<compile_context>
chip_gen: v7x
topology: tpu7x:2x2x1
jax: 0.10.0
libtpu: 0.0.40
codegen_flags: <defaults>
</compile_context>

<pallas_src>
import jax
import jax.numpy as jnp
from jax.experimental import pallas as pl
from jax.experimental.pallas import tpu as pltpu

CP = 128   # every conv channel dim padded to 128 -> lane-dense matmuls
K1 = 128   # conv1 im2col contraction dim (9 * Cin, padded to 128)


def _round_up(x, m):
    return (x + m - 1) // m * m


# ---------------------------------------------------------------------------
# In-kernel building blocks
# ---------------------------------------------------------------------------
def _zero_halo(buf, hin, win):
    """Zero only the halo of a padded activation buffer.

    buf: (nb, hin+2, wpad, CP); interior lives at [1:1+hin, 2:2+win].
    The interior is fully rewritten every grid step, so only the halo needs
    zeroing.  Column stores use even offsets/widths -> bf16-packing aligned.
    """
    nb, hbuf, wpad, cp = buf.shape
    zrow = jnp.zeros((nb, 1, wpad, cp), buf.dtype)
    buf[:, 0:1, :, :] = zrow                                      # top halo row
    buf[:, hin + 1:hin + 2, :, :] = zrow                          # bottom halo row
    buf[:, :, 0:2, :] = jnp.zeros((nb, hbuf, 2, cp), buf.dtype)   # left halo cols
    if wpad > win + 2:                                            # right halo cols
        buf[:, :, win + 2:wpad, :] = jnp.zeros(
            (nb, hbuf, wpad - win - 2, cp), buf.dtype)


def _conv3x3(in_ref, nb, hout, wout, w_ref, b_ref):
    """3x3 'same' conv on a zero-halo bf16 VMEM buffer via 9 shifted matmuls.

    in_ref : (nb, hout+2, wpad, CP) bf16, interior at [1:1+hout, 2:2+wout]
    w_ref  : (9, CP, CP) bf16 taps ordered kh*3+kw; b_ref: (1, CP) f32
    returns: (nb, hout, wout, CP) f32 (bias added, no activation)
    """
    _, _, wpad, cp = in_ref.shape
    m = nb * hout
    acc = None
    for dh in range(3):
        rows = in_ref[:, dh:dh + hout, :, :]          # aligned slab load (bf16)
        lhs = rows.reshape(m * wpad, cp)              # free reshape (wpad % 8 == 0)
        for dw in range(3):
            y = jnp.dot(lhs, w_ref[dh * 3 + dw],
                        preferred_element_type=jnp.float32)
            contrib = y.reshape(m, wpad, cp)[:, 1 + dw:1 + dw + wout, :]
            acc = contrib if acc is None else acc + contrib
    acc = acc + b_ref[...].reshape(1, 1, cp)
    return acc.reshape(nb, hout, wout, cp)


def _maxpool2x2(y, tmp_ref):
    """Fused 2x2 max-pool: row pairs via a free untiled reshape, column pairs
    via one small f32 VMEM temp + strided pl.ds reads (known-good lowering)."""
    nb, hout, wout, cp = y.shape
    ho, wo = hout // 2, wout // 2
    y5 = y.reshape(nb, ho, 2, wout, cp)
    tmp_ref[...] = jnp.maximum(y5[:, :, 0, :, :], y5[:, :, 1, :, :])
    even = tmp_ref[:, :, pl.ds(0, wo, 2), :]
    odd = tmp_ref[:, :, pl.ds(1, wo, 2), :]
    return jnp.maximum(even, odd)                     # (nb, ho, wo, cp) f32


def _make_kernel(nb, h, w):
    h2, w2, h3, w3 = h // 2, w // 2, h // 4, w // 4

    def kernel(x_ref, w1r, b1r, w2r, b2r, w3r, b3r, w4r, b4r, w5r, b5r,
               w6r, b6r, out_ref, s1, sA, sB, pt1, pt2):
        # Halo-only zeroing (interiors are fully rewritten each step).
        _zero_halo(s1, h2, w2)
        _zero_halo(sA, h3, w3)
        _zero_halo(sB, h3, w3)

        # conv1: host-side im2col -> ONE (nb*h*w, 128)x(128,128) matmul + ReLU
        lhs1 = x_ref[...].reshape(nb * h * w, K1)
        y = jnp.dot(lhs1, w1r[...], preferred_element_type=jnp.float32)
        y = jnp.maximum(y + b1r[...], 0.0).reshape(nb, h, w, CP)
        s1[:, 1:1 + h2, 2:2 + w2, :] = _maxpool2x2(y, pt1).astype(s1.dtype)

        # conv2 (3x3, pad 1) + ReLU + 2x2 max-pool
        y = jnp.maximum(_conv3x3(s1, nb, h2, w2, w2r, b2r), 0.0)
        sA[:, 1:1 + h3, 2:2 + w3, :] = _maxpool2x2(y, pt2).astype(sA.dtype)

        # conv3 (3x3, pad 1) + ReLU
        y = jnp.maximum(_conv3x3(sA, nb, h3, w3, w3r, b3r), 0.0)
        sB[:, 1:1 + h3, 2:2 + w3, :] = y.astype(sB.dtype)

        # conv4: ConvTranspose2d(3x3, s=1, p=1) == conv(flipped W, pad 1) + ReLU
        y = jnp.maximum(_conv3x3(sB, nb, h3, w3, w4r, b4r), 0.0)
        sA[:, 1:1 + h3, 2:2 + w3, :] = y.astype(sA.dtype)

        # conv5: ConvTranspose2d(3x3, s=1, p=1) == conv(flipped W, pad 1) + ReLU
        y = jnp.maximum(_conv3x3(sA, nb, h3, w3, w5r, b5r), 0.0)
        sB[:, 1:1 + h3, 2:2 + w3, :] = y.astype(sB.dtype)

        # conv6: 1x1 ConvTranspose == 1x1 conv, + sigmoid (full-width aligned read)
        rows = sB[:, 1:1 + h3, :, :]                  # (nb, h3, wp3, CP) bf16
        wp3 = rows.shape[2]
        lhs6 = rows.reshape(nb * h3 * wp3, CP)
        y = jnp.dot(lhs6, w6r[...], preferred_element_type=jnp.float32)
        y = jax.nn.sigmoid(y + b6r[...]).reshape(nb * h3, wp3, CP)
        out_ref[...] = y[:, 2:2 + w3, :].reshape(nb, h3, w3, CP)

    return kernel


# ---------------------------------------------------------------------------
# Wrapper (NCHW in/out, PyTorch-layout params)
# ---------------------------------------------------------------------------
def _prepare_params(params):
    """torch-layout params -> padded bf16 kernel operands + f32 biases."""
    def conv_taps(w_oihw):                 # nn.Conv2d weight (Cout, Cin, KH, KW)
        co, ci, kh, kw = w_oihw.shape
        return jnp.transpose(w_oihw, (2, 3, 1, 0)).reshape(kh * kw, ci, co)

    def convT_taps(w_iohw):                # nn.ConvTranspose2d (Cin, Cout, KH, KW), s=1
        ci, co, kh, kw = w_iohw.shape
        wf = w_iohw[:, :, ::-1, ::-1]      # flip spatial, swap in/out channels
        return jnp.transpose(wf, (2, 3, 0, 1)).reshape(kh * kw, ci, co)

    def pad_taps(t):
        n, ci, co = t.shape
        return jnp.pad(t, ((0, 0), (0, CP - ci), (0, CP - co))).astype(jnp.bfloat16)

    def pad_b(b):
        return jnp.pad(b, (0, CP - b.shape[0])).reshape(1, CP).astype(jnp.float32)

    # conv1: 9 taps packed into the contraction dim (matches host-side im2col).
    w1 = params["conv1_w"]
    co1, ci1 = w1.shape[0], w1.shape[1]
    w1p = jnp.transpose(w1, (2, 3, 1, 0)).reshape(9 * ci1, co1)
    w1p = jnp.pad(w1p, ((0, K1 - 9 * ci1), (0, CP - co1))).astype(jnp.bfloat16)

    # conv6: 1x1 ConvTranspose -> plain (Cin, Cout) matrix.
    w6 = params["conv6_w"][:, :, 0, 0]
    w6p = jnp.pad(w6, ((0, CP - w6.shape[0]),
                       (0, CP - w6.shape[1]))).astype(jnp.bfloat16)

    return (
        w1p, pad_b(params["conv1_b"]),
        pad_taps(conv_taps(params["conv2_w"])), pad_b(params["conv2_b"]),
        pad_taps(conv_taps(params["conv3_w"])), pad_b(params["conv3_b"]),
        pad_taps(convT_taps(params["conv4_w"])), pad_b(params["conv4_b"]),
        pad_taps(convT_taps(params["conv5_w"])), pad_b(params["conv5_b"]),
        w6p, pad_b(params["conv6_b"]),
    )


def _im2col_conv1(x_nchw):
    """Host/XLA-side im2col for conv1: (B,C,H,W) -> (B,H,W,128) bf16."""
    b, c, h, w = x_nchw.shape
    x = jnp.transpose(x_nchw, (0, 2, 3, 1))
    xp = jnp.pad(x, ((0, 0), (1, 1), (1, 1), (0, 0)))
    cols = [xp[:, dh:dh + h, dw:dw + w, :] for dh in range(3) for dw in range(3)]
    im = jnp.concatenate(cols, axis=-1)                 # (B, H, W, 9*C)
    im = jnp.pad(im, ((0, 0), (0, 0), (0, 0), (0, K1 - 9 * c)))
    return im.astype(jnp.bfloat16)


def basic_fcn_forward(prepared, x_nchw, images_per_step=None):
    b, c, h, w = x_nchw.shape
    assert h % 4 == 0 and w % 4 == 0, "spatial dims must be divisible by 4"
    assert 9 * c <= K1, "input_channels too large for packed conv1 im2col"
    # Default keeps >= 2 grid steps so both v7x TensorCores get work; on
    # single-TC chips (v5e/v6e) pass images_per_step=b to fold the batch.
    nb = images_per_step if images_per_step is not None else max(1, b // 2)
    assert b % nb == 0
    h2, w2, h3, w3 = h // 2, w // 2, h // 4, w // 4
    wp2 = _round_up(w2 + 3, 8)
    wp3 = _round_up(w3 + 3, 8)

    xcol = _im2col_conv1(x_nchw)

    in_specs = [pl.BlockSpec((nb, h, w, K1), lambda i: (i, 0, 0, 0)),
                pl.BlockSpec((K1, CP), lambda i: (0, 0)),
                pl.BlockSpec((1, CP), lambda i: (0, 0))]
    for _ in range(4):                                   # conv2..conv5
        in_specs += [pl.BlockSpec((9, CP, CP), lambda i: (0, 0, 0)),
                     pl.BlockSpec((1, CP), lambda i: (0, 0))]
    in_specs += [pl.BlockSpec((CP, CP), lambda i: (0, 0)),
                 pl.BlockSpec((1, CP), lambda i: (0, 0))]

    out = pl.pallas_call(
        _make_kernel(nb, h, w),
        out_shape=jax.ShapeDtypeStruct((b, h3, w3, CP), jnp.float32),
        grid=(b // nb,),
        in_specs=in_specs,
        out_specs=pl.BlockSpec((nb, h3, w3, CP), lambda i: (i, 0, 0, 0)),
        scratch_shapes=[
            pltpu.VMEM((nb, h2 + 2, wp2, CP), jnp.bfloat16),  # s1: pool1 out
            pltpu.VMEM((nb, h3 + 2, wp3, CP), jnp.bfloat16),  # sA: ping buffer
            pltpu.VMEM((nb, h3 + 2, wp3, CP), jnp.bfloat16),  # sB: pong buffer
            pltpu.VMEM((nb, h2, w, CP), jnp.float32),         # pt1: pool1 row-max
            pltpu.VMEM((nb, h3, w2, CP), jnp.float32),        # pt2: pool2 row-max
        ],
        compiler_params=pltpu.CompilerParams(
            dimension_semantics=("parallel",)),
    )(xcol, *prepared)

    out = out[:, :, :, :c]                               # drop channel padding
    return jnp.transpose(out, (0, 3, 1, 2))              # NHWC -> NCHW


# ---------------------------------------------------------------------------
# Deterministic synthetic parameters (PyTorch layouts)
# ---------------------------------------------------------------------------
def init_params(key, cin):
    ks = jax.random.split(key, 12)

    def u(k, shape, fan_in):
        bound = 1.0 / (fan_in ** 0.5)
        return jax.random.uniform(k, shape, jnp.float32, -bound, bound)

    return {
        # nn.Conv2d weights: (Cout, Cin, KH, KW)
        "conv1_w": u(ks[0], (32, cin, 3, 3), cin * 9),
        "conv1_b": u(ks[1], (32,), cin * 9),
        "conv2_w": u(ks[2], (64, 32, 3, 3), 32 * 9),
        "conv2_b": u(ks[3], (64,), 32 * 9),
        "conv3_w": u(ks[4], (128, 64, 3, 3), 64 * 9),
        "conv3_b": u(ks[5], (128,), 64 * 9),
        # nn.ConvTranspose2d weights: (Cin, Cout, KH, KW)
        "conv4_w": u(ks[6], (128, 64, 3, 3), 128 * 9),
        "conv4_b": u(ks[7], (64,), 128 * 9),
        "conv5_w": u(ks[8], (64, 32, 3, 3), 64 * 9),
        "conv5_b": u(ks[9], (32,), 64 * 9),
        "conv6_w": u(ks[10], (32, cin, 1, 1), 32),
        "conv6_b": u(ks[11], (cin,), 32),
    }


# ---------------------------------------------------------------------------
# Pure-JAX reference with PyTorch semantics (for correctness checking)
# ---------------------------------------------------------------------------
def _ref_forward(params, x_nchw, dot_dtype=jnp.float32):
    dn = ("NHWC", "HWIO", "NHWC")

    def conv(x, w_hwio, bias, pad, act):
        y = jax.lax.conv_general_dilated(
            x.astype(dot_dtype), w_hwio.astype(dot_dtype), (1, 1),
            [(pad, pad), (pad, pad)], dimension_numbers=dn,
            preferred_element_type=jnp.float32)
        y = y + bias
        return jnp.maximum(y, 0.0) if act == "relu" else jax.nn.sigmoid(y)

    def pool(x):
        return jax.lax.reduce_window(x, -jnp.inf, jax.lax.max,
                                     (1, 2, 2, 1), (1, 2, 2, 1), "VALID")

    def conv_hwio(w_oihw):
        return jnp.transpose(w_oihw, (2, 3, 1, 0))

    def convT_hwio(w_iohw):  # stride-1 ConvT == conv(flipped, swapped), pad = K-1-p
        return jnp.transpose(w_iohw[:, :, ::-1, ::-1], (2, 3, 0, 1))

    x = jnp.transpose(x_nchw, (0, 2, 3, 1))
    x = conv(x, conv_hwio(params["conv1_w"]), params["conv1_b"], 1, "relu")
    x = pool(x)
    x = conv(x, conv_hwio(params["conv2_w"]), params["conv2_b"], 1, "relu")
    x = pool(x)
    x = conv(x, conv_hwio(params["conv3_w"]), params["conv3_b"], 1, "relu")
    x = conv(x, convT_hwio(params["conv4_w"]), params["conv4_b"], 1, "relu")
    x = conv(x, convT_hwio(params["conv5_w"]), params["conv5_b"], 1, "relu")
    x = conv(x, convT_hwio(params["conv6_w"]), params["conv6_b"], 0, "sigmoid")
    return jnp.transpose(x, (0, 3, 1, 2))


if __name__ == "__main__":
    key = jax.random.PRNGKey(0)
    k_param, k_x = jax.random.split(key)
    input_channels = 4
    B, H, W = 2, 16, 16

    params = init_params(k_param, input_channels)
    prepared = _prepare_params(params)
    x = jax.random.normal(k_x, (B, input_channels, H, W), jnp.float32)

    out = jax.jit(basic_fcn_forward)(prepared, x)
    out = jax.block_until_ready(out)

    # Two 2x2 max-pools + stride-1 (transposed) convs: 16x16 -> 4x4 spatially.
    assert out.shape == (B, input_channels, H // 4, W // 4), out.shape

    # Apples-to-apples: reference also rounds activations/weights to bf16.
    ref_bf16 = _ref_forward(params, x, jnp.bfloat16)
    err_bf16 = float(jnp.max(jnp.abs(out - ref_bf16)))
    assert err_bf16 < 1e-2, err_bf16

    # Sanity check against exact f32 PyTorch semantics (bf16 noise only).
    ref_f32 = _ref_forward(params, x, jnp.float32)
    err_f32 = float(jnp.max(jnp.abs(out - ref_f32)))
    assert err_f32 < 6e-2, err_f32

    print("KERNEL_OK")
</pallas_src>

<mosaic_0001>
module attributes {stable_mosaic.version = 11 : i64} {
  func.func @kernel(%arg0: i32, %arg1: memref<1x16x16x128xbf16, #tpu.memory_space<vmem>>, %arg2: memref<128x128xbf16, #tpu.memory_space<vmem>>, %arg3: memref<1x128xf32, #tpu.memory_space<vmem>>, %arg4: memref<9x128x128xbf16, #tpu.memory_space<vmem>>, %arg5: memref<1x128xf32, #tpu.memory_space<vmem>>, %arg6: memref<9x128x128xbf16, #tpu.memory_space<vmem>>, %arg7: memref<1x128xf32, #tpu.memory_space<vmem>>, %arg8: memref<9x128x128xbf16, #tpu.memory_space<vmem>>, %arg9: memref<1x128xf32, #tpu.memory_space<vmem>>, %arg10: memref<9x128x128xbf16, #tpu.memory_space<vmem>>, %arg11: memref<1x128xf32, #tpu.memory_space<vmem>>, %arg12: memref<128x128xbf16, #tpu.memory_space<vmem>>, %arg13: memref<1x128xf32, #tpu.memory_space<vmem>>, %arg14: memref<1x4x4x128xf32, #tpu.memory_space<vmem>>, %arg15: memref<1x10x16x128xbf16, #tpu.memory_space<vmem>>, %arg16: memref<1x6x8x128xbf16, #tpu.memory_space<vmem>>, %arg17: memref<1x6x8x128xbf16, #tpu.memory_space<vmem>>, %arg18: memref<1x8x16x128xf32, #tpu.memory_space<vmem>>, %arg19: memref<1x4x8x128xf32, #tpu.memory_space<vmem>>) attributes {dimension_semantics = [#tpu.dimension_semantics<parallel>], iteration_bounds = array<i64: 2>, scalar_prefetch = 0 : i64, scratch_operands = 5 : i64, tpu.core_type = #tpu.core_type<tc>, window_params = [{transform_indices = @transform_0, window_bounds = array<i64: 1, 16, 16, 128>}, {pipeline_mode = #tpu.pipeline_mode<synchronous>, transform_indices = @transform_1, window_bounds = array<i64: 128, 128>}, {pipeline_mode = #tpu.pipeline_mode<synchronous>, transform_indices = @transform_2, window_bounds = array<i64: 1, 128>}, {pipeline_mode = #tpu.pipeline_mode<synchronous>, transform_indices = @transform_3, window_bounds = array<i64: 9, 128, 128>}, {pipeline_mode = #tpu.pipeline_mode<synchronous>, transform_indices = @transform_4, window_bounds = array<i64: 1, 128>}, {pipeline_mode = #tpu.pipeline_mode<synchronous>, transform_indices = @transform_5, window_bounds = array<i64: 9, 128, 128>}, {pipeline_mode = #tpu.pipeline_mode<synchronous>, transform_indices = @transform_6, window_bounds = array<i64: 1, 128>}, {pipeline_mode = #tpu.pipeline_mode<synchronous>, transform_indices = @transform_7, window_bounds = array<i64: 9, 128, 128>}, {pipeline_mode = #tpu.pipeline_mode<synchronous>, transform_indices = @transform_8, window_bounds = array<i64: 1, 128>}, {pipeline_mode = #tpu.pipeline_mode<synchronous>, transform_indices = @transform_9, window_bounds = array<i64: 9, 128, 128>}, {pipeline_mode = #tpu.pipeline_mode<synchronous>, transform_indices = @transform_10, window_bounds = array<i64: 1, 128>}, {pipeline_mode = #tpu.pipeline_mode<synchronous>, transform_indices = @transform_11, window_bounds = array<i64: 128, 128>}, {pipeline_mode = #tpu.pipeline_mode<synchronous>, transform_indices = @transform_12, window_bounds = array<i64: 1, 128>}, {transform_indices = @transform_13, window_bounds = array<i64: 1, 4, 4, 128>}]} {
    %cst = arith.constant 0.000000e+00 : bf16
    %0 = vector.broadcast %cst : bf16 to vector<1x1x16x128xbf16>
    %c0 = arith.constant 0 : index
    %c0_0 = arith.constant 0 : index
    %c0_1 = arith.constant 0 : index
    %c0_2 = arith.constant 0 : index
    %1 = vector.load %arg15[%c0, %c0_0, %c0_1, %c0_2] : memref<1x10x16x128xbf16, #tpu.memory_space<vmem>>, vector<1x1x16x128xbf16>
    tpu.vector_store %arg15[%c0, %c0_0, %c0_1, %c0_2], %0 {strides = array<i32>} : memref<1x10x16x128xbf16, #tpu.memory_space<vmem>>, vector<1x1x16x128xbf16>,
    %c0_3 = arith.constant 0 : index
    %c9 = arith.constant 9 : index
    %c0_4 = arith.constant 0 : index
    %c0_5 = arith.constant 0 : index
    %2 = vector.load %arg15[%c0_3, %c9, %c0_4, %c0_5] : memref<1x10x16x128xbf16, #tpu.memory_space<vmem>>, vector<1x1x16x128xbf16>
    tpu.vector_store %arg15[%c0_3, %c9, %c0_4, %c0_5], %0 {strides = array<i32>} : memref<1x10x16x128xbf16, #tpu.memory_space<vmem>>, vector<1x1x16x128xbf16>,
    %cst_6 = arith.constant 0.000000e+00 : bf16
    %3 = vector.broadcast %cst_6 : bf16 to vector<1x10x2x128xbf16>
    %c0_7 = arith.constant 0 : index
    %c0_8 = arith.constant 0 : index
    %c0_9 = arith.constant 0 : index
    %c0_10 = arith.constant 0 : index
    %4 = vector.load %arg15[%c0_7, %c0_8, %c0_9, %c0_10] : memref<1x10x16x128xbf16, #tpu.memory_space<vmem>>, vector<1x10x2x128xbf16>
    tpu.vector_store %arg15[%c0_7, %c0_8, %c0_9, %c0_10], %3 {strides = array<i32>} : memref<1x10x16x128xbf16, #tpu.memory_space<vmem>>, vector<1x10x2x128xbf16>,
    %cst_11 = arith.constant 0.000000e+00 : bf16
    %5 = vector.broadcast %cst_11 : bf16 to vector<1x10x6x128xbf16>
    %c0_12 = arith.constant 0 : index
    %c0_13 = arith.constant 0 : index
    %c10 = arith.constant 10 : index
    %c0_14 = arith.constant 0 : index
    %6 = vector.load %arg15[%c0_12, %c0_13, %c10, %c0_14] : memref<1x10x16x128xbf16, #tpu.memory_space<vmem>>, vector<1x10x6x128xbf16>
    tpu.vector_store %arg15[%c0_12, %c0_13, %c10, %c0_14], %5 {strides = array<i32>} : memref<1x10x16x128xbf16, #tpu.memory_space<vmem>>, vector<1x10x6x128xbf16>,
    %cst_15 = arith.constant 0.000000e+00 : bf16
    %7 = vector.broadcast %cst_15 : bf16 to vector<1x1x8x128xbf16>
    %c0_16 = arith.constant 0 : index
    %c0_17 = arith.constant 0 : index
    %c0_18 = arith.constant 0 : index
    %c0_19 = arith.constant 0 : index
    %8 = vector.load %arg16[%c0_16, %c0_17, %c0_18, %c0_19] : memref<1x6x8x128xbf16, #tpu.memory_space<vmem>>, vector<1x1x8x128xbf16>
    tpu.vector_store %arg16[%c0_16, %c0_17, %c0_18, %c0_19], %7 {strides = array<i32>} : memref<1x6x8x128xbf16, #tpu.memory_space<vmem>>, vector<1x1x8x128xbf16>,
    %c0_20 = arith.constant 0 : index
    %c5 = arith.constant 5 : index
    %c0_21 = arith.constant 0 : index
    %c0_22 = arith.constant 0 : index
    %9 = vector.load %arg16[%c0_20, %c5, %c0_21, %c0_22] : memref<1x6x8x128xbf16, #tpu.memory_space<vmem>>, vector<1x1x8x128xbf16>
    tpu.vector_store %arg16[%c0_20, %c5, %c0_21, %c0_22], %7 {strides = array<i32>} : memref<1x6x8x128xbf16, #tpu.memory_space<vmem>>, vector<1x1x8x128xbf16>,
    %cst_23 = arith.constant 0.000000e+00 : bf16
    %10 = vector.broadcast %cst_23 : bf16 to vector<1x6x2x128xbf16>
    %c0_24 = arith.constant 0 : index
    %c0_25 = arith.constant 0 : index
    %c0_26 = arith.constant 0 : index
    %c0_27 = arith.constant 0 : index
    %11 = vector.load %arg16[%c0_24, %c0_25, %c0_26, %c0_27] : memref<1x6x8x128xbf16, #tpu.memory_space<vmem>>, vector<1x6x2x128xbf16>
    tpu.vector_store %arg16[%c0_24, %c0_25, %c0_26, %c0_27], %10 {strides = array<i32>} : memref<1x6x8x128xbf16, #tpu.memory_space<vmem>>, vector<1x6x2x128xbf16>,
    %cst_28 = arith.constant 0.000000e+00 : bf16
    %12 = vector.broadcast %cst_28 : bf16 to vector<1x6x2x128xbf16>
    %c0_29 = arith.constant 0 : index
    %c0_30 = arith.constant 0 : index
    %c6 = arith.constant 6 : index
    %c0_31 = arith.constant 0 : index
    %13 = vector.load %arg16[%c0_29, %c0_30, %c6, %c0_31] : memref<1x6x8x128xbf16, #tpu.memory_space<vmem>>, vector<1x6x2x128xbf16>
    tpu.vector_store %arg16[%c0_29, %c0_30, %c6, %c0_31], %12 {strides = array<i32>} : memref<1x6x8x128xbf16, #tpu.memory_space<vmem>>, vector<1x6x2x128xbf16>,
    %cst_32 = arith.constant 0.000000e+00 : bf16
    %14 = vector.broadcast %cst_32 : bf16 to vector<1x1x8x128xbf16>
    %c0_33 = arith.constant 0 : index
    %c0_34 = arith.constant 0 : index
    %c0_35 = arith.constant 0 : index
    %c0_36 = arith.constant 0 : index
    %15 = vector.load %arg17[%c0_33, %c0_34, %c0_35, %c0_36] : memref<1x6x8x128xbf16, #tpu.memory_space<vmem>>, vector<1x1x8x128xbf16>
    tpu.vector_store %arg17[%c0_33, %c0_34, %c0_35, %c0_36], %14 {strides = array<i32>} : memref<1x6x8x128xbf16, #tpu.memory_space<vmem>>, vector<1x1x8x128xbf16>,
    %c0_37 = arith.constant 0 : index
    %c5_38 = arith.constant 5 : index
    %c0_39 = arith.constant 0 : index
    %c0_40 = arith.constant 0 : index
    %16 = vector.load %arg17[%c0_37, %c5_38, %c0_39, %c0_40] : memref<1x6x8x128xbf16, #tpu.memory_space<vmem>>, vector<1x1x8x128xbf16>
    tpu.vector_store %arg17[%c0_37, %c5_38, %c0_39, %c0_40], %14 {strides = array<i32>} : memref<1x6x8x128xbf16, #tpu.memory_space<vmem>>, vector<1x1x8x128xbf16>,
    %cst_41 = arith.constant 0.000000e+00 : bf16
    %17 = vector.broadcast %cst_41 : bf16 to vector<1x6x2x128xbf16>
    %c0_42 = arith.constant 0 : index
    %c0_43 = arith.constant 0 : index
    %c0_44 = arith.constant 0 : index
    %c0_45 = arith.constant 0 : index
    %18 = vector.load %arg17[%c0_42, %c0_43, %c0_44, %c0_45] : memref<1x6x8x128xbf16, #tpu.memory_space<vmem>>, vector<1x6x2x128xbf16>
    tpu.vector_store %arg17[%c0_42, %c0_43, %c0_44, %c0_45], %17 {strides = array<i32>} : memref<1x6x8x128xbf16, #tpu.memory_space<vmem>>, vector<1x6x2x128xbf16>,
    %cst_46 = arith.constant 0.000000e+00 : bf16
    %19 = vector.broadcast %cst_46 : bf16 to vector<1x6x2x128xbf16>
    %c0_47 = arith.constant 0 : index
    %c0_48 = arith.constant 0 : index
    %c6_49 = arith.constant 6 : index
    %c0_50 = arith.constant 0 : index
    %20 = vector.load %arg17[%c0_47, %c0_48, %c6_49, %c0_50] : memref<1x6x8x128xbf16, #tpu.memory_space<vmem>>, vector<1x6x2x128xbf16>
    tpu.vector_store %arg17[%c0_47, %c0_48, %c6_49, %c0_50], %19 {strides = array<i32>} : memref<1x6x8x128xbf16, #tpu.memory_space<vmem>>, vector<1x6x2x128xbf16>,
    %c0_51 = arith.constant 0 : index
    %c0_52 = arith.constant 0 : index
    %c0_53 = arith.constant 0 : index
    %c0_54 = arith.constant 0 : index
    %21 = vector.load %arg1[%c0_51, %c0_52, %c0_53, %c0_54] : memref<1x16x16x128xbf16, #tpu.memory_space<vmem>>, vector<1x16x16x128xbf16>
    %22 = vector.shape_cast %21 : vector<1x16x16x128xbf16> to vector<256x128xbf16>
    %c0_55 = arith.constant 0 : index
    %c0_56 = arith.constant 0 : index
    %23 = vector.load %arg2[%c0_55, %c0_56] : memref<128x128xbf16, #tpu.memory_space<vmem>>, vector<128x128xbf16>
    %cst_57 = arith.constant dense<0.000000e+00> : vector<256x128xf32>
    %24 = tpu.matmul %22, %23, %cst_57 {dimension_numbers = #tpu.dot_dimension_numbers<[1], [0], [0], [1], [0, 0, 1, 1], [], []>} : vector<256x128xbf16>, vector<128x128xbf16>, vector<256x128xf32> -> vector<256x128xf32>
    %c0_58 = arith.constant 0 : index
    %c0_59 = arith.constant 0 : index
    %25 = vector.load %arg3[%c0_58, %c0_59] : memref<1x128xf32, #tpu.memory_space<vmem>>, vector<1x128xf32>
    %26 = vector.broadcast %25 : vector<1x128xf32> to vector<256x128xf32>
    %27 = arith.addf %24, %26 : vector<256x128xf32>
    %cst_60 = arith.constant 0.000000e+00 : f32
    %28 = vector.broadcast %cst_60 : f32 to vector<256x128xf32>
    %29 = arith.maximumf %27, %28 : vector<256x128xf32>
    %30 = vector.shape_cast %29 : vector<256x128xf32> to vector<1x16x16x128xf32>
    %31 = vector.shape_cast %30 : vector<1x16x16x128xf32> to vector<1x8x2x16x128xf32>
    %32 = vector.extract_strided_slice %31 {offsets = [0, 0, 0, 0, 0], sizes = [1, 8, 1, 16, 128], strides = [1, 1, 1, 1, 1]} : vector<1x8x2x16x128xf32> to vector<1x8x1x16x128xf32>
    %33 = vector.shape_cast %32 : vector<1x8x1x16x128xf32> to vector<1x8x16x128xf32>
    %34 = vector.extract_strided_slice %31 {offsets = [0, 0, 1, 0, 0], sizes = [1, 8, 1, 16, 128], strides = [1, 1, 1, 1, 1]} : vector<1x8x2x16x128xf32> to vector<1x8x1x16x128xf32>
    %35 = vector.shape_cast %34 : vector<1x8x1x16x128xf32> to vector<1x8x16x128xf32>
    %36 = arith.maximumf %33, %35 : vector<1x8x16x128xf32>
    %c0_61 = arith.constant 0 : index
    %c0_62 = arith.constant 0 : index
    %c0_63 = arith.constant 0 : index
    %c0_64 = arith.constant 0 : index
    %37 = vector.load %arg18[%c0_61, %c0_62, %c0_63, %c0_64] : memref<1x8x16x128xf32, #tpu.memory_space<vmem>>, vector<1x8x16x128xf32>
    tpu.vector_store %arg18[%c0_61, %c0_62, %c0_63, %c0_64], %36 {strides = array<i32>} : memref<1x8x16x128xf32, #tpu.memory_space<vmem>>, vector<1x8x16x128xf32>,
    %c0_65 = arith.constant 0 : index
    %c0_66 = arith.constant 0 : index
    %c0_67 = arith.constant 0 : index
    %c0_68 = arith.constant 0 : index
    %38 = tpu.strided_load %arg18[%c0_65, %c0_66, %c0_67, %c0_68] {strides = array<i32: 1, 1, 2, 1>} : memref<1x8x16x128xf32, #tpu.memory_space<vmem>>, vector<1x8x8x128xf32>
    %c0_69 = arith.constant 0 : index
    %c0_70 = arith.constant 0 : index
    %c1 = arith.constant 1 : index
    %c0_71 = arith.constant 0 : index
    %39 = tpu.strided_load %arg18[%c0_69, %c0_70, %c1, %c0_71] {strides = array<i32: 1, 1, 2, 1>} : memref<1x8x16x128xf32, #tpu.memory_space<vmem>>, vector<1x8x8x128xf32>
    %40 = arith.maximumf %38, %39 : vector<1x8x8x128xf32>
    %41 = arith.truncf %40 : vector<1x8x8x128xf32> to vector<1x8x8x128xbf16>
    %c0_72 = arith.constant 0 : index
    %c1_73 = arith.constant 1 : index
    %c2 = arith.constant 2 : index
    %c0_74 = arith.constant 0 : index
    %42 = vector.load %arg15[%c0_72, %c1_73, %c2, %c0_74] : memref<1x10x16x128xbf16, #tpu.memory_space<vmem>>, vector<1x8x8x128xbf16>
    tpu.vector_store %arg15[%c0_72, %c1_73, %c2, %c0_74], %41 {strides = array<i32>} : memref<1x10x16x128xbf16, #tpu.memory_space<vmem>>, vector<1x8x8x128xbf16>,
    %c0_75 = arith.constant 0 : index
    %c0_76 = arith.constant 0 : index
    %c0_77 = arith.constant 0 : index
    %c0_78 = arith.constant 0 : index
    %43 = vector.load %arg15[%c0_75, %c0_76, %c0_77, %c0_78] : memref<1x10x16x128xbf16, #tpu.memory_space<vmem>>, vector<1x8x16x128xbf16>
    %44 = vector.shape_cast %43 : vector<1x8x16x128xbf16> to vector<128x128xbf16>
    %c0_79 = arith.constant 0 : index
    %c0_80 = arith.constant 0 : index
    %c0_81 = arith.constant 0 : index
    %45 = vector.load %arg4[%c0_79, %c0_80, %c0_81] : memref<9x128x128xbf16, #tpu.memory_space<vmem>>, vector<1x128x128xbf16>
    %46 = vector.shape_cast %45 : vector<1x128x128xbf16> to vector<128x128xbf16>
    %cst_82 = arith.constant dense<0.000000e+00> : vector<128x128xf32>
    %47 = tpu.matmul %44, %46, %cst_82 {dimension_numbers = #tpu.dot_dimension_numbers<[1], [0], [0], [1], [0, 0, 1, 1], [], []>} : vector<128x128xbf16>, vector<128x128xbf16>, vector<128x128xf32> -> vector<128x128xf32>
    %48 = vector.shape_cast %47 : vector<128x128xf32> to vector<8x16x128xf32>
    %49 = vector.extract_strided_slice %48 {offsets = [0, 1, 0], sizes = [8, 8, 128], strides = [1, 1, 1]} : vector<8x16x128xf32> to vector<8x8x128xf32>
    %c1_83 = arith.constant 1 : index
    %c0_84 = arith.constant 0 : index
    %c0_85 = arith.constant 0 : index
    %50 = vector.load %arg4[%c1_83, %c0_84, %c0_85] : memref<9x128x128xbf16, #tpu.memory_space<vmem>>, vector<1x128x128xbf16>
    %51 = vector.shape_cast %50 : vector<1x128x128xbf16> to vector<128x128xbf16>
    %cst_86 = arith.constant dense<0.000000e+00> : vector<128x128xf32>
    %52 = tpu.matmul %44, %51, %cst_86 {dimension_numbers = #tpu.dot_dimension_numbers<[1], [0], [0], [1], [0, 0, 1, 1], [], []>} : vector<128x128xbf16>, vector<128x128xbf16>, vector<128x128xf32> -> vector<128x128xf32>
    %53 = vector.shape_cast %52 : vector<128x128xf32> to vector<8x16x128xf32>
    %54 = vector.extract_strided_slice %53 {offsets = [0, 2, 0], sizes = [8, 8, 128], strides = [1, 1, 1]} : vector<8x16x128xf32> to vector<8x8x128xf32>
    %55 = arith.addf %49, %54 : vector<8x8x128xf32>
    %c2_87 = arith.constant 2 : index
    %c0_88 = arith.constant 0 : index
    %c0_89 = arith.constant 0 : index
    %56 = vector.load %arg4[%c2_87, %c0_88, %c0_89] : memref<9x128x128xbf16, #tpu.memory_space<vmem>>, vector<1x128x128xbf16>
    %57 = vector.shape_cast %56 : vector<1x128x128xbf16> to vector<128x128xbf16>
    %cst_90 = arith.constant dense<0.000000e+00> : vector<128x128xf32>
    %58 = tpu.matmul %44, %57, %cst_90 {dimension_numbers = #tpu.dot_dimension_numbers<[1], [0], [0], [1], [0, 0, 1, 1], [], []>} : vector<128x128xbf16>, vector<128x128xbf16>, vector<128x128xf32> -> vector<128x128xf32>
    %59 = vector.shape_cast %58 : vector<128x128xf32> to vector<8x16x128xf32>
    %60 = vector.extract_strided_slice %59 {offsets = [0, 3, 0], sizes = [8, 8, 128], strides = [1, 1, 1]} : vector<8x16x128xf32> to vector<8x8x128xf32>
    %61 = arith.addf %55, %60 : vector<8x8x128xf32>
    %c0_91 = arith.constant 0 : index
    %c1_92 = arith.constant 1 : index
    %c0_93 = arith.constant 0 : index
    %c0_94 = arith.constant 0 : index
    %62 = vector.load %arg15[%c0_91, %c1_92, %c0_93, %c0_94] : memref<1x10x16x128xbf16, #tpu.memory_space<vmem>>, vector<1x8x16x128xbf16>
    %63 = vector.shape_cast %62 : vector<1x8x16x128xbf16> to vector<128x128xbf16>
    %c3 = arith.constant 3 : index
    %c0_95 = arith.constant 0 : index
    %c0_96 = arith.constant 0 : index
    %64 = vector.load %arg4[%c3, %c0_95, %c0_96] : memref<9x128x128xbf16, #tpu.memory_space<vmem>>, vector<1x128x128xbf16>
    %65 = vector.shape_cast %64 : vector<1x128x128xbf16> to vector<128x128xbf16>
    %cst_97 = arith.constant dense<0.000000e+00> : vector<128x128xf32>
    %66 = tpu.matmul %63, %65, %cst_97 {dimension_numbers = #tpu.dot_dimension_numbers<[1], [0], [0], [1], [0, 0, 1, 1], [], []>} : vector<128x128xbf16>, vector<128x128xbf16>, vector<128x128xf32> -> vector<128x128xf32>
    %67 = vector.shape_cast %66 : vector<128x128xf32> to vector<8x16x128xf32>
    %68 = vector.extract_strided_slice %67 {offsets = [0, 1, 0], sizes = [8, 8, 128], strides = [1, 1, 1]} : vector<8x16x128xf32> to vector<8x8x128xf32>
    %69 = arith.addf %61, %68 : vector<8x8x128xf32>
    %c4 = arith.constant 4 : index
    %c0_98 = arith.constant 0 : index
    %c0_99 = arith.constant 0 : index
    %70 = vector.load %arg4[%c4, %c0_98, %c0_99] : memref<9x128x128xbf16, #tpu.memory_space<vmem>>, vector<1x128x128xbf16>
    %71 = vector.shape_cast %70 : vector<1x128x128xbf16> to vector<128x128xbf16>
    %cst_100 = arith.constant dense<0.000000e+00> : vector<128x128xf32>
    %72 = tpu.matmul %63, %71, %cst_100 {dimension_numbers = #tpu.dot_dimension_numbers<[1], [0], [0], [1], [0, 0, 1, 1], [], []>} : vector<128x128xbf16>, vector<128x128xbf16>, vector<128x128xf32> -> vector<128x128xf32>
    %73 = vector.shape_cast %72 : vector<128x128xf32> to vector<8x16x128xf32>
    %74 = vector.extract_strided_slice %73 {offsets = [0, 2, 0], sizes = [8, 8, 128], strides = [1, 1, 1]} : vector<8x16x128xf32> to vector<8x8x128xf32>
    %75 = arith.addf %69, %74 : vector<8x8x128xf32>
    %c5_101 = arith.constant 5 : index
    %c0_102 = arith.constant 0 : index
    %c0_103 = arith.constant 0 : index
    %76 = vector.load %arg4[%c5_101, %c0_102, %c0_103] : memref<9x128x128xbf16, #tpu.memory_space<vmem>>, vector<1x128x128xbf16>
    %77 = vector.shape_cast %76 : vector<1x128x128xbf16> to vector<128x128xbf16>
    %cst_104 = arith.constant dense<0.000000e+00> : vector<128x128xf32>
    %78 = tpu.matmul %63, %77, %cst_104 {dimension_numbers = #tpu.dot_dimension_numbers<[1], [0], [0], [1], [0, 0, 1, 1], [], []>} : vector<128x128xbf16>, vector<128x128xbf16>, vector<128x128xf32> -> vector<128x128xf32>
    %79 = vector.shape_cast %78 : vector<128x128xf32> to vector<8x16x128xf32>
    %80 = vector.extract_strided_slice %79 {offsets = [0, 3, 0], sizes = [8, 8, 128], strides = [1, 1, 1]} : vector<8x16x128xf32> to vector<8x8x128xf32>
    %81 = arith.addf %75, %80 : vector<8x8x128xf32>
    %c0_105 = arith.constant 0 : index
    %c2_106 = arith.constant 2 : index
    %c0_107 = arith.constant 0 : index
    %c0_108 = arith.constant 0 : index
    %82 = vector.load %arg15[%c0_105, %c2_106, %c0_107, %c0_108] : memref<1x10x16x128xbf16, #tpu.memory_space<vmem>>, vector<1x8x16x128xbf16>
    %83 = vector.shape_cast %82 : vector<1x8x16x128xbf16> to vector<128x128xbf16>
    %c6_109 = arith.constant 6 : index
    %c0_110 = arith.constant 0 : index
    %c0_111 = arith.constant 0 : index
    %84 = vector.load %arg4[%c6_109, %c0_110, %c0_111] : memref<9x128x128xbf16, #tpu.memory_space<vmem>>, vector<1x128x128xbf16>
    %85 = vector.shape_cast %84 : vector<1x128x128xbf16> to vector<128x128xbf16>
    %cst_112 = arith.constant dense<0.000000e+00> : vector<128x128xf32>
    %86 = tpu.matmul %83, %85, %cst_112 {dimension_numbers = #tpu.dot_dimension_numbers<[1], [0], [0], [1], [0, 0, 1, 1], [], []>} : vector<128x128xbf16>, vector<128x128xbf16>, vector<128x128xf32> -> vector<128x128xf32>
    %87 = vector.shape_cast %86 : vector<128x128xf32> to vector<8x16x128xf32>
    %88 = vector.extract_strided_slice %87 {offsets = [0, 1, 0], sizes = [8, 8, 128], strides = [1, 1, 1]} : vector<8x16x128xf32> to vector<8x8x128xf32>
    %89 = arith.addf %81, %88 : vector<8x8x128xf32>
    %c7 = arith.constant 7 : index
    %c0_113 = arith.constant 0 : index
    %c0_114 = arith.constant 0 : index
    %90 = vector.load %arg4[%c7, %c0_113, %c0_114] : memref<9x128x128xbf16, #tpu.memory_space<vmem>>, vector<1x128x128xbf16>
    %91 = vector.shape_cast %90 : vector<1x128x128xbf16> to vector<128x128xbf16>
    %cst_115 = arith.constant dense<0.000000e+00> : vector<128x128xf32>
    %92 = tpu.matmul %83, %91, %cst_115 {dimension_numbers = #tpu.dot_dimension_numbers<[1], [0], [0], [1], [0, 0, 1, 1], [], []>} : vector<128x128xbf16>, vector<128x128xbf16>, vector<128x128xf32> -> vector<128x128xf32>
    %93 = vector.shape_cast %92 : vector<128x128xf32> to vector<8x16x128xf32>
    %94 = vector.extract_strided_slice %93 {offsets = [0, 2, 0], sizes = [8, 8, 128], strides = [1, 1, 1]} : vector<8x16x128xf32> to vector<8x8x128xf32>
    %95 = arith.addf %89, %94 : vector<8x8x128xf32>
    %c8 = arith.constant 8 : index
    %c0_116 = arith.constant 0 : index
    %c0_117 = arith.constant 0 : index
    %96 = vector.load %arg4[%c8, %c0_116, %c0_117] : memref<9x128x128xbf16, #tpu.memory_space<vmem>>, vector<1x128x128xbf16>
    %97 = vector.shape_cast %96 : vector<1x128x128xbf16> to vector<128x128xbf16>
    %cst_118 = arith.constant dense<0.000000e+00> : vector<128x128xf32>
    %98 = tpu.matmul %83, %97, %cst_118 {dimension_numbers = #tpu.dot_dimension_numbers<[1], [0], [0], [1], [0, 0, 1, 1], [], []>} : vector<128x128xbf16>, vector<128x128xbf16>, vector<128x128xf32> -> vector<128x128xf32>
    %99 = vector.shape_cast %98 : vector<128x128xf32> to vector<8x16x128xf32>
    %100 = vector.extract_strided_slice %99 {offsets = [0, 3, 0], sizes = [8, 8, 128], strides = [1, 1, 1]} : vector<8x16x128xf32> to vector<8x8x128xf32>
    %101 = arith.addf %95, %100 : vector<8x8x128xf32>
    %c0_119 = arith.constant 0 : index
    %c0_120 = arith.constant 0 : index
    %102 = vector.load %arg5[%c0_119, %c0_120] : memref<1x128xf32, #tpu.memory_space<vmem>>, vector<1x128xf32>
    %103 = vector.shape_cast %102 : vector<1x128xf32> to vector<1x1x128xf32>
    %104 = vector.broadcast %103 : vector<1x1x128xf32> to vector<8x8x128xf32>
    %105 = arith.addf %101, %104 : vector<8x8x128xf32>
    %106 = vector.shape_cast %105 : vector<8x8x128xf32> to vector<1x8x8x128xf32>
    %cst_121 = arith.constant 0.000000e+00 : f32
    %107 = vector.broadcast %cst_121 : f32 to vector<1x8x8x128xf32>
    %108 = arith.maximumf %106, %107 : vector<1x8x8x128xf32>
    %109 = vector.shape_cast %108 : vector<1x8x8x128xf32> to vector<1x4x2x8x128xf32>
    %110 = vector.extract_strided_slice %109 {offsets = [0, 0, 0, 0, 0], sizes = [1, 4, 1, 8, 128], strides = [1, 1, 1, 1, 1]} : vector<1x4x2x8x128xf32> to vector<1x4x1x8x128xf32>
    %111 = vector.shape_cast %110 : vector<1x4x1x8x128xf32> to vector<1x4x8x128xf32>
    %112 = vector.extract_strided_slice %109 {offsets = [0, 0, 1, 0, 0], sizes = [1, 4, 1, 8, 128], strides = [1, 1, 1, 1, 1]} : vector<1x4x2x8x128xf32> to vector<1x4x1x8x128xf32>
    %113 = vector.shape_cast %112 : vector<1x4x1x8x128xf32> to vector<1x4x8x128xf32>
    %114 = arith.maximumf %111, %113 : vector<1x4x8x128xf32>
    %c0_122 = arith.constant 0 : index
    %c0_123 = arith.constant 0 : index
    %c0_124 = arith.constant 0 : index
    %c0_125 = arith.constant 0 : index
    %115 = vector.load %arg19[%c0_122, %c0_123, %c0_124, %c0_125] : memref<1x4x8x128xf32, #tpu.memory_space<vmem>>, vector<1x4x8x128xf32>
    tpu.vector_store %arg19[%c0_122, %c0_123, %c0_124, %c0_125], %114 {strides = array<i32>} : memref<1x4x8x128xf32, #tpu.memory_space<vmem>>, vector<1x4x8x128xf32>,
    %c0_126 = arith.constant 0 : index
    %c0_127 = arith.constant 0 : index
    %c0_128 = arith.constant 0 : index
    %c0_129 = arith.constant 0 : index
    %116 = tpu.strided_load %arg19[%c0_126, %c0_127, %c0_128, %c0_129] {strides = array<i32: 1, 1, 2, 1>} : memref<1x4x8x128xf32, #tpu.memory_space<vmem>>, vector<1x4x4x128xf32>
    %c0_130 = arith.constant 0 : index
    %c0_131 = arith.constant 0 : index
    %c1_132 = arith.constant 1 : index
    %c0_133 = arith.constant 0 : index
    %117 = tpu.strided_load %arg19[%c0_130, %c0_131, %c1_132, %c0_133] {strides = array<i32: 1, 1, 2, 1>} : memref<1x4x8x128xf32, #tpu.memory_space<vmem>>, vector<1x4x4x128xf32>
    %118 = arith.maximumf %116, %117 : vector<1x4x4x128xf32>
    %119 = arith.truncf %118 : vector<1x4x4x128xf32> to vector<1x4x4x128xbf16>
    %c0_134 = arith.constant 0 : index
    %c1_135 = arith.constant 1 : index
    %c2_136 = arith.constant 2 : index
    %c0_137 = arith.constant 0 : index
    %120 = vector.load %arg16[%c0_134, %c1_135, %c2_136, %c0_137] : memref<1x6x8x128xbf16, #tpu.memory_space<vmem>>, vector<1x4x4x128xbf16>
    tpu.vector_store %arg16[%c0_134, %c1_135, %c2_136, %c0_137], %119 {strides = array<i32>} : memref<1x6x8x128xbf16, #tpu.memory_space<vmem>>, vector<1x4x4x128xbf16>,
    %c0_138 = arith.constant 0 : index
    %c0_139 = arith.constant 0 : index
    %c0_140 = arith.constant 0 : index
    %c0_141 = arith.constant 0 : index
    %121 = vector.load %arg16[%c0_138, %c0_139, %c0_140, %c0_141] : memref<1x6x8x128xbf16, #tpu.memory_space<vmem>>, vector<1x4x8x128xbf16>
    %122 = vector.shape_cast %121 : vector<1x4x8x128xbf16> to vector<32x128xbf16>
    %c0_142 = arith.constant 0 : index
    %c0_143 = arith.constant 0 : index
    %c0_144 = arith.constant 0 : index
    %123 = vector.load %arg6[%c0_142, %c0_143, %c0_144] : memref<9x128x128xbf16, #tpu.memory_space<vmem>>, vector<1x128x128xbf16>
    %124 = vector.shape_cast %123 : vector<1x128x128xbf16> to vector<128x128xbf16>
    %cst_145 = arith.constant dense<0.000000e+00> : vector<32x128xf32>
    %125 = tpu.matmul %122, %124, %cst_145 {dimension_numbers = #tpu.dot_dimension_numbers<[1], [0], [0], [1], [0, 0, 1, 1], [], []>} : vector<32x128xbf16>, vector<128x128xbf16>, vector<32x128xf32> -> vector<32x128xf32>
    %126 = vector.shape_cast %125 : vector<32x128xf32> to vector<4x8x128xf32>
    %127 = vector.extract_strided_slice %126 {offsets = [0, 1, 0], sizes = [4, 4, 128], strides = [1, 1, 1]} : vector<4x8x128xf32> to vector<4x4x128xf32>
    %c1_146 = arith.constant 1 : index
    %c0_147 = arith.constant 0 : index
    %c0_148 = arith.constant 0 : index
    %128 = vector.load %arg6[%c1_146, %c0_147, %c0_148] : memref<9x128x128xbf16, #tpu.memory_space<vmem>>, vector<1x128x128xbf16>
    %129 = vector.shape_cast %128 : vector<1x128x128xbf16> to vector<128x128xbf16>
    %cst_149 = arith.constant dense<0.000000e+00> : vector<32x128xf32>
    %130 = tpu.matmul %122, %129, %cst_149 {dimension_numbers = #tpu.dot_dimension_numbers<[1], [0], [0], [1], [0, 0, 1, 1], [], []>} : vector<32x128xbf16>, vector<128x128xbf16>, vector<32x128xf32> -> vector<32x128xf32>
    %131 = vector.shape_cast %130 : vector<32x128xf32> to vector<4x8x128xf32>
    %132 = vector.extract_strided_slice %131 {offsets = [0, 2, 0], sizes = [4, 4, 128], strides = [1, 1, 1]} : vector<4x8x128xf32> to vector<4x4x128xf32>
    %133 = arith.addf %127, %132 : vector<4x4x128xf32>
    %c2_150 = arith.constant 2 : index
    %c0_151 = arith.constant 0 : index
    %c0_152 = arith.constant 0 : index
    %134 = vector.load %arg6[%c2_150, %c0_151, %c0_152] : memref<9x128x128xbf16, #tpu.memory_space<vmem>>, vector<1x128x128xbf16>
    %135 = vector.shape_cast %134 : vector<1x128x128xbf16> to vector<128x128xbf16>
    %cst_153 = arith.constant dense<0.000000e+00> : vector<32x128xf32>
    %136 = tpu.matmul %122, %135, %cst_153 {dimension_numbers = #tpu.dot_dimension_numbers<[1], [0], [0], [1], [0, 0, 1, 1], [], []>} : vector<32x128xbf16>, vector<128x128xbf16>, vector<32x128xf32> -> vector<32x128xf32>
    %137 = vector.shape_cast %136 : vector<32x128xf32> to vector<4x8x128xf32>
    %138 = vector.extract_strided_slice %137 {offsets = [0, 3, 0], sizes = [4, 4, 128], strides = [1, 1, 1]} : vector<4x8x128xf32> to vector<4x4x128xf32>
    %139 = arith.addf %133, %138 : vector<4x4x128xf32>
    %c0_154 = arith.constant 0 : index
    %c1_155 = arith.constant 1 : index
    %c0_156 = arith.constant 0 : index
    %c0_157 = arith.constant 0 : index
    %140 = vector.load %arg16[%c0_154, %c1_155, %c0_156, %c0_157] : memref<1x6x8x128xbf16, #tpu.memory_space<vmem>>, vector<1x4x8x128xbf16>
    %141 = vector.shape_cast %140 : vector<1x4x8x128xbf16> to vector<32x128xbf16>
    %c3_158 = arith.constant 3 : index
    %c0_159 = arith.constant 0 : index
    %c0_160 = arith.constant 0 : index
    %142 = vector.load %arg6[%c3_158, %c0_159, %c0_160] : memref<9x128x128xbf16, #tpu.memory_space<vmem>>, vector<1x128x128xbf16>
    %143 = vector.shape_cast %142 : vector<1x128x128xbf16> to vector<128x128xbf16>
    %cst_161 = arith.constant dense<0.000000e+00> : vector<32x128xf32>
    %144 = tpu.matmul %141, %143, %cst_161 {dimension_numbers = #tpu.dot_dimension_numbers<[1], [0], [0], [1], [0, 0, 1, 1], [], []>} : vector<32x128xbf16>, vector<128x128xbf16>, vector<32x128xf32> -> vector<32x128xf32>
    %145 = vector.shape_cast %144 : vector<32x128xf32> to vector<4x8x128xf32>
    %146 = vector.extract_strided_slice %145 {offsets = [0, 1, 0], sizes = [4, 4, 128], strides = [1, 1, 1]} : vector<4x8x128xf32> to vector<4x4x128xf32>
    %147 = arith.addf %139, %146 : vector<4x4x128xf32>
    %c4_162 = arith.constant 4 : index
    %c0_163 = arith.constant 0 : index
    %c0_164 = arith.constant 0 : index
    %148 = vector.load %arg6[%c4_162, %c0_163, %c0_164] : memref<9x128x128xbf16, #tpu.memory_space<vmem>>, vector<1x128x128xbf16>
    %149 = vector.shape_cast %148 : vector<1x128x128xbf16> to vector<128x128xbf16>
    %cst_165 = arith.constant dense<0.000000e+00> : vector<32x128xf32>
    %150 = tpu.matmul %141, %149, %cst_165 {dimension_numbers = #tpu.dot_dimension_numbers<[1], [0], [0], [1], [0, 0, 1, 1], [], []>} : vector<32x128xbf16>, vector<128x128xbf16>, vector<32x128xf32> -> vector<32x128xf32>
    %151 = vector.shape_cast %150 : vector<32x128xf32> to vector<4x8x128xf32>
    %152 = vector.extract_strided_slice %151 {offsets = [0, 2, 0], sizes = [4, 4, 128], strides = [1, 1, 1]} : vector<4x8x128xf32> to vector<4x4x128xf32>
    %153 = arith.addf %147, %152 : vector<4x4x128xf32>
    %c5_166 = arith.constant 5 : index
    %c0_167 = arith.constant 0 : index
    %c0_168 = arith.constant 0 : index
    %154 = vector.load %arg6[%c5_166, %c0_167, %c0_168] : memref<9x128x128xbf16, #tpu.memory_space<vmem>>, vector<1x128x128xbf16>
    %155 = vector.shape_cast %154 : vector<1x128x128xbf16> to vector<128x128xbf16>
    %cst_169 = arith.constant dense<0.000000e+00> : vector<32x128xf32>
    %156 = tpu.matmul %141, %155, %cst_169 {dimension_numbers = #tpu.dot_dimension_numbers<[1], [0], [0], [1], [0, 0, 1, 1], [], []>} : vector<32x128xbf16>, vector<128x128xbf16>, vector<32x128xf32> -> vector<32x128xf32>
    %157 = vector.shape_cast %156 : vector<32x128xf32> to vector<4x8x128xf32>
    %158 = vector.extract_strided_slice %157 {offsets = [0, 3, 0], sizes = [4, 4, 128], strides = [1, 1, 1]} : vector<4x8x128xf32> to vector<4x4x128xf32>
    %159 = arith.addf %153, %158 : vector<4x4x128xf32>
    %c0_170 = arith.constant 0 : index
    %c2_171 = arith.constant 2 : index
    %c0_172 = arith.constant 0 : index
    %c0_173 = arith.constant 0 : index
    %160 = vector.load %arg16[%c0_170, %c2_171, %c0_172, %c0_173] : memref<1x6x8x128xbf16, #tpu.memory_space<vmem>>, vector<1x4x8x128xbf16>
    %161 = vector.shape_cast %160 : vector<1x4x8x128xbf16> to vector<32x128xbf16>
    %c6_174 = arith.constant 6 : index
    %c0_175 = arith.constant 0 : index
    %c0_176 = arith.constant 0 : index
    %162 = vector.load %arg6[%c6_174, %c0_175, %c0_176] : memref<9x128x128xbf16, #tpu.memory_space<vmem>>, vector<1x128x128xbf16>
    %163 = vector.shape_cast %162 : vector<1x128x128xbf16> to vector<128x128xbf16>
    %cst_177 = arith.constant dense<0.000000e+00> : vector<32x128xf32>
    %164 = tpu.matmul %161, %163, %cst_177 {dimension_numbers = #tpu.dot_dimension_numbers<[1], [0], [0], [1], [0, 0, 1, 1], [], []>} : vector<32x128xbf16>, vector<128x128xbf16>, vector<32x128xf32> -> vector<32x128xf32>
    %165 = vector.shape_cast %164 : vector<32x128xf32> to vector<4x8x128xf32>
    %166 = vector.extract_strided_slice %165 {offsets = [0, 1, 0], sizes = [4, 4, 128], strides = [1, 1, 1]} : vector<4x8x128xf32> to vector<4x4x128xf32>
    %167 = arith.addf %159, %166 : vector<4x4x128xf32>
    %c7_178 = arith.constant 7 : index
    %c0_179 = arith.constant 0 : index
    %c0_180 = arith.constant 0 : index
    %168 = vector.load %arg6[%c7_178, %c0_179, %c0_180] : memref<9x128x128xbf16, #tpu.memory_space<vmem>>, vector<1x128x128xbf16>
    %169 = vector.shape_cast %168 : vector<1x128x128xbf16> to vector<128x128xbf16>
    %cst_181 = arith.constant dense<0.000000e+00> : vector<32x128xf32>
    %170 = tpu.matmul %161, %169, %cst_181 {dimension_numbers = #tpu.dot_dimension_numbers<[1], [0], [0], [1], [0, 0, 1, 1], [], []>} : vector<32x128xbf16>, vector<128x128xbf16>, vector<32x128xf32> -> vector<32x128xf32>
    %171 = vector.shape_cast %170 : vector<32x128xf32> to vector<4x8x128xf32>
    %172 = vector.extract_strided_slice %171 {offsets = [0, 2, 0], sizes = [4, 4, 128], strides = [1, 1, 1]} : vector<4x8x128xf32> to vector<4x4x128xf32>
    %173 = arith.addf %167, %172 : vector<4x4x128xf32>
    %c8_182 = arith.constant 8 : index
    %c0_183 = arith.constant 0 : index
    %c0_184 = arith.constant 0 : index
    %174 = vector.load %arg6[%c8_182, %c0_183, %c0_184] : memref<9x128x128xbf16, #tpu.memory_space<vmem>>, vector<1x128x128xbf16>
    %175 = vector.shape_cast %174 : vector<1x128x128xbf16> to vector<128x128xbf16>
    %cst_185 = arith.constant dense<0.000000e+00> : vector<32x128xf32>
    %176 = tpu.matmul %161, %175, %cst_185 {dimension_numbers = #tpu.dot_dimension_numbers<[1], [0], [0], [1], [0, 0, 1, 1], [], []>} : vector<32x128xbf16>, vector<128x128xbf16>, vector<32x128xf32> -> vector<32x128xf32>
    %177 = vector.shape_cast %176 : vector<32x128xf32> to vector<4x8x128xf32>
    %178 = vector.extract_strided_slice %177 {offsets = [0, 3, 0], sizes = [4, 4, 128], strides = [1, 1, 1]} : vector<4x8x128xf32> to vector<4x4x128xf32>
    %179 = arith.addf %173, %178 : vector<4x4x128xf32>
    %c0_186 = arith.constant 0 : index
    %c0_187 = arith.constant 0 : index
    %180 = vector.load %arg7[%c0_186, %c0_187] : memref<1x128xf32, #tpu.memory_space<vmem>>, vector<1x128xf32>
    %181 = vector.shape_cast %180 : vector<1x128xf32> to vector<1x1x128xf32>
    %182 = vector.broadcast %181 : vector<1x1x128xf32> to vector<4x4x128xf32>
    %183 = arith.addf %179, %182 : vector<4x4x128xf32>
    %184 = vector.shape_cast %183 : vector<4x4x128xf32> to vector<1x4x4x128xf32>
    %cst_188 = arith.constant 0.000000e+00 : f32
    %185 = vector.broadcast %cst_188 : f32 to vector<1x4x4x128xf32>
    %186 = arith.maximumf %184, %185 : vector<1x4x4x128xf32>
    %187 = arith.truncf %186 : vector<1x4x4x128xf32> to vector<1x4x4x128xbf16>
    %c0_189 = arith.constant 0 : index
    %c1_190 = arith.constant 1 : index
    %c2_191 = arith.constant 2 : index
    %c0_192 = arith.constant 0 : index
    %188 = vector.load %arg17[%c0_189, %c1_190, %c2_191, %c0_192] : memref<1x6x8x128xbf16, #tpu.memory_space<vmem>>, vector<1x4x4x128xbf16>
    tpu.vector_store %arg17[%c0_189, %c1_190, %c2_191, %c0_192], %187 {strides = array<i32>} : memref<1x6x8x128xbf16, #tpu.memory_space<vmem>>, vector<1x4x4x128xbf16>,
    %c0_193 = arith.constant 0 : index
    %c0_194 = arith.constant 0 : index
    %c0_195 = arith.constant 0 : index
    %c0_196 = arith.constant 0 : index
    %189 = vector.load %arg17[%c0_193, %c0_194, %c0_195, %c0_196] : memref<1x6x8x128xbf16, #tpu.memory_space<vmem>>, vector<1x4x8x128xbf16>
    %190 = vector.shape_cast %189 : vector<1x4x8x128xbf16> to vector<32x128xbf16>
    %c0_197 = arith.constant 0 : index
    %c0_198 = arith.constant 0 : index
    %c0_199 = arith.constant 0 : index
    %191 = vector.load %arg8[%c0_197, %c0_198, %c0_199] : memref<9x128x128xbf16, #tpu.memory_space<vmem>>, vector<1x128x128xbf16>
    %192 = vector.shape_cast %191 : vector<1x128x128xbf16> to vector<128x128xbf16>
    %cst_200 = arith.constant dense<0.000000e+00> : vector<32x128xf32>
    %193 = tpu.matmul %190, %192, %cst_200 {dimension_numbers = #tpu.dot_dimension_numbers<[1], [0], [0], [1], [0, 0, 1, 1], [], []>} : vector<32x128xbf16>, vector<128x128xbf16>, vector<32x128xf32> -> vector<32x128xf32>
    %194 = vector.shape_cast %193 : vector<32x128xf32> to vector<4x8x128xf32>
    %195 = vector.extract_strided_slice %194 {offsets = [0, 1, 0], sizes = [4, 4, 128], strides = [1, 1, 1]} : vector<4x8x128xf32> to vector<4x4x128xf32>
    %c1_201 = arith.constant 1 : index
    %c0_202 = arith.constant 0 : index
    %c0_203 = arith.constant 0 : index
    %196 = vector.load %arg8[%c1_201, %c0_202, %c0_203] : memref<9x128x128xbf16, #tpu.memory_space<vmem>>, vector<1x128x128xbf16>
    %197 = vector.shape_cast %196 : vector<1x128x128xbf16> to vector<128x128xbf16>
    %cst_204 = arith.constant dense<0.000000e+00> : vector<32x128xf32>
    %198 = tpu.matmul %190, %197, %cst_204 {dimension_numbers = #tpu.dot_dimension_numbers<[1], [0], [0], [1], [0, 0, 1, 1], [], []>} : vector<32x128xbf16>, vector<128x128xbf16>, vector<32x128xf32> -> vector<32x128xf32>
    %199 = vector.shape_cast %198 : vector<32x128xf32> to vector<4x8x128xf32>
    %200 = vector.extract_strided_slice %199 {offsets = [0, 2, 0], sizes = [4, 4, 128], strides = [1, 1, 1]} : vector<4x8x128xf32> to vector<4x4x128xf32>
    %201 = arith.addf %195, %200 : vector<4x4x128xf32>
    %c2_205 = arith.constant 2 : index
    %c0_206 = arith.constant 0 : index
    %c0_207 = arith.constant 0 : index
    %202 = vector.load %arg8[%c2_205, %c0_206, %c0_207] : memref<9x128x128xbf16, #tpu.memory_space<vmem>>, vector<1x128x128xbf16>
    %203 = vector.shape_cast %202 : vector<1x128x128xbf16> to vector<128x128xbf16>
    %cst_208 = arith.constant dense<0.000000e+00> : vector<32x128xf32>
    %204 = tpu.matmul %190, %203, %cst_208 {dimension_numbers = #tpu.dot_dimension_numbers<[1], [0], [0], [1], [0, 0, 1, 1], [], []>} : vector<32x128xbf16>, vector<128x128xbf16>, vector<32x128xf32> -> vector<32x128xf32>
    %205 = vector.shape_cast %204 : vector<32x128xf32> to vector<4x8x128xf32>
    %206 = vector.extract_strided_slice %205 {offsets = [0, 3, 0], sizes = [4, 4, 128], strides = [1, 1, 1]} : vector<4x8x128xf32> to vector<4x4x128xf32>
    %207 = arith.addf %201, %206 : vector<4x4x128xf32>
    %c0_209 = arith.constant 0 : index
    %c1_210 = arith.constant 1 : index
    %c0_211 = arith.constant 0 : index
    %c0_212 = arith.constant 0 : index
    %208 = vector.load %arg17[%c0_209, %c1_210, %c0_211, %c0_212] : memref<1x6x8x128xbf16, #tpu.memory_space<vmem>>, vector<1x4x8x128xbf16>
    %209 = vector.shape_cast %208 : vector<1x4x8x128xbf16> to vector<32x128xbf16>
    %c3_213 = arith.constant 3 : index
    %c0_214 = arith.constant 0 : index
    %c0_215 = arith.constant 0 : index
    %210 = vector.load %arg8[%c3_213, %c0_214, %c0_215] : memref<9x128x128xbf16, #tpu.memory_space<vmem>>, vector<1x128x128xbf16>
    %211 = vector.shape_cast %210 : vector<1x128x128xbf16> to vector<128x128xbf16>
    %cst_216 = arith.constant dense<0.000000e+00> : vector<32x128xf32>
    %212 = tpu.matmul %209, %211, %cst_216 {dimension_numbers = #tpu.dot_dimension_numbers<[1], [0], [0], [1], [0, 0, 1, 1], [], []>} : vector<32x128xbf16>, vector<128x128xbf16>, vector<32x128xf32> -> vector<32x128xf32>
    %213 = vector.shape_cast %212 : vector<32x128xf32> to vector<4x8x128xf32>
    %214 = vector.extract_strided_slice %213 {offsets = [0, 1, 0], sizes = [4, 4, 128], strides = [1, 1, 1]} : vector<4x8x128xf32> to vector<4x4x128xf32>
    %215 = arith.addf %207, %214 : vector<4x4x128xf32>
    %c4_217 = arith.constant 4 : index
    %c0_218 = arith.constant 0 : index
    %c0_219 = arith.constant 0 : index
    %216 = vector.load %arg8[%c4_217, %c0_218, %c0_219] : memref<9x128x128xbf16, #tpu.memory_space<vmem>>, vector<1x128x128xbf16>
    %217 = vector.shape_cast %216 : vector<1x128x128xbf16> to vector<128x128xbf16>
    %cst_220 = arith.constant dense<0.000000e+00> : vector<32x128xf32>
    %218 = tpu.matmul %209, %217, %cst_220 {dimension_numbers = #tpu.dot_dimension_numbers<[1], [0], [0], [1], [0, 0, 1, 1], [], []>} : vector<32x128xbf16>, vector<128x128xbf16>, vector<32x128xf32> -> vector<32x128xf32>
    %219 = vector.shape_cast %218 : vector<32x128xf32> to vector<4x8x128xf32>
    %220 = vector.extract_strided_slice %219 {offsets = [0, 2, 0], sizes = [4, 4, 128], strides = [1, 1, 1]} : vector<4x8x128xf32> to vector<4x4x128xf32>
    %221 = arith.addf %215, %220 : vector<4x4x128xf32>
    %c5_221 = arith.constant 5 : index
    %c0_222 = arith.constant 0 : index
    %c0_223 = arith.constant 0 : index
    %222 = vector.load %arg8[%c5_221, %c0_222, %c0_223] : memref<9x128x128xbf16, #tpu.memory_space<vmem>>, vector<1x128x128xbf16>
    %223 = vector.shape_cast %222 : vector<1x128x128xbf16> to vector<128x128xbf16>
    %cst_224 = arith.constant dense<0.000000e+00> : vector<32x128xf32>
    %224 = tpu.matmul %209, %223, %cst_224 {dimension_numbers = #tpu.dot_dimension_numbers<[1], [0], [0], [1], [0, 0, 1, 1], [], []>} : vector<32x128xbf16>, vector<128x128xbf16>, vector<32x128xf32> -> vector<32x128xf32>
    %225 = vector.shape_cast %224 : vector<32x128xf32> to vector<4x8x128xf32>
    %226 = vector.extract_strided_slice %225 {offsets = [0, 3, 0], sizes = [4, 4, 128], strides = [1, 1, 1]} : vector<4x8x128xf32> to vector<4x4x128xf32>
    %227 = arith.addf %221, %226 : vector<4x4x128xf32>
    %c0_225 = arith.constant 0 : index
    %c2_226 = arith.constant 2 : index
    %c0_227 = arith.constant 0 : index
    %c0_228 = arith.constant 0 : index
    %228 = vector.load %arg17[%c0_225, %c2_226, %c0_227, %c0_228] : memref<1x6x8x128xbf16, #tpu.memory_space<vmem>>, vector<1x4x8x128xbf16>
    %229 = vector.shape_cast %228 : vector<1x4x8x128xbf16> to vector<32x128xbf16>
    %c6_229 = arith.constant 6 : index
    %c0_230 = arith.constant 0 : index
    %c0_231 = arith.constant 0 : index
    %230 = vector.load %arg8[%c6_229, %c0_230, %c0_231] : memref<9x128x128xbf16, #tpu.memory_space<vmem>>, vector<1x128x128xbf16>
    %231 = vector.shape_cast %230 : vector<1x128x128xbf16> to vector<128x128xbf16>
    %cst_232 = arith.constant dense<0.000000e+00> : vector<32x128xf32>
    %232 = tpu.matmul %229, %231, %cst_232 {dimension_numbers = #tpu.dot_dimension_numbers<[1], [0], [0], [1], [0, 0, 1, 1], [], []>} : vector<32x128xbf16>, vector<128x128xbf16>, vector<32x128xf32> -> vector<32x128xf32>
    %233 = vector.shape_cast %232 : vector<32x128xf32> to vector<4x8x128xf32>
    %234 = vector.extract_strided_slice %233 {offsets = [0, 1, 0], sizes = [4, 4, 128], strides = [1, 1, 1]} : vector<4x8x128xf32> to vector<4x4x128xf32>
    %235 = arith.addf %227, %234 : vector<4x4x128xf32>
    %c7_233 = arith.constant 7 : index
    %c0_234 = arith.constant 0 : index
    %c0_235 = arith.constant 0 : index
    %236 = vector.load %arg8[%c7_233, %c0_234, %c0_235] : memref<9x128x128xbf16, #tpu.memory_space<vmem>>, vector<1x128x128xbf16>
    %237 = vector.shape_cast %236 : vector<1x128x128xbf16> to vector<128x128xbf16>
    %cst_236 = arith.constant dense<0.000000e+00> : vector<32x128xf32>
    %238 = tpu.matmul %229, %237, %cst_236 {dimension_numbers = #tpu.dot_dimension_numbers<[1], [0], [0], [1], [0, 0, 1, 1], [], []>} : vector<32x128xbf16>, vector<128x128xbf16>, vector<32x128xf32> -> vector<32x128xf32>
    %239 = vector.shape_cast %238 : vector<32x128xf32> to vector<4x8x128xf32>
    %240 = vector.extract_strided_slice %239 {offsets = [0, 2, 0], sizes = [4, 4, 128], strides = [1, 1, 1]} : vector<4x8x128xf32> to vector<4x4x128xf32>
    %241 = arith.addf %235, %240 : vector<4x4x128xf32>
    %c8_237 = arith.constant 8 : index
    %c0_238 = arith.constant 0 : index
    %c0_239 = arith.constant 0 : index
    %242 = vector.load %arg8[%c8_237, %c0_238, %c0_239] : memref<9x128x128xbf16, #tpu.memory_space<vmem>>, vector<1x128x128xbf16>
    %243 = vector.shape_cast %242 : vector<1x128x128xbf16> to vector<128x128xbf16>
    %cst_240 = arith.constant dense<0.000000e+00> : vector<32x128xf32>
    %244 = tpu.matmul %229, %243, %cst_240 {dimension_numbers = #tpu.dot_dimension_numbers<[1], [0], [0], [1], [0, 0, 1, 1], [], []>} : vector<32x128xbf16>, vector<128x128xbf16>, vector<32x128xf32> -> vector<32x128xf32>
    %245 = vector.shape_cast %244 : vector<32x128xf32> to vector<4x8x128xf32>
    %246 = vector.extract_strided_slice %245 {offsets = [0, 3, 0], sizes = [4, 4, 128], strides = [1, 1, 1]} : vector<4x8x128xf32> to vector<4x4x128xf32>
    %247 = arith.addf %241, %246 : vector<4x4x128xf32>
    %c0_241 = arith.constant 0 : index
    %c0_242 = arith.constant 0 : index
    %248 = vector.load %arg9[%c0_241, %c0_242] : memref<1x128xf32, #tpu.memory_space<vmem>>, vector<1x128xf32>
    %249 = vector.shape_cast %248 : vector<1x128xf32> to vector<1x1x128xf32>
    %250 = vector.broadcast %249 : vector<1x1x128xf32> to vector<4x4x128xf32>
    %251 = arith.addf %247, %250 : vector<4x4x128xf32>
    %252 = vector.shape_cast %251 : vector<4x4x128xf32> to vector<1x4x4x128xf32>
    %cst_243 = arith.constant 0.000000e+00 : f32
    %253 = vector.broadcast %cst_243 : f32 to vector<1x4x4x128xf32>
    %254 = arith.maximumf %252, %253 : vector<1x4x4x128xf32>
    %255 = arith.truncf %254 : vector<1x4x4x128xf32> to vector<1x4x4x128xbf16>
    %c0_244 = arith.constant 0 : index
    %c1_245 = arith.constant 1 : index
    %c2_246 = arith.constant 2 : index
    %c0_247 = arith.constant 0 : index
    %256 = vector.load %arg16[%c0_244, %c1_245, %c2_246, %c0_247] : memref<1x6x8x128xbf16, #tpu.memory_space<vmem>>, vector<1x4x4x128xbf16>
    tpu.vector_store %arg16[%c0_244, %c1_245, %c2_246, %c0_247], %255 {strides = array<i32>} : memref<1x6x8x128xbf16, #tpu.memory_space<vmem>>, vector<1x4x4x128xbf16>,
    %c0_248 = arith.constant 0 : index
    %c0_249 = arith.constant 0 : index
    %c0_250 = arith.constant 0 : index
    %c0_251 = arith.constant 0 : index
    %257 = vector.load %arg16[%c0_248, %c0_249, %c0_250, %c0_251] : memref<1x6x8x128xbf16, #tpu.memory_space<vmem>>, vector<1x4x8x128xbf16>
    %258 = vector.shape_cast %257 : vector<1x4x8x128xbf16> to vector<32x128xbf16>
    %c0_252 = arith.constant 0 : index
    %c0_253 = arith.constant 0 : index
    %c0_254 = arith.constant 0 : index
    %259 = vector.load %arg10[%c0_252, %c0_253, %c0_254] : memref<9x128x128xbf16, #tpu.memory_space<vmem>>, vector<1x128x128xbf16>
    %260 = vector.shape_cast %259 : vector<1x128x128xbf16> to vector<128x128xbf16>
    %cst_255 = arith.constant dense<0.000000e+00> : vector<32x128xf32>
    %261 = tpu.matmul %258, %260, %cst_255 {dimension_numbers = #tpu.dot_dimension_numbers<[1], [0], [0], [1], [0, 0, 1, 1], [], []>} : vector<32x128xbf16>, vector<128x128xbf16>, vector<32x128xf32> -> vector<32x128xf32>
    %262 = vector.shape_cast %261 : vector<32x128xf32> to vector<4x8x128xf32>
    %263 = vector.extract_strided_slice %262 {offsets = [0, 1, 0], sizes = [4, 4, 128], strides = [1, 1, 1]} : vector<4x8x128xf32> to vector<4x4x128xf32>
    %c1_256 = arith.constant 1 : index
    %c0_257 = arith.constant 0 : index
    %c0_258 = arith.constant 0 : index
    %264 = vector.load %arg10[%c1_256, %c0_257, %c0_258] : memref<9x128x128xbf16, #tpu.memory_space<vmem>>, vector<1x128x128xbf16>
    %265 = vector.shape_cast %264 : vector<1x128x128xbf16> to vector<128x128xbf16>
    %cst_259 = arith.constant dense<0.000000e+00> : vector<32x128xf32>
    %266 = tpu.matmul %258, %265, %cst_259 {dimension_numbers = #tpu.dot_dimension_numbers<[1], [0], [0], [1], [0, 0, 1, 1], [], []>} : vector<32x128xbf16>, vector<128x128xbf16>, vector<32x128xf32> -> vector<32x128xf32>
    %267 = vector.shape_cast %266 : vector<32x128xf32> to vector<4x8x128xf32>
    %268 = vector.extract_strided_slice %267 {offsets = [0, 2, 0], sizes = [4, 4, 128], strides = [1, 1, 1]} : vector<4x8x128xf32> to vector<4x4x128xf32>
    %269 = arith.addf %263, %268 : vector<4x4x128xf32>
    %c2_260 = arith.constant 2 : index
    %c0_261 = arith.constant 0 : index
    %c0_262 = arith.constant 0 : index
    %270 = vector.load %arg10[%c2_260, %c0_261, %c0_262] : memref<9x128x128xbf16, #tpu.memory_space<vmem>>, vector<1x128x128xbf16>
    %271 = vector.shape_cast %270 : vector<1x128x128xbf16> to vector<128x128xbf16>
    %cst_263 = arith.constant dense<0.000000e+00> : vector<32x128xf32>
    %272 = tpu.matmul %258, %271, %cst_263 {dimension_numbers = #tpu.dot_dimension_numbers<[1], [0], [0], [1], [0, 0, 1, 1], [], []>} : vector<32x128xbf16>, vector<128x128xbf16>, vector<32x128xf32> -> vector<32x128xf32>
    %273 = vector.shape_cast %272 : vector<32x128xf32> to vector<4x8x128xf32>
    %274 = vector.extract_strided_slice %273 {offsets = [0, 3, 0], sizes = [4, 4, 128], strides = [1, 1, 1]} : vector<4x8x128xf32> to vector<4x4x128xf32>
    %275 = arith.addf %269, %274 : vector<4x4x128xf32>
    %c0_264 = arith.constant 0 : index
    %c1_265 = arith.constant 1 : index
    %c0_266 = arith.constant 0 : index
    %c0_267 = arith.constant 0 : index
    %276 = vector.load %arg16[%c0_264, %c1_265, %c0_266, %c0_267] : memref<1x6x8x128xbf16, #tpu.memory_space<vmem>>, vector<1x4x8x128xbf16>
    %277 = vector.shape_cast %276 : vector<1x4x8x128xbf16> to vector<32x128xbf16>
    %c3_268 = arith.constant 3 : index
    %c0_269 = arith.constant 0 : index
    %c0_270 = arith.constant 0 : index
    %278 = vector.load %arg10[%c3_268, %c0_269, %c0_270] : memref<9x128x128xbf16, #tpu.memory_space<vmem>>, vector<1x128x128xbf16>
    %279 = vector.shape_cast %278 : vector<1x128x128xbf16> to vector<128x128xbf16>
    %cst_271 = arith.constant dense<0.000000e+00> : vector<32x128xf32>
    %280 = tpu.matmul %277, %279, %cst_271 {dimension_numbers = #tpu.dot_dimension_numbers<[1], [0], [0], [1], [0, 0, 1, 1], [], []>} : vector<32x128xbf16>, vector<128x128xbf16>, vector<32x128xf32> -> vector<32x128xf32>
    %281 = vector.shape_cast %280 : vector<32x128xf32> to vector<4x8x128xf32>
    %282 = vector.extract_strided_slice %281 {offsets = [0, 1, 0], sizes = [4, 4, 128], strides = [1, 1, 1]} : vector<4x8x128xf32> to vector<4x4x128xf32>
    %283 = arith.addf %275, %282 : vector<4x4x128xf32>
    %c4_272 = arith.constant 4 : index
    %c0_273 = arith.constant 0 : index
    %c0_274 = arith.constant 0 : index
    %284 = vector.load %arg10[%c4_272, %c0_273, %c0_274] : memref<9x128x128xbf16, #tpu.memory_space<vmem>>, vector<1x128x128xbf16>
    %285 = vector.shape_cast %284 : vector<1x128x128xbf16> to vector<128x128xbf16>
    %cst_275 = arith.constant dense<0.000000e+00> : vector<32x128xf32>
    %286 = tpu.matmul %277, %285, %cst_275 {dimension_numbers = #tpu.dot_dimension_numbers<[1], [0], [0], [1], [0, 0, 1, 1], [], []>} : vector<32x128xbf16>, vector<128x128xbf16>, vector<32x128xf32> -> vector<32x128xf32>
    %287 = vector.shape_cast %286 : vector<32x128xf32> to vector<4x8x128xf32>
    %288 = vector.extract_strided_slice %287 {offsets = [0, 2, 0], sizes = [4, 4, 128], strides = [1, 1, 1]} : vector<4x8x128xf32> to vector<4x4x128xf32>
    %289 = arith.addf %283, %288 : vector<4x4x128xf32>
    %c5_276 = arith.constant 5 : index
    %c0_277 = arith.constant 0 : index
    %c0_278 = arith.constant 0 : index
    %290 = vector.load %arg10[%c5_276, %c0_277, %c0_278] : memref<9x128x128xbf16, #tpu.memory_space<vmem>>, vector<1x128x128xbf16>
    %291 = vector.shape_cast %290 : vector<1x128x128xbf16> to vector<128x128xbf16>
    %cst_279 = arith.constant dense<0.000000e+00> : vector<32x128xf32>
    %292 = tpu.matmul %277, %291, %cst_279 {dimension_numbers = #tpu.dot_dimension_numbers<[1], [0], [0], [1], [0, 0, 1, 1], [], []>} : vector<32x128xbf16>, vector<128x128xbf16>, vector<32x128xf32> -> vector<32x128xf32>
    %293 = vector.shape_cast %292 : vector<32x128xf32> to vector<4x8x128xf32>
    %294 = vector.extract_strided_slice %293 {offsets = [0, 3, 0], sizes = [4, 4, 128], strides = [1, 1, 1]} : vector<4x8x128xf32> to vector<4x4x128xf32>
    %295 = arith.addf %289, %294 : vector<4x4x128xf32>
    %c0_280 = arith.constant 0 : index
    %c2_281 = arith.constant 2 : index
    %c0_282 = arith.constant 0 : index
    %c0_283 = arith.constant 0 : index
    %296 = vector.load %arg16[%c0_280, %c2_281, %c0_282, %c0_283] : memref<1x6x8x128xbf16, #tpu.memory_space<vmem>>, vector<1x4x8x128xbf16>
    %297 = vector.shape_cast %296 : vector<1x4x8x128xbf16> to vector<32x128xbf16>
    %c6_284 = arith.constant 6 : index
    %c0_285 = arith.constant 0 : index
    %c0_286 = arith.constant 0 : index
    %298 = vector.load %arg10[%c6_284, %c0_285, %c0_286] : memref<9x128x128xbf16, #tpu.memory_space<vmem>>, vector<1x128x128xbf16>
    %299 = vector.shape_cast %298 : vector<1x128x128xbf16> to vector<128x128xbf16>
    %cst_287 = arith.constant dense<0.000000e+00> : vector<32x128xf32>
    %300 = tpu.matmul %297, %299, %cst_287 {dimension_numbers = #tpu.dot_dimension_numbers<[1], [0], [0], [1], [0, 0, 1, 1], [], []>} : vector<32x128xbf16>, vector<128x128xbf16>, vector<32x128xf32> -> vector<32x128xf32>
    %301 = vector.shape_cast %300 : vector<32x128xf32> to vector<4x8x128xf32>
    %302 = vector.extract_strided_slice %301 {offsets = [0, 1, 0], sizes = [4, 4, 128], strides = [1, 1, 1]} : vector<4x8x128xf32> to vector<4x4x128xf32>
    %303 = arith.addf %295, %302 : vector<4x4x128xf32>
    %c7_288 = arith.constant 7 : index
    %c0_289 = arith.constant 0 : index
    %c0_290 = arith.constant 0 : index
    %304 = vector.load %arg10[%c7_288, %c0_289, %c0_290] : memref<9x128x128xbf16, #tpu.memory_space<vmem>>, vector<1x128x128xbf16>
    %305 = vector.shape_cast %304 : vector<1x128x128xbf16> to vector<128x128xbf16>
    %cst_291 = arith.constant dense<0.000000e+00> : vector<32x128xf32>
    %306 = tpu.matmul %297, %305, %cst_291 {dimension_numbers = #tpu.dot_dimension_numbers<[1], [0], [0], [1], [0, 0, 1, 1], [], []>} : vector<32x128xbf16>, vector<128x128xbf16>, vector<32x128xf32> -> vector<32x128xf32>
    %307 = vector.shape_cast %306 : vector<32x128xf32> to vector<4x8x128xf32>
    %308 = vector.extract_strided_slice %307 {offsets = [0, 2, 0], sizes = [4, 4, 128], strides = [1, 1, 1]} : vector<4x8x128xf32> to vector<4x4x128xf32>
    %309 = arith.addf %303, %308 : vector<4x4x128xf32>
    %c8_292 = arith.constant 8 : index
    %c0_293 = arith.constant 0 : index
    %c0_294 = arith.constant 0 : index
    %310 = vector.load %arg10[%c8_292, %c0_293, %c0_294] : memref<9x128x128xbf16, #tpu.memory_space<vmem>>, vector<1x128x128xbf16>
    %311 = vector.shape_cast %310 : vector<1x128x128xbf16> to vector<128x128xbf16>
    %cst_295 = arith.constant dense<0.000000e+00> : vector<32x128xf32>
    %312 = tpu.matmul %297, %311, %cst_295 {dimension_numbers = #tpu.dot_dimension_numbers<[1], [0], [0], [1], [0, 0, 1, 1], [], []>} : vector<32x128xbf16>, vector<128x128xbf16>, vector<32x128xf32> -> vector<32x128xf32>
    %313 = vector.shape_cast %312 : vector<32x128xf32> to vector<4x8x128xf32>
    %314 = vector.extract_strided_slice %313 {offsets = [0, 3, 0], sizes = [4, 4, 128], strides = [1, 1, 1]} : vector<4x8x128xf32> to vector<4x4x128xf32>
    %315 = arith.addf %309, %314 : vector<4x4x128xf32>
    %c0_296 = arith.constant 0 : index
    %c0_297 = arith.constant 0 : index
    %316 = vector.load %arg11[%c0_296, %c0_297] : memref<1x128xf32, #tpu.memory_space<vmem>>, vector<1x128xf32>
    %317 = vector.shape_cast %316 : vector<1x128xf32> to vector<1x1x128xf32>
    %318 = vector.broadcast %317 : vector<1x1x128xf32> to vector<4x4x128xf32>
    %319 = arith.addf %315, %318 : vector<4x4x128xf32>
    %320 = vector.shape_cast %319 : vector<4x4x128xf32> to vector<1x4x4x128xf32>
    %cst_298 = arith.constant 0.000000e+00 : f32
    %321 = vector.broadcast %cst_298 : f32 to vector<1x4x4x128xf32>
    %322 = arith.maximumf %320, %321 : vector<1x4x4x128xf32>
    %323 = arith.truncf %322 : vector<1x4x4x128xf32> to vector<1x4x4x128xbf16>
    %c0_299 = arith.constant 0 : index
    %c1_300 = arith.constant 1 : index
    %c2_301 = arith.constant 2 : index
    %c0_302 = arith.constant 0 : index
    %324 = vector.load %arg17[%c0_299, %c1_300, %c2_301, %c0_302] : memref<1x6x8x128xbf16, #tpu.memory_space<vmem>>, vector<1x4x4x128xbf16>
    tpu.vector_store %arg17[%c0_299, %c1_300, %c2_301, %c0_302], %323 {strides = array<i32>} : memref<1x6x8x128xbf16, #tpu.memory_space<vmem>>, vector<1x4x4x128xbf16>,
    %c0_303 = arith.constant 0 : index
    %c1_304 = arith.constant 1 : index
    %c0_305 = arith.constant 0 : index
    %c0_306 = arith.constant 0 : index
    %325 = vector.load %arg17[%c0_303, %c1_304, %c0_305, %c0_306] : memref<1x6x8x128xbf16, #tpu.memory_space<vmem>>, vector<1x4x8x128xbf16>
    %326 = vector.shape_cast %325 : vector<1x4x8x128xbf16> to vector<32x128xbf16>
    %c0_307 = arith.constant 0 : index
    %c0_308 = arith.constant 0 : index
    %327 = vector.load %arg12[%c0_307, %c0_308] : memref<128x128xbf16, #tpu.memory_space<vmem>>, vector<128x128xbf16>
    %cst_309 = arith.constant dense<0.000000e+00> : vector<32x128xf32>
    %328 = tpu.matmul %326, %327, %cst_309 {dimension_numbers = #tpu.dot_dimension_numbers<[1], [0], [0], [1], [0, 0, 1, 1], [], []>} : vector<32x128xbf16>, vector<128x128xbf16>, vector<32x128xf32> -> vector<32x128xf32>
    %c0_310 = arith.constant 0 : index
    %c0_311 = arith.constant 0 : index
    %329 = vector.load %arg13[%c0_310, %c0_311] : memref<1x128xf32, #tpu.memory_space<vmem>>, vector<1x128xf32>
    %330 = vector.broadcast %329 : vector<1x128xf32> to vector<32x128xf32>
    %331 = arith.addf %328, %330 : vector<32x128xf32>
    %332 = arith.negf %331 : vector<32x128xf32>
    %333 = math.exp %332 : vector<32x128xf32>
    %cst_312 = arith.constant 1.000000e+00 : f32
    %334 = vector.broadcast %cst_312 : f32 to vector<32x128xf32>
    %335 = arith.addf %334, %333 : vector<32x128xf32>
    %336 = arith.divf %334, %335 : vector<32x128xf32>
    %337 = vector.shape_cast %336 : vector<32x128xf32> to vector<4x8x128xf32>
    %338 = vector.extract_strided_slice %337 {offsets = [0, 2, 0], sizes = [4, 4, 128], strides = [1, 1, 1]} : vector<4x8x128xf32> to vector<4x4x128xf32>
    %339 = vector.shape_cast %338 : vector<4x4x128xf32> to vector<1x4x4x128xf32>
    %c0_313 = arith.constant 0 : index
    %c0_314 = arith.constant 0 : index
    %c0_315 = arith.constant 0 : index
    %c0_316 = arith.constant 0 : index
    %340 = vector.load %arg14[%c0_313, %c0_314, %c0_315, %c0_316] : memref<1x4x4x128xf32, #tpu.memory_space<vmem>>, vector<1x4x4x128xf32>
    tpu.vector_store %arg14[%c0_313, %c0_314, %c0_315, %c0_316], %339 {strides = array<i32>} : memref<1x4x4x128xf32, #tpu.memory_space<vmem>>, vector<1x4x4x128xf32>,
    return
  }
  func.func @transform_0(%arg0: i32) -> (i32, i32, i32, i32) {
    %c0_i32 = arith.constant 0 : i32
    %c0_i32_0 = arith.constant 0 : i32
    %c0_i32_1 = arith.constant 0 : i32
    %c0_i32_2 = arith.constant 0 : i32
    return %arg0, %c0_i32, %c0_i32_0, %c0_i32_1 : i32, i32, i32, i32
  }
  func.func @transform_1(%arg0: i32) -> (i32, i32) {
    %c0_i32 = arith.constant 0 : i32
    %c0_i32_0 = arith.constant 0 : i32
    %c0_i32_1 = arith.constant 0 : i32
    return %c0_i32, %c0_i32_0 : i32, i32
  }
  func.func @transform_2(%arg0: i32) -> (i32, i32) {
    %c0_i32 = arith.constant 0 : i32
    %c0_i32_0 = arith.constant 0 : i32
    %c0_i32_1 = arith.constant 0 : i32
    return %c0_i32, %c0_i32_0 : i32, i32
  }
  func.func @transform_3(%arg0: i32) -> (i32, i32, i32) {
    %c0_i32 = arith.constant 0 : i32
    %c0_i32_0 = arith.constant 0 : i32
    %c0_i32_1 = arith.constant 0 : i32
    %c0_i32_2 = arith.constant 0 : i32
    return %c0_i32, %c0_i32_0, %c0_i32_1 : i32, i32, i32
  }
  func.func @transform_4(%arg0: i32) -> (i32, i32) {
    %c0_i32 = arith.constant 0 : i32
    %c0_i32_0 = arith.constant 0 : i32
    %c0_i32_1 = arith.constant 0 : i32
    return %c0_i32, %c0_i32_0 : i32, i32
  }
  func.func @transform_5(%arg0: i32) -> (i32, i32, i32) {
    %c0_i32 = arith.constant 0 : i32
    %c0_i32_0 = arith.constant 0 : i32
    %c0_i32_1 = arith.constant 0 : i32
    %c0_i32_2 = arith.constant 0 : i32
    return %c0_i32, %c0_i32_0, %c0_i32_1 : i32, i32, i32
  }
  func.func @transform_6(%arg0: i32) -> (i32, i32) {
    %c0_i32 = arith.constant 0 : i32
    %c0_i32_0 = arith.constant 0 : i32
    %c0_i32_1 = arith.constant 0 : i32
    return %c0_i32, %c0_i32_0 : i32, i32
  }
  func.func @transform_7(%arg0: i32) -> (i32, i32, i32) {
    %c0_i32 = arith.constant 0 : i32
    %c0_i32_0 = arith.constant 0 : i32
    %c0_i32_1 = arith.constant 0 : i32
    %c0_i32_2 = arith.constant 0 : i32
    return %c0_i32, %c0_i32_0, %c0_i32_1 : i32, i32, i32
  }
  func.func @transform_8(%arg0: i32) -> (i32, i32) {
    %c0_i32 = arith.constant 0 : i32
    %c0_i32_0 = arith.constant 0 : i32
    %c0_i32_1 = arith.constant 0 : i32
    return %c0_i32, %c0_i32_0 : i32, i32
  }
  func.func @transform_9(%arg0: i32) -> (i32, i32, i32) {
    %c0_i32 = arith.constant 0 : i32
    %c0_i32_0 = arith.constant 0 : i32
    %c0_i32_1 = arith.constant 0 : i32
    %c0_i32_2 = arith.constant 0 : i32
    return %c0_i32, %c0_i32_0, %c0_i32_1 : i32, i32, i32
  }
  func.func @transform_10(%arg0: i32) -> (i32, i32) {
    %c0_i32 = arith.constant 0 : i32
    %c0_i32_0 = arith.constant 0 : i32
    %c0_i32_1 = arith.constant 0 : i32
    return %c0_i32, %c0_i32_0 : i32, i32
  }
  func.func @transform_11(%arg0: i32) -> (i32, i32) {
    %c0_i32 = arith.constant 0 : i32
    %c0_i32_0 = arith.constant 0 : i32
    %c0_i32_1 = arith.constant 0 : i32
    return %c0_i32, %c0_i32_0 : i32, i32
  }
  func.func @transform_12(%arg0: i32) -> (i32, i32) {
    %c0_i32 = arith.constant 0 : i32
    %c0_i32_0 = arith.constant 0 : i32
    %c0_i32_1 = arith.constant 0 : i32
    return %c0_i32, %c0_i32_0 : i32, i32
  }
  func.func @transform_13(%arg0: i32) -> (i32, i32, i32, i32) {
    %c0_i32 = arith.constant 0 : i32
    %c0_i32_0 = arith.constant 0 : i32
    %c0_i32_1 = arith.constant 0 : i32
    %c0_i32_2 = arith.constant 0 : i32
    return %arg0, %c0_i32, %c0_i32_0, %c0_i32_1 : i32, i32, i32, i32
  }
}

</mosaic_0001>

<llo_original>
// kernel: basic_fcn_forward.1
$region0: #{basic_fcn_forward.1}
  #allocation0 [shape = 'u32[]', space=smem, size = 0x4, offset = 0x4, fixed_abs, tag = 'smem constant byte address 0x4 - core index']
  #allocation1 [shape = 'u32[144,128]{1,0:T(1,128)}', space=vmem, size = 0x12000, scoped, tag = 'internal scratch']
  #allocation2 [shape = 'bf16[1,10,16,128]{3,2,1,0:T(16,128)(2,1)}', space=vmem, size = 0xa000, scoped, tag = 'scratch operand']
  #allocation3 [shape = 'bf16[1,6,8,128]{3,2,1,0:T(8,128)(2,1)}', space=vmem, size = 0x3000, scoped, tag = 'scratch operand']
  #allocation4 [shape = 'bf16[1,6,8,128]{3,2,1,0:T(8,128)(2,1)}', space=vmem, size = 0x3000, scoped, tag = 'scratch operand']
  #allocation5 [shape = 'f32[1,8,16,128]{3,2,1,0:T(8,128)}', space=vmem, size = 0x10000, scoped, tag = 'scratch operand']
  #allocation6 [shape = 'f32[1,4,8,128]{3,2,1,0:T(8,128)}', space=vmem, size = 0x4000, scoped, tag = 'scratch operand']
  %s0 = inlined_call_operand.vmem [shape: bf16[2,16,16,128], index: 0, kind: input, shape index: {}]
  %s1 = inlined_call_operand.vmem [shape: bf16[128,128], index: 1, kind: input, shape index: {}]
  %s2 = inlined_call_operand.vmem [shape: f32[1,128], index: 2, kind: input, shape index: {}]
  %s3 = inlined_call_operand.vmem [shape: bf16[9,128,128], index: 3, kind: input, shape index: {}]
  %s4 = inlined_call_operand.vmem [shape: f32[1,128], index: 4, kind: input, shape index: {}]
  %s5 = inlined_call_operand.vmem [shape: bf16[9,128,128], index: 5, kind: input, shape index: {}]
  %s6 = inlined_call_operand.vmem [shape: f32[1,128], index: 6, kind: input, shape index: {}]
  %s7 = inlined_call_operand.vmem [shape: bf16[9,128,128], index: 7, kind: input, shape index: {}]
  %s8 = inlined_call_operand.vmem [shape: f32[1,128], index: 8, kind: input, shape index: {}]
  %s9 = inlined_call_operand.vmem [shape: bf16[9,128,128], index: 9, kind: input, shape index: {}]
  %s10 = inlined_call_operand.vmem [shape: f32[1,128], index: 10, kind: input, shape index: {}]
  %s11 = inlined_call_operand.vmem [shape: bf16[128,128], index: 11, kind: input, shape index: {}]
  %s12 = inlined_call_operand.vmem [shape: f32[1,128], index: 12, kind: input, shape index: {}]
  %s13 = inlined_call_operand.vmem [shape: f32[2,4,4,128], index: 13, kind: output, shape index: {}]
  %s14 = sld [smem:[#allocation0]]
  $region85: #{basic_fcn_forward.1} parent=0
    _
  %s16 = ssub.s32 1, %s14
  %s17 = scalar_select 0, %s16, %s14
  loop: start=0, step=1, limit=4
  $region2: #{basic_fcn_forward.1} parent=0 // loop_pre_header
    _
  $region3: #{basic_fcn_forward.1} parent=0 // loop_header
    %s19 = sphi 0, %s23
    %p20 = scmp.ge.s32.totalorder %s19, 4
    %s29 = sphi 0, %s31
    %s32 = sphi 0, %s29
    %s33 = sphi 0, %s32
    %s49 = sphi 0, %s33
    %s53 = sphi 0, %s53
    %s55 = sphi 0, %s53
    %s56 = sphi 0, %s55
    %s70 = sphi 0, %s56
    %s74 = sphi 0, %s74
    %s76 = sphi 0, %s74
    %s77 = sphi 0, %s76
    %s91 = sphi 0, %s77
    %s95 = sphi 0, %s95
    %s97 = sphi 0, %s95
    %s98 = sphi 0, %s97
    %s112 = sphi 0, %s98
    %s116 = sphi 0, %s116
    %s118 = sphi 0, %s116
    %s119 = sphi 0, %s118
    %s133 = sphi 0, %s119
    %s137 = sphi 0, %s137
    %s139 = sphi 0, %s137
    %s140 = sphi 0, %s139
    %s154 = sphi 0, %s140
    %s158 = sphi 0, %s158
    %s160 = sphi 0, %s158
    %s161 = sphi 0, %s160
    %s175 = sphi 0, %s161
    %s179 = sphi 0, %s179
    %s181 = sphi 0, %s179
    %s182 = sphi 0, %s181
    %s196 = sphi 0, %s182
    %s200 = sphi 0, %s200
    %s202 = sphi 0, %s200
    %s203 = sphi 0, %s202
    %s217 = sphi 0, %s203
    %s221 = sphi 0, %s221
    %s223 = sphi 0, %s221
    %s224 = sphi 0, %s223
    %s238 = sphi 0, %s224
    %s242 = sphi 0, %s242
    %s244 = sphi 0, %s242
    %s245 = sphi 0, %s244
    %s259 = sphi 0, %s245
    %s263 = sphi 0, %s263
    %s265 = sphi 0, %s263
    %s266 = sphi 0, %s265
    %s280 = sphi 0, %s266
    %s284 = sphi 0, %s284
    %s286 = sphi 0, %s284
    %s287 = sphi 0, %s286
    %s301 = sphi 0, %s287
    %s307 = sphi 0, %s309
    %s310 = sphi 0, %s307
    %s311 = sphi 0, %s310
    %s327 = sphi 0, %s311
  $region4: #{basic_fcn_forward.1} parent=0 // loop_header_branch
    %22 = sbr.rel (%p20) target = $region8
  $region5: #{basic_fcn_forward.1} parent=0 // loop_body
    %s24 = ssub.s32 %s19, 1
    %s25 = ssub.s32 %s19, 2
    %s26 = sadd.s32 %s19, 1
    %s27 = ssub.s32 %s19, %s26
    %p28 = scmp.eq.s32.totalorder %s27, 0
    %s30 = sadd.s32 %s29, 1
    %s31 = scalar_select %p28, %s29, %s30
    %p34 = pneg %p28
    %p35 = scmp.eq.s32.totalorder %s19, 1
    %p36 = por %p34, %p35
    %p37 = scmp.ne.s32.totalorder %s29, %s32
    %p38 = scmp.eq.s32.totalorder %s19, 0
    %p39 = por %p37, %p38
    %p40 = scmp.ne.s32.totalorder %s29, %s32
    %p41 = scmp.eq.s32.totalorder %s24, 1
    %p42 = por %p40, %p41
    %p43 = scmp.ne.s32.totalorder %s32, %s33
    %p44 = scmp.eq.s32.totalorder %s24, 0
    %p45 = por %p43, %p44
    %p46 = scmp.ne.s32.totalorder %s32, %s33
    %p47 = scmp.eq.s32.totalorder %s25, 1
    %p48 = por %p46, %p47
    %p50 = scmp.ne.s32.totalorder %s33, %s49
    %p51 = scmp.eq.s32.totalorder %s25, 0
    %p52 = por %p50, %p51
    %s54 = sadd.s32 %s53, 1
    %p57 = scmp.eq.s32.totalorder %s19, 1
    %p58 = scmp.ne.s32.totalorder %s53, %s55
    %p59 = scmp.eq.s32.totalorder %s19, 0
    %p60 = por %p58, %p59
    %p61 = scmp.ne.s32.totalorder %s53, %s55
    %p62 = scmp.eq.s32.totalorder %s24, 1
    %p63 = por %p61, %p62
    %p64 = scmp.ne.s32.totalorder %s55, %s56
    %p65 = scmp.eq.s32.totalorder %s24, 0
    %p66 = por %p64, %p65
    %p67 = scmp.ne.s32.totalorder %s55, %s56
    %p68 = scmp.eq.s32.totalorder %s25, 1
    %p69 = por %p67, %p68
    %p71 = scmp.ne.s32.totalorder %s56, %s70
    %p72 = scmp.eq.s32.totalorder %s25, 0
    %p73 = por %p71, %p72
    %s75 = sadd.s32 %s74, 1
    %p78 = scmp.eq.s32.totalorder %s19, 1
    %p79 = scmp.ne.s32.totalorder %s74, %s76
    %p80 = scmp.eq.s32.totalorder %s19, 0
    %p81 = por %p79, %p80
    %p82 = scmp.ne.s32.totalorder %s74, %s76
    %p83 = scmp.eq.s32.totalorder %s24, 1
    %p84 = por %p82, %p83
    %p85 = scmp.ne.s32.totalorder %s76, %s77
    %p86 = scmp.eq.s32.totalorder %s24, 0
    %p87 = por %p85, %p86
    %p88 = scmp.ne.s32.totalorder %s76, %s77
    %p89 = scmp.eq.s32.totalorder %s25, 1
    %p90 = por %p88, %p89
    %p92 = scmp.ne.s32.totalorder %s77, %s91
    %p93 = scmp.eq.s32.totalorder %s25, 0
    %p94 = por %p92, %p93
    %s96 = sadd.s32 %s95, 1
    %p99 = scmp.eq.s32.totalorder %s19, 1
    %p100 = scmp.ne.s32.totalorder %s95, %s97
    %p101 = scmp.eq.s32.totalorder %s19, 0
    %p102 = por %p100, %p101
    %p103 = scmp.ne.s32.totalorder %s95, %s97
    %p104 = scmp.eq.s32.totalorder %s24, 1
    %p105 = por %p103, %p104
    %p106 = scmp.ne.s32.totalorder %s97, %s98
    %p107 = scmp.eq.s32.totalorder %s24, 0
    %p108 = por %p106, %p107
    %p109 = scmp.ne.s32.totalorder %s97, %s98
    %p110 = scmp.eq.s32.totalorder %s25, 1
    %p111 = por %p109, %p110
    %p113 = scmp.ne.s32.totalorder %s98, %s112
    %p114 = scmp.eq.s32.totalorder %s25, 0
    %p115 = por %p113, %p114
    %s117 = sadd.s32 %s116, 1
    %p120 = scmp.eq.s32.totalorder %s19, 1
    %p121 = scmp.ne.s32.totalorder %s116, %s118
    %p122 = scmp.eq.s32.totalorder %s19, 0
    %p123 = por %p121, %p122
    %p124 = scmp.ne.s32.totalorder %s116, %s118
    %p125 = scmp.eq.s32.totalorder %s24, 1
    %p126 = por %p124, %p125
    %p127 = scmp.ne.s32.totalorder %s118, %s119
    %p128 = scmp.eq.s32.totalorder %s24, 0
    %p129 = por %p127, %p128
    %p130 = scmp.ne.s32.totalorder %s118, %s119
    %p131 = scmp.eq.s32.totalorder %s25, 1
    %p132 = por %p130, %p131
    %p134 = scmp.ne.s32.totalorder %s119, %s133
    %p135 = scmp.eq.s32.totalorder %s25, 0
    %p136 = por %p134, %p135
    %s138 = sadd.s32 %s137, 1
    %p141 = scmp.eq.s32.totalorder %s19, 1
    %p142 = scmp.ne.s32.totalorder %s137, %s139
    %p143 = scmp.eq.s32.totalorder %s19, 0
    %p144 = por %p142, %p143
    %p145 = scmp.ne.s32.totalorder %s137, %s139
    %p146 = scmp.eq.s32.totalorder %s24, 1
    %p147 = por %p145, %p146
    %p148 = scmp.ne.s32.totalorder %s139, %s140
    %p149 = scmp.eq.s32.totalorder %s24, 0
    %p150 = por %p148, %p149
    %p151 = scmp.ne.s32.totalorder %s139, %s140
    %p152 = scmp.eq.s32.totalorder %s25, 1
    %p153 = por %p151, %p152
    %p155 = scmp.ne.s32.totalorder %s140, %s154
    %p156 = scmp.eq.s32.totalorder %s25, 0
    %p157 = por %p155, %p156
    %s159 = sadd.s32 %s158, 1
    %p162 = scmp.eq.s32.totalorder %s19, 1
    %p163 = scmp.ne.s32.totalorder %s158, %s160
    %p164 = scmp.eq.s32.totalorder %s19, 0
    %p165 = por %p163, %p164
    %p166 = scmp.ne.s32.totalorder %s158, %s160
    %p167 = scmp.eq.s32.totalorder %s24, 1
    %p168 = por %p166, %p167
    %p169 = scmp.ne.s32.totalorder %s160, %s161
    %p170 = scmp.eq.s32.totalorder %s24, 0
    %p171 = por %p169, %p170
    %p172 = scmp.ne.s32.totalorder %s160, %s161
    %p173 = scmp.eq.s32.totalorder %s25, 1
    %p174 = por %p172, %p173
    %p176 = scmp.ne.s32.totalorder %s161, %s175
    %p177 = scmp.eq.s32.totalorder %s25, 0
    %p178 = por %p176, %p177
    %s180 = sadd.s32 %s179, 1
    %p183 = scmp.eq.s32.totalorder %s19, 1
    %p184 = scmp.ne.s32.totalorder %s179, %s181
    %p185 = scmp.eq.s32.totalorder %s19, 0
    %p186 = por %p184, %p185
    %p187 = scmp.ne.s32.totalorder %s179, %s181
    %p188 = scmp.eq.s32.totalorder %s24, 1
    %p189 = por %p187, %p188
    %p190 = scmp.ne.s32.totalorder %s181, %s182
    %p191 = scmp.eq.s32.totalorder %s24, 0
    %p192 = por %p190, %p191
    %p193 = scmp.ne.s32.totalorder %s181, %s182
    %p194 = scmp.eq.s32.totalorder %s25, 1
    %p195 = por %p193, %p194
    %p197 = scmp.ne.s32.totalorder %s182, %s196
    %p198 = scmp.eq.s32.totalorder %s25, 0
    %p199 = por %p197, %p198
    %s201 = sadd.s32 %s200, 1
    %p204 = scmp.eq.s32.totalorder %s19, 1
    %p205 = scmp.ne.s32.totalorder %s200, %s202
    %p206 = scmp.eq.s32.totalorder %s19, 0
    %p207 = por %p205, %p206
    %p208 = scmp.ne.s32.totalorder %s200, %s202
    %p209 = scmp.eq.s32.totalorder %s24, 1
    %p210 = por %p208, %p209
    %p211 = scmp.ne.s32.totalorder %s202, %s203
    %p212 = scmp.eq.s32.totalorder %s24, 0
    %p213 = por %p211, %p212
    %p214 = scmp.ne.s32.totalorder %s202, %s203
    %p215 = scmp.eq.s32.totalorder %s25, 1
    %p216 = por %p214, %p215
    %p218 = scmp.ne.s32.totalorder %s203, %s217
    %p219 = scmp.eq.s32.totalorder %s25, 0
    %p220 = por %p218, %p219
    %s222 = sadd.s32 %s221, 1
    %p225 = scmp.eq.s32.totalorder %s19, 1
    %p226 = scmp.ne.s32.totalorder %s221, %s223
    %p227 = scmp.eq.s32.totalorder %s19, 0
    %p228 = por %p226, %p227
    %p229 = scmp.ne.s32.totalorder %s221, %s223
    %p230 = scmp.eq.s32.totalorder %s24, 1
    %p231 = por %p229, %p230
    %p232 = scmp.ne.s32.totalorder %s223, %s224
    %p233 = scmp.eq.s32.totalorder %s24, 0
    %p234 = por %p232, %p233
    %p235 = scmp.ne.s32.totalorder %s223, %s224
    %p236 = scmp.eq.s32.totalorder %s25, 1
    %p237 = por %p235, %p236
    %p239 = scmp.ne.s32.totalorder %s224, %s238
    %p240 = scmp.eq.s32.totalorder %s25, 0
    %p241 = por %p239, %p240
    %s243 = sadd.s32 %s242, 1
    %p246 = scmp.eq.s32.totalorder %s19, 1
    %p247 = scmp.ne.s32.totalorder %s242, %s244
    %p248 = scmp.eq.s32.totalorder %s19, 0
    %p249 = por %p247, %p248
    %p250 = scmp.ne.s32.totalorder %s242, %s244
    %p251 = scmp.eq.s32.totalorder %s24, 1
    %p252 = por %p250, %p251
    %p253 = scmp.ne.s32.totalorder %s244, %s245
    %p254 = scmp.eq.s32.totalorder %s24, 0
    %p255 = por %p253, %p254
    %p256 = scmp.ne.s32.totalorder %s244, %s245
    %p257 = scmp.eq.s32.totalorder %s25, 1
    %p258 = por %p256, %p257
    %p260 = scmp.ne.s32.totalorder %s245, %s259
    %p261 = scmp.eq.s32.totalorder %s25, 0
    %p262 = por %p260, %p261
    %s264 = sadd.s32 %s263, 1
    %p267 = scmp.eq.s32.totalorder %s19, 1
    %p268 = scmp.ne.s32.totalorder %s263, %s265
    %p269 = scmp.eq.s32.totalorder %s19, 0
    %p270 = por %p268, %p269
    %p271 = scmp.ne.s32.totalorder %s263, %s265
    %p272 = scmp.eq.s32.totalorder %s24, 1
    %p273 = por %p271, %p272
    %p274 = scmp.ne.s32.totalorder %s265, %s266
    %p275 = scmp.eq.s32.totalorder %s24, 0
    %p276 = por %p274, %p275
    %p277 = scmp.ne.s32.totalorder %s265, %s266
    %p278 = scmp.eq.s32.totalorder %s25, 1
    %p279 = por %p277, %p278
    %p281 = scmp.ne.s32.totalorder %s266, %s280
    %p282 = scmp.eq.s32.totalorder %s25, 0
    %p283 = por %p281, %p282
    %s285 = sadd.s32 %s284, 1
    %p288 = scmp.eq.s32.totalorder %s19, 1
    %p289 = scmp.ne.s32.totalorder %s284, %s286
    %p290 = scmp.eq.s32.totalorder %s19, 0
    %p291 = por %p289, %p290
    %p292 = scmp.ne.s32.totalorder %s284, %s286
    %p293 = scmp.eq.s32.totalorder %s24, 1
    %p294 = por %p292, %p293
    %p295 = scmp.ne.s32.totalorder %s286, %s287
    %p296 = scmp.eq.s32.totalorder %s24, 0
    %p297 = por %p295, %p296
    %p298 = scmp.ne.s32.totalorder %s286, %s287
    %p299 = scmp.eq.s32.totalorder %s25, 1
    %p300 = por %p298, %p299
    %p302 = scmp.ne.s32.totalorder %s287, %s301
    %p303 = scmp.eq.s32.totalorder %s25, 0
    %p304 = por %p302, %p303
    %s305 = ssub.s32 %s19, %s26
    %p306 = scmp.eq.s32.totalorder %s305, 0
    %s308 = sadd.s32 %s307, 1
    %s309 = scalar_select %p306, %s307, %s308
    %p312 = pneg %p306
    %p313 = scmp.eq.s32.totalorder %s19, 1
    %p314 = por %p312, %p313
    %p315 = scmp.ne.s32.totalorder %s307, %s310
    %p316 = scmp.eq.s32.totalorder %s19, 0
    %p317 = por %p315, %p316
    %p318 = scmp.ne.s32.totalorder %s307, %s310
    %p319 = scmp.eq.s32.totalorder %s24, 1
    %p320 = por %p318, %p319
    %p321 = scmp.ne.s32.totalorder %s310, %s311
    %p322 = scmp.eq.s32.totalorder %s24, 0
    %p323 = por %p321, %p322
    %p324 = scmp.ne.s32.totalorder %s310, %s311
    %p325 = scmp.eq.s32.totalorder %s25, 1
    %p326 = por %p324, %p325
    %p328 = scmp.ne.s32.totalorder %s311, %s327
    %p329 = scmp.eq.s32.totalorder %s25, 0
    %p330 = por %p328, %p329
    %p331 = scmp.le.s32.totalorder 1, %s19
    %p332 = scmp.lt.s32.totalorder %s19, 3
    %p333 = pnand %p331, %p332
    %p334 = pneg %p333
    // Predicated region
    $region9: #{basic_fcn_forward.1} parent=5 // pred_check
      _
    $region10: #{basic_fcn_forward.1} parent=5 // pred_check_branch
      %336 = sbr.rel (%p333) target = $region12
    $region11: #{basic_fcn_forward.1} parent=5 // pred_region
      %s337 = ssub.s32 %s19, 1
      // Predicated region
      $region13: #{basic_fcn_forward.1} parent=11 // pred_check
        %p338 = pneg %p66
      $region14: #{basic_fcn_forward.1} parent=11 // pred_check_branch
        %340 = sbr.rel (%p338) target = $region16
      $region15: #{basic_fcn_forward.1} parent=11 // pred_region
        _
      $region16: #{basic_fcn_forward.1} parent=11 // pred_fallthru
        _
      // Predicated region
      $region17: #{basic_fcn_forward.1} parent=11 // pred_check
        %p341 = pneg %p87
      $region18: #{basic_fcn_forward.1} parent=11 // pred_check_branch
        %343 = sbr.rel (%p341) target = $region20
      $region19: #{basic_fcn_forward.1} parent=11 // pred_region
        _
      $region20: #{basic_fcn_forward.1} parent=11 // pred_fallthru
        _
      // Predicated region
      $region21: #{basic_fcn_forward.1} parent=11 // pred_check
        %p344 = pneg %p108
      $region22: #{basic_fcn_forward.1} parent=11 // pred_check_branch
        %346 = sbr.rel (%p344) target = $region24
      $region23: #{basic_fcn_forward.1} parent=11 // pred_region
        _
      $region24: #{basic_fcn_forward.1} parent=11 // pred_fallthru
        _
      // Predicated region
      $region25: #{basic_fcn_forward.1} parent=11 // pred_check
        %p347 = pneg %p129
      $region26: #{basic_fcn_forward.1} parent=11 // pred_check_branch
        %349 = sbr.rel (%p347) target = $region28
      $region27: #{basic_fcn_forward.1} parent=11 // pred_region
        _
      $region28: #{basic_fcn_forward.1} parent=11 // pred_fallthru
        _
      // Predicated region
      $region29: #{basic_fcn_forward.1} parent=11 // pred_check
        %p350 = pneg %p150
      $region30: #{basic_fcn_forward.1} parent=11 // pred_check_branch
        %352 = sbr.rel (%p350) target = $region32
      $region31: #{basic_fcn_forward.1} parent=11 // pred_region
        _
      $region32: #{basic_fcn_forward.1} parent=11 // pred_fallthru
        _
      // Predicated region
      $region33: #{basic_fcn_forward.1} parent=11 // pred_check
        %p353 = pneg %p171
      $region34: #{basic_fcn_forward.1} parent=11 // pred_check_branch
        %355 = sbr.rel (%p353) target = $region36
      $region35: #{basic_fcn_forward.1} parent=11 // pred_region
        _
      $region36: #{basic_fcn_forward.1} parent=11 // pred_fallthru
        _
      // Predicated region
      $region37: #{basic_fcn_forward.1} parent=11 // pred_check
        %p356 = pneg %p192
      $region38: #{basic_fcn_forward.1} parent=11 // pred_check_branch
        %358 = sbr.rel (%p356) target = $region40
      $region39: #{basic_fcn_forward.1} parent=11 // pred_region
        _
      $region40: #{basic_fcn_forward.1} parent=11 // pred_fallthru
        _
      // Predicated region
      $region41: #{basic_fcn_forward.1} parent=11 // pred_check
        %p359 = pneg %p213
      $region42: #{basic_fcn_forward.1} parent=11 // pred_check_branch
        %361 = sbr.rel (%p359) target = $region44
      $region43: #{basic_fcn_forward.1} parent=11 // pred_region
        _
      $region44: #{basic_fcn_forward.1} parent=11 // pred_fallthru
        _
      // Predicated region
      $region45: #{basic_fcn_forward.1} parent=11 // pred_check
        %p362 = pneg %p234
      $region46: #{basic_fcn_forward.1} parent=11 // pred_check_branch
        %364 = sbr.rel (%p362) target = $region48
      $region47: #{basic_fcn_forward.1} parent=11 // pred_region
        _
      $region48: #{basic_fcn_forward.1} parent=11 // pred_fallthru
        _
      // Predicated region
      $region49: #{basic_fcn_forward.1} parent=11 // pred_check
        %p365 = pneg %p255
      $region50: #{basic_fcn_forward.1} parent=11 // pred_check_branch
        %367 = sbr.rel (%p365) target = $region52
      $region51: #{basic_fcn_forward.1} parent=11 // pred_region
        _
      $region52: #{basic_fcn_forward.1} parent=11 // pred_fallthru
        _
      // Predicated region
      $region53: #{basic_fcn_forward.1} parent=11 // pred_check
        %p368 = pneg %p276
      $region54: #{basic_fcn_forward.1} parent=11 // pred_check_branch
        %370 = sbr.rel (%p368) target = $region56
      $region55: #{basic_fcn_forward.1} parent=11 // pred_region
        _
      $region56: #{basic_fcn_forward.1} parent=11 // pred_fallthru
        _
      // Predicated region
      $region57: #{basic_fcn_forward.1} parent=11 // pred_check
        %p371 = pneg %p297
      $region58: #{basic_fcn_forward.1} parent=11 // pred_check_branch
        %373 = sbr.rel (%p371) target = $region60
      $region59: #{basic_fcn_forward.1} parent=11 // pred_region
        _
      $region60: #{basic_fcn_forward.1} parent=11 // pred_fallthru
        _
    $region12: #{basic_fcn_forward.1} parent=5 // pred_fallthru
      _
    %p374 = scmp.lt.s32.totalorder %s19, 2
    // Predicated region
    $region61: #{basic_fcn_forward.1} parent=5 // pred_check
      %p375 = pneg %p374
    $region62: #{basic_fcn_forward.1} parent=5 // pred_check_branch
      %377 = sbr.rel (%p375) target = $region64
    $region63: #{basic_fcn_forward.1} parent=5 // pred_region
      // Predicated region
      $region65: #{basic_fcn_forward.1} parent=63 // pred_check
        %p378 = pneg %p39
      $region66: #{basic_fcn_forward.1} parent=63 // pred_check_branch
        %380 = sbr.rel (%p378) target = $region68
      $region67: #{basic_fcn_forward.1} parent=63 // pred_region
        %p381 = scmp.lt.s32.totalorder %s19, 1
        %s382 = scalar_select %p381, %s19, 1
        %s383 = smul.addr %s382, 32
        %s384 = smul.addr %s383, 4
        %s385 = scalar_lea.vmem %s0, %s384
      $region68: #{basic_fcn_forward.1} parent=63 // pred_fallthru
        _
    $region64: #{basic_fcn_forward.1} parent=5 // pred_fallthru
      _
    %p386 = scmp.le.s32.totalorder 1, %s19
    %p387 = scmp.lt.s32.totalorder %s19, 3
    %p388 = pnand %p386, %p387
    %p389 = pneg %p388
    // Predicated region
    $region69: #{basic_fcn_forward.1} parent=5 // pred_check
      _
    $region70: #{basic_fcn_forward.1} parent=5 // pred_check_branch
      %391 = sbr.rel (%p388) target = $region72
    $region71: #{basic_fcn_forward.1} parent=5 // pred_region
      %s392 = ssub.s32 %s19, 1
      %p393 = scmp.lt.s32.totalorder %s24, 1
      %s394 = scalar_select %p393, %s24, 1
      %s395 = smul.addr %s394, 32
      %s396 = smul.addr %s395, 4
      %s397 = scalar_lea.vmem %s0, %s396
      %p398 = pneg %p45
      %p399 = pneg %p42
      %p400 = pneg %p66
      %p401 = pneg %p63
      %p402 = pneg %p87
      %p403 = pneg %p84
      %p404 = pneg %p108
      %p405 = pneg %p105
      %p406 = pneg %p129
      %p407 = pneg %p126
      %p408 = pneg %p150
      %p409 = pneg %p147
      %p410 = pneg %p171
      %p411 = pneg %p168
      %p412 = pneg %p192
      %p413 = pneg %p189
      %p414 = pneg %p213
      %p415 = pneg %p210
      %p416 = pneg %p234
      %p417 = pneg %p231
      %p418 = pneg %p255
      %p419 = pneg %p252
      %p420 = pneg %p276
      %p421 = pneg %p273
      %p422 = pneg %p297
      %p423 = pneg %p294
      %p424 = pneg %p323
      %p425 = pneg %p320
      %p426 = scmp.lt.s32.totalorder %s24, 1
      %s427 = scalar_select %p426, %s24, 1
      %s428 = smul.addr %s427, 4
      %s429 = smul.addr %s428, 4
      %s430 = scalar_lea.vmem %s13, %s429
      %p431 = scmp.lt.s32.totalorder %s24, 1
      %s432 = scalar_select %p431, %s24, 1
      %s433 = smul.addr %s432, 32
      %s434 = smul.addr %s433, 4
      %s435 = scalar_lea.vmem %s0, %s434
      %p436 = scmp.lt.s32.totalorder %s24, 1
      %s437 = scalar_select %p436, %s24, 1
      %s438 = smul.addr %s437, 4
      %s439 = smul.addr %s438, 4
      %s440 = scalar_lea.vmem %s13, %s439
      %442 = vst [vmem:[#allocation2] sm:$0xff] 0
      %s443 = scalar_lea.vmem [#allocation2], 72
      %444 = vst [vmem:[%s443] sm:$0xff] 0
      %445 = vst [vmem:[#allocation2] sm:$0x1] 0
      %446 = vst [vmem:[#allocation2 + $0x8] sm:$0x1] 0
      %447 = vst [vmem:[#allocation2 + $0x10] sm:$0x1] 0
      %448 = vst [vmem:[#allocation2 + $0x18] sm:$0x1] 0
      %449 = vst [vmem:[#allocation2 + $0x20] sm:$0x1] 0
      %450 = vst [vmem:[#allocation2 + $0x28] sm:$0x1] 0
      %451 = vst [vmem:[#allocation2 + $0x30] sm:$0x1] 0
      %452 = vst [vmem:[#allocation2 + $0x38] sm:$0x1] 0
      %453 = vst [vmem:[#allocation2 + $0x40] sm:$0x1] 0
      %454 = vst [vmem:[#allocation2 + $0x48] sm:$0x1] 0
      %455 = vst [vmem:[#allocation2] sm:$0xe0] 0
      %456 = vst [vmem:[#allocation2 + $0x8] sm:$0xe0] 0
      %457 = vst [vmem:[#allocation2 + $0x10] sm:$0xe0] 0
      %458 = vst [vmem:[#allocation2 + $0x18] sm:$0xe0] 0
      %459 = vst [vmem:[#allocation2 + $0x20] sm:$0xe0] 0
      %460 = vst [vmem:[#allocation2 + $0x28] sm:$0xe0] 0
      %461 = vst [vmem:[#allocation2 + $0x30] sm:$0xe0] 0
      %462 = vst [vmem:[#allocation2 + $0x38] sm:$0xe0] 0
      %463 = vst [vmem:[#allocation2 + $0x40] sm:$0xe0] 0
      %464 = vst [vmem:[#allocation2 + $0x48] sm:$0xe0] 0
      %465 = vst [vmem:[#allocation3] sm:$0xf] 0
      %s466 = scalar_lea.vmem [#allocation3], 20
      %467 = vst [vmem:[%s466] sm:$0xf] 0
      %468 = vst [vmem:[#allocation3] sm:$0x1] 0
      %469 = vst [vmem:[#allocation3 + $0x4] sm:$0x1] 0
      %470 = vst [vmem:[#allocation3 + $0x8] sm:$0x1] 0
      %471 = vst [vmem:[#allocation3 + $0xc] sm:$0x1] 0
      %472 = vst [vmem:[#allocation3 + $0x10] sm:$0x1] 0
      %473 = vst [vmem:[#allocation3 + $0x14] sm:$0x1] 0
      %474 = vst [vmem:[#allocation3] sm:$0x8] 0
      %475 = vst [vmem:[#allocation3 + $0x4] sm:$0x8] 0
      %476 = vst [vmem:[#allocation3 + $0x8] sm:$0x8] 0
      %477 = vst [vmem:[#allocation3 + $0xc] sm:$0x8] 0
      %478 = vst [vmem:[#allocation3 + $0x10] sm:$0x8] 0
      %479 = vst [vmem:[#allocation3 + $0x14] sm:$0x8] 0
      %480 = vst [vmem:[#allocation4] sm:$0xf] 0
      %s481 = scalar_lea.vmem [#allocation4], 20
      %482 = vst [vmem:[%s481] sm:$0xf] 0
      %483 = vst [vmem:[#allocation4] sm:$0x1] 0
      %484 = vst [vmem:[#allocation4 + $0x4] sm:$0x1] 0
      %485 = vst [vmem:[#allocation4 + $0x8] sm:$0x1] 0
      %486 = vst [vmem:[#allocation4 + $0xc] sm:$0x1] 0
      %487 = vst [vmem:[#allocation4 + $0x10] sm:$0x1] 0
      %488 = vst [vmem:[#allocation4 + $0x14] sm:$0x1] 0
      %489 = vst [vmem:[#allocation4] sm:$0x8] 0
      %490 = vst [vmem:[#allocation4 + $0x4] sm:$0x8] 0
      %491 = vst [vmem:[#allocation4 + $0x8] sm:$0x8] 0
      %492 = vst [vmem:[#allocation4 + $0xc] sm:$0x8] 0
      %493 = vst [vmem:[#allocation4 + $0x10] sm:$0x8] 0
      %494 = vst [vmem:[#allocation4 + $0x14] sm:$0x8] 0
      %v495 = vld [vmem:[%s435] sm:$0xf]
      %v496 = vld [vmem:[%s435 + $0x4] sm:$0xf]
      %v497 = vld [vmem:[%s435 + $0x8] sm:$0xf]
      %v498 = vld [vmem:[%s435 + $0xc] sm:$0xf]
      %v499 = vld [vmem:[%s435 + $0x10] sm:$0xf]
      %v500 = vld [vmem:[%s435 + $0x14] sm:$0xf]
      %v501 = vld [vmem:[%s435 + $0x18] sm:$0xf]
      %v502 = vld [vmem:[%s435 + $0x1c] sm:$0xf]
      %v503 = vld [vmem:[%s435 + $0x20] sm:$0xf]
      %v504 = vld [vmem:[%s435 + $0x24] sm:$0xf]
      %v505 = vld [vmem:[%s435 + $0x28] sm:$0xf]
      %v506 = vld [vmem:[%s435 + $0x2c] sm:$0xf]
      %v507 = vld [vmem:[%s435 + $0x30] sm:$0xf]
      %v508 = vld [vmem:[%s435 + $0x34] sm:$0xf]
      %v509 = vld [vmem:[%s435 + $0x38] sm:$0xf]
      %v510 = vld [vmem:[%s435 + $0x3c] sm:$0xf]
      %v511 = vld [vmem:[%s435 + $0x40] sm:$0xf]
      %v512 = vld [vmem:[%s435 + $0x44] sm:$0xf]
      %v513 = vld [vmem:[%s435 + $0x48] sm:$0xf]
      %v514 = vld [vmem:[%s435 + $0x4c] sm:$0xf]
      %v515 = vld [vmem:[%s435 + $0x50] sm:$0xf]
      %v516 = vld [vmem:[%s435 + $0x54] sm:$0xf]
      %v517 = vld [vmem:[%s435 + $0x58] sm:$0xf]
      %v518 = vld [vmem:[%s435 + $0x5c] sm:$0xf]
      %v519 = vld [vmem:[%s435 + $0x60] sm:$0xf]
      %v520 = vld [vmem:[%s435 + $0x64] sm:$0xf]
      %v521 = vld [vmem:[%s435 + $0x68] sm:$0xf]
      %v522 = vld [vmem:[%s435 + $0x6c] sm:$0xf]
      %v523 = vld [vmem:[%s435 + $0x70] sm:$0xf]
      %v524 = vld [vmem:[%s435 + $0x74] sm:$0xf]
      %v525 = vld [vmem:[%s435 + $0x78] sm:$0xf]
      %v526 = vld [vmem:[%s435 + $0x7c] sm:$0xf]
      %v527 = vld [vmem:[%s1] sm:$0xf]
      %v528 = vld [vmem:[%s1 + $0x4] sm:$0xf]
      %v529 = vld [vmem:[%s1 + $0x8] sm:$0xf]
      %v530 = vld [vmem:[%s1 + $0xc] sm:$0xf]
      %v531 = vld [vmem:[%s1 + $0x10] sm:$0xf]
      %v532 = vld [vmem:[%s1 + $0x14] sm:$0xf]
      %v533 = vld [vmem:[%s1 + $0x18] sm:$0xf]
      %v534 = vld [vmem:[%s1 + $0x1c] sm:$0xf]
      %v535 = vld [vmem:[%s1 + $0x20] sm:$0xf]
      %v536 = vld [vmem:[%s1 + $0x24] sm:$0xf]
      %v537 = vld [vmem:[%s1 + $0x28] sm:$0xf]
      %v538 = vld [vmem:[%s1 + $0x2c] sm:$0xf]
      %v539 = vld [vmem:[%s1 + $0x30] sm:$0xf]
      %v540 = vld [vmem:[%s1 + $0x34] sm:$0xf]
      %v541 = vld [vmem:[%s1 + $0x38] sm:$0xf]
      %v542 = vld [vmem:[%s1 + $0x3c] sm:$0xf]
      %v543 = vld [vmem:[%s2] sm:$0x1]
      %v545 = vlaneseq
      %v546 = vshrl.u32 %v545, 7
      %v547 = vsub.s32 0, %v546
      %v548 = vrot.slane %v543, %v547
      %v582 = vunpack.c.l.b16 %v495
      %v583 = vunpack.c.l.b16 %v496
      %v584 = vunpack.c.l.b16 %v497
      %v585 = vunpack.c.l.b16 %v498
      %v586 = vunpack.c.l.b16 %v499
      %v587 = vunpack.c.l.b16 %v500
      %v588 = vunpack.c.l.b16 %v501
      %v589 = vunpack.c.l.b16 %v502
      %v590 = vunpack.c.l.b16 %v503
      %v591 = vunpack.c.l.b16 %v504
      %v592 = vunpack.c.l.b16 %v505
      %v593 = vunpack.c.l.b16 %v506
      %v594 = vunpack.c.l.b16 %v507
      %v595 = vunpack.c.l.b16 %v508
      %v596 = vunpack.c.l.b16 %v509
      %v597 = vunpack.c.l.b16 %v510
      %v598 = vunpack.c.l.b16 %v511
      %v599 = vunpack.c.l.b16 %v512
      %v600 = vunpack.c.l.b16 %v513
      %v601 = vunpack.c.l.b16 %v514
      %v602 = vunpack.c.l.b16 %v515
      %v603 = vunpack.c.l.b16 %v516
      %v604 = vunpack.c.l.b16 %v517
      %v605 = vunpack.c.l.b16 %v518
      %v606 = vunpack.c.l.b16 %v519
      %v607 = vunpack.c.l.b16 %v520
      %v608 = vunpack.c.l.b16 %v521
      %v609 = vunpack.c.l.b16 %v522
      %v610 = vunpack.c.l.b16 %v523
      %v611 = vunpack.c.l.b16 %v524
      %v612 = vunpack.c.l.b16 %v525
      %v613 = vunpack.c.l.b16 %v526
      %v614 = vpack.c.b16 %v583, %v582
      %v615 = vpack.c.b16 %v585, %v584
      %v616 = vpack.c.b16 %v587, %v586
      %v617 = vpack.c.b16 %v589, %v588
      %v618 = vpack.c.b16 %v591, %v590
      %v619 = vpack.c.b16 %v593, %v592
      %v620 = vpack.c.b16 %v595, %v594
      %v621 = vpack.c.b16 %v597, %v596
      %v622 = vpack.c.b16 %v599, %v598
      %v623 = vpack.c.b16 %v601, %v600
      %v624 = vpack.c.b16 %v603, %v602
      %v625 = vpack.c.b16 %v605, %v604
      %v626 = vpack.c.b16 %v607, %v606
      %v627 = vpack.c.b16 %v609, %v608
      %v628 = vpack.c.b16 %v611, %v610
      %v629 = vpack.c.b16 %v613, %v612
      %v662 = vunpack.c.l.b16 %v527
      %v663 = vunpack.c.l.b16 %v528
      %v664 = vunpack.c.l.b16 %v529
      %v665 = vunpack.c.l.b16 %v530
      %v666 = vunpack.c.l.b16 %v531
      %v667 = vunpack.c.l.b16 %v532
      %v668 = vunpack.c.l.b16 %v533
      %v669 = vunpack.c.l.b16 %v534
      %v670 = vunpack.c.l.b16 %v535
      %v671 = vunpack.c.l.b16 %v536
      %v672 = vunpack.c.l.b16 %v537
      %v673 = vunpack.c.l.b16 %v538
      %v674 = vunpack.c.l.b16 %v539
      %v675 = vunpack.c.l.b16 %v540
      %v676 = vunpack.c.l.b16 %v541
      %v677 = vunpack.c.l.b16 %v542
      %v678 = vpack.c.b16 %v663, %v662
      %v679 = vpack.c.b16 %v665, %v664
      %v680 = vpack.c.b16 %v667, %v666
      %v681 = vpack.c.b16 %v669, %v668
      %v682 = vpack.c.b16 %v671, %v670
      %v683 = vpack.c.b16 %v673, %v672
      %v684 = vpack.c.b16 %v675, %v674
      %v685 = vpack.c.b16 %v677, %v676
      %694 = vmatprep.subr.bf16.mxu0 0
      %695 = vmatpush1.bf16.msra.mxu0 %v678
      %696 = vmatprep.subr.bf16.mxu0 0
      %697 = vmatpush1.bf16.msra.mxu0 %v679
      %698 = vmatprep.subr.bf16.mxu0 0
      %699 = vmatpush1.bf16.msra.mxu0 %v680
      %700 = vmatprep.subr.bf16.mxu0 0
      %701 = vmatpush1.bf16.msra.mxu0 %v681
      %702 = vmatprep.subr.bf16.mxu0 0
      %703 = vmatpush1.bf16.msra.mxu0 %v682
      %704 = vmatprep.subr.bf16.mxu0 0
      %705 = vmatpush1.bf16.msra.mxu0 %v683
      %706 = vmatprep.subr.bf16.mxu0 0
      %707 = vmatpush1.bf16.msra.mxu0 %v684
      %708 = vmatprep.subr.bf16.mxu0 0
      %709 = vmatpush1.bf16.msra.mxu0 %v685
      %710 = vmatprep.subr.bf16.mxu0 0
      %711 = vmatpush1.bf16.msra.mxu0 0
      %712 = vmatprep.subr.bf16.mxu0 0
      %713 = vmatpush1.bf16.msra.mxu0 0
      %714 = vmatprep.subr.bf16.mxu0 0
      %715 = vmatpush1.bf16.msra.mxu0 0
      %716 = vmatprep.subr.bf16.mxu0 0
      %717 = vmatpush1.bf16.msra.mxu0 0
      %718 = vmatprep.subr.bf16.mxu0 0
      %719 = vmatpush1.bf16.msra.mxu0 0
      %720 = vmatprep.subr.bf16.mxu0 0
      %721 = vmatpush1.bf16.msra.mxu0 0
      %722 = vmatprep.subr.bf16.mxu0 0
      %723 = vmatpush1.bf16.msra.mxu0 0
      %724 = vmatprep.subr.bf16.mxu0 0
      %725 = vmatpush1.bf16.msra.mxu0 0
      %726 = vmatprep.mubr.bf16.mxu0 0
      %727 = vmatmul.mubr.bf16.gmra.mrb[0].mxu0 %v614
      %v728 = vpop.f32.mrb[0].mxu0
      %v729 = vadd.f32 %v548, %v728
      %v730 = vpop.f32.mrb[0].mxu0
      %v731 = vpop.f32.mrb[0].mxu0
      %v732 = vadd.f32 %v548, %v731
      %v733 = vpop.f32.mrb[0].mxu0
      %734 = vmatprep.mubr.bf16.mxu0 0
      %735 = vmatmul.mubr.bf16.gmra.mrb[0].mxu0 %v615
      %v736 = vpop.f32.mrb[0].mxu0
      %v737 = vadd.f32 %v548, %v736
      %v738 = vpop.f32.mrb[0].mxu0
      %v739 = vpop.f32.mrb[0].mxu0
      %v740 = vadd.f32 %v548, %v739
      %v741 = vpop.f32.mrb[0].mxu0
      %742 = vmatprep.mubr.bf16.mxu0 0
      %743 = vmatmul.mubr.bf16.gmra.mrb[0].mxu0 %v616
      %v744 = vpop.f32.mrb[0].mxu0
      %v745 = vadd.f32 %v548, %v744
      %v746 = vpop.f32.mrb[0].mxu0
      %v747 = vpop.f32.mrb[0].mxu0
      %v748 = vadd.f32 %v548, %v747
      %v749 = vpop.f32.mrb[0].mxu0
      %750 = vmatprep.mubr.bf16.mxu0 0
      %751 = vmatmul.mubr.bf16.gmra.mrb[0].mxu0 %v617
      %v752 = vpop.f32.mrb[0].mxu0
      %v753 = vadd.f32 %v548, %v752
      %v754 = vpop.f32.mrb[0].mxu0
      %v755 = vpop.f32.mrb[0].mxu0
      %v756 = vadd.f32 %v548, %v755
      %v757 = vpop.f32.mrb[0].mxu0
      %758 = vmatprep.mubr.bf16.mxu0 0
      %759 = vmatmul.mubr.bf16.gmra.mrb[0].mxu0 %v618
      %v760 = vpop.f32.mrb[0].mxu0
      %v761 = vadd.f32 %v548, %v760
      %v762 = vpop.f32.mrb[0].mxu0
      %v763 = vpop.f32.mrb[0].mxu0
      %v764 = vadd.f32 %v548, %v763
      %v765 = vpop.f32.mrb[0].mxu0
      %766 = vmatprep.mubr.bf16.mxu0 0
      %767 = vmatmul.mubr.bf16.gmra.mrb[0].mxu0 %v619
      %v768 = vpop.f32.mrb[0].mxu0
      %v769 = vadd.f32 %v548, %v768
      %v770 = vpop.f32.mrb[0].mxu0
      %v771 = vpop.f32.mrb[0].mxu0
      %v772 = vadd.f32 %v548, %v771
      %v773 = vpop.f32.mrb[0].mxu0
      %774 = vmatprep.mubr.bf16.mxu0 0
      %775 = vmatmul.mubr.bf16.gmra.mrb[0].mxu0 %v620
      %v776 = vpop.f32.mrb[0].mxu0
      %v777 = vadd.f32 %v548, %v776
      %v778 = vpop.f32.mrb[0].mxu0
      %v779 = vpop.f32.mrb[0].mxu0
      %v780 = vadd.f32 %v548, %v779
      %v781 = vpop.f32.mrb[0].mxu0
      %782 = vmatprep.mubr.bf16.mxu0 0
      %783 = vmatmul.mubr.bf16.gmra.mrb[0].mxu0 %v621
      %v784 = vpop.f32.mrb[0].mxu0
      %v785 = vadd.f32 %v548, %v784
      %v786 = vpop.f32.mrb[0].mxu0
      %v787 = vpop.f32.mrb[0].mxu0
      %v788 = vadd.f32 %v548, %v787
      %v789 = vpop.f32.mrb[0].mxu0
      %790 = vmatprep.mubr.bf16.mxu0 0
      %791 = vmatmul.mubr.bf16.gmra.mrb[0].mxu0 %v622
      %v792 = vpop.f32.mrb[0].mxu0
      %v793 = vadd.f32 %v548, %v792
      %v794 = vpop.f32.mrb[0].mxu0
      %v795 = vpop.f32.mrb[0].mxu0
      %v796 = vadd.f32 %v548, %v795
      %v797 = vpop.f32.mrb[0].mxu0
      %798 = vmatprep.mubr.bf16.mxu0 0
      %799 = vmatmul.mubr.bf16.gmra.mrb[0].mxu0 %v623
      %v800 = vpop.f32.mrb[0].mxu0
      %v801 = vadd.f32 %v548, %v800
      %v802 = vpop.f32.mrb[0].mxu0
      %v803 = vpop.f32.mrb[0].mxu0
      %v804 = vadd.f32 %v548, %v803
      %v805 = vpop.f32.mrb[0].mxu0
      %806 = vmatprep.mubr.bf16.mxu0 0
      %807 = vmatmul.mubr.bf16.gmra.mrb[0].mxu0 %v624
      %v808 = vpop.f32.mrb[0].mxu0
      %v809 = vadd.f32 %v548, %v808
      %v810 = vpop.f32.mrb[0].mxu0
      %v811 = vpop.f32.mrb[0].mxu0
      %v812 = vadd.f32 %v548, %v811
      %v813 = vpop.f32.mrb[0].mxu0
      %814 = vmatprep.mubr.bf16.mxu0 0
      %815 = vmatmul.mubr.bf16.gmra.mrb[0].mxu0 %v625
      %v816 = vpop.f32.mrb[0].mxu0
      %v817 = vadd.f32 %v548, %v816
      %v818 = vpop.f32.mrb[0].mxu0
      %v819 = vpop.f32.mrb[0].mxu0
      %v820 = vadd.f32 %v548, %v819
      %v821 = vpop.f32.mrb[0].mxu0
      %822 = vmatprep.mubr.bf16.mxu0 0
      %823 = vmatmul.mubr.bf16.gmra.mrb[0].mxu0 %v626
      %v824 = vpop.f32.mrb[0].mxu0
      %v825 = vadd.f32 %v548, %v824
      %v826 = vpop.f32.mrb[0].mxu0
      %v827 = vpop.f32.mrb[0].mxu0
      %v828 = vadd.f32 %v548, %v827
      %v829 = vpop.f32.mrb[0].mxu0
      %830 = vmatprep.mubr.bf16.mxu0 0
      %831 = vmatmul.mubr.bf16.gmra.mrb[0].mxu0 %v627
      %v832 = vpop.f32.mrb[0].mxu0
      %v833 = vadd.f32 %v548, %v832
      %v834 = vpop.f32.mrb[0].mxu0
      %v835 = vpop.f32.mrb[0].mxu0
      %v836 = vadd.f32 %v548, %v835
      %v837 = vpop.f32.mrb[0].mxu0
      %838 = vmatprep.mubr.bf16.mxu0 0
      %839 = vmatmul.mubr.bf16.gmra.mrb[0].mxu0 %v628
      %v840 = vpop.f32.mrb[0].mxu0
      %v841 = vadd.f32 %v548, %v840
      %v842 = vpop.f32.mrb[0].mxu0
      %v843 = vpop.f32.mrb[0].mxu0
      %v844 = vadd.f32 %v548, %v843
      %v845 = vpop.f32.mrb[0].mxu0
      %846 = vmatprep.mubr.bf16.mxu0 0
      %847 = vmatmul.mubr.bf16.gmra.mrb[0].mxu0 %v629
      %v848 = vpop.f32.mrb[0].mxu0
      %v849 = vadd.f32 %v548, %v848
      %v850 = vpop.f32.mrb[0].mxu0
      %v851 = vpop.f32.mrb[0].mxu0
      %v852 = vadd.f32 %v548, %v851
      %v853 = vpop.f32.mrb[0].mxu0
      %854 = vdwg.mxu0
      %v855 = vmax.f32 %v729, 0.0
      %v856 = vmax.f32 %v732, 0.0
      %v857 = vmax.f32 %v737, 0.0
      %v858 = vmax.f32 %v740, 0.0
      %v859 = vmax.f32 %v745, 0.0
      %v860 = vmax.f32 %v748, 0.0
      %v861 = vmax.f32 %v753, 0.0
      %v862 = vmax.f32 %v756, 0.0
      %v863 = vmax.f32 %v761, 0.0
      %v864 = vmax.f32 %v764, 0.0
      %v865 = vmax.f32 %v769, 0.0
      %v866 = vmax.f32 %v772, 0.0
      %v867 = vmax.f32 %v777, 0.0
      %v868 = vmax.f32 %v780, 0.0
      %v869 = vmax.f32 %v785, 0.0
      %v870 = vmax.f32 %v788, 0.0
      %v871 = vmax.f32 %v793, 0.0
      %v872 = vmax.f32 %v796, 0.0
      %v873 = vmax.f32 %v801, 0.0
      %v874 = vmax.f32 %v804, 0.0
      %v875 = vmax.f32 %v809, 0.0
      %v876 = vmax.f32 %v812, 0.0
      %v877 = vmax.f32 %v817, 0.0
      %v878 = vmax.f32 %v820, 0.0
      %v879 = vmax.f32 %v825, 0.0
      %v880 = vmax.f32 %v828, 0.0
      %v881 = vmax.f32 %v833, 0.0
      %v882 = vmax.f32 %v836, 0.0
      %v883 = vmax.f32 %v841, 0.0
      %v884 = vmax.f32 %v844, 0.0
      %v885 = vmax.f32 %v849, 0.0
      %v886 = vmax.f32 %v852, 0.0
      %v887 = vmax.f32 %v855, %v857
      %v888 = vmax.f32 %v856, %v858
      %v889 = vmax.f32 %v859, %v861
      %v890 = vmax.f32 %v860, %v862
      %v891 = vmax.f32 %v863, %v865
      %v892 = vmax.f32 %v864, %v866
      %v893 = vmax.f32 %v867, %v869
      %v894 = vmax.f32 %v868, %v870
      %v895 = vmax.f32 %v871, %v873
      %v896 = vmax.f32 %v872, %v874
      %v897 = vmax.f32 %v875, %v877
      %v898 = vmax.f32 %v876, %v878
      %v899 = vmax.f32 %v879, %v881
      %v900 = vmax.f32 %v880, %v882
      %v901 = vmax.f32 %v883, %v885
      %v902 = vmax.f32 %v884, %v886
      %903 = vst [vmem:[#allocation5] sm:$0xff] %v887
      %904 = vst [vmem:[#allocation5 + $0x8] sm:$0xff] %v888
      %905 = vst [vmem:[#allocation5 + $0x10] sm:$0xff] %v889
      %906 = vst [vmem:[#allocation5 + $0x18] sm:$0xff] %v890
      %907 = vst [vmem:[#allocation5 + $0x20] sm:$0xff] %v891
      %908 = vst [vmem:[#allocation5 + $0x28] sm:$0xff] %v892
      %909 = vst [vmem:[#allocation5 + $0x30] sm:$0xff] %v893
      %910 = vst [vmem:[#allocation5 + $0x38] sm:$0xff] %v894
      %911 = vst [vmem:[#allocation5 + $0x40] sm:$0xff] %v895
      %912 = vst [vmem:[#allocation5 + $0x48] sm:$0xff] %v896
      %913 = vst [vmem:[#allocation5 + $0x50] sm:$0xff] %v897
      %914 = vst [vmem:[#allocation5 + $0x58] sm:$0xff] %v898
      %915 = vst [vmem:[#allocation5 + $0x60] sm:$0xff] %v899
      %916 = vst [vmem:[#allocation5 + $0x68] sm:$0xff] %v900
      %917 = vst [vmem:[#allocation5 + $0x70] sm:$0xff] %v901
      %918 = vst [vmem:[#allocation5 + $0x78] sm:$0xff] %v902
      %v919 = vld [vmem:[#allocation5] ss:$2 sm:$0xff]
      %s920 = scalar_lea.vmem [#allocation5], 16
      %v921 = vld [vmem:[%s920] ss:$2 sm:$0xff]
      %s922 = scalar_lea.vmem [#allocation5], 32
      %v923 = vld [vmem:[%s922] ss:$2 sm:$0xff]
      %s924 = scalar_lea.vmem [#allocation5], 48
      %v925 = vld [vmem:[%s924] ss:$2 sm:$0xff]
      %s926 = scalar_lea.vmem [#allocation5], 64
      %v927 = vld [vmem:[%s926] ss:$2 sm:$0xff]
      %s928 = scalar_lea.vmem [#allocation5], 80
      %v929 = vld [vmem:[%s928] ss:$2 sm:$0xff]
      %s930 = scalar_lea.vmem [#allocation5], 96
      %v931 = vld [vmem:[%s930] ss:$2 sm:$0xff]
      %s932 = scalar_lea.vmem [#allocation5], 112
      %v933 = vld [vmem:[%s932] ss:$2 sm:$0xff]
      %s934 = scalar_lea.vmem [#allocation5], 1
      %v935 = vld [vmem:[%s934] ss:$2 sm:$0xff]
      %s936 = scalar_lea.vmem [#allocation5], 17
      %v937 = vld [vmem:[%s936] ss:$2 sm:$0xff]
      %s938 = scalar_lea.vmem [#allocation5], 33
      %v939 = vld [vmem:[%s938] ss:$2 sm:$0xff]
      %s940 = scalar_lea.vmem [#allocation5], 49
      %v941 = vld [vmem:[%s940] ss:$2 sm:$0xff]
      %s942 = scalar_lea.vmem [#allocation5], 65
      %v943 = vld [vmem:[%s942] ss:$2 sm:$0xff]
      %s944 = scalar_lea.vmem [#allocation5], 81
      %v945 = vld [vmem:[%s944] ss:$2 sm:$0xff]
      %s946 = scalar_lea.vmem [#allocation5], 97
      %v947 = vld [vmem:[%s946] ss:$2 sm:$0xff]
      %s948 = scalar_lea.vmem [#allocation5], 113
      %v949 = vld [vmem:[%s948] ss:$2 sm:$0xff]
      %v950 = vmax.f32 %v919, %v935
      %v951 = vmax.f32 %v921, %v937
      %v952 = vmax.f32 %v923, %v939
      %v953 = vmax.f32 %v925, %v941
      %v954 = vmax.f32 %v927, %v943
      %v955 = vmax.f32 %v929, %v945
      %v956 = vmax.f32 %v931, %v947
      %v957 = vmax.f32 %v933, %v949
      %v958 = vpack.c.bf16 %v950, %v950
      %v959 = vpack.c.bf16 %v951, %v951
      %v960 = vpack.c.bf16 %v952, %v952
      %v961 = vpack.c.bf16 %v953, %v953
      %v962 = vpack.c.bf16 %v954, %v954
      %v963 = vpack.c.bf16 %v955, %v955
      %v964 = vpack.c.bf16 %v956, %v956
      %v965 = vpack.c.bf16 %v957, %v957
      %v974 = vrot.slane %v958, 7
      %v975 = vrot.slane %v959, 7
      %v976 = vrot.slane %v960, 7
      %v977 = vrot.slane %v961, 7
      %v978 = vrot.slane %v962, 7
      %v979 = vrot.slane %v963, 7
      %v980 = vrot.slane %v964, 7
      %v981 = vrot.slane %v965, 7
      %s990 = scalar_lea.vmem [#allocation2], 8
      %991 = vst [vmem:[%s990] sm:$0x1e] %v974
      %992 = vst [vmem:[%s990 + $0x8] sm:$0x1e] %v975
      %993 = vst [vmem:[%s990 + $0x10] sm:$0x1e] %v976
      %994 = vst [vmem:[%s990 + $0x18] sm:$0x1e] %v977
      %995 = vst [vmem:[%s990 + $0x20] sm:$0x1e] %v978
      %996 = vst [vmem:[%s990 + $0x28] sm:$0x1e] %v979
      %997 = vst [vmem:[%s990 + $0x30] sm:$0x1e] %v980
      %998 = vst [vmem:[%s990 + $0x38] sm:$0x1e] %v981
      %v999 = vld [vmem:[#allocation2] sm:$0xff]
      %v1000 = vld [vmem:[#allocation2 + $0x8] sm:$0xff]
      %v1001 = vld [vmem:[#allocation2 + $0x10] sm:$0xff]
      %v1002 = vld [vmem:[#allocation2 + $0x18] sm:$0xff]
      %v1003 = vld [vmem:[#allocation2 + $0x20] sm:$0xff]
      %v1004 = vld [vmem:[#allocation2 + $0x28] sm:$0xff]
      %v1005 = vld [vmem:[#allocation2 + $0x30] sm:$0xff]
      %v1006 = vld [vmem:[#allocation2 + $0x38] sm:$0xff]
      %v1007 = vld [vmem:[%s3] sm:$0xf]
      %v1008 = vld [vmem:[%s3 + $0x4] sm:$0xf]
      %v1009 = vld [vmem:[%s3 + $0x8] sm:$0xf]
      %v1010 = vld [vmem:[%s3 + $0xc] sm:$0xf]
      %v1011 = vld [vmem:[%s3 + $0x10] sm:$0xf]
      %v1012 = vld [vmem:[%s3 + $0x14] sm:$0xf]
      %v1013 = vld [vmem:[%s3 + $0x18] sm:$0xf]
      %v1014 = vld [vmem:[%s3 + $0x1c] sm:$0xf]
      %v1015 = vld [vmem:[%s3 + $0x20] sm:$0xf]
      %v1016 = vld [vmem:[%s3 + $0x24] sm:$0xf]
      %v1017 = vld [vmem:[%s3 + $0x28] sm:$0xf]
      %v1018 = vld [vmem:[%s3 + $0x2c] sm:$0xf]
      %v1019 = vld [vmem:[%s3 + $0x30] sm:$0xf]
      %v1020 = vld [vmem:[%s3 + $0x34] sm:$0xf]
      %v1021 = vld [vmem:[%s3 + $0x38] sm:$0xf]
      %v1022 = vld [vmem:[%s3 + $0x3c] sm:$0xf]
      %v1039 = vunpack.c.l.b16 %v1007
      %v1040 = vunpack.c.l.b16 %v1008
      %v1041 = vunpack.c.l.b16 %v1009
      %v1042 = vunpack.c.l.b16 %v1010
      %v1043 = vunpack.c.l.b16 %v1011
      %v1044 = vunpack.c.l.b16 %v1012
      %v1045 = vunpack.c.l.b16 %v1013
      %v1046 = vunpack.c.l.b16 %v1014
      %v1047 = vunpack.c.l.b16 %v1015
      %v1048 = vunpack.c.l.b16 %v1016
      %v1049 = vunpack.c.l.b16 %v1017
      %v1050 = vunpack.c.l.b16 %v1018
      %v1051 = vunpack.c.l.b16 %v1019
      %v1052 = vunpack.c.l.b16 %v1020
      %v1053 = vunpack.c.l.b16 %v1021
      %v1054 = vunpack.c.l.b16 %v1022
      %v1055 = vpack.c.b16 %v1040, %v1039
      %v1056 = vpack.c.b16 %v1042, %v1041
      %v1057 = vpack.c.b16 %v1044, %v1043
      %v1058 = vpack.c.b16 %v1046, %v1045
      %v1059 = vpack.c.b16 %v1048, %v1047
      %v1060 = vpack.c.b16 %v1050, %v1049
      %v1061 = vpack.c.b16 %v1052, %v1051
      %v1062 = vpack.c.b16 %v1054, %v1053
      %1071 = vmatprep.subr.bf16.mxu0 0
      %1072 = vmatpush1.bf16.msra.mxu0 %v1055
      %1073 = vmatprep.subr.bf16.mxu0 0
      %1074 = vmatpush1.bf16.msra.mxu0 %v1056
      %1075 = vmatprep.subr.bf16.mxu0 0
      %1076 = vmatpush1.bf16.msra.mxu0 %v1057
      %1077 = vmatprep.subr.bf16.mxu0 0
      %1078 = vmatpush1.bf16.msra.mxu0 %v1058
      %1079 = vmatprep.subr.bf16.mxu0 0
      %1080 = vmatpush1.bf16.msra.mxu0 %v1059
      %1081 = vmatprep.subr.bf16.mxu0 0
      %1082 = vmatpush1.bf16.msra.mxu0 %v1060
      %1083 = vmatprep.subr.bf16.mxu0 0
      %1084 = vmatpush1.bf16.msra.mxu0 %v1061
      %1085 = vmatprep.subr.bf16.mxu0 0
      %1086 = vmatpush1.bf16.msra.mxu0 %v1062
      %1087 = vmatprep.subr.bf16.mxu0 0
      %1088 = vmatpush1.bf16.msra.mxu0 0
      %1089 = vmatprep.subr.bf16.mxu0 0
      %1090 = vmatpush1.bf16.msra.mxu0 0
      %1091 = vmatprep.subr.bf16.mxu0 0
      %1092 = vmatpush1.bf16.msra.mxu0 0
      %1093 = vmatprep.subr.bf16.mxu0 0
      %1094 = vmatpush1.bf16.msra.mxu0 0
      %1095 = vmatprep.subr.bf16.mxu0 0
      %1096 = vmatpush1.bf16.msra.mxu0 0
      %1097 = vmatprep.subr.bf16.mxu0 0
      %1098 = vmatpush1.bf16.msra.mxu0 0
      %1099 = vmatprep.subr.bf16.mxu0 0
      %1100 = vmatpush1.bf16.msra.mxu0 0
      %1101 = vmatprep.subr.bf16.mxu0 0
      %1102 = vmatpush1.bf16.msra.mxu0 0
      %1103 = vmatprep.mubr.bf16.mxu0 0
      %1104 = vmatmul.mubr.bf16.gmra.mrb[0].mxu0 %v999
      %v1105 = vpop.f32.mrb[0].mxu0
      %v1106 = vadd.f32 0.0, %v1105
      %v1107 = vpop.f32.mrb[0].mxu0
      %v1108 = vpop.f32.mrb[0].mxu0
      %v1109 = vadd.f32 0.0, %v1108
      %v1110 = vpop.f32.mrb[0].mxu0
      %1111 = vmatprep.mubr.bf16.mxu0 0
      %1112 = vmatmul.mubr.bf16.gmra.mrb[0].mxu0 %v1000
      %v1113 = vpop.f32.mrb[0].mxu0
      %v1114 = vadd.f32 0.0, %v1113
      %v1115 = vpop.f32.mrb[0].mxu0
      %v1116 = vpop.f32.mrb[0].mxu0
      %v1117 = vadd.f32 0.0, %v1116
      %v1118 = vpop.f32.mrb[0].mxu0
      %1119 = vmatprep.mubr.bf16.mxu0 0
      %1120 = vmatmul.mubr.bf16.gmra.mrb[0].mxu0 %v1001
      %v1121 = vpop.f32.mrb[0].mxu0
      %v1122 = vadd.f32 0.0, %v1121
      %v1123 = vpop.f32.mrb[0].mxu0
      %v1124 = vpop.f32.mrb[0].mxu0
      %v1125 = vadd.f32 0.0, %v1124
      %v1126 = vpop.f32.mrb[0].mxu0
      %1127 = vmatprep.mubr.bf16.mxu0 0
      %1128 = vmatmul.mubr.bf16.gmra.mrb[0].mxu0 %v1002
      %v1129 = vpop.f32.mrb[0].mxu0
      %v1130 = vadd.f32 0.0, %v1129
      %v1131 = vpop.f32.mrb[0].mxu0
      %v1132 = vpop.f32.mrb[0].mxu0
      %v1133 = vadd.f32 0.0, %v1132
      %v1134 = vpop.f32.mrb[0].mxu0
      %1135 = vmatprep.mubr.bf16.mxu0 0
      %1136 = vmatmul.mubr.bf16.gmra.mrb[0].mxu0 %v1003
      %v1137 = vpop.f32.mrb[0].mxu0
      %v1138 = vadd.f32 0.0, %v1137
      %v1139 = vpop.f32.mrb[0].mxu0
      %v1140 = vpop.f32.mrb[0].mxu0
      %v1141 = vadd.f32 0.0, %v1140
      %v1142 = vpop.f32.mrb[0].mxu0
      %1143 = vmatprep.mubr.bf16.mxu0 0
      %1144 = vmatmul.mubr.bf16.gmra.mrb[0].mxu0 %v1004
      %v1145 = vpop.f32.mrb[0].mxu0
      %v1146 = vadd.f32 0.0, %v1145
      %v1147 = vpop.f32.mrb[0].mxu0
      %v1148 = vpop.f32.mrb[0].mxu0
      %v1149 = vadd.f32 0.0, %v1148
      %v1150 = vpop.f32.mrb[0].mxu0
      %1151 = vmatprep.mubr.bf16.mxu0 0
      %1152 = vmatmul.mubr.bf16.gmra.mrb[0].mxu0 %v1005
      %v1153 = vpop.f32.mrb[0].mxu0
      %v1154 = vadd.f32 0.0, %v1153
      %v1155 = vpop.f32.mrb[0].mxu0
      %v1156 = vpop.f32.mrb[0].mxu0
      %v1157 = vadd.f32 0.0, %v1156
      %v1158 = vpop.f32.mrb[0].mxu0
      %1159 = vmatprep.mubr.bf16.mxu0 0
      %1160 = vmatmul.mubr.bf16.gmra.mrb[0].mxu0 %v1006
      %v1161 = vpop.f32.mrb[0].mxu0
      %v1162 = vadd.f32 0.0, %v1161
      %v1163 = vpop.f32.mrb[0].mxu0
      %v1164 = vpop.f32.mrb[0].mxu0
      %v1165 = vadd.f32 0.0, %v1164
      %v1166 = vpop.f32.mrb[0].mxu0
      %1167 = vdwg.mxu0
      %s1168 = scalar_lea.vmem %s3, 64
      %v1169 = vld [vmem:[%s1168] sm:$0xf]
      %v1170 = vld [vmem:[%s1168 + $0x4] sm:$0xf]
      %v1171 = vld [vmem:[%s1168 + $0x8] sm:$0xf]
      %v1172 = vld [vmem:[%s1168 + $0xc] sm:$0xf]
      %v1173 = vld [vmem:[%s1168 + $0x10] sm:$0xf]
      %v1174 = vld [vmem:[%s1168 + $0x14] sm:$0xf]
      %v1175 = vld [vmem:[%s1168 + $0x18] sm:$0xf]
      %v1176 = vld [vmem:[%s1168 + $0x1c] sm:$0xf]
      %v1177 = vld [vmem:[%s1168 + $0x20] sm:$0xf]
      %v1178 = vld [vmem:[%s1168 + $0x24] sm:$0xf]
      %v1179 = vld [vmem:[%s1168 + $0x28] sm:$0xf]
      %v1180 = vld [vmem:[%s1168 + $0x2c] sm:$0xf]
      %v1181 = vld [vmem:[%s1168 + $0x30] sm:$0xf]
      %v1182 = vld [vmem:[%s1168 + $0x34] sm:$0xf]
      %v1183 = vld [vmem:[%s1168 + $0x38] sm:$0xf]
      %v1184 = vld [vmem:[%s1168 + $0x3c] sm:$0xf]
      %v1201 = vunpack.c.l.b16 %v1169
      %v1202 = vunpack.c.l.b16 %v1170
      %v1203 = vunpack.c.l.b16 %v1171
      %v1204 = vunpack.c.l.b16 %v1172
      %v1205 = vunpack.c.l.b16 %v1173
      %v1206 = vunpack.c.l.b16 %v1174
      %v1207 = vunpack.c.l.b16 %v1175
      %v1208 = vunpack.c.l.b16 %v1176
      %v1209 = vunpack.c.l.b16 %v1177
      %v1210 = vunpack.c.l.b16 %v1178
      %v1211 = vunpack.c.l.b16 %v1179
      %v1212 = vunpack.c.l.b16 %v1180
      %v1213 = vunpack.c.l.b16 %v1181
      %v1214 = vunpack.c.l.b16 %v1182
      %v1215 = vunpack.c.l.b16 %v1183
      %v1216 = vunpack.c.l.b16 %v1184
      %v1217 = vpack.c.b16 %v1202, %v1201
      %v1218 = vpack.c.b16 %v1204, %v1203
      %v1219 = vpack.c.b16 %v1206, %v1205
      %v1220 = vpack.c.b16 %v1208, %v1207
      %v1221 = vpack.c.b16 %v1210, %v1209
      %v1222 = vpack.c.b16 %v1212, %v1211
      %v1223 = vpack.c.b16 %v1214, %v1213
      %v1224 = vpack.c.b16 %v1216, %v1215
      %1233 = vmatprep.subr.bf16.mxu0 0
      %1234 = vmatpush1.bf16.msra.mxu0 %v1217
      %1235 = vmatprep.subr.bf16.mxu0 0
      %1236 = vmatpush1.bf16.msra.mxu0 %v1218
      %1237 = vmatprep.subr.bf16.mxu0 0
      %1238 = vmatpush1.bf16.msra.mxu0 %v1219
      %1239 = vmatprep.subr.bf16.mxu0 0
      %1240 = vmatpush1.bf16.msra.mxu0 %v1220
      %1241 = vmatprep.subr.bf16.mxu0 0
      %1242 = vmatpush1.bf16.msra.mxu0 %v1221
      %1243 = vmatprep.subr.bf16.mxu0 0
      %1244 = vmatpush1.bf16.msra.mxu0 %v1222
      %1245 = vmatprep.subr.bf16.mxu0 0
      %1246 = vmatpush1.bf16.msra.mxu0 %v1223
      %1247 = vmatprep.subr.bf16.mxu0 0
      %1248 = vmatpush1.bf16.msra.mxu0 %v1224
      %1249 = vmatprep.subr.bf16.mxu0 0
      %1250 = vmatpush1.bf16.msra.mxu0 0
      %1251 = vmatprep.subr.bf16.mxu0 0
      %1252 = vmatpush1.bf16.msra.mxu0 0
      %1253 = vmatprep.subr.bf16.mxu0 0
      %1254 = vmatpush1.bf16.msra.mxu0 0
      %1255 = vmatprep.subr.bf16.mxu0 0
      %1256 = vmatpush1.bf16.msra.mxu0 0
      %1257 = vmatprep.subr.bf16.mxu0 0
      %1258 = vmatpush1.bf16.msra.mxu0 0
      %1259 = vmatprep.subr.bf16.mxu0 0
      %1260 = vmatpush1.bf16.msra.mxu0 0
      %1261 = vmatprep.subr.bf16.mxu0 0
      %1262 = vmatpush1.bf16.msra.mxu0 0
      %1263 = vmatprep.subr.bf16.mxu0 0
      %1264 = vmatpush1.bf16.msra.mxu0 0
      %1265 = vmatprep.mubr.bf16.mxu0 0
      %1266 = vmatmul.mubr.bf16.gmra.mrb[0].mxu0 %v999
      %v1267 = vpop.f32.mrb[0].mxu0
      %v1268 = vadd.f32 0.0, %v1267
      %v1269 = vpop.f32.mrb[0].mxu0
      %v1270 = vpop.f32.mrb[0].mxu0
      %v1271 = vadd.f32 0.0, %v1270
      %v1272 = vpop.f32.mrb[0].mxu0
      %1273 = vmatprep.mubr.bf16.mxu0 0
      %1274 = vmatmul.mubr.bf16.gmra.mrb[0].mxu0 %v1000
      %v1275 = vpop.f32.mrb[0].mxu0
      %v1276 = vadd.f32 0.0, %v1275
      %v1277 = vpop.f32.mrb[0].mxu0
      %v1278 = vpop.f32.mrb[0].mxu0
      %v1279 = vadd.f32 0.0, %v1278
      %v1280 = vpop.f32.mrb[0].mxu0
      %1281 = vmatprep.mubr.bf16.mxu0 0
      %1282 = vmatmul.mubr.bf16.gmra.mrb[0].mxu0 %v1001
      %v1283 = vpop.f32.mrb[0].mxu0
      %v1284 = vadd.f32 0.0, %v1283
      %v1285 = vpop.f32.mrb[0].mxu0
      %v1286 = vpop.f32.mrb[0].mxu0
      %v1287 = vadd.f32 0.0, %v1286
      %v1288 = vpop.f32.mrb[0].mxu0
      %1289 = vmatprep.mubr.bf16.mxu0 0
      %1290 = vmatmul.mubr.bf16.gmra.mrb[0].mxu0 %v1002
      %v1291 = vpop.f32.mrb[0].mxu0
      %v1292 = vadd.f32 0.0, %v1291
      %v1293 = vpop.f32.mrb[0].mxu0
      %v1294 = vpop.f32.mrb[0].mxu0
      %v1295 = vadd.f32 0.0, %v1294
      %v1296 = vpop.f32.mrb[0].mxu0
      %1297 = vmatprep.mubr.bf16.mxu0 0
      %1298 = vmatmul.mubr.bf16.gmra.mrb[0].mxu0 %v1003
      %v1299 = vpop.f32.mrb[0].mxu0
      %v1300 = vadd.f32 0.0, %v1299
      %v1301 = vpop.f32.mrb[0].mxu0
      %v1302 = vpop.f32.mrb[0].mxu0
      %v1303 = vadd.f32 0.0, %v1302
      %v1304 = vpop.f32.mrb[0].mxu0
      %1305 = vmatprep.mubr.bf16.mxu0 0
      %1306 = vmatmul.mubr.bf16.gmra.mrb[0].mxu0 %v1004
      %v1307 = vpop.f32.mrb[0].mxu0
      %v1308 = vadd.f32 0.0, %v1307
      %v1309 = vpop.f32.mrb[0].mxu0
      %v1310 = vpop.f32.mrb[0].mxu0
      %v1311 = vadd.f32 0.0, %v1310
      %v1312 = vpop.f32.mrb[0].mxu0
      %1313 = vmatprep.mubr.bf16.mxu0 0
      %1314 = vmatmul.mubr.bf16.gmra.mrb[0].mxu0 %v1005
      %v1315 = vpop.f32.mrb[0].mxu0
      %v1316 = vadd.f32 0.0, %v1315
      %v1317 = vpop.f32.mrb[0].mxu0
      %v1318 = vpop.f32.mrb[0].mxu0
      %v1319 = vadd.f32 0.0, %v1318
      %v1320 = vpop.f32.mrb[0].mxu0
      %1321 = vmatprep.mubr.bf16.mxu0 0
      %1322 = vmatmul.mubr.bf16.gmra.mrb[0].mxu0 %v1006
      %v1323 = vpop.f32.mrb[0].mxu0
      %v1324 = vadd.f32 0.0, %v1323
      %v1325 = vpop.f32.mrb[0].mxu0
      %v1326 = vpop.f32.mrb[0].mxu0
      %v1327 = vadd.f32 0.0, %v1326
      %v1328 = vpop.f32.mrb[0].mxu0
      %1329 = vdwg.mxu0
      %vm1346 = vcmask 1046528
      %v1347 = vrot.slane %v1268, 1
      %v1348 = vrot.slane %v1271, 1
      %v1349 = vsel %vm1346, %v1347, %v1348
      %v1350 = vrot.slane %v1276, 1
      %v1351 = vrot.slane %v1279, 1
      %v1352 = vsel %vm1346, %v1350, %v1351
      %v1353 = vrot.slane %v1284, 1
      %v1354 = vrot.slane %v1287, 1
      %v1355 = vsel %vm1346, %v1353, %v1354
      %v1356 = vrot.slane %v1292, 1
      %v1357 = vrot.slane %v1295, 1
      %v1358 = vsel %vm1346, %v1356, %v1357
      %v1359 = vrot.slane %v1300, 1
      %v1360 = vrot.slane %v1303, 1
      %v1361 = vsel %vm1346, %v1359, %v1360
      %v1362 = vrot.slane %v1308, 1
      %v1363 = vrot.slane %v1311, 1
      %v1364 = vsel %vm1346, %v1362, %v1363
      %v1365 = vrot.slane %v1316, 1
      %v1366 = vrot.slane %v1319, 1
      %v1367 = vsel %vm1346, %v1365, %v1366
      %v1368 = vrot.slane %v1324, 1
      %v1369 = vrot.slane %v1327, 1
      %v1370 = vsel %vm1346, %v1368, %v1369
      %v1387 = vadd.f32 %v1106, %v1349
      %v1388 = vadd.f32 %v1109, %v1348
      %v1389 = vadd.f32 %v1114, %v1352
      %v1390 = vadd.f32 %v1117, %v1351
      %v1391 = vadd.f32 %v1122, %v1355
      %v1392 = vadd.f32 %v1125, %v1354
      %v1393 = vadd.f32 %v1130, %v1358
      %v1394 = vadd.f32 %v1133, %v1357
      %v1395 = vadd.f32 %v1138, %v1361
      %v1396 = vadd.f32 %v1141, %v1360
      %v1397 = vadd.f32 %v1146, %v1364
      %v1398 = vadd.f32 %v1149, %v1363
      %v1399 = vadd.f32 %v1154, %v1367
      %v1400 = vadd.f32 %v1157, %v1366
      %v1401 = vadd.f32 %v1162, %v1370
      %v1402 = vadd.f32 %v1165, %v1369
      %s1403 = scalar_lea.vmem %s3, 128
      %v1404 = vld [vmem:[%s1403] sm:$0xf]
      %v1405 = vld [vmem:[%s1403 + $0x4] sm:$0xf]
      %v1406 = vld [vmem:[%s1403 + $0x8] sm:$0xf]
      %v1407 = vld [vmem:[%s1403 + $0xc] sm:$0xf]
      %v1408 = vld [vmem:[%s1403 + $0x10] sm:$0xf]
      %v1409 = vld [vmem:[%s1403 + $0x14] sm:$0xf]
      %v1410 = vld [vmem:[%s1403 + $0x18] sm:$0xf]
      %v1411 = vld [vmem:[%s1403 + $0x1c] sm:$0xf]
      %v1412 = vld [vmem:[%s1403 + $0x20] sm:$0xf]
      %v1413 = vld [vmem:[%s1403 + $0x24] sm:$0xf]
      %v1414 = vld [vmem:[%s1403 + $0x28] sm:$0xf]
      %v1415 = vld [vmem:[%s1403 + $0x2c] sm:$0xf]
      %v1416 = vld [vmem:[%s1403 + $0x30] sm:$0xf]
      %v1417 = vld [vmem:[%s1403 + $0x34] sm:$0xf]
      %v1418 = vld [vmem:[%s1403 + $0x38] sm:$0xf]
      %v1419 = vld [vmem:[%s1403 + $0x3c] sm:$0xf]
      %v1436 = vunpack.c.l.b16 %v1404
      %v1437 = vunpack.c.l.b16 %v1405
      %v1438 = vunpack.c.l.b16 %v1406
      %v1439 = vunpack.c.l.b16 %v1407
      %v1440 = vunpack.c.l.b16 %v1408
      %v1441 = vunpack.c.l.b16 %v1409
      %v1442 = vunpack.c.l.b16 %v1410
      %v1443 = vunpack.c.l.b16 %v1411
      %v1444 = vunpack.c.l.b16 %v1412
      %v1445 = vunpack.c.l.b16 %v1413
      %v1446 = vunpack.c.l.b16 %v1414
      %v1447 = vunpack.c.l.b16 %v1415
      %v1448 = vunpack.c.l.b16 %v1416
      %v1449 = vunpack.c.l.b16 %v1417
      %v1450 = vunpack.c.l.b16 %v1418
      %v1451 = vunpack.c.l.b16 %v1419
      %v1452 = vpack.c.b16 %v1437, %v1436
      %v1453 = vpack.c.b16 %v1439, %v1438
      %v1454 = vpack.c.b16 %v1441, %v1440
      %v1455 = vpack.c.b16 %v1443, %v1442
      %v1456 = vpack.c.b16 %v1445, %v1444
      %v1457 = vpack.c.b16 %v1447, %v1446
      %v1458 = vpack.c.b16 %v1449, %v1448
      %v1459 = vpack.c.b16 %v1451, %v1450
      %1468 = vmatprep.subr.bf16.mxu0 0
      %1469 = vmatpush1.bf16.msra.mxu0 %v1452
      %1470 = vmatprep.subr.bf16.mxu0 0
      %1471 = vmatpush1.bf16.msra.mxu0 %v1453
      %1472 = vmatprep.subr.bf16.mxu0 0
      %1473 = vmatpush1.bf16.msra.mxu0 %v1454
      %1474 = vmatprep.subr.bf16.mxu0 0
      %1475 = vmatpush1.bf16.msra.mxu0 %v1455
      %1476 = vmatprep.subr.bf16.mxu0 0
      %1477 = vmatpush1.bf16.msra.mxu0 %v1456
      %1478 = vmatprep.subr.bf16.mxu0 0
      %1479 = vmatpush1.bf16.msra.mxu0 %v1457
      %1480 = vmatprep.subr.bf16.mxu0 0
      %1481 = vmatpush1.bf16.msra.mxu0 %v1458
      %1482 = vmatprep.subr.bf16.mxu0 0
      %1483 = vmatpush1.bf16.msra.mxu0 %v1459
      %1484 = vmatprep.subr.bf16.mxu0 0
      %1485 = vmatpush1.bf16.msra.mxu0 0
      %1486 = vmatprep.subr.bf16.mxu0 0
      %1487 = vmatpush1.bf16.msra.mxu0 0
      %1488 = vmatprep.subr.bf16.mxu0 0
      %1489 = vmatpush1.bf16.msra.mxu0 0
      %1490 = vmatprep.subr.bf16.mxu0 0
      %1491 = vmatpush1.bf16.msra.mxu0 0
      %1492 = vmatprep.subr.bf16.mxu0 0
      %1493 = vmatpush1.bf16.msra.mxu0 0
      %1494 = vmatprep.subr.bf16.mxu0 0
      %1495 = vmatpush1.bf16.msra.mxu0 0
      %1496 = vmatprep.subr.bf16.mxu0 0
      %1497 = vmatpush1.bf16.msra.mxu0 0
      %1498 = vmatprep.subr.bf16.mxu0 0
      %1499 = vmatpush1.bf16.msra.mxu0 0
      %1500 = vmatprep.mubr.bf16.mxu0 0
      %1501 = vmatmul.mubr.bf16.gmra.mrb[0].mxu0 %v999
      %v1502 = vpop.f32.mrb[0].mxu0
      %v1503 = vadd.f32 0.0, %v1502
      %v1504 = vpop.f32.mrb[0].mxu0
      %v1505 = vpop.f32.mrb[0].mxu0
      %v1506 = vadd.f32 0.0, %v1505
      %v1507 = vpop.f32.mrb[0].mxu0
      %1508 = vmatprep.mubr.bf16.mxu0 0
      %1509 = vmatmul.mubr.bf16.gmra.mrb[0].mxu0 %v1000
      %v1510 = vpop.f32.mrb[0].mxu0
      %v1511 = vadd.f32 0.0, %v1510
      %v1512 = vpop.f32.mrb[0].mxu0
      %v1513 = vpop.f32.mrb[0].mxu0
      %v1514 = vadd.f32 0.0, %v1513
      %v1515 = vpop.f32.mrb[0].mxu0
      %1516 = vmatprep.mubr.bf16.mxu0 0
      %1517 = vmatmul.mubr.bf16.gmra.mrb[0].mxu0 %v1001
      %v1518 = vpop.f32.mrb[0].mxu0
      %v1519 = vadd.f32 0.0, %v1518
      %v1520 = vpop.f32.mrb[0].mxu0
      %v1521 = vpop.f32.mrb[0].mxu0
      %v1522 = vadd.f32 0.0, %v1521
      %v1523 = vpop.f32.mrb[0].mxu0
      %1524 = vmatprep.mubr.bf16.mxu0 0
      %1525 = vmatmul.mubr.bf16.gmra.mrb[0].mxu0 %v1002
      %v1526 = vpop.f32.mrb[0].mxu0
      %v1527 = vadd.f32 0.0, %v1526
      %v1528 = vpop.f32.mrb[0].mxu0
      %v1529 = vpop.f32.mrb[0].mxu0
      %v1530 = vadd.f32 0.0, %v1529
      %v1531 = vpop.f32.mrb[0].mxu0
      %1532 = vmatprep.mubr.bf16.mxu0 0
      %1533 = vmatmul.mubr.bf16.gmra.mrb[0].mxu0 %v1003
      %v1534 = vpop.f32.mrb[0].mxu0
      %v1535 = vadd.f32 0.0, %v1534
      %v1536 = vpop.f32.mrb[0].mxu0
      %v1537 = vpop.f32.mrb[0].mxu0
      %v1538 = vadd.f32 0.0, %v1537
      %v1539 = vpop.f32.mrb[0].mxu0
      %1540 = vmatprep.mubr.bf16.mxu0 0
      %1541 = vmatmul.mubr.bf16.gmra.mrb[0].mxu0 %v1004
      %v1542 = vpop.f32.mrb[0].mxu0
      %v1543 = vadd.f32 0.0, %v1542
      %v1544 = vpop.f32.mrb[0].mxu0
      %v1545 = vpop.f32.mrb[0].mxu0
      %v1546 = vadd.f32 0.0, %v1545
      %v1547 = vpop.f32.mrb[0].mxu0
      %1548 = vmatprep.mubr.bf16.mxu0 0
      %1549 = vmatmul.mubr.bf16.gmra.mrb[0].mxu0 %v1005
      %v1550 = vpop.f32.mrb[0].mxu0
      %v1551 = vadd.f32 0.0, %v1550
      %v1552 = vpop.f32.mrb[0].mxu0
      %v1553 = vpop.f32.mrb[0].mxu0
      %v1554 = vadd.f32 0.0, %v1553
      %v1555 = vpop.f32.mrb[0].mxu0
      %1556 = vmatprep.mubr.bf16.mxu0 0
      %1557 = vmatmul.mubr.bf16.gmra.mrb[0].mxu0 %v1006
      %v1558 = vpop.f32.mrb[0].mxu0
      %v1559 = vadd.f32 0.0, %v1558
      %v1560 = vpop.f32.mrb[0].mxu0
      %v1561 = vpop.f32.mrb[0].mxu0
      %v1562 = vadd.f32 0.0, %v1561
      %v1563 = vpop.f32.mrb[0].mxu0
      %1564 = vdwg.mxu0
      %vm1581 = vcmask 1045504
      %v1582 = vrot.slane %v1503, 2
      %v1583 = vrot.slane %v1506, 2
      %v1584 = vsel %vm1581, %v1582, %v1583
      %v1585 = vrot.slane %v1511, 2
      %v1586 = vrot.slane %v1514, 2
      %v1587 = vsel %vm1581, %v1585, %v1586
      %v1588 = vrot.slane %v1519, 2
      %v1589 = vrot.slane %v1522, 2
      %v1590 = vsel %vm1581, %v1588, %v1589
      %v1591 = vrot.slane %v1527, 2
      %v1592 = vrot.slane %v1530, 2
      %v1593 = vsel %vm1581, %v1591, %v1592
      %v1594 = vrot.slane %v1535, 2
      %v1595 = vrot.slane %v1538, 2
      %v1596 = vsel %vm1581, %v1594, %v1595
      %v1597 = vrot.slane %v1543, 2
      %v1598 = vrot.slane %v1546, 2
      %v1599 = vsel %vm1581, %v1597, %v1598
      %v1600 = vrot.slane %v1551, 2
      %v1601 = vrot.slane %v1554, 2
      %v1602 = vsel %vm1581, %v1600, %v1601
      %v1603 = vrot.slane %v1559, 2
      %v1604 = vrot.slane %v1562, 2
      %v1605 = vsel %vm1581, %v1603, %v1604
      %v1622 = vadd.f32 %v1387, %v1584
      %v1623 = vadd.f32 %v1388, %v1583
      %v1624 = vadd.f32 %v1389, %v1587
      %v1625 = vadd.f32 %v1390, %v1586
      %v1626 = vadd.f32 %v1391, %v1590
      %v1627 = vadd.f32 %v1392, %v1589
      %v1628 = vadd.f32 %v1393, %v1593
      %v1629 = vadd.f32 %v1394, %v1592
      %v1630 = vadd.f32 %v1395, %v1596
      %v1631 = vadd.f32 %v1396, %v1595
      %v1632 = vadd.f32 %v1397, %v1599
      %v1633 = vadd.f32 %v1398, %v1598
      %v1634 = vadd.f32 %v1399, %v1602
      %v1635 = vadd.f32 %v1400, %v1601
      %v1636 = vadd.f32 %v1401, %v1605
      %v1637 = vadd.f32 %v1402, %v1604
      %v1638 = vld [vmem:[%s990] sm:$0xff]
      %v1639 = vld [vmem:[%s990 + $0x8] sm:$0xff]
      %v1640 = vld [vmem:[%s990 + $0x10] sm:$0xff]
      %v1641 = vld [vmem:[%s990 + $0x18] sm:$0xff]
      %v1642 = vld [vmem:[%s990 + $0x20] sm:$0xff]
      %v1643 = vld [vmem:[%s990 + $0x28] sm:$0xff]
      %v1644 = vld [vmem:[%s990 + $0x30] sm:$0xff]
      %v1645 = vld [vmem:[%s990 + $0x38] sm:$0xff]
      %s1646 = scalar_lea.vmem %s3, 192
      %v1647 = vld [vmem:[%s1646] sm:$0xf]
      %v1648 = vld [vmem:[%s1646 + $0x4] sm:$0xf]
      %v1649 = vld [vmem:[%s1646 + $0x8] sm:$0xf]
      %v1650 = vld [vmem:[%s1646 + $0xc] sm:$0xf]
      %v1651 = vld [vmem:[%s1646 + $0x10] sm:$0xf]
      %v1652 = vld [vmem:[%s1646 + $0x14] sm:$0xf]
      %v1653 = vld [vmem:[%s1646 + $0x18] sm:$0xf]
      %v1654 = vld [vmem:[%s1646 + $0x1c] sm:$0xf]
      %v1655 = vld [vmem:[%s1646 + $0x20] sm:$0xf]
      %v1656 = vld [vmem:[%s1646 + $0x24] sm:$0xf]
      %v1657 = vld [vmem:[%s1646 + $0x28] sm:$0xf]
      %v1658 = vld [vmem:[%s1646 + $0x2c] sm:$0xf]
      %v1659 = vld [vmem:[%s1646 + $0x30] sm:$0xf]
      %v1660 = vld [vmem:[%s1646 + $0x34] sm:$0xf]
      %v1661 = vld [vmem:[%s1646 + $0x38] sm:$0xf]
      %v1662 = vld [vmem:[%s1646 + $0x3c] sm:$0xf]
      %v1679 = vunpack.c.l.b16 %v1647
      %v1680 = vunpack.c.l.b16 %v1648
      %v1681 = vunpack.c.l.b16 %v1649
      %v1682 = vunpack.c.l.b16 %v1650
      %v1683 = vunpack.c.l.b16 %v1651
      %v1684 = vunpack.c.l.b16 %v1652
      %v1685 = vunpack.c.l.b16 %v1653
      %v1686 = vunpack.c.l.b16 %v1654
      %v1687 = vunpack.c.l.b16 %v1655
      %v1688 = vunpack.c.l.b16 %v1656
      %v1689 = vunpack.c.l.b16 %v1657
      %v1690 = vunpack.c.l.b16 %v1658
      %v1691 = vunpack.c.l.b16 %v1659
      %v1692 = vunpack.c.l.b16 %v1660
      %v1693 = vunpack.c.l.b16 %v1661
      %v1694 = vunpack.c.l.b16 %v1662
      %v1695 = vpack.c.b16 %v1680, %v1679
      %v1696 = vpack.c.b16 %v1682, %v1681
      %v1697 = vpack.c.b16 %v1684, %v1683
      %v1698 = vpack.c.b16 %v1686, %v1685
      %v1699 = vpack.c.b16 %v1688, %v1687
      %v1700 = vpack.c.b16 %v1690, %v1689
      %v1701 = vpack.c.b16 %v1692, %v1691
      %v1702 = vpack.c.b16 %v1694, %v1693
      %1711 = vmatprep.subr.bf16.mxu0 0
      %1712 = vmatpush1.bf16.msra.mxu0 %v1695
      %1713 = vmatprep.subr.bf16.mxu0 0
      %1714 = vmatpush1.bf16.msra.mxu0 %v1696
      %1715 = vmatprep.subr.bf16.mxu0 0
      %1716 = vmatpush1.bf16.msra.mxu0 %v1697
      %1717 = vmatprep.subr.bf16.mxu0 0
      %1718 = vmatpush1.bf16.msra.mxu0 %v1698
      %1719 = vmatprep.subr.bf16.mxu0 0
      %1720 = vmatpush1.bf16.msra.mxu0 %v1699
      %1721 = vmatprep.subr.bf16.mxu0 0
      %1722 = vmatpush1.bf16.msra.mxu0 %v1700
      %1723 = vmatprep.subr.bf16.mxu0 0
      %1724 = vmatpush1.bf16.msra.mxu0 %v1701
      %1725 = vmatprep.subr.bf16.mxu0 0
      %1726 = vmatpush1.bf16.msra.mxu0 %v1702
      %1727 = vmatprep.subr.bf16.mxu0 0
      %1728 = vmatpush1.bf16.msra.mxu0 0
      %1729 = vmatprep.subr.bf16.mxu0 0
      %1730 = vmatpush1.bf16.msra.mxu0 0
      %1731 = vmatprep.subr.bf16.mxu0 0
      %1732 = vmatpush1.bf16.msra.mxu0 0
      %1733 = vmatprep.subr.bf16.mxu0 0
      %1734 = vmatpush1.bf16.msra.mxu0 0
      %1735 = vmatprep.subr.bf16.mxu0 0
      %1736 = vmatpush1.bf16.msra.mxu0 0
      %1737 = vmatprep.subr.bf16.mxu0 0
      %1738 = vmatpush1.bf16.msra.mxu0 0
      %1739 = vmatprep.subr.bf16.mxu0 0
      %1740 = vmatpush1.bf16.msra.mxu0 0
      %1741 = vmatprep.subr.bf16.mxu0 0
      %1742 = vmatpush1.bf16.msra.mxu0 0
      %1743 = vmatprep.mubr.bf16.mxu0 0
      %1744 = vmatmul.mubr.bf16.gmra.mrb[0].mxu0 %v1638
      %v1745 = vpop.f32.mrb[0].mxu0
      %v1746 = vadd.f32 0.0, %v1745
      %v1747 = vpop.f32.mrb[0].mxu0
      %v1748 = vpop.f32.mrb[0].mxu0
      %v1749 = vadd.f32 0.0, %v1748
      %v1750 = vpop.f32.mrb[0].mxu0
      %1751 = vmatprep.mubr.bf16.mxu0 0
      %1752 = vmatmul.mubr.bf16.gmra.mrb[0].mxu0 %v1639
      %v1753 = vpop.f32.mrb[0].mxu0
      %v1754 = vadd.f32 0.0, %v1753
      %v1755 = vpop.f32.mrb[0].mxu0
      %v1756 = vpop.f32.mrb[0].mxu0
      %v1757 = vadd.f32 0.0, %v1756
      %v1758 = vpop.f32.mrb[0].mxu0
      %1759 = vmatprep.mubr.bf16.mxu0 0
      %1760 = vmatmul.mubr.bf16.gmra.mrb[0].mxu0 %v1640
      %v1761 = vpop.f32.mrb[0].mxu0
      %v1762 = vadd.f32 0.0, %v1761
      %v1763 = vpop.f32.mrb[0].mxu0
      %v1764 = vpop.f32.mrb[0].mxu0
      %v1765 = vadd.f32 0.0, %v1764
      %v1766 = vpop.f32.mrb[0].mxu0
      %1767 = vmatprep.mubr.bf16.mxu0 0
      %1768 = vmatmul.mubr.bf16.gmra.mrb[0].mxu0 %v1641
      %v1769 = vpop.f32.mrb[0].mxu0
      %v1770 = vadd.f32 0.0, %v1769
      %v1771 = vpop.f32.mrb[0].mxu0
      %v1772 = vpop.f32.mrb[0].mxu0
      %v1773 = vadd.f32 0.0, %v1772
      %v1774 = vpop.f32.mrb[0].mxu0
      %1775 = vmatprep.mubr.bf16.mxu0 0
      %1776 = vmatmul.mubr.bf16.gmra.mrb[0].mxu0 %v1642
      %v1777 = vpop.f32.mrb[0].mxu0
      %v1778 = vadd.f32 0.0, %v1777
      %v1779 = vpop.f32.mrb[0].mxu0
      %v1780 = vpop.f32.mrb[0].mxu0
      %v1781 = vadd.f32 0.0, %v1780
      %v1782 = vpop.f32.mrb[0].mxu0
      %1783 = vmatprep.mubr.bf16.mxu0 0
      %1784 = vmatmul.mubr.bf16.gmra.mrb[0].mxu0 %v1643
      %v1785 = vpop.f32.mrb[0].mxu0
      %v1786 = vadd.f32 0.0, %v1785
      %v1787 = vpop.f32.mrb[0].mxu0
      %v1788 = vpop.f32.mrb[0].mxu0
      %v1789 = vadd.f32 0.0, %v1788
      %v1790 = vpop.f32.mrb[0].mxu0
      %1791 = vmatprep.mubr.bf16.mxu0 0
      %1792 = vmatmul.mubr.bf16.gmra.mrb[0].mxu0 %v1644
      %v1793 = vpop.f32.mrb[0].mxu0
      %v1794 = vadd.f32 0.0, %v1793
      %v1795 = vpop.f32.mrb[0].mxu0
      %v1796 = vpop.f32.mrb[0].mxu0
      %v1797 = vadd.f32 0.0, %v1796
      %v1798 = vpop.f32.mrb[0].mxu0
      %1799 = vmatprep.mubr.bf16.mxu0 0
      %1800 = vmatmul.mubr.bf16.gmra.mrb[0].mxu0 %v1645
      %v1801 = vpop.f32.mrb[0].mxu0
      %v1802 = vadd.f32 0.0, %v1801
      %v1803 = vpop.f32.mrb[0].mxu0
      %v1804 = vpop.f32.mrb[0].mxu0
      %v1805 = vadd.f32 0.0, %v1804
      %v1806 = vpop.f32.mrb[0].mxu0
      %1807 = vdwg.mxu0
      %v1808 = vadd.f32 %v1622, %v1746
      %v1809 = vadd.f32 %v1623, %v1749
      %v1810 = vadd.f32 %v1624, %v1754
      %v1811 = vadd.f32 %v1625, %v1757
      %v1812 = vadd.f32 %v1626, %v1762
      %v1813 = vadd.f32 %v1627, %v1765
      %v1814 = vadd.f32 %v1628, %v1770
      %v1815 = vadd.f32 %v1629, %v1773
      %v1816 = vadd.f32 %v1630, %v1778
      %v1817 = vadd.f32 %v1631, %v1781
      %v1818 = vadd.f32 %v1632, %v1786
      %v1819 = vadd.f32 %v1633, %v1789
      %v1820 = vadd.f32 %v1634, %v1794
      %v1821 = vadd.f32 %v1635, %v1797
      %v1822 = vadd.f32 %v1636, %v1802
      %v1823 = vadd.f32 %v1637, %v1805
      %s1824 = scalar_lea.vmem %s3, 256
      %v1825 = vld [vmem:[%s1824] sm:$0xf]
      %v1826 = vld [vmem:[%s1824 + $0x4] sm:$0xf]
      %v1827 = vld [vmem:[%s1824 + $0x8] sm:$0xf]
      %v1828 = vld [vmem:[%s1824 + $0xc] sm:$0xf]
      %v1829 = vld [vmem:[%s1824 + $0x10] sm:$0xf]
      %v1830 = vld [vmem:[%s1824 + $0x14] sm:$0xf]
      %v1831 = vld [vmem:[%s1824 + $0x18] sm:$0xf]
      %v1832 = vld [vmem:[%s1824 + $0x1c] sm:$0xf]
      %v1833 = vld [vmem:[%s1824 + $0x20] sm:$0xf]
      %v1834 = vld [vmem:[%s1824 + $0x24] sm:$0xf]
      %v1835 = vld [vmem:[%s1824 + $0x28] sm:$0xf]
      %v1836 = vld [vmem:[%s1824 + $0x2c] sm:$0xf]
      %v1837 = vld [vmem:[%s1824 + $0x30] sm:$0xf]
      %v1838 = vld [vmem:[%s1824 + $0x34] sm:$0xf]
      %v1839 = vld [vmem:[%s1824 + $0x38] sm:$0xf]
      %v1840 = vld [vmem:[%s1824 + $0x3c] sm:$0xf]
      %v1857 = vunpack.c.l.b16 %v1825
      %v1858 = vunpack.c.l.b16 %v1826
      %v1859 = vunpack.c.l.b16 %v1827
      %v1860 = vunpack.c.l.b16 %v1828
      %v1861 = vunpack.c.l.b16 %v1829
      %v1862 = vunpack.c.l.b16 %v1830
      %v1863 = vunpack.c.l.b16 %v1831
      %v1864 = vunpack.c.l.b16 %v1832
      %v1865 = vunpack.c.l.b16 %v1833
      %v1866 = vunpack.c.l.b16 %v1834
      %v1867 = vunpack.c.l.b16 %v1835
      %v1868 = vunpack.c.l.b16 %v1836
      %v1869 = vunpack.c.l.b16 %v1837
      %v1870 = vunpack.c.l.b16 %v1838
      %v1871 = vunpack.c.l.b16 %v1839
      %v1872 = vunpack.c.l.b16 %v1840
      %v1873 = vpack.c.b16 %v1858, %v1857
      %v1874 = vpack.c.b16 %v1860, %v1859
      %v1875 = vpack.c.b16 %v1862, %v1861
      %v1876 = vpack.c.b16 %v1864, %v1863
      %v1877 = vpack.c.b16 %v1866, %v1865
      %v1878 = vpack.c.b16 %v1868, %v1867
      %v1879 = vpack.c.b16 %v1870, %v1869
      %v1880 = vpack.c.b16 %v1872, %v1871
      %1889 = vmatprep.subr.bf16.mxu0 0
      %1890 = vmatpush1.bf16.msra.mxu0 %v1873
      %1891 = vmatprep.subr.bf16.mxu0 0
      %1892 = vmatpush1.bf16.msra.mxu0 %v1874
      %1893 = vmatprep.subr.bf16.mxu0 0
      %1894 = vmatpush1.bf16.msra.mxu0 %v1875
      %1895 = vmatprep.subr.bf16.mxu0 0
      %1896 = vmatpush1.bf16.msra.mxu0 %v1876
      %1897 = vmatprep.subr.bf16.mxu0 0
      %1898 = vmatpush1.bf16.msra.mxu0 %v1877
      %1899 = vmatprep.subr.bf16.mxu0 0
      %1900 = vmatpush1.bf16.msra.mxu0 %v1878
      %1901 = vmatprep.subr.bf16.mxu0 0
      %1902 = vmatpush1.bf16.msra.mxu0 %v1879
      %1903 = vmatprep.subr.bf16.mxu0 0
      %1904 = vmatpush1.bf16.msra.mxu0 %v1880
      %1905 = vmatprep.subr.bf16.mxu0 0
      %1906 = vmatpush1.bf16.msra.mxu0 0
      %1907 = vmatprep.subr.bf16.mxu0 0
      %1908 = vmatpush1.bf16.msra.mxu0 0
      %1909 = vmatprep.subr.bf16.mxu0 0
      %1910 = vmatpush1.bf16.msra.mxu0 0
      %1911 = vmatprep.subr.bf16.mxu0 0
      %1912 = vmatpush1.bf16.msra.mxu0 0
      %1913 = vmatprep.subr.bf16.mxu0 0
      %1914 = vmatpush1.bf16.msra.mxu0 0
      %1915 = vmatprep.subr.bf16.mxu0 0
      %1916 = vmatpush1.bf16.msra.mxu0 0
      %1917 = vmatprep.subr.bf16.mxu0 0
      %1918 = vmatpush1.bf16.msra.mxu0 0
      %1919 = vmatprep.subr.bf16.mxu0 0
      %1920 = vmatpush1.bf16.msra.mxu0 0
      %1921 = vmatprep.mubr.bf16.mxu0 0
      %1922 = vmatmul.mubr.bf16.gmra.mrb[0].mxu0 %v1638
      %v1923 = vpop.f32.mrb[0].mxu0
      %v1924 = vadd.f32 0.0, %v1923
      %v1925 = vpop.f32.mrb[0].mxu0
      %v1926 = vpop.f32.mrb[0].mxu0
      %v1927 = vadd.f32 0.0, %v1926
      %v1928 = vpop.f32.mrb[0].mxu0
      %1929 = vmatprep.mubr.bf16.mxu0 0
      %1930 = vmatmul.mubr.bf16.gmra.mrb[0].mxu0 %v1639
      %v1931 = vpop.f32.mrb[0].mxu0
      %v1932 = vadd.f32 0.0, %v1931
      %v1933 = vpop.f32.mrb[0].mxu0
      %v1934 = vpop.f32.mrb[0].mxu0
      %v1935 = vadd.f32 0.0, %v1934
      %v1936 = vpop.f32.mrb[0].mxu0
      %1937 = vmatprep.mubr.bf16.mxu0 0
      %1938 = vmatmul.mubr.bf16.gmra.mrb[0].mxu0 %v1640
      %v1939 = vpop.f32.mrb[0].mxu0
      %v1940 = vadd.f32 0.0, %v1939
      %v1941 = vpop.f32.mrb[0].mxu0
      %v1942 = vpop.f32.mrb[0].mxu0
      %v1943 = vadd.f32 0.0, %v1942
      %v1944 = vpop.f32.mrb[0].mxu0
      %1945 = vmatprep.mubr.bf16.mxu0 0
      %1946 = vmatmul.mubr.bf16.gmra.mrb[0].mxu0 %v1641
      %v1947 = vpop.f32.mrb[0].mxu0
      %v1948 = vadd.f32 0.0, %v1947
      %v1949 = vpop.f32.mrb[0].mxu0
      %v1950 = vpop.f32.mrb[0].mxu0
      %v1951 = vadd.f32 0.0, %v1950
      %v1952 = vpop.f32.mrb[0].mxu0
      %1953 = vmatprep.mubr.bf16.mxu0 0
      %1954 = vmatmul.mubr.bf16.gmra.mrb[0].mxu0 %v1642
      %v1955 = vpop.f32.mrb[0].mxu0
      %v1956 = vadd.f32 0.0, %v1955
      %v1957 = vpop.f32.mrb[0].mxu0
      %v1958 = vpop.f32.mrb[0].mxu0
      %v1959 = vadd.f32 0.0, %v1958
      %v1960 = vpop.f32.mrb[0].mxu0
      %1961 = vmatprep.mubr.bf16.mxu0 0
      %1962 = vmatmul.mubr.bf16.gmra.mrb[0].mxu0 %v1643
      %v1963 = vpop.f32.mrb[0].mxu0
      %v1964 = vadd.f32 0.0, %v1963
      %v1965 = vpop.f32.mrb[0].mxu0
      %v1966 = vpop.f32.mrb[0].mxu0
      %v1967 = vadd.f32 0.0, %v1966
      %v1968 = vpop.f32.mrb[0].mxu0
      %1969 = vmatprep.mubr.bf16.mxu0 0
      %1970 = vmatmul.mubr.bf16.gmra.mrb[0].mxu0 %v1644
      %v1971 = vpop.f32.mrb[0].mxu0
      %v1972 = vadd.f32 0.0, %v1971
      %v1973 = vpop.f32.mrb[0].mxu0
      %v1974 = vpop.f32.mrb[0].mxu0
      %v1975 = vadd.f32 0.0, %v1974
      %v1976 = vpop.f32.mrb[0].mxu0
      %1977 = vmatprep.mubr.bf16.mxu0 0
      %1978 = vmatmul.mubr.bf16.gmra.mrb[0].mxu0 %v1645
      %v1979 = vpop.f32.mrb[0].mxu0
      %v1980 = vadd.f32 0.0, %v1979
      %v1981 = vpop.f32.mrb[0].mxu0
      %v1982 = vpop.f32.mrb[0].mxu0
      %v1983 = vadd.f32 0.0, %v1982
      %v1984 = vpop.f32.mrb[0].mxu0
      %1985 = vdwg.mxu0
      %v2002 = vrot.slane %v1924, 1
      %v2003 = vrot.slane %v1927, 1
      %v2004 = vsel %vm1346, %v2002, %v2003
      %v2005 = vrot.slane %v1932, 1
      %v2006 = vrot.slane %v1935, 1
      %v2007 = vsel %vm1346, %v2005, %v2006
      %v2008 = vrot.slane %v1940, 1
      %v2009 = vrot.slane %v1943, 1
      %v2010 = vsel %vm1346, %v2008, %v2009
      %v2011 = vrot.slane %v1948, 1
      %v2012 = vrot.slane %v1951, 1
      %v2013 = vsel %vm1346, %v2011, %v2012
      %v2014 = vrot.slane %v1956, 1
      %v2015 = vrot.slane %v1959, 1
      %v2016 = vsel %vm1346, %v2014, %v2015
      %v2017 = vrot.slane %v1964, 1
      %v2018 = vrot.slane %v1967, 1
      %v2019 = vsel %vm1346, %v2017, %v2018
      %v2020 = vrot.slane %v1972, 1
      %v2021 = vrot.slane %v1975, 1
      %v2022 = vsel %vm1346, %v2020, %v2021
      %v2023 = vrot.slane %v1980, 1
      %v2024 = vrot.slane %v1983, 1
      %v2025 = vsel %vm1346, %v2023, %v2024
      %v2042 = vadd.f32 %v1808, %v2004
      %v2043 = vadd.f32 %v1809, %v2003
      %v2044 = vadd.f32 %v1810, %v2007
      %v2045 = vadd.f32 %v1811, %v2006
      %v2046 = vadd.f32 %v1812, %v2010
      %v2047 = vadd.f32 %v1813, %v2009
      %v2048 = vadd.f32 %v1814, %v2013
      %v2049 = vadd.f32 %v1815, %v2012
      %v2050 = vadd.f32 %v1816, %v2016
      %v2051 = vadd.f32 %v1817, %v2015
      %v2052 = vadd.f32 %v1818, %v2019
      %v2053 = vadd.f32 %v1819, %v2018
      %v2054 = vadd.f32 %v1820, %v2022
      %v2055 = vadd.f32 %v1821, %v2021
      %v2056 = vadd.f32 %v1822, %v2025
      %v2057 = vadd.f32 %v1823, %v2024
      %s2058 = scalar_lea.vmem %s3, 320
      %v2059 = vld [vmem:[%s2058] sm:$0xf]
      %v2060 = vld [vmem:[%s2058 + $0x4] sm:$0xf]
      %v2061 = vld [vmem:[%s2058 + $0x8] sm:$0xf]
      %v2062 = vld [vmem:[%s2058 + $0xc] sm:$0xf]
      %v2063 = vld [vmem:[%s2058 + $0x10] sm:$0xf]
      %v2064 = vld [vmem:[%s2058 + $0x14] sm:$0xf]
      %v2065 = vld [vmem:[%s2058 + $0x18] sm:$0xf]
      %v2066 = vld [vmem:[%s2058 + $0x1c] sm:$0xf]
      %v2067 = vld [vmem:[%s2058 + $0x20] sm:$0xf]
      %v2068 = vld [vmem:[%s2058 + $0x24] sm:$0xf]
      %v2069 = vld [vmem:[%s2058 + $0x28] sm:$0xf]
      %v2070 = vld [vmem:[%s2058 + $0x2c] sm:$0xf]
      %v2071 = vld [vmem:[%s2058 + $0x30] sm:$0xf]
      %v2072 = vld [vmem:[%s2058 + $0x34] sm:$0xf]
      %v2073 = vld [vmem:[%s2058 + $0x38] sm:$0xf]
      %v2074 = vld [vmem:[%s2058 + $0x3c] sm:$0xf]
      %v2091 = vunpack.c.l.b16 %v2059
      %v2092 = vunpack.c.l.b16 %v2060
      %v2093 = vunpack.c.l.b16 %v2061
      %v2094 = vunpack.c.l.b16 %v2062
      %v2095 = vunpack.c.l.b16 %v2063
      %v2096 = vunpack.c.l.b16 %v2064
      %v2097 = vunpack.c.l.b16 %v2065
      %v2098 = vunpack.c.l.b16 %v2066
      %v2099 = vunpack.c.l.b16 %v2067
      %v2100 = vunpack.c.l.b16 %v2068
      %v2101 = vunpack.c.l.b16 %v2069
      %v2102 = vunpack.c.l.b16 %v2070
      %v2103 = vunpack.c.l.b16 %v2071
      %v2104 = vunpack.c.l.b16 %v2072
      %v2105 = vunpack.c.l.b16 %v2073
      %v2106 = vunpack.c.l.b16 %v2074
      %v2107 = vpack.c.b16 %v2092, %v2091
      %v2108 = vpack.c.b16 %v2094, %v2093
      %v2109 = vpack.c.b16 %v2096, %v2095
      %v2110 = vpack.c.b16 %v2098, %v2097
      %v2111 = vpack.c.b16 %v2100, %v2099
      %v2112 = vpack.c.b16 %v2102, %v2101
      %v2113 = vpack.c.b16 %v2104, %v2103
      %v2114 = vpack.c.b16 %v2106, %v2105
      %2123 = vmatprep.subr.bf16.mxu0 0
      %2124 = vmatpush1.bf16.msra.mxu0 %v2107
      %2125 = vmatprep.subr.bf16.mxu0 0
      %2126 = vmatpush1.bf16.msra.mxu0 %v2108
      %2127 = vmatprep.subr.bf16.mxu0 0
      %2128 = vmatpush1.bf16.msra.mxu0 %v2109
      %2129 = vmatprep.subr.bf16.mxu0 0
      %2130 = vmatpush1.bf16.msra.mxu0 %v2110
      %2131 = vmatprep.subr.bf16.mxu0 0
      %2132 = vmatpush1.bf16.msra.mxu0 %v2111
      %2133 = vmatprep.subr.bf16.mxu0 0
      %2134 = vmatpush1.bf16.msra.mxu0 %v2112
      %2135 = vmatprep.subr.bf16.mxu0 0
      %2136 = vmatpush1.bf16.msra.mxu0 %v2113
      %2137 = vmatprep.subr.bf16.mxu0 0
      %2138 = vmatpush1.bf16.msra.mxu0 %v2114
      %2139 = vmatprep.subr.bf16.mxu0 0
      %2140 = vmatpush1.bf16.msra.mxu0 0
      %2141 = vmatprep.subr.bf16.mxu0 0
      %2142 = vmatpush1.bf16.msra.mxu0 0
      %2143 = vmatprep.subr.bf16.mxu0 0
      %2144 = vmatpush1.bf16.msra.mxu0 0
      %2145 = vmatprep.subr.bf16.mxu0 0
      %2146 = vmatpush1.bf16.msra.mxu0 0
      %2147 = vmatprep.subr.bf16.mxu0 0
      %2148 = vmatpush1.bf16.msra.mxu0 0
      %2149 = vmatprep.subr.bf16.mxu0 0
      %2150 = vmatpush1.bf16.msra.mxu0 0
      %2151 = vmatprep.subr.bf16.mxu0 0
      %2152 = vmatpush1.bf16.msra.mxu0 0
      %2153 = vmatprep.subr.bf16.mxu0 0
      %2154 = vmatpush1.bf16.msra.mxu0 0
      %2155 = vmatprep.mubr.bf16.mxu0 0
      %2156 = vmatmul.mubr.bf16.gmra.mrb[0].mxu0 %v1638
      %v2157 = vpop.f32.mrb[0].mxu0
      %v2158 = vadd.f32 0.0, %v2157
      %v2159 = vpop.f32.mrb[0].mxu0
      %v2160 = vpop.f32.mrb[0].mxu0
      %v2161 = vadd.f32 0.0, %v2160
      %v2162 = vpop.f32.mrb[0].mxu0
      %2163 = vmatprep.mubr.bf16.mxu0 0
      %2164 = vmatmul.mubr.bf16.gmra.mrb[0].mxu0 %v1639
      %v2165 = vpop.f32.mrb[0].mxu0
      %v2166 = vadd.f32 0.0, %v2165
      %v2167 = vpop.f32.mrb[0].mxu0
      %v2168 = vpop.f32.mrb[0].mxu0
      %v2169 = vadd.f32 0.0, %v2168
      %v2170 = vpop.f32.mrb[0].mxu0
      %2171 = vmatprep.mubr.bf16.mxu0 0
      %2172 = vmatmul.mubr.bf16.gmra.mrb[0].mxu0 %v1640
      %v2173 = vpop.f32.mrb[0].mxu0
      %v2174 = vadd.f32 0.0, %v2173
      %v2175 = vpop.f32.mrb[0].mxu0
      %v2176 = vpop.f32.mrb[0].mxu0
      %v2177 = vadd.f32 0.0, %v2176
      %v2178 = vpop.f32.mrb[0].mxu0
      %2179 = vmatprep.mubr.bf16.mxu0 0
      %2180 = vmatmul.mubr.bf16.gmra.mrb[0].mxu0 %v1641
      %v2181 = vpop.f32.mrb[0].mxu0
      %v2182 = vadd.f32 0.0, %v2181
      %v2183 = vpop.f32.mrb[0].mxu0
      %v2184 = vpop.f32.mrb[0].mxu0
      %v2185 = vadd.f32 0.0, %v2184
      %v2186 = vpop.f32.mrb[0].mxu0
      %2187 = vmatprep.mubr.bf16.mxu0 0
      %2188 = vmatmul.mubr.bf16.gmra.mrb[0].mxu0 %v1642
      %v2189 = vpop.f32.mrb[0].mxu0
      %v2190 = vadd.f32 0.0, %v2189
      %v2191 = vpop.f32.mrb[0].mxu0
      %v2192 = vpop.f32.mrb[0].mxu0
      %v2193 = vadd.f32 0.0, %v2192
      %v2194 = vpop.f32.mrb[0].mxu0
      %2195 = vmatprep.mubr.bf16.mxu0 0
      %2196 = vmatmul.mubr.bf16.gmra.mrb[0].mxu0 %v1643
      %v2197 = vpop.f32.mrb[0].mxu0
      %v2198 = vadd.f32 0.0, %v2197
      %v2199 = vpop.f32.mrb[0].mxu0
      %v2200 = vpop.f32.mrb[0].mxu0
      %v2201 = vadd.f32 0.0, %v2200
      %v2202 = vpop.f32.mrb[0].mxu0
      %2203 = vmatprep.mubr.bf16.mxu0 0
      %2204 = vmatmul.mubr.bf16.gmra.mrb[0].mxu0 %v1644
      %v2205 = vpop.f32.mrb[0].mxu0
      %v2206 = vadd.f32 0.0, %v2205
      %v2207 = vpop.f32.mrb[0].mxu0
      %v2208 = vpop.f32.mrb[0].mxu0
      %v2209 = vadd.f32 0.0, %v2208
      %v2210 = vpop.f32.mrb[0].mxu0
      %2211 = vmatprep.mubr.bf16.mxu0 0
      %2212 = vmatmul.mubr.bf16.gmra.mrb[0].mxu0 %v1645
      %v2213 = vpop.f32.mrb[0].mxu0
      %v2214 = vadd.f32 0.0, %v2213
      %v2215 = vpop.f32.mrb[0].mxu0
      %v2216 = vpop.f32.mrb[0].mxu0
      %v2217 = vadd.f32 0.0, %v2216
      %v2218 = vpop.f32.mrb[0].mxu0
      %2219 = vdwg.mxu0
      %v2236 = vrot.slane %v2158, 2
      %v2237 = vrot.slane %v2161, 2
      %v2238 = vsel %vm1581, %v2236, %v2237
      %v2239 = vrot.slane %v2166, 2
      %v2240 = vrot.slane %v2169, 2
      %v2241 = vsel %vm1581, %v2239, %v2240
      %v2242 = vrot.slane %v2174, 2
      %v2243 = vrot.slane %v2177, 2
      %v2244 = vsel %vm1581, %v2242, %v2243
      %v2245 = vrot.slane %v2182, 2
      %v2246 = vrot.slane %v2185, 2
      %v2247 = vsel %vm1581, %v2245, %v2246
      %v2248 = vrot.slane %v2190, 2
      %v2249 = vrot.slane %v2193, 2
      %v2250 = vsel %vm1581, %v2248, %v2249
      %v2251 = vrot.slane %v2198, 2
      %v2252 = vrot.slane %v2201, 2
      %v2253 = vsel %vm1581, %v2251, %v2252
      %v2254 = vrot.slane %v2206, 2
      %v2255 = vrot.slane %v2209, 2
      %v2256 = vsel %vm1581, %v2254, %v2255
      %v2257 = vrot.slane %v2214, 2
      %v2258 = vrot.slane %v2217, 2
      %v2259 = vsel %vm1581, %v2257, %v2258
      %v2276 = vadd.f32 %v2042, %v2238
      %v2277 = vadd.f32 %v2043, %v2237
      %v2278 = vadd.f32 %v2044, %v2241
      %v2279 = vadd.f32 %v2045, %v2240
      %v2280 = vadd.f32 %v2046, %v2244
      %v2281 = vadd.f32 %v2047, %v2243
      %v2282 = vadd.f32 %v2048, %v2247
      %v2283 = vadd.f32 %v2049, %v2246
      %v2284 = vadd.f32 %v2050, %v2250
      %v2285 = vadd.f32 %v2051, %v2249
      %v2286 = vadd.f32 %v2052, %v2253
      %v2287 = vadd.f32 %v2053, %v2252
      %v2288 = vadd.f32 %v2054, %v2256
      %v2289 = vadd.f32 %v2055, %v2255
      %v2290 = vadd.f32 %v2056, %v2259
      %v2291 = vadd.f32 %v2057, %v2258
      %s2292 = scalar_lea.vmem [#allocation2], 16
      %v2293 = vld [vmem:[%s2292] sm:$0xff]
      %v2294 = vld [vmem:[%s2292 + $0x8] sm:$0xff]
      %v2295 = vld [vmem:[%s2292 + $0x10] sm:$0xff]
      %v2296 = vld [vmem:[%s2292 + $0x18] sm:$0xff]
      %v2297 = vld [vmem:[%s2292 + $0x20] sm:$0xff]
      %v2298 = vld [vmem:[%s2292 + $0x28] sm:$0xff]
      %v2299 = vld [vmem:[%s2292 + $0x30] sm:$0xff]
      %v2300 = vld [vmem:[%s2292 + $0x38] sm:$0xff]
      %s2301 = scalar_lea.vmem %s3, 384
      %v2302 = vld [vmem:[%s2301] sm:$0xf]
      %v2303 = vld [vmem:[%s2301 + $0x4] sm:$0xf]
      %v2304 = vld [vmem:[%s2301 + $0x8] sm:$0xf]
      %v2305 = vld [vmem:[%s2301 + $0xc] sm:$0xf]
      %v2306 = vld [vmem:[%s2301 + $0x10] sm:$0xf]
      %v2307 = vld [vmem:[%s2301 + $0x14] sm:$0xf]
      %v2308 = vld [vmem:[%s2301 + $0x18] sm:$0xf]
      %v2309 = vld [vmem:[%s2301 + $0x1c] sm:$0xf]
      %v2310 = vld [vmem:[%s2301 + $0x20] sm:$0xf]
      %v2311 = vld [vmem:[%s2301 + $0x24] sm:$0xf]
      %v2312 = vld [vmem:[%s2301 + $0x28] sm:$0xf]
      %v2313 = vld [vmem:[%s2301 + $0x2c] sm:$0xf]
      %v2314 = vld [vmem:[%s2301 + $0x30] sm:$0xf]
      %v2315 = vld [vmem:[%s2301 + $0x34] sm:$0xf]
      %v2316 = vld [vmem:[%s2301 + $0x38] sm:$0xf]
      %v2317 = vld [vmem:[%s2301 + $0x3c] sm:$0xf]
      %v2334 = vunpack.c.l.b16 %v2302
      %v2335 = vunpack.c.l.b16 %v2303
      %v2336 = vunpack.c.l.b16 %v2304
      %v2337 = vunpack.c.l.b16 %v2305
      %v2338 = vunpack.c.l.b16 %v2306
      %v2339 = vunpack.c.l.b16 %v2307
      %v2340 = vunpack.c.l.b16 %v2308
      %v2341 = vunpack.c.l.b16 %v2309
      %v2342 = vunpack.c.l.b16 %v2310
      %v2343 = vunpack.c.l.b16 %v2311
      %v2344 = vunpack.c.l.b16 %v2312
      %v2345 = vunpack.c.l.b16 %v2313
      %v2346 = vunpack.c.l.b16 %v2314
      %v2347 = vunpack.c.l.b16 %v2315
      %v2348 = vunpack.c.l.b16 %v2316
      %v2349 = vunpack.c.l.b16 %v2317
      %v2350 = vpack.c.b16 %v2335, %v2334
      %v2351 = vpack.c.b16 %v2337, %v2336
      %v2352 = vpack.c.b16 %v2339, %v2338
      %v2353 = vpack.c.b16 %v2341, %v2340
      %v2354 = vpack.c.b16 %v2343, %v2342
      %v2355 = vpack.c.b16 %v2345, %v2344
      %v2356 = vpack.c.b16 %v2347, %v2346
      %v2357 = vpack.c.b16 %v2349, %v2348
      %2366 = vmatprep.subr.bf16.mxu0 0
      %2367 = vmatpush1.bf16.msra.mxu0 %v2350
      %2368 = vmatprep.subr.bf16.mxu0 0
      %2369 = vmatpush1.bf16.msra.mxu0 %v2351
      %2370 = vmatprep.subr.bf16.mxu0 0
      %2371 = vmatpush1.bf16.msra.mxu0 %v2352
      %2372 = vmatprep.subr.bf16.mxu0 0
      %2373 = vmatpush1.bf16.msra.mxu0 %v2353
      %2374 = vmatprep.subr.bf16.mxu0 0
      %2375 = vmatpush1.bf16.msra.mxu0 %v2354
      %2376 = vmatprep.subr.bf16.mxu0 0
      %2377 = vmatpush1.bf16.msra.mxu0 %v2355
      %2378 = vmatprep.subr.bf16.mxu0 0
      %2379 = vmatpush1.bf16.msra.mxu0 %v2356
      %2380 = vmatprep.subr.bf16.mxu0 0
      %2381 = vmatpush1.bf16.msra.mxu0 %v2357
      %2382 = vmatprep.subr.bf16.mxu0 0
      %2383 = vmatpush1.bf16.msra.mxu0 0
      %2384 = vmatprep.subr.bf16.mxu0 0
      %2385 = vmatpush1.bf16.msra.mxu0 0
      %2386 = vmatprep.subr.bf16.mxu0 0
      %2387 = vmatpush1.bf16.msra.mxu0 0
      %2388 = vmatprep.subr.bf16.mxu0 0
      %2389 = vmatpush1.bf16.msra.mxu0 0
      %2390 = vmatprep.subr.bf16.mxu0 0
      %2391 = vmatpush1.bf16.msra.mxu0 0
      %2392 = vmatprep.subr.bf16.mxu0 0
      %2393 = vmatpush1.bf16.msra.mxu0 0
      %2394 = vmatprep.subr.bf16.mxu0 0
      %2395 = vmatpush1.bf16.msra.mxu0 0
      %2396 = vmatprep.subr.bf16.mxu0 0
      %2397 = vmatpush1.bf16.msra.mxu0 0
      %2398 = vmatprep.mubr.bf16.mxu0 0
      %2399 = vmatmul.mubr.bf16.gmra.mrb[0].mxu0 %v2293
      %v2400 = vpop.f32.mrb[0].mxu0
      %v2401 = vadd.f32 0.0, %v2400
      %v2402 = vpop.f32.mrb[0].mxu0
      %v2403 = vpop.f32.mrb[0].mxu0
      %v2404 = vadd.f32 0.0, %v2403
      %v2405 = vpop.f32.mrb[0].mxu0
      %2406 = vmatprep.mubr.bf16.mxu0 0
      %2407 = vmatmul.mubr.bf16.gmra.mrb[0].mxu0 %v2294
      %v2408 = vpop.f32.mrb[0].mxu0
      %v2409 = vadd.f32 0.0, %v2408
      %v2410 = vpop.f32.mrb[0].mxu0
      %v2411 = vpop.f32.mrb[0].mxu0
      %v2412 = vadd.f32 0.0, %v2411
      %v2413 = vpop.f32.mrb[0].mxu0
      %2414 = vmatprep.mubr.bf16.mxu0 0
      %2415 = vmatmul.mubr.bf16.gmra.mrb[0].mxu0 %v2295
      %v2416 = vpop.f32.mrb[0].mxu0
      %v2417 = vadd.f32 0.0, %v2416
      %v2418 = vpop.f32.mrb[0].mxu0
      %v2419 = vpop.f32.mrb[0].mxu0
      %v2420 = vadd.f32 0.0, %v2419
      %v2421 = vpop.f32.mrb[0].mxu0
      %2422 = vmatprep.mubr.bf16.mxu0 0
      %2423 = vmatmul.mubr.bf16.gmra.mrb[0].mxu0 %v2296
      %v2424 = vpop.f32.mrb[0].mxu0
      %v2425 = vadd.f32 0.0, %v2424
      %v2426 = vpop.f32.mrb[0].mxu0
      %v2427 = vpop.f32.mrb[0].mxu0
      %v2428 = vadd.f32 0.0, %v2427
      %v2429 = vpop.f32.mrb[0].mxu0
      %2430 = vmatprep.mubr.bf16.mxu0 0
      %2431 = vmatmul.mubr.bf16.gmra.mrb[0].mxu0 %v2297
      %v2432 = vpop.f32.mrb[0].mxu0
      %v2433 = vadd.f32 0.0, %v2432
      %v2434 = vpop.f32.mrb[0].mxu0
      %v2435 = vpop.f32.mrb[0].mxu0
      %v2436 = vadd.f32 0.0, %v2435
      %v2437 = vpop.f32.mrb[0].mxu0
      %2438 = vmatprep.mubr.bf16.mxu0 0
      %2439 = vmatmul.mubr.bf16.gmra.mrb[0].mxu0 %v2298
      %v2440 = vpop.f32.mrb[0].mxu0
      %v2441 = vadd.f32 0.0, %v2440
      %v2442 = vpop.f32.mrb[0].mxu0
      %v2443 = vpop.f32.mrb[0].mxu0
      %v2444 = vadd.f32 0.0, %v2443
      %v2445 = vpop.f32.mrb[0].mxu0
      %2446 = vmatprep.mubr.bf16.mxu0 0
      %2447 = vmatmul.mubr.bf16.gmra.mrb[0].mxu0 %v2299
      %v2448 = vpop.f32.mrb[0].mxu0
      %v2449 = vadd.f32 0.0, %v2448
      %v2450 = vpop.f32.mrb[0].mxu0
      %v2451 = vpop.f32.mrb[0].mxu0
      %v2452 = vadd.f32 0.0, %v2451
      %v2453 = vpop.f32.mrb[0].mxu0
      %2454 = vmatprep.mubr.bf16.mxu0 0
      %2455 = vmatmul.mubr.bf16.gmra.mrb[0].mxu0 %v2300
      %v2456 = vpop.f32.mrb[0].mxu0
      %v2457 = vadd.f32 0.0, %v2456
      %v2458 = vpop.f32.mrb[0].mxu0
      %v2459 = vpop.f32.mrb[0].mxu0
      %v2460 = vadd.f32 0.0, %v2459
      %v2461 = vpop.f32.mrb[0].mxu0
      %2462 = vdwg.mxu0
      %v2463 = vadd.f32 %v2276, %v2401
      %v2464 = vadd.f32 %v2277, %v2404
      %v2465 = vadd.f32 %v2278, %v2409
      %v2466 = vadd.f32 %v2279, %v2412
      %v2467 = vadd.f32 %v2280, %v2417
      %v2468 = vadd.f32 %v2281, %v2420
      %v2469 = vadd.f32 %v2282, %v2425
      %v2470 = vadd.f32 %v2283, %v2428
      %v2471 = vadd.f32 %v2284, %v2433
      %v2472 = vadd.f32 %v2285, %v2436
      %v2473 = vadd.f32 %v2286, %v2441
      %v2474 = vadd.f32 %v2287, %v2444
      %v2475 = vadd.f32 %v2288, %v2449
      %v2476 = vadd.f32 %v2289, %v2452
      %v2477 = vadd.f32 %v2290, %v2457
      %v2478 = vadd.f32 %v2291, %v2460
      %s2479 = scalar_lea.vmem %s3, 448
      %v2480 = vld [vmem:[%s2479] sm:$0xf]
      %v2481 = vld [vmem:[%s2479 + $0x4] sm:$0xf]
      %v2482 = vld [vmem:[%s2479 + $0x8] sm:$0xf]
      %v2483 = vld [vmem:[%s2479 + $0xc] sm:$0xf]
      %v2484 = vld [vmem:[%s2479 + $0x10] sm:$0xf]
      %v2485 = vld [vmem:[%s2479 + $0x14] sm:$0xf]
      %v2486 = vld [vmem:[%s2479 + $0x18] sm:$0xf]
      %v2487 = vld [vmem:[%s2479 + $0x1c] sm:$0xf]
      %v2488 = vld [vmem:[%s2479 + $0x20] sm:$0xf]
      %v2489 = vld [vmem:[%s2479 + $0x24] sm:$0xf]
      %v2490 = vld [vmem:[%s2479 + $0x28] sm:$0xf]
      %v2491 = vld [vmem:[%s2479 + $0x2c] sm:$0xf]
      %v2492 = vld [vmem:[%s2479 + $0x30] sm:$0xf]
      %v2493 = vld [vmem:[%s2479 + $0x34] sm:$0xf]
      %v2494 = vld [vmem:[%s2479 + $0x38] sm:$0xf]
      %v2495 = vld [vmem:[%s2479 + $0x3c] sm:$0xf]
      %v2512 = vunpack.c.l.b16 %v2480
      %v2513 = vunpack.c.l.b16 %v2481
      %v2514 = vunpack.c.l.b16 %v2482
      %v2515 = vunpack.c.l.b16 %v2483
      %v2516 = vunpack.c.l.b16 %v2484
      %v2517 = vunpack.c.l.b16 %v2485
      %v2518 = vunpack.c.l.b16 %v2486
      %v2519 = vunpack.c.l.b16 %v2487
      %v2520 = vunpack.c.l.b16 %v2488
      %v2521 = vunpack.c.l.b16 %v2489
      %v2522 = vunpack.c.l.b16 %v2490
      %v2523 = vunpack.c.l.b16 %v2491
      %v2524 = vunpack.c.l.b16 %v2492
      %v2525 = vunpack.c.l.b16 %v2493
      %v2526 = vunpack.c.l.b16 %v2494
      %v2527 = vunpack.c.l.b16 %v2495
      %v2528 = vpack.c.b16 %v2513, %v2512
      %v2529 = vpack.c.b16 %v2515, %v2514
      %v2530 = vpack.c.b16 %v2517, %v2516
      %v2531 = vpack.c.b16 %v2519, %v2518
      %v2532 = vpack.c.b16 %v2521, %v2520
      %v2533 = vpack.c.b16 %v2523, %v2522
      %v2534 = vpack.c.b16 %v2525, %v2524
      %v2535 = vpack.c.b16 %v2527, %v2526
      %2544 = vmatprep.subr.bf16.mxu0 0
      %2545 = vmatpush1.bf16.msra.mxu0 %v2528
      %2546 = vmatprep.subr.bf16.mxu0 0
      %2547 = vmatpush1.bf16.msra.mxu0 %v2529
      %2548 = vmatprep.subr.bf16.mxu0 0
      %2549 = vmatpush1.bf16.msra.mxu0 %v2530
      %2550 = vmatprep.subr.bf16.mxu0 0
      %2551 = vmatpush1.bf16.msra.mxu0 %v2531
      %2552 = vmatprep.subr.bf16.mxu0 0
      %2553 = vmatpush1.bf16.msra.mxu0 %v2532
      %2554 = vmatprep.subr.bf16.mxu0 0
      %2555 = vmatpush1.bf16.msra.mxu0 %v2533
      %2556 = vmatprep.subr.bf16.mxu0 0
      %2557 = vmatpush1.bf16.msra.mxu0 %v2534
      %2558 = vmatprep.subr.bf16.mxu0 0
      %2559 = vmatpush1.bf16.msra.mxu0 %v2535
      %2560 = vmatprep.subr.bf16.mxu0 0
      %2561 = vmatpush1.bf16.msra.mxu0 0
      %2562 = vmatprep.subr.bf16.mxu0 0
      %2563 = vmatpush1.bf16.msra.mxu0 0
      %2564 = vmatprep.subr.bf16.mxu0 0
      %2565 = vmatpush1.bf16.msra.mxu0 0
      %2566 = vmatprep.subr.bf16.mxu0 0
      %2567 = vmatpush1.bf16.msra.mxu0 0
      %2568 = vmatprep.subr.bf16.mxu0 0
      %2569 = vmatpush1.bf16.msra.mxu0 0
      %2570 = vmatprep.subr.bf16.mxu0 0
      %2571 = vmatpush1.bf16.msra.mxu0 0
      %2572 = vmatprep.subr.bf16.mxu0 0
      %2573 = vmatpush1.bf16.msra.mxu0 0
      %2574 = vmatprep.subr.bf16.mxu0 0
      %2575 = vmatpush1.bf16.msra.mxu0 0
      %2576 = vmatprep.mubr.bf16.mxu0 0
      %2577 = vmatmul.mubr.bf16.gmra.mrb[0].mxu0 %v2293
      %v2578 = vpop.f32.mrb[0].mxu0
      %v2579 = vadd.f32 0.0, %v2578
      %v2580 = vpop.f32.mrb[0].mxu0
      %v2581 = vpop.f32.mrb[0].mxu0
      %v2582 = vadd.f32 0.0, %v2581
      %v2583 = vpop.f32.mrb[0].mxu0
      %2584 = vmatprep.mubr.bf16.mxu0 0
      %2585 = vmatmul.mubr.bf16.gmra.mrb[0].mxu0 %v2294
      %v2586 = vpop.f32.mrb[0].mxu0
      %v2587 = vadd.f32 0.0, %v2586
      %v2588 = vpop.f32.mrb[0].mxu0
      %v2589 = vpop.f32.mrb[0].mxu0
      %v2590 = vadd.f32 0.0, %v2589
      %v2591 = vpop.f32.mrb[0].mxu0
      %2592 = vmatprep.mubr.bf16.mxu0 0
      %2593 = vmatmul.mubr.bf16.gmra.mrb[0].mxu0 %v2295
      %v2594 = vpop.f32.mrb[0].mxu0
      %v2595 = vadd.f32 0.0, %v2594
      %v2596 = vpop.f32.mrb[0].mxu0
      %v2597 = vpop.f32.mrb[0].mxu0
      %v2598 = vadd.f32 0.0, %v2597
      %v2599 = vpop.f32.mrb[0].mxu0
      %2600 = vmatprep.mubr.bf16.mxu0 0
      %2601 = vmatmul.mubr.bf16.gmra.mrb[0].mxu0 %v2296
      %v2602 = vpop.f32.mrb[0].mxu0
      %v2603 = vadd.f32 0.0, %v2602
      %v2604 = vpop.f32.mrb[0].mxu0
      %v2605 = vpop.f32.mrb[0].mxu0
      %v2606 = vadd.f32 0.0, %v2605
      %v2607 = vpop.f32.mrb[0].mxu0
      %2608 = vmatprep.mubr.bf16.mxu0 0
      %2609 = vmatmul.mubr.bf16.gmra.mrb[0].mxu0 %v2297
      %v2610 = vpop.f32.mrb[0].mxu0
      %v2611 = vadd.f32 0.0, %v2610
      %v2612 = vpop.f32.mrb[0].mxu0
      %v2613 = vpop.f32.mrb[0].mxu0
      %v2614 = vadd.f32 0.0, %v2613
      %v2615 = vpop.f32.mrb[0].mxu0
      %2616 = vmatprep.mubr.bf16.mxu0 0
      %2617 = vmatmul.mubr.bf16.gmra.mrb[0].mxu0 %v2298
      %v2618 = vpop.f32.mrb[0].mxu0
      %v2619 = vadd.f32 0.0, %v2618
      %v2620 = vpop.f32.mrb[0].mxu0
      %v2621 = vpop.f32.mrb[0].mxu0
      %v2622 = vadd.f32 0.0, %v2621
      %v2623 = vpop.f32.mrb[0].mxu0
      %2624 = vmatprep.mubr.bf16.mxu0 0
      %2625 = vmatmul.mubr.bf16.gmra.mrb[0].mxu0 %v2299
      %v2626 = vpop.f32.mrb[0].mxu0
      %v2627 = vadd.f32 0.0, %v2626
      %v2628 = vpop.f32.mrb[0].mxu0
      %v2629 = vpop.f32.mrb[0].mxu0
      %v2630 = vadd.f32 0.0, %v2629
      %v2631 = vpop.f32.mrb[0].mxu0
      %2632 = vmatprep.mubr.bf16.mxu0 0
      %2633 = vmatmul.mubr.bf16.gmra.mrb[0].mxu0 %v2300
      %v2634 = vpop.f32.mrb[0].mxu0
      %v2635 = vadd.f32 0.0, %v2634
      %v2636 = vpop.f32.mrb[0].mxu0
      %v2637 = vpop.f32.mrb[0].mxu0
      %v2638 = vadd.f32 0.0, %v2637
      %v2639 = vpop.f32.mrb[0].mxu0
      %2640 = vdwg.mxu0
      %v2657 = vrot.slane %v2579, 1
      %v2658 = vrot.slane %v2582, 1
      %v2659 = vsel %vm1346, %v2657, %v2658
      %v2660 = vrot.slane %v2587, 1
      %v2661 = vrot.slane %v2590, 1
      %v2662 = vsel %vm1346, %v2660, %v2661
      %v2663 = vrot.slane %v2595, 1
      %v2664 = vrot.slane %v2598, 1
      %v2665 = vsel %vm1346, %v2663, %v2664
      %v2666 = vrot.slane %v2603, 1
      %v2667 = vrot.slane %v2606, 1
      %v2668 = vsel %vm1346, %v2666, %v2667
      %v2669 = vrot.slane %v2611, 1
      %v2670 = vrot.slane %v2614, 1
      %v2671 = vsel %vm1346, %v2669, %v2670
      %v2672 = vrot.slane %v2619, 1
      %v2673 = vrot.slane %v2622, 1
      %v2674 = vsel %vm1346, %v2672, %v2673
      %v2675 = vrot.slane %v2627, 1
      %v2676 = vrot.slane %v2630, 1
      %v2677 = vsel %vm1346, %v2675, %v2676
      %v2678 = vrot.slane %v2635, 1
      %v2679 = vrot.slane %v2638, 1
      %v2680 = vsel %vm1346, %v2678, %v2679
      %v2697 = vadd.f32 %v2463, %v2659
      %v2698 = vadd.f32 %v2464, %v2658
      %v2699 = vadd.f32 %v2465, %v2662
      %v2700 = vadd.f32 %v2466, %v2661
      %v2701 = vadd.f32 %v2467, %v2665
      %v2702 = vadd.f32 %v2468, %v2664
      %v2703 = vadd.f32 %v2469, %v2668
      %v2704 = vadd.f32 %v2470, %v2667
      %v2705 = vadd.f32 %v2471, %v2671
      %v2706 = vadd.f32 %v2472, %v2670
      %v2707 = vadd.f32 %v2473, %v2674
      %v2708 = vadd.f32 %v2474, %v2673
      %v2709 = vadd.f32 %v2475, %v2677
      %v2710 = vadd.f32 %v2476, %v2676
      %v2711 = vadd.f32 %v2477, %v2680
      %v2712 = vadd.f32 %v2478, %v2679
      %s2713 = scalar_lea.vmem %s3, 512
      %v2714 = vld [vmem:[%s2713] sm:$0xf]
      %v2715 = vld [vmem:[%s2713 + $0x4] sm:$0xf]
      %v2716 = vld [vmem:[%s2713 + $0x8] sm:$0xf]
      %v2717 = vld [vmem:[%s2713 + $0xc] sm:$0xf]
      %v2718 = vld [vmem:[%s2713 + $0x10] sm:$0xf]
      %v2719 = vld [vmem:[%s2713 + $0x14] sm:$0xf]
      %v2720 = vld [vmem:[%s2713 + $0x18] sm:$0xf]
      %v2721 = vld [vmem:[%s2713 + $0x1c] sm:$0xf]
      %v2722 = vld [vmem:[%s2713 + $0x20] sm:$0xf]
      %v2723 = vld [vmem:[%s2713 + $0x24] sm:$0xf]
      %v2724 = vld [vmem:[%s2713 + $0x28] sm:$0xf]
      %v2725 = vld [vmem:[%s2713 + $0x2c] sm:$0xf]
      %v2726 = vld [vmem:[%s2713 + $0x30] sm:$0xf]
      %v2727 = vld [vmem:[%s2713 + $0x34] sm:$0xf]
      %v2728 = vld [vmem:[%s2713 + $0x38] sm:$0xf]
      %v2729 = vld [vmem:[%s2713 + $0x3c] sm:$0xf]
      %v2746 = vunpack.c.l.b16 %v2714
      %v2747 = vunpack.c.l.b16 %v2715
      %v2748 = vunpack.c.l.b16 %v2716
      %v2749 = vunpack.c.l.b16 %v2717
      %v2750 = vunpack.c.l.b16 %v2718
      %v2751 = vunpack.c.l.b16 %v2719
      %v2752 = vunpack.c.l.b16 %v2720
      %v2753 = vunpack.c.l.b16 %v2721
      %v2754 = vunpack.c.l.b16 %v2722
      %v2755 = vunpack.c.l.b16 %v2723
      %v2756 = vunpack.c.l.b16 %v2724
      %v2757 = vunpack.c.l.b16 %v2725
      %v2758 = vunpack.c.l.b16 %v2726
      %v2759 = vunpack.c.l.b16 %v2727
      %v2760 = vunpack.c.l.b16 %v2728
      %v2761 = vunpack.c.l.b16 %v2729
      %v2762 = vpack.c.b16 %v2747, %v2746
      %v2763 = vpack.c.b16 %v2749, %v2748
      %v2764 = vpack.c.b16 %v2751, %v2750
      %v2765 = vpack.c.b16 %v2753, %v2752
      %v2766 = vpack.c.b16 %v2755, %v2754
      %v2767 = vpack.c.b16 %v2757, %v2756
      %v2768 = vpack.c.b16 %v2759, %v2758
      %v2769 = vpack.c.b16 %v2761, %v2760
      %2778 = vmatprep.subr.bf16.mxu0 0
      %2779 = vmatpush1.bf16.msra.mxu0 %v2762
      %2780 = vmatprep.subr.bf16.mxu0 0
      %2781 = vmatpush1.bf16.msra.mxu0 %v2763
      %2782 = vmatprep.subr.bf16.mxu0 0
      %2783 = vmatpush1.bf16.msra.mxu0 %v2764
      %2784 = vmatprep.subr.bf16.mxu0 0
      %2785 = vmatpush1.bf16.msra.mxu0 %v2765
      %2786 = vmatprep.subr.bf16.mxu0 0
      %2787 = vmatpush1.bf16.msra.mxu0 %v2766
      %2788 = vmatprep.subr.bf16.mxu0 0
      %2789 = vmatpush1.bf16.msra.mxu0 %v2767
      %2790 = vmatprep.subr.bf16.mxu0 0
      %2791 = vmatpush1.bf16.msra.mxu0 %v2768
      %2792 = vmatprep.subr.bf16.mxu0 0
      %2793 = vmatpush1.bf16.msra.mxu0 %v2769
      %2794 = vmatprep.subr.bf16.mxu0 0
      %2795 = vmatpush1.bf16.msra.mxu0 0
      %2796 = vmatprep.subr.bf16.mxu0 0
      %2797 = vmatpush1.bf16.msra.mxu0 0
      %2798 = vmatprep.subr.bf16.mxu0 0
      %2799 = vmatpush1.bf16.msra.mxu0 0
      %2800 = vmatprep.subr.bf16.mxu0 0
      %2801 = vmatpush1.bf16.msra.mxu0 0
      %2802 = vmatprep.subr.bf16.mxu0 0
      %2803 = vmatpush1.bf16.msra.mxu0 0
      %2804 = vmatprep.subr.bf16.mxu0 0
      %2805 = vmatpush1.bf16.msra.mxu0 0
      %2806 = vmatprep.subr.bf16.mxu0 0
      %2807 = vmatpush1.bf16.msra.mxu0 0
      %2808 = vmatprep.subr.bf16.mxu0 0
      %2809 = vmatpush1.bf16.msra.mxu0 0
      %2810 = vmatprep.mubr.bf16.mxu0 0
      %2811 = vmatmul.mubr.bf16.gmra.mrb[0].mxu0 %v2293
      %v2812 = vpop.f32.mrb[0].mxu0
      %v2813 = vadd.f32 0.0, %v2812
      %v2814 = vpop.f32.mrb[0].mxu0
      %v2815 = vpop.f32.mrb[0].mxu0
      %v2816 = vadd.f32 0.0, %v2815
      %v2817 = vpop.f32.mrb[0].mxu0
      %2818 = vmatprep.mubr.bf16.mxu0 0
      %2819 = vmatmul.mubr.bf16.gmra.mrb[0].mxu0 %v2294
      %v2820 = vpop.f32.mrb[0].mxu0
      %v2821 = vadd.f32 0.0, %v2820
      %v2822 = vpop.f32.mrb[0].mxu0
      %v2823 = vpop.f32.mrb[0].mxu0
      %v2824 = vadd.f32 0.0, %v2823
      %v2825 = vpop.f32.mrb[0].mxu0
      %2826 = vmatprep.mubr.bf16.mxu0 0
      %2827 = vmatmul.mubr.bf16.gmra.mrb[0].mxu0 %v2295
      %v2828 = vpop.f32.mrb[0].mxu0
      %v2829 = vadd.f32 0.0, %v2828
      %v2830 = vpop.f32.mrb[0].mxu0
      %v2831 = vpop.f32.mrb[0].mxu0
      %v2832 = vadd.f32 0.0, %v2831
      %v2833 = vpop.f32.mrb[0].mxu0
      %2834 = vmatprep.mubr.bf16.mxu0 0
      %2835 = vmatmul.mubr.bf16.gmra.mrb[0].mxu0 %v2296
      %v2836 = vpop.f32.mrb[0].mxu0
      %v2837 = vadd.f32 0.0, %v2836
      %v2838 = vpop.f32.mrb[0].mxu0
      %v2839 = vpop.f32.mrb[0].mxu0
      %v2840 = vadd.f32 0.0, %v2839
      %v2841 = vpop.f32.mrb[0].mxu0
      %2842 = vmatprep.mubr.bf16.mxu0 0
      %2843 = vmatmul.mubr.bf16.gmra.mrb[0].mxu0 %v2297
      %v2844 = vpop.f32.mrb[0].mxu0
      %v2845 = vadd.f32 0.0, %v2844
      %v2846 = vpop.f32.mrb[0].mxu0
      %v2847 = vpop.f32.mrb[0].mxu0
      %v2848 = vadd.f32 0.0, %v2847
      %v2849 = vpop.f32.mrb[0].mxu0
      %2850 = vmatprep.mubr.bf16.mxu0 0
      %2851 = vmatmul.mubr.bf16.gmra.mrb[0].mxu0 %v2298
      %v2852 = vpop.f32.mrb[0].mxu0
      %v2853 = vadd.f32 0.0, %v2852
      %v2854 = vpop.f32.mrb[0].mxu0
      %v2855 = vpop.f32.mrb[0].mxu0
      %v2856 = vadd.f32 0.0, %v2855
      %v2857 = vpop.f32.mrb[0].mxu0
      %2858 = vmatprep.mubr.bf16.mxu0 0
      %2859 = vmatmul.mubr.bf16.gmra.mrb[0].mxu0 %v2299
      %v2860 = vpop.f32.mrb[0].mxu0
      %v2861 = vadd.f32 0.0, %v2860
      %v2862 = vpop.f32.mrb[0].mxu0
      %v2863 = vpop.f32.mrb[0].mxu0
      %v2864 = vadd.f32 0.0, %v2863
      %v2865 = vpop.f32.mrb[0].mxu0
      %2866 = vmatprep.mubr.bf16.mxu0 0
      %2867 = vmatmul.mubr.bf16.gmra.mrb[0].mxu0 %v2300
      %v2868 = vpop.f32.mrb[0].mxu0
      %v2869 = vadd.f32 0.0, %v2868
      %v2870 = vpop.f32.mrb[0].mxu0
      %v2871 = vpop.f32.mrb[0].mxu0
      %v2872 = vadd.f32 0.0, %v2871
      %v2873 = vpop.f32.mrb[0].mxu0
      %2874 = vdwg.mxu0
      %v2891 = vrot.slane %v2813, 2
      %v2892 = vrot.slane %v2816, 2
      %v2893 = vsel %vm1581, %v2891, %v2892
      %v2894 = vrot.slane %v2821, 2
      %v2895 = vrot.slane %v2824, 2
      %v2896 = vsel %vm1581, %v2894, %v2895
      %v2897 = vrot.slane %v2829, 2
      %v2898 = vrot.slane %v2832, 2
      %v2899 = vsel %vm1581, %v2897, %v2898
      %v2900 = vrot.slane %v2837, 2
      %v2901 = vrot.slane %v2840, 2
      %v2902 = vsel %vm1581, %v2900, %v2901
      %v2903 = vrot.slane %v2845, 2
      %v2904 = vrot.slane %v2848, 2
      %v2905 = vsel %vm1581, %v2903, %v2904
      %v2906 = vrot.slane %v2853, 2
      %v2907 = vrot.slane %v2856, 2
      %v2908 = vsel %vm1581, %v2906, %v2907
      %v2909 = vrot.slane %v2861, 2
      %v2910 = vrot.slane %v2864, 2
      %v2911 = vsel %vm1581, %v2909, %v2910
      %v2912 = vrot.slane %v2869, 2
      %v2913 = vrot.slane %v2872, 2
      %v2914 = vsel %vm1581, %v2912, %v2913
      %v2931 = vadd.f32 %v2697, %v2893
      %v2932 = vadd.f32 %v2698, %v2892
      %v2933 = vadd.f32 %v2699, %v2896
      %v2934 = vadd.f32 %v2700, %v2895
      %v2935 = vadd.f32 %v2701, %v2899
      %v2936 = vadd.f32 %v2702, %v2898
      %v2937 = vadd.f32 %v2703, %v2902
      %v2938 = vadd.f32 %v2704, %v2901
      %v2939 = vadd.f32 %v2705, %v2905
      %v2940 = vadd.f32 %v2706, %v2904
      %v2941 = vadd.f32 %v2707, %v2908
      %v2942 = vadd.f32 %v2708, %v2907
      %v2943 = vadd.f32 %v2709, %v2911
      %v2944 = vadd.f32 %v2710, %v2910
      %v2945 = vadd.f32 %v2711, %v2914
      %v2946 = vadd.f32 %v2712, %v2913
      %v2947 = vld [vmem:[%s4] sm:$0x1]
      %v2949 = vlaneseq
      %v2950 = vshrl.u32 %v2949, 7
      %v2951 = vsub.s32 0, %v2950
      %v2952 = vrot.slane %v2947, %v2951
      %v2954 = vadd.f32 %v2931, %v2952
      %v2955 = vadd.f32 %v2932, %v2952
      %v2956 = vadd.f32 %v2933, %v2952
      %v2957 = vadd.f32 %v2934, %v2952
      %v2958 = vadd.f32 %v2935, %v2952
      %v2959 = vadd.f32 %v2936, %v2952
      %v2960 = vadd.f32 %v2937, %v2952
      %v2961 = vadd.f32 %v2938, %v2952
      %v2962 = vadd.f32 %v2939, %v2952
      %v2963 = vadd.f32 %v2940, %v2952
      %v2964 = vadd.f32 %v2941, %v2952
      %v2965 = vadd.f32 %v2942, %v2952
      %v2966 = vadd.f32 %v2943, %v2952
      %v2967 = vadd.f32 %v2944, %v2952
      %v2968 = vadd.f32 %v2945, %v2952
      %v2969 = vadd.f32 %v2946, %v2952
      %v2970 = vmax.f32 %v2954, 0.0
      %v2971 = vmax.f32 %v2955, 0.0
      %v2972 = vmax.f32 %v2956, 0.0
      %v2973 = vmax.f32 %v2957, 0.0
      %v2974 = vmax.f32 %v2958, 0.0
      %v2975 = vmax.f32 %v2959, 0.0
      %v2976 = vmax.f32 %v2960, 0.0
      %v2977 = vmax.f32 %v2961, 0.0
      %v2978 = vmax.f32 %v2962, 0.0
      %v2979 = vmax.f32 %v2963, 0.0
      %v2980 = vmax.f32 %v2964, 0.0
      %v2981 = vmax.f32 %v2965, 0.0
      %v2982 = vmax.f32 %v2966, 0.0
      %v2983 = vmax.f32 %v2967, 0.0
      %v2984 = vmax.f32 %v2968, 0.0
      %v2985 = vmax.f32 %v2969, 0.0
      %v2986 = vmax.f32 %v2970, %v2972
      %v2987 = vmax.f32 %v2971, %v2973
      %v2988 = vmax.f32 %v2974, %v2976
      %v2989 = vmax.f32 %v2975, %v2977
      %v2990 = vmax.f32 %v2978, %v2980
      %v2991 = vmax.f32 %v2979, %v2981
      %v2992 = vmax.f32 %v2982, %v2984
      %v2993 = vmax.f32 %v2983, %v2985
      %2994 = vst [vmem:[#allocation6 - $0x1] sm:$0xfe] %v2986
      %2995 = vst [vmem:[#allocation6 + $0x7] sm:$0x1] %v2987
      %2996 = vst [vmem:[#allocation6 + $0x7] sm:$0xfe] %v2988
      %2997 = vst [vmem:[#allocation6 + $0xf] sm:$0x1] %v2989
      %2998 = vst [vmem:[#allocation6 + $0xf] sm:$0xfe] %v2990
      %2999 = vst [vmem:[#allocation6 + $0x17] sm:$0x1] %v2991
      %3000 = vst [vmem:[#allocation6 + $0x17] sm:$0xfe] %v2992
      %3001 = vst [vmem:[#allocation6 + $0x1f] sm:$0x1] %v2993
      %v3002 = vld [vmem:[#allocation6] ss:$2 sm:$0xf]
      %s3003 = scalar_lea.vmem [#allocation6], 8
      %v3004 = vld [vmem:[%s3003] ss:$2 sm:$0xf]
      %s3005 = scalar_lea.vmem [#allocation6], 16
      %v3006 = vld [vmem:[%s3005] ss:$2 sm:$0xf]
      %s3007 = scalar_lea.vmem [#allocation6], 24
      %v3008 = vld [vmem:[%s3007] ss:$2 sm:$0xf]
      %s3009 = scalar_lea.vmem [#allocation6], 1
      %v3010 = vld [vmem:[%s3009] ss:$2 sm:$0xf]
      %s3011 = scalar_lea.vmem [#allocation6], 9
      %v3012 = vld [vmem:[%s3011] ss:$2 sm:$0xf]
      %s3013 = scalar_lea.vmem [#allocation6], 17
      %v3014 = vld [vmem:[%s3013] ss:$2 sm:$0xf]
      %s3015 = scalar_lea.vmem [#allocation6], 25
      %v3016 = vld [vmem:[%s3015] ss:$2 sm:$0xf]
      %v3017 = vmax.f32 %v3002, %v3010
      %v3018 = vmax.f32 %v3004, %v3012
      %v3019 = vmax.f32 %v3006, %v3014
      %v3020 = vmax.f32 %v3008, %v3016
      %v3021 = vpack.c.bf16 %v3017, %v3017
      %v3022 = vpack.c.bf16 %v3018, %v3018
      %v3023 = vpack.c.bf16 %v3019, %v3019
      %v3024 = vpack.c.bf16 %v3020, %v3020
      %v3029 = vunpack.c.l.b16 %v3021
      %v3030 = vunpack.c.l.b16 %v3022
      %v3031 = vunpack.c.l.b16 %v3023
      %v3032 = vunpack.c.l.b16 %v3024
      %v3033 = vpack.c.b16 %v3029, %v3029
      %v3034 = vpack.c.b16 %v3030, %v3030
      %v3035 = vpack.c.b16 %v3031, %v3031
      %v3036 = vpack.c.b16 %v3032, %v3032
      %v3037 = vrot.slane %v3033, 7
      %v3038 = vrot.slane %v3034, 7
      %v3039 = vrot.slane %v3035, 7
      %v3040 = vrot.slane %v3036, 7
      %s3045 = scalar_lea.vmem [#allocation3], 4
      %3046 = vst [vmem:[%s3045] sm:$0x6] %v3037
      %3047 = vst [vmem:[%s3045 + $0x4] sm:$0x6] %v3038
      %3048 = vst [vmem:[%s3045 + $0x8] sm:$0x6] %v3039
      %3049 = vst [vmem:[%s3045 + $0xc] sm:$0x6] %v3040
      %v3050 = vld [vmem:[#allocation3] sm:$0xf]
      %v3051 = vld [vmem:[#allocation3 + $0x4] sm:$0xf]
      %v3052 = vld [vmem:[#allocation3 + $0x8] sm:$0xf]
      %v3053 = vld [vmem:[#allocation3 + $0xc] sm:$0xf]
      %v3054 = vld [vmem:[%s5] sm:$0xf]
      %v3055 = vld [vmem:[%s5 + $0x4] sm:$0xf]
      %v3056 = vld [vmem:[%s5 + $0x8] sm:$0xf]
      %v3057 = vld [vmem:[%s5 + $0xc] sm:$0xf]
      %v3058 = vld [vmem:[%s5 + $0x10] sm:$0xf]
      %v3059 = vld [vmem:[%s5 + $0x14] sm:$0xf]
      %v3060 = vld [vmem:[%s5 + $0x18] sm:$0xf]
      %v3061 = vld [vmem:[%s5 + $0x1c] sm:$0xf]
      %v3062 = vld [vmem:[%s5 + $0x20] sm:$0xf]
      %v3063 = vld [vmem:[%s5 + $0x24] sm:$0xf]
      %v3064 = vld [vmem:[%s5 + $0x28] sm:$0xf]
      %v3065 = vld [vmem:[%s5 + $0x2c] sm:$0xf]
      %v3066 = vld [vmem:[%s5 + $0x30] sm:$0xf]
      %v3067 = vld [vmem:[%s5 + $0x34] sm:$0xf]
      %v3068 = vld [vmem:[%s5 + $0x38] sm:$0xf]
      %v3069 = vld [vmem:[%s5 + $0x3c] sm:$0xf]
      %v3074 = vunpack.c.l.b16 %v3050
      %v3075 = vunpack.c.l.b16 %v3051
      %v3076 = vunpack.c.l.b16 %v3052
      %v3077 = vunpack.c.l.b16 %v3053
      %v3078 = vpack.c.b16 %v3075, %v3074
      %v3079 = vpack.c.b16 %v3077, %v3076
      %v3098 = vunpack.c.l.b16 %v3054
      %v3099 = vunpack.c.l.b16 %v3055
      %v3100 = vunpack.c.l.b16 %v3056
      %v3101 = vunpack.c.l.b16 %v3057
      %v3102 = vunpack.c.l.b16 %v3058
      %v3103 = vunpack.c.l.b16 %v3059
      %v3104 = vunpack.c.l.b16 %v3060
      %v3105 = vunpack.c.l.b16 %v3061
      %v3106 = vunpack.c.l.b16 %v3062
      %v3107 = vunpack.c.l.b16 %v3063
      %v3108 = vunpack.c.l.b16 %v3064
      %v3109 = vunpack.c.l.b16 %v3065
      %v3110 = vunpack.c.l.b16 %v3066
      %v3111 = vunpack.c.l.b16 %v3067
      %v3112 = vunpack.c.l.b16 %v3068
      %v3113 = vunpack.c.l.b16 %v3069
      %v3114 = vpack.c.b16 %v3099, %v3098
      %v3115 = vpack.c.b16 %v3101, %v3100
      %v3116 = vpack.c.b16 %v3103, %v3102
      %v3117 = vpack.c.b16 %v3105, %v3104
      %v3118 = vpack.c.b16 %v3107, %v3106
      %v3119 = vpack.c.b16 %v3109, %v3108
      %v3120 = vpack.c.b16 %v3111, %v3110
      %v3121 = vpack.c.b16 %v3113, %v3112
      %3130 = vmatprep.subr.bf16.mxu0 0
      %3131 = vmatpush1.bf16.msra.mxu0 %v3114
      %3132 = vmatprep.subr.bf16.mxu0 0
      %3133 = vmatpush1.bf16.msra.mxu0 %v3115
      %3134 = vmatprep.subr.bf16.mxu0 0
      %3135 = vmatpush1.bf16.msra.mxu0 %v3116
      %3136 = vmatprep.subr.bf16.mxu0 0
      %3137 = vmatpush1.bf16.msra.mxu0 %v3117
      %3138 = vmatprep.subr.bf16.mxu0 0
      %3139 = vmatpush1.bf16.msra.mxu0 %v3118
      %3140 = vmatprep.subr.bf16.mxu0 0
      %3141 = vmatpush1.bf16.msra.mxu0 %v3119
      %3142 = vmatprep.subr.bf16.mxu0 0
      %3143 = vmatpush1.bf16.msra.mxu0 %v3120
      %3144 = vmatprep.subr.bf16.mxu0 0
      %3145 = vmatpush1.bf16.msra.mxu0 %v3121
      %3146 = vmatprep.subr.bf16.mxu0 0
      %3147 = vmatpush1.bf16.msra.mxu0 0
      %3148 = vmatprep.subr.bf16.mxu0 0
      %3149 = vmatpush1.bf16.msra.mxu0 0
      %3150 = vmatprep.subr.bf16.mxu0 0
      %3151 = vmatpush1.bf16.msra.mxu0 0
      %3152 = vmatprep.subr.bf16.mxu0 0
      %3153 = vmatpush1.bf16.msra.mxu0 0
      %3154 = vmatprep.subr.bf16.mxu0 0
      %3155 = vmatpush1.bf16.msra.mxu0 0
      %3156 = vmatprep.subr.bf16.mxu0 0
      %3157 = vmatpush1.bf16.msra.mxu0 0
      %3158 = vmatprep.subr.bf16.mxu0 0
      %3159 = vmatpush1.bf16.msra.mxu0 0
      %3160 = vmatprep.subr.bf16.mxu0 0
      %3161 = vmatpush1.bf16.msra.mxu0 0
      %3162 = vmatprep.mubr.bf16.mxu0 0
      %3163 = vmatmul.mubr.bf16.gmra.mrb[0].mxu0 %v3078
      %v3164 = vpop.f32.mrb[0].mxu0
      %v3165 = vadd.f32 0.0, %v3164
      %v3166 = vpop.f32.mrb[0].mxu0
      %v3167 = vpop.f32.mrb[0].mxu0
      %v3168 = vadd.f32 0.0, %v3167
      %v3169 = vpop.f32.mrb[0].mxu0
      %3170 = vmatprep.mubr.bf16.mxu0 0
      %3171 = vmatmul.mubr.bf16.gmra.mrb[0].mxu0 %v3079
      %v3172 = vpop.f32.mrb[0].mxu0
      %v3173 = vadd.f32 0.0, %v3172
      %v3174 = vpop.f32.mrb[0].mxu0
      %v3175 = vpop.f32.mrb[0].mxu0
      %v3176 = vadd.f32 0.0, %v3175
      %v3177 = vpop.f32.mrb[0].mxu0
      %3178 = vdwg.mxu0
      %s3179 = scalar_lea.vmem %s5, 64
      %v3180 = vld [vmem:[%s3179] sm:$0xf]
      %v3181 = vld [vmem:[%s3179 + $0x4] sm:$0xf]
      %v3182 = vld [vmem:[%s3179 + $0x8] sm:$0xf]
      %v3183 = vld [vmem:[%s3179 + $0xc] sm:$0xf]
      %v3184 = vld [vmem:[%s3179 + $0x10] sm:$0xf]
      %v3185 = vld [vmem:[%s3179 + $0x14] sm:$0xf]
      %v3186 = vld [vmem:[%s3179 + $0x18] sm:$0xf]
      %v3187 = vld [vmem:[%s3179 + $0x1c] sm:$0xf]
      %v3188 = vld [vmem:[%s3179 + $0x20] sm:$0xf]
      %v3189 = vld [vmem:[%s3179 + $0x24] sm:$0xf]
      %v3190 = vld [vmem:[%s3179 + $0x28] sm:$0xf]
      %v3191 = vld [vmem:[%s3179 + $0x2c] sm:$0xf]
      %v3192 = vld [vmem:[%s3179 + $0x30] sm:$0xf]
      %v3193 = vld [vmem:[%s3179 + $0x34] sm:$0xf]
      %v3194 = vld [vmem:[%s3179 + $0x38] sm:$0xf]
      %v3195 = vld [vmem:[%s3179 + $0x3c] sm:$0xf]
      %v3212 = vunpack.c.l.b16 %v3180
      %v3213 = vunpack.c.l.b16 %v3181
      %v3214 = vunpack.c.l.b16 %v3182
      %v3215 = vunpack.c.l.b16 %v3183
      %v3216 = vunpack.c.l.b16 %v3184
      %v3217 = vunpack.c.l.b16 %v3185
      %v3218 = vunpack.c.l.b16 %v3186
      %v3219 = vunpack.c.l.b16 %v3187
      %v3220 = vunpack.c.l.b16 %v3188
      %v3221 = vunpack.c.l.b16 %v3189
      %v3222 = vunpack.c.l.b16 %v3190
      %v3223 = vunpack.c.l.b16 %v3191
      %v3224 = vunpack.c.l.b16 %v3192
      %v3225 = vunpack.c.l.b16 %v3193
      %v3226 = vunpack.c.l.b16 %v3194
      %v3227 = vunpack.c.l.b16 %v3195
      %v3228 = vpack.c.b16 %v3213, %v3212
      %v3229 = vpack.c.b16 %v3215, %v3214
      %v3230 = vpack.c.b16 %v3217, %v3216
      %v3231 = vpack.c.b16 %v3219, %v3218
      %v3232 = vpack.c.b16 %v3221, %v3220
      %v3233 = vpack.c.b16 %v3223, %v3222
      %v3234 = vpack.c.b16 %v3225, %v3224
      %v3235 = vpack.c.b16 %v3227, %v3226
      %3244 = vmatprep.subr.bf16.mxu0 0
      %3245 = vmatpush1.bf16.msra.mxu0 %v3228
      %3246 = vmatprep.subr.bf16.mxu0 0
      %3247 = vmatpush1.bf16.msra.mxu0 %v3229
      %3248 = vmatprep.subr.bf16.mxu0 0
      %3249 = vmatpush1.bf16.msra.mxu0 %v3230
      %3250 = vmatprep.subr.bf16.mxu0 0
      %3251 = vmatpush1.bf16.msra.mxu0 %v3231
      %3252 = vmatprep.subr.bf16.mxu0 0
      %3253 = vmatpush1.bf16.msra.mxu0 %v3232
      %3254 = vmatprep.subr.bf16.mxu0 0
      %3255 = vmatpush1.bf16.msra.mxu0 %v3233
      %3256 = vmatprep.subr.bf16.mxu0 0
      %3257 = vmatpush1.bf16.msra.mxu0 %v3234
      %3258 = vmatprep.subr.bf16.mxu0 0
      %3259 = vmatpush1.bf16.msra.mxu0 %v3235
      %3260 = vmatprep.subr.bf16.mxu0 0
      %3261 = vmatpush1.bf16.msra.mxu0 0
      %3262 = vmatprep.subr.bf16.mxu0 0
      %3263 = vmatpush1.bf16.msra.mxu0 0
      %3264 = vmatprep.subr.bf16.mxu0 0
      %3265 = vmatpush1.bf16.msra.mxu0 0
      %3266 = vmatprep.subr.bf16.mxu0 0
      %3267 = vmatpush1.bf16.msra.mxu0 0
      %3268 = vmatprep.subr.bf16.mxu0 0
      %3269 = vmatpush1.bf16.msra.mxu0 0
      %3270 = vmatprep.subr.bf16.mxu0 0
      %3271 = vmatpush1.bf16.msra.mxu0 0
      %3272 = vmatprep.subr.bf16.mxu0 0
      %3273 = vmatpush1.bf16.msra.mxu0 0
      %3274 = vmatprep.subr.bf16.mxu0 0
      %3275 = vmatpush1.bf16.msra.mxu0 0
      %3276 = vmatprep.mubr.bf16.mxu0 0
      %3277 = vmatmul.mubr.bf16.gmra.mrb[0].mxu0 %v3078
      %v3278 = vpop.f32.mrb[0].mxu0
      %v3279 = vadd.f32 0.0, %v3278
      %v3280 = vpop.f32.mrb[0].mxu0
      %v3281 = vpop.f32.mrb[0].mxu0
      %v3282 = vadd.f32 0.0, %v3281
      %v3283 = vpop.f32.mrb[0].mxu0
      %3284 = vmatprep.mubr.bf16.mxu0 0
      %3285 = vmatmul.mubr.bf16.gmra.mrb[0].mxu0 %v3079
      %v3286 = vpop.f32.mrb[0].mxu0
      %v3287 = vadd.f32 0.0, %v3286
      %v3288 = vpop.f32.mrb[0].mxu0
      %v3289 = vpop.f32.mrb[0].mxu0
      %v3290 = vadd.f32 0.0, %v3289
      %v3291 = vpop.f32.mrb[0].mxu0
      %3292 = vdwg.mxu0
      %v3297 = vrot.slane %v3279, 1
      %v3298 = vrot.slane %v3282, 1
      %v3299 = vrot.slane %v3287, 1
      %v3300 = vrot.slane %v3290, 1
      %v3305 = vadd.f32 %v3165, %v3297
      %v3306 = vadd.f32 %v3168, %v3298
      %v3307 = vadd.f32 %v3173, %v3299
      %v3308 = vadd.f32 %v3176, %v3300
      %s3309 = scalar_lea.vmem %s5, 128
      %v3310 = vld [vmem:[%s3309] sm:$0xf]
      %v3311 = vld [vmem:[%s3309 + $0x4] sm:$0xf]
      %v3312 = vld [vmem:[%s3309 + $0x8] sm:$0xf]
      %v3313 = vld [vmem:[%s3309 + $0xc] sm:$0xf]
      %v3314 = vld [vmem:[%s3309 + $0x10] sm:$0xf]
      %v3315 = vld [vmem:[%s3309 + $0x14] sm:$0xf]
      %v3316 = vld [vmem:[%s3309 + $0x18] sm:$0xf]
      %v3317 = vld [vmem:[%s3309 + $0x1c] sm:$0xf]
      %v3318 = vld [vmem:[%s3309 + $0x20] sm:$0xf]
      %v3319 = vld [vmem:[%s3309 + $0x24] sm:$0xf]
      %v3320 = vld [vmem:[%s3309 + $0x28] sm:$0xf]
      %v3321 = vld [vmem:[%s3309 + $0x2c] sm:$0xf]
      %v3322 = vld [vmem:[%s3309 + $0x30] sm:$0xf]
      %v3323 = vld [vmem:[%s3309 + $0x34] sm:$0xf]
      %v3324 = vld [vmem:[%s3309 + $0x38] sm:$0xf]
      %v3325 = vld [vmem:[%s3309 + $0x3c] sm:$0xf]
      %v3342 = vunpack.c.l.b16 %v3310
      %v3343 = vunpack.c.l.b16 %v3311
      %v3344 = vunpack.c.l.b16 %v3312
      %v3345 = vunpack.c.l.b16 %v3313
      %v3346 = vunpack.c.l.b16 %v3314
      %v3347 = vunpack.c.l.b16 %v3315
      %v3348 = vunpack.c.l.b16 %v3316
      %v3349 = vunpack.c.l.b16 %v3317
      %v3350 = vunpack.c.l.b16 %v3318
      %v3351 = vunpack.c.l.b16 %v3319
      %v3352 = vunpack.c.l.b16 %v3320
      %v3353 = vunpack.c.l.b16 %v3321
      %v3354 = vunpack.c.l.b16 %v3322
      %v3355 = vunpack.c.l.b16 %v3323
      %v3356 = vunpack.c.l.b16 %v3324
      %v3357 = vunpack.c.l.b16 %v3325
      %v3358 = vpack.c.b16 %v3343, %v3342
      %v3359 = vpack.c.b16 %v3345, %v3344
      %v3360 = vpack.c.b16 %v3347, %v3346
      %v3361 = vpack.c.b16 %v3349, %v3348
      %v3362 = vpack.c.b16 %v3351, %v3350
      %v3363 = vpack.c.b16 %v3353, %v3352
      %v3364 = vpack.c.b16 %v3355, %v3354
      %v3365 = vpack.c.b16 %v3357, %v3356
      %3374 = vmatprep.subr.bf16.mxu0 0
      %3375 = vmatpush1.bf16.msra.mxu0 %v3358
      %3376 = vmatprep.subr.bf16.mxu0 0
      %3377 = vmatpush1.bf16.msra.mxu0 %v3359
      %3378 = vmatprep.subr.bf16.mxu0 0
      %3379 = vmatpush1.bf16.msra.mxu0 %v3360
      %3380 = vmatprep.subr.bf16.mxu0 0
      %3381 = vmatpush1.bf16.msra.mxu0 %v3361
      %3382 = vmatprep.subr.bf16.mxu0 0
      %3383 = vmatpush1.bf16.msra.mxu0 %v3362
      %3384 = vmatprep.subr.bf16.mxu0 0
      %3385 = vmatpush1.bf16.msra.mxu0 %v3363
      %3386 = vmatprep.subr.bf16.mxu0 0
      %3387 = vmatpush1.bf16.msra.mxu0 %v3364
      %3388 = vmatprep.subr.bf16.mxu0 0
      %3389 = vmatpush1.bf16.msra.mxu0 %v3365
      %3390 = vmatprep.subr.bf16.mxu0 0
      %3391 = vmatpush1.bf16.msra.mxu0 0
      %3392 = vmatprep.subr.bf16.mxu0 0
      %3393 = vmatpush1.bf16.msra.mxu0 0
      %3394 = vmatprep.subr.bf16.mxu0 0
      %3395 = vmatpush1.bf16.msra.mxu0 0
      %3396 = vmatprep.subr.bf16.mxu0 0
      %3397 = vmatpush1.bf16.msra.mxu0 0
      %3398 = vmatprep.subr.bf16.mxu0 0
      %3399 = vmatpush1.bf16.msra.mxu0 0
      %3400 = vmatprep.subr.bf16.mxu0 0
      %3401 = vmatpush1.bf16.msra.mxu0 0
      %3402 = vmatprep.subr.bf16.mxu0 0
      %3403 = vmatpush1.bf16.msra.mxu0 0
      %3404 = vmatprep.subr.bf16.mxu0 0
      %3405 = vmatpush1.bf16.msra.mxu0 0
      %3406 = vmatprep.mubr.bf16.mxu0 0
      %3407 = vmatmul.mubr.bf16.gmra.mrb[0].mxu0 %v3078
      %v3408 = vpop.f32.mrb[0].mxu0
      %v3409 = vadd.f32 0.0, %v3408
      %v3410 = vpop.f32.mrb[0].mxu0
      %v3411 = vpop.f32.mrb[0].mxu0
      %v3412 = vadd.f32 0.0, %v3411
      %v3413 = vpop.f32.mrb[0].mxu0
      %3414 = vmatprep.mubr.bf16.mxu0 0
      %3415 = vmatmul.mubr.bf16.gmra.mrb[0].mxu0 %v3079
      %v3416 = vpop.f32.mrb[0].mxu0
      %v3417 = vadd.f32 0.0, %v3416
      %v3418 = vpop.f32.mrb[0].mxu0
      %v3419 = vpop.f32.mrb[0].mxu0
      %v3420 = vadd.f32 0.0, %v3419
      %v3421 = vpop.f32.mrb[0].mxu0
      %3422 = vdwg.mxu0
      %v3427 = vrot.slane %v3409, 2
      %v3428 = vrot.slane %v3412, 2
      %v3429 = vrot.slane %v3417, 2
      %v3430 = vrot.slane %v3420, 2
      %v3435 = vadd.f32 %v3305, %v3427
      %v3436 = vadd.f32 %v3306, %v3428
      %v3437 = vadd.f32 %v3307, %v3429
      %v3438 = vadd.f32 %v3308, %v3430
      %v3439 = vld [vmem:[%s3045] sm:$0xf]
      %v3440 = vld [vmem:[%s3045 + $0x4] sm:$0xf]
      %v3441 = vld [vmem:[%s3045 + $0x8] sm:$0xf]
      %v3442 = vld [vmem:[%s3045 + $0xc] sm:$0xf]
      %s3443 = scalar_lea.vmem %s5, 192
      %v3444 = vld [vmem:[%s3443] sm:$0xf]
      %v3445 = vld [vmem:[%s3443 + $0x4] sm:$0xf]
      %v3446 = vld [vmem:[%s3443 + $0x8] sm:$0xf]
      %v3447 = vld [vmem:[%s3443 + $0xc] sm:$0xf]
      %v3448 = vld [vmem:[%s3443 + $0x10] sm:$0xf]
      %v3449 = vld [vmem:[%s3443 + $0x14] sm:$0xf]
      %v3450 = vld [vmem:[%s3443 + $0x18] sm:$0xf]
      %v3451 = vld [vmem:[%s3443 + $0x1c] sm:$0xf]
      %v3452 = vld [vmem:[%s3443 + $0x20] sm:$0xf]
      %v3453 = vld [vmem:[%s3443 + $0x24] sm:$0xf]
      %v3454 = vld [vmem:[%s3443 + $0x28] sm:$0xf]
      %v3455 = vld [vmem:[%s3443 + $0x2c] sm:$0xf]
      %v3456 = vld [vmem:[%s3443 + $0x30] sm:$0xf]
      %v3457 = vld [vmem:[%s3443 + $0x34] sm:$0xf]
      %v3458 = vld [vmem:[%s3443 + $0x38] sm:$0xf]
      %v3459 = vld [vmem:[%s3443 + $0x3c] sm:$0xf]
      %v3464 = vunpack.c.l.b16 %v3439
      %v3465 = vunpack.c.l.b16 %v3440
      %v3466 = vunpack.c.l.b16 %v3441
      %v3467 = vunpack.c.l.b16 %v3442
      %v3468 = vpack.c.b16 %v3465, %v3464
      %v3469 = vpack.c.b16 %v3467, %v3466
      %v3488 = vunpack.c.l.b16 %v3444
      %v3489 = vunpack.c.l.b16 %v3445
      %v3490 = vunpack.c.l.b16 %v3446
      %v3491 = vunpack.c.l.b16 %v3447
      %v3492 = vunpack.c.l.b16 %v3448
      %v3493 = vunpack.c.l.b16 %v3449
      %v3494 = vunpack.c.l.b16 %v3450
      %v3495 = vunpack.c.l.b16 %v3451
      %v3496 = vunpack.c.l.b16 %v3452
      %v3497 = vunpack.c.l.b16 %v3453
      %v3498 = vunpack.c.l.b16 %v3454
      %v3499 = vunpack.c.l.b16 %v3455
      %v3500 = vunpack.c.l.b16 %v3456
      %v3501 = vunpack.c.l.b16 %v3457
      %v3502 = vunpack.c.l.b16 %v3458
      %v3503 = vunpack.c.l.b16 %v3459
      %v3504 = vpack.c.b16 %v3489, %v3488
      %v3505 = vpack.c.b16 %v3491, %v3490
      %v3506 = vpack.c.b16 %v3493, %v3492
      %v3507 = vpack.c.b16 %v3495, %v3494
      %v3508 = vpack.c.b16 %v3497, %v3496
      %v3509 = vpack.c.b16 %v3499, %v3498
      %v3510 = vpack.c.b16 %v3501, %v3500
      %v3511 = vpack.c.b16 %v3503, %v3502
      %3520 = vmatprep.subr.bf16.mxu0 0
      %3521 = vmatpush1.bf16.msra.mxu0 %v3504
      %3522 = vmatprep.subr.bf16.mxu0 0
      %3523 = vmatpush1.bf16.msra.mxu0 %v3505
      %3524 = vmatprep.subr.bf16.mxu0 0
      %3525 = vmatpush1.bf16.msra.mxu0 %v3506
      %3526 = vmatprep.subr.bf16.mxu0 0
      %3527 = vmatpush1.bf16.msra.mxu0 %v3507
      %3528 = vmatprep.subr.bf16.mxu0 0
      %3529 = vmatpush1.bf16.msra.mxu0 %v3508
      %3530 = vmatprep.subr.bf16.mxu0 0
      %3531 = vmatpush1.bf16.msra.mxu0 %v3509
      %3532 = vmatprep.subr.bf16.mxu0 0
      %3533 = vmatpush1.bf16.msra.mxu0 %v3510
      %3534 = vmatprep.subr.bf16.mxu0 0
      %3535 = vmatpush1.bf16.msra.mxu0 %v3511
      %3536 = vmatprep.subr.bf16.mxu0 0
      %3537 = vmatpush1.bf16.msra.mxu0 0
      %3538 = vmatprep.subr.bf16.mxu0 0
      %3539 = vmatpush1.bf16.msra.mxu0 0
      %3540 = vmatprep.subr.bf16.mxu0 0
      %3541 = vmatpush1.bf16.msra.mxu0 0
      %3542 = vmatprep.subr.bf16.mxu0 0
      %3543 = vmatpush1.bf16.msra.mxu0 0
      %3544 = vmatprep.subr.bf16.mxu0 0
      %3545 = vmatpush1.bf16.msra.mxu0 0
      %3546 = vmatprep.subr.bf16.mxu0 0
      %3547 = vmatpush1.bf16.msra.mxu0 0
      %3548 = vmatprep.subr.bf16.mxu0 0
      %3549 = vmatpush1.bf16.msra.mxu0 0
      %3550 = vmatprep.subr.bf16.mxu0 0
      %3551 = vmatpush1.bf16.msra.mxu0 0
      %3552 = vmatprep.mubr.bf16.mxu0 0
      %3553 = vmatmul.mubr.bf16.gmra.mrb[0].mxu0 %v3468
      %v3554 = vpop.f32.mrb[0].mxu0
      %v3555 = vadd.f32 0.0, %v3554
      %v3556 = vpop.f32.mrb[0].mxu0
      %v3557 = vpop.f32.mrb[0].mxu0
      %v3558 = vadd.f32 0.0, %v3557
      %v3559 = vpop.f32.mrb[0].mxu0
      %3560 = vmatprep.mubr.bf16.mxu0 0
      %3561 = vmatmul.mubr.bf16.gmra.mrb[0].mxu0 %v3469
      %v3562 = vpop.f32.mrb[0].mxu0
      %v3563 = vadd.f32 0.0, %v3562
      %v3564 = vpop.f32.mrb[0].mxu0
      %v3565 = vpop.f32.mrb[0].mxu0
      %v3566 = vadd.f32 0.0, %v3565
      %v3567 = vpop.f32.mrb[0].mxu0
      %3568 = vdwg.mxu0
      %v3569 = vadd.f32 %v3435, %v3555
      %v3570 = vadd.f32 %v3436, %v3558
      %v3571 = vadd.f32 %v3437, %v3563
      %v3572 = vadd.f32 %v3438, %v3566
      %s3573 = scalar_lea.vmem %s5, 256
      %v3574 = vld [vmem:[%s3573] sm:$0xf]
      %v3575 = vld [vmem:[%s3573 + $0x4] sm:$0xf]
      %v3576 = vld [vmem:[%s3573 + $0x8] sm:$0xf]
      %v3577 = vld [vmem:[%s3573 + $0xc] sm:$0xf]
      %v3578 = vld [vmem:[%s3573 + $0x10] sm:$0xf]
      %v3579 = vld [vmem:[%s3573 + $0x14] sm:$0xf]
      %v3580 = vld [vmem:[%s3573 + $0x18] sm:$0xf]
      %v3581 = vld [vmem:[%s3573 + $0x1c] sm:$0xf]
      %v3582 = vld [vmem:[%s3573 + $0x20] sm:$0xf]
      %v3583 = vld [vmem:[%s3573 + $0x24] sm:$0xf]
      %v3584 = vld [vmem:[%s3573 + $0x28] sm:$0xf]
      %v3585 = vld [vmem:[%s3573 + $0x2c] sm:$0xf]
      %v3586 = vld [vmem:[%s3573 + $0x30] sm:$0xf]
      %v3587 = vld [vmem:[%s3573 + $0x34] sm:$0xf]
      %v3588 = vld [vmem:[%s3573 + $0x38] sm:$0xf]
      %v3589 = vld [vmem:[%s3573 + $0x3c] sm:$0xf]
      %v3606 = vunpack.c.l.b16 %v3574
      %v3607 = vunpack.c.l.b16 %v3575
      %v3608 = vunpack.c.l.b16 %v3576
      %v3609 = vunpack.c.l.b16 %v3577
      %v3610 = vunpack.c.l.b16 %v3578
      %v3611 = vunpack.c.l.b16 %v3579
      %v3612 = vunpack.c.l.b16 %v3580
      %v3613 = vunpack.c.l.b16 %v3581
      %v3614 = vunpack.c.l.b16 %v3582
      %v3615 = vunpack.c.l.b16 %v3583
      %v3616 = vunpack.c.l.b16 %v3584
      %v3617 = vunpack.c.l.b16 %v3585
      %v3618 = vunpack.c.l.b16 %v3586
      %v3619 = vunpack.c.l.b16 %v3587
      %v3620 = vunpack.c.l.b16 %v3588
      %v3621 = vunpack.c.l.b16 %v3589
      %v3622 = vpack.c.b16 %v3607, %v3606
      %v3623 = vpack.c.b16 %v3609, %v3608
      %v3624 = vpack.c.b16 %v3611, %v3610
      %v3625 = vpack.c.b16 %v3613, %v3612
      %v3626 = vpack.c.b16 %v3615, %v3614
      %v3627 = vpack.c.b16 %v3617, %v3616
      %v3628 = vpack.c.b16 %v3619, %v3618
      %v3629 = vpack.c.b16 %v3621, %v3620
      %3638 = vmatprep.subr.bf16.mxu0 0
      %3639 = vmatpush1.bf16.msra.mxu0 %v3622
      %3640 = vmatprep.subr.bf16.mxu0 0
      %3641 = vmatpush1.bf16.msra.mxu0 %v3623
      %3642 = vmatprep.subr.bf16.mxu0 0
      %3643 = vmatpush1.bf16.msra.mxu0 %v3624
      %3644 = vmatprep.subr.bf16.mxu0 0
      %3645 = vmatpush1.bf16.msra.mxu0 %v3625
      %3646 = vmatprep.subr.bf16.mxu0 0
      %3647 = vmatpush1.bf16.msra.mxu0 %v3626
      %3648 = vmatprep.subr.bf16.mxu0 0
      %3649 = vmatpush1.bf16.msra.mxu0 %v3627
      %3650 = vmatprep.subr.bf16.mxu0 0
      %3651 = vmatpush1.bf16.msra.mxu0 %v3628
      %3652 = vmatprep.subr.bf16.mxu0 0
      %3653 = vmatpush1.bf16.msra.mxu0 %v3629
      %3654 = vmatprep.subr.bf16.mxu0 0
      %3655 = vmatpush1.bf16.msra.mxu0 0
      %3656 = vmatprep.subr.bf16.mxu0 0
      %3657 = vmatpush1.bf16.msra.mxu0 0
      %3658 = vmatprep.subr.bf16.mxu0 0
      %3659 = vmatpush1.bf16.msra.mxu0 0
      %3660 = vmatprep.subr.bf16.mxu0 0
      %3661 = vmatpush1.bf16.msra.mxu0 0
      %3662 = vmatprep.subr.bf16.mxu0 0
      %3663 = vmatpush1.bf16.msra.mxu0 0
      %3664 = vmatprep.subr.bf16.mxu0 0
      %3665 = vmatpush1.bf16.msra.mxu0 0
      %3666 = vmatprep.subr.bf16.mxu0 0
      %3667 = vmatpush1.bf16.msra.mxu0 0
      %3668 = vmatprep.subr.bf16.mxu0 0
      %3669 = vmatpush1.bf16.msra.mxu0 0
      %3670 = vmatprep.mubr.bf16.mxu0 0
      %3671 = vmatmul.mubr.bf16.gmra.mrb[0].mxu0 %v3468
      %v3672 = vpop.f32.mrb[0].mxu0
      %v3673 = vadd.f32 0.0, %v3672
      %v3674 = vpop.f32.mrb[0].mxu0
      %v3675 = vpop.f32.mrb[0].mxu0
      %v3676 = vadd.f32 0.0, %v3675
      %v3677 = vpop.f32.mrb[0].mxu0
      %3678 = vmatprep.mubr.bf16.mxu0 0
      %3679 = vmatmul.mubr.bf16.gmra.mrb[0].mxu0 %v3469
      %v3680 = vpop.f32.mrb[0].mxu0
      %v3681 = vadd.f32 0.0, %v3680
      %v3682 = vpop.f32.mrb[0].mxu0
      %v3683 = vpop.f32.mrb[0].mxu0
      %v3684 = vadd.f32 0.0, %v3683
      %v3685 = vpop.f32.mrb[0].mxu0
      %3686 = vdwg.mxu0
      %v3691 = vrot.slane %v3673, 1
      %v3692 = vrot.slane %v3676, 1
      %v3693 = vrot.slane %v3681, 1
      %v3694 = vrot.slane %v3684, 1
      %v3699 = vadd.f32 %v3569, %v3691
      %v3700 = vadd.f32 %v3570, %v3692
      %v3701 = vadd.f32 %v3571, %v3693
      %v3702 = vadd.f32 %v3572, %v3694
      %s3703 = scalar_lea.vmem %s5, 320
      %v3704 = vld [vmem:[%s3703] sm:$0xf]
      %v3705 = vld [vmem:[%s3703 + $0x4] sm:$0xf]
      %v3706 = vld [vmem:[%s3703 + $0x8] sm:$0xf]
      %v3707 = vld [vmem:[%s3703 + $0xc] sm:$0xf]
      %v3708 = vld [vmem:[%s3703 + $0x10] sm:$0xf]
      %v3709 = vld [vmem:[%s3703 + $0x14] sm:$0xf]
      %v3710 = vld [vmem:[%s3703 + $0x18] sm:$0xf]
      %v3711 = vld [vmem:[%s3703 + $0x1c] sm:$0xf]
      %v3712 = vld [vmem:[%s3703 + $0x20] sm:$0xf]
      %v3713 = vld [vmem:[%s3703 + $0x24] sm:$0xf]
      %v3714 = vld [vmem:[%s3703 + $0x28] sm:$0xf]
      %v3715 = vld [vmem:[%s3703 + $0x2c] sm:$0xf]
      %v3716 = vld [vmem:[%s3703 + $0x30] sm:$0xf]
      %v3717 = vld [vmem:[%s3703 + $0x34] sm:$0xf]
      %v3718 = vld [vmem:[%s3703 + $0x38] sm:$0xf]
      %v3719 = vld [vmem:[%s3703 + $0x3c] sm:$0xf]
      %v3736 = vunpack.c.l.b16 %v3704
      %v3737 = vunpack.c.l.b16 %v3705
      %v3738 = vunpack.c.l.b16 %v3706
      %v3739 = vunpack.c.l.b16 %v3707
      %v3740 = vunpack.c.l.b16 %v3708
      %v3741 = vunpack.c.l.b16 %v3709
      %v3742 = vunpack.c.l.b16 %v3710
      %v3743 = vunpack.c.l.b16 %v3711
      %v3744 = vunpack.c.l.b16 %v3712
      %v3745 = vunpack.c.l.b16 %v3713
      %v3746 = vunpack.c.l.b16 %v3714
      %v3747 = vunpack.c.l.b16 %v3715
      %v3748 = vunpack.c.l.b16 %v3716
      %v3749 = vunpack.c.l.b16 %v3717
      %v3750 = vunpack.c.l.b16 %v3718
      %v3751 = vunpack.c.l.b16 %v3719
      %v3752 = vpack.c.b16 %v3737, %v3736
      %v3753 = vpack.c.b16 %v3739, %v3738
      %v3754 = vpack.c.b16 %v3741, %v3740
      %v3755 = vpack.c.b16 %v3743, %v3742
      %v3756 = vpack.c.b16 %v3745, %v3744
      %v3757 = vpack.c.b16 %v3747, %v3746
      %v3758 = vpack.c.b16 %v3749, %v3748
      %v3759 = vpack.c.b16 %v3751, %v3750
      %3768 = vmatprep.subr.bf16.mxu0 0
      %3769 = vmatpush1.bf16.msra.mxu0 %v3752
      %3770 = vmatprep.subr.bf16.mxu0 0
      %3771 = vmatpush1.bf16.msra.mxu0 %v3753
      %3772 = vmatprep.subr.bf16.mxu0 0
      %3773 = vmatpush1.bf16.msra.mxu0 %v3754
      %3774 = vmatprep.subr.bf16.mxu0 0
      %3775 = vmatpush1.bf16.msra.mxu0 %v3755
      %3776 = vmatprep.subr.bf16.mxu0 0
      %3777 = vmatpush1.bf16.msra.mxu0 %v3756
      %3778 = vmatprep.subr.bf16.mxu0 0
      %3779 = vmatpush1.bf16.msra.mxu0 %v3757
      %3780 = vmatprep.subr.bf16.mxu0 0
      %3781 = vmatpush1.bf16.msra.mxu0 %v3758
      %3782 = vmatprep.subr.bf16.mxu0 0
      %3783 = vmatpush1.bf16.msra.mxu0 %v3759
      %3784 = vmatprep.subr.bf16.mxu0 0
      %3785 = vmatpush1.bf16.msra.mxu0 0
      %3786 = vmatprep.subr.bf16.mxu0 0
      %3787 = vmatpush1.bf16.msra.mxu0 0
      %3788 = vmatprep.subr.bf16.mxu0 0
      %3789 = vmatpush1.bf16.msra.mxu0 0
      %3790 = vmatprep.subr.bf16.mxu0 0
      %3791 = vmatpush1.bf16.msra.mxu0 0
      %3792 = vmatprep.subr.bf16.mxu0 0
      %3793 = vmatpush1.bf16.msra.mxu0 0
      %3794 = vmatprep.subr.bf16.mxu0 0
      %3795 = vmatpush1.bf16.msra.mxu0 0
      %3796 = vmatprep.subr.bf16.mxu0 0
      %3797 = vmatpush1.bf16.msra.mxu0 0
      %3798 = vmatprep.subr.bf16.mxu0 0
      %3799 = vmatpush1.bf16.msra.mxu0 0
      %3800 = vmatprep.mubr.bf16.mxu0 0
      %3801 = vmatmul.mubr.bf16.gmra.mrb[0].mxu0 %v3468
      %v3802 = vpop.f32.mrb[0].mxu0
      %v3803 = vadd.f32 0.0, %v3802
      %v3804 = vpop.f32.mrb[0].mxu0
      %v3805 = vpop.f32.mrb[0].mxu0
      %v3806 = vadd.f32 0.0, %v3805
      %v3807 = vpop.f32.mrb[0].mxu0
      %3808 = vmatprep.mubr.bf16.mxu0 0
      %3809 = vmatmul.mubr.bf16.gmra.mrb[0].mxu0 %v3469
      %v3810 = vpop.f32.mrb[0].mxu0
      %v3811 = vadd.f32 0.0, %v3810
      %v3812 = vpop.f32.mrb[0].mxu0
      %v3813 = vpop.f32.mrb[0].mxu0
      %v3814 = vadd.f32 0.0, %v3813
      %v3815 = vpop.f32.mrb[0].mxu0
      %3816 = vdwg.mxu0
      %v3821 = vrot.slane %v3803, 2
      %v3822 = vrot.slane %v3806, 2
      %v3823 = vrot.slane %v3811, 2
      %v3824 = vrot.slane %v3814, 2
      %v3829 = vadd.f32 %v3699, %v3821
      %v3830 = vadd.f32 %v3700, %v3822
      %v3831 = vadd.f32 %v3701, %v3823
      %v3832 = vadd.f32 %v3702, %v3824
      %s3833 = scalar_lea.vmem [#allocation3], 8
      %v3834 = vld [vmem:[%s3833] sm:$0xf]
      %v3835 = vld [vmem:[%s3833 + $0x4] sm:$0xf]
      %v3836 = vld [vmem:[%s3833 + $0x8] sm:$0xf]
      %v3837 = vld [vmem:[%s3833 + $0xc] sm:$0xf]
      %s3838 = scalar_lea.vmem %s5, 384
      %v3839 = vld [vmem:[%s3838] sm:$0xf]
      %v3840 = vld [vmem:[%s3838 + $0x4] sm:$0xf]
      %v3841 = vld [vmem:[%s3838 + $0x8] sm:$0xf]
      %v3842 = vld [vmem:[%s3838 + $0xc] sm:$0xf]
      %v3843 = vld [vmem:[%s3838 + $0x10] sm:$0xf]
      %v3844 = vld [vmem:[%s3838 + $0x14] sm:$0xf]
      %v3845 = vld [vmem:[%s3838 + $0x18] sm:$0xf]
      %v3846 = vld [vmem:[%s3838 + $0x1c] sm:$0xf]
      %v3847 = vld [vmem:[%s3838 + $0x20] sm:$0xf]
      %v3848 = vld [vmem:[%s3838 + $0x24] sm:$0xf]
      %v3849 = vld [vmem:[%s3838 + $0x28] sm:$0xf]
      %v3850 = vld [vmem:[%s3838 + $0x2c] sm:$0xf]
      %v3851 = vld [vmem:[%s3838 + $0x30] sm:$0xf]
      %v3852 = vld [vmem:[%s3838 + $0x34] sm:$0xf]
      %v3853 = vld [vmem:[%s3838 + $0x38] sm:$0xf]
      %v3854 = vld [vmem:[%s3838 + $0x3c] sm:$0xf]
      %v3859 = vunpack.c.l.b16 %v3834
      %v3860 = vunpack.c.l.b16 %v3835
      %v3861 = vunpack.c.l.b16 %v3836
      %v3862 = vunpack.c.l.b16 %v3837
      %v3863 = vpack.c.b16 %v3860, %v3859
      %v3864 = vpack.c.b16 %v3862, %v3861
      %v3883 = vunpack.c.l.b16 %v3839
      %v3884 = vunpack.c.l.b16 %v3840
      %v3885 = vunpack.c.l.b16 %v3841
      %v3886 = vunpack.c.l.b16 %v3842
      %v3887 = vunpack.c.l.b16 %v3843
      %v3888 = vunpack.c.l.b16 %v3844
      %v3889 = vunpack.c.l.b16 %v3845
      %v3890 = vunpack.c.l.b16 %v3846
      %v3891 = vunpack.c.l.b16 %v3847
      %v3892 = vunpack.c.l.b16 %v3848
      %v3893 = vunpack.c.l.b16 %v3849
      %v3894 = vunpack.c.l.b16 %v3850
      %v3895 = vunpack.c.l.b16 %v3851
      %v3896 = vunpack.c.l.b16 %v3852
      %v3897 = vunpack.c.l.b16 %v3853
      %v3898 = vunpack.c.l.b16 %v3854
      %v3899 = vpack.c.b16 %v3884, %v3883
      %v3900 = vpack.c.b16 %v3886, %v3885
      %v3901 = vpack.c.b16 %v3888, %v3887
      %v3902 = vpack.c.b16 %v3890, %v3889
      %v3903 = vpack.c.b16 %v3892, %v3891
      %v3904 = vpack.c.b16 %v3894, %v3893
      %v3905 = vpack.c.b16 %v3896, %v3895
      %v3906 = vpack.c.b16 %v3898, %v3897
      %3915 = vmatprep.subr.bf16.mxu0 0
      %3916 = vmatpush1.bf16.msra.mxu0 %v3899
      %3917 = vmatprep.subr.bf16.mxu0 0
      %3918 = vmatpush1.bf16.msra.mxu0 %v3900
      %3919 = vmatprep.subr.bf16.mxu0 0
      %3920 = vmatpush1.bf16.msra.mxu0 %v3901
      %3921 = vmatprep.subr.bf16.mxu0 0
      %3922 = vmatpush1.bf16.msra.mxu0 %v3902
      %3923 = vmatprep.subr.bf16.mxu0 0
      %3924 = vmatpush1.bf16.msra.mxu0 %v3903
      %3925 = vmatprep.subr.bf16.mxu0 0
      %3926 = vmatpush1.bf16.msra.mxu0 %v3904
      %3927 = vmatprep.subr.bf16.mxu0 0
      %3928 = vmatpush1.bf16.msra.mxu0 %v3905
      %3929 = vmatprep.subr.bf16.mxu0 0
      %3930 = vmatpush1.bf16.msra.mxu0 %v3906
      %3931 = vmatprep.subr.bf16.mxu0 0
      %3932 = vmatpush1.bf16.msra.mxu0 0
      %3933 = vmatprep.subr.bf16.mxu0 0
      %3934 = vmatpush1.bf16.msra.mxu0 0
      %3935 = vmatprep.subr.bf16.mxu0 0
      %3936 = vmatpush1.bf16.msra.mxu0 0
      %3937 = vmatprep.subr.bf16.mxu0 0
      %3938 = vmatpush1.bf16.msra.mxu0 0
      %3939 = vmatprep.subr.bf16.mxu0 0
      %3940 = vmatpush1.bf16.msra.mxu0 0
      %3941 = vmatprep.subr.bf16.mxu0 0
      %3942 = vmatpush1.bf16.msra.mxu0 0
      %3943 = vmatprep.subr.bf16.mxu0 0
      %3944 = vmatpush1.bf16.msra.mxu0 0
      %3945 = vmatprep.subr.bf16.mxu0 0
      %3946 = vmatpush1.bf16.msra.mxu0 0
      %3947 = vmatprep.mubr.bf16.mxu0 0
      %3948 = vmatmul.mubr.bf16.gmra.mrb[0].mxu0 %v3863
      %v3949 = vpop.f32.mrb[0].mxu0
      %v3950 = vadd.f32 0.0, %v3949
      %v3951 = vpop.f32.mrb[0].mxu0
      %v3952 = vpop.f32.mrb[0].mxu0
      %v3953 = vadd.f32 0.0, %v3952
      %v3954 = vpop.f32.mrb[0].mxu0
      %3955 = vmatprep.mubr.bf16.mxu0 0
      %3956 = vmatmul.mubr.bf16.gmra.mrb[0].mxu0 %v3864
      %v3957 = vpop.f32.mrb[0].mxu0
      %v3958 = vadd.f32 0.0, %v3957
      %v3959 = vpop.f32.mrb[0].mxu0
      %v3960 = vpop.f32.mrb[0].mxu0
      %v3961 = vadd.f32 0.0, %v3960
      %v3962 = vpop.f32.mrb[0].mxu0
      %3963 = vdwg.mxu0
      %v3964 = vadd.f32 %v3829, %v3950
      %v3965 = vadd.f32 %v3830, %v3953
      %v3966 = vadd.f32 %v3831, %v3958
      %v3967 = vadd.f32 %v3832, %v3961
      %s3968 = scalar_lea.vmem %s5, 448
      %v3969 = vld [vmem:[%s3968] sm:$0xf]
      %v3970 = vld [vmem:[%s3968 + $0x4] sm:$0xf]
      %v3971 = vld [vmem:[%s3968 + $0x8] sm:$0xf]
      %v3972 = vld [vmem:[%s3968 + $0xc] sm:$0xf]
      %v3973 = vld [vmem:[%s3968 + $0x10] sm:$0xf]
      %v3974 = vld [vmem:[%s3968 + $0x14] sm:$0xf]
      %v3975 = vld [vmem:[%s3968 + $0x18] sm:$0xf]
      %v3976 = vld [vmem:[%s3968 + $0x1c] sm:$0xf]
      %v3977 = vld [vmem:[%s3968 + $0x20] sm:$0xf]
      %v3978 = vld [vmem:[%s3968 + $0x24] sm:$0xf]
      %v3979 = vld [vmem:[%s3968 + $0x28] sm:$0xf]
      %v3980 = vld [vmem:[%s3968 + $0x2c] sm:$0xf]
      %v3981 = vld [vmem:[%s3968 + $0x30] sm:$0xf]
      %v3982 = vld [vmem:[%s3968 + $0x34] sm:$0xf]
      %v3983 = vld [vmem:[%s3968 + $0x38] sm:$0xf]
      %v3984 = vld [vmem:[%s3968 + $0x3c] sm:$0xf]
      %v4001 = vunpack.c.l.b16 %v3969
      %v4002 = vunpack.c.l.b16 %v3970
      %v4003 = vunpack.c.l.b16 %v3971
      %v4004 = vunpack.c.l.b16 %v3972
      %v4005 = vunpack.c.l.b16 %v3973
      %v4006 = vunpack.c.l.b16 %v3974
      %v4007 = vunpack.c.l.b16 %v3975
      %v4008 = vunpack.c.l.b16 %v3976
      %v4009 = vunpack.c.l.b16 %v3977
      %v4010 = vunpack.c.l.b16 %v3978
      %v4011 = vunpack.c.l.b16 %v3979
      %v4012 = vunpack.c.l.b16 %v3980
      %v4013 = vunpack.c.l.b16 %v3981
      %v4014 = vunpack.c.l.b16 %v3982
      %v4015 = vunpack.c.l.b16 %v3983
      %v4016 = vunpack.c.l.b16 %v3984
      %v4017 = vpack.c.b16 %v4002, %v4001
      %v4018 = vpack.c.b16 %v4004, %v4003
      %v4019 = vpack.c.b16 %v4006, %v4005
      %v4020 = vpack.c.b16 %v4008, %v4007
      %v4021 = vpack.c.b16 %v4010, %v4009
      %v4022 = vpack.c.b16 %v4012, %v4011
      %v4023 = vpack.c.b16 %v4014, %v4013
      %v4024 = vpack.c.b16 %v4016, %v4015
      %4033 = vmatprep.subr.bf16.mxu0 0
      %4034 = vmatpush1.bf16.msra.mxu0 %v4017
      %4035 = vmatprep.subr.bf16.mxu0 0
      %4036 = vmatpush1.bf16.msra.mxu0 %v4018
      %4037 = vmatprep.subr.bf16.mxu0 0
      %4038 = vmatpush1.bf16.msra.mxu0 %v4019
      %4039 = vmatprep.subr.bf16.mxu0 0
      %4040 = vmatpush1.bf16.msra.mxu0 %v4020
      %4041 = vmatprep.subr.bf16.mxu0 0
      %4042 = vmatpush1.bf16.msra.mxu0 %v4021
      %4043 = vmatprep.subr.bf16.mxu0 0
      %4044 = vmatpush1.bf16.msra.mxu0 %v4022
      %4045 = vmatprep.subr.bf16.mxu0 0
      %4046 = vmatpush1.bf16.msra.mxu0 %v4023
      %4047 = vmatprep.subr.bf16.mxu0 0
      %4048 = vmatpush1.bf16.msra.mxu0 %v4024
      %4049 = vmatprep.subr.bf16.mxu0 0
      %4050 = vmatpush1.bf16.msra.mxu0 0
      %4051 = vmatprep.subr.bf16.mxu0 0
      %4052 = vmatpush1.bf16.msra.mxu0 0
      %4053 = vmatprep.subr.bf16.mxu0 0
      %4054 = vmatpush1.bf16.msra.mxu0 0
      %4055 = vmatprep.subr.bf16.mxu0 0
      %4056 = vmatpush1.bf16.msra.mxu0 0
      %4057 = vmatprep.subr.bf16.mxu0 0
      %4058 = vmatpush1.bf16.msra.mxu0 0
      %4059 = vmatprep.subr.bf16.mxu0 0
      %4060 = vmatpush1.bf16.msra.mxu0 0
      %4061 = vmatprep.subr.bf16.mxu0 0
      %4062 = vmatpush1.bf16.msra.mxu0 0
      %4063 = vmatprep.subr.bf16.mxu0 0
      %4064 = vmatpush1.bf16.msra.mxu0 0
      %4065 = vmatprep.mubr.bf16.mxu0 0
      %4066 = vmatmul.mubr.bf16.gmra.mrb[0].mxu0 %v3863
      %v4067 = vpop.f32.mrb[0].mxu0
      %v4068 = vadd.f32 0.0, %v4067
      %v4069 = vpop.f32.mrb[0].mxu0
      %v4070 = vpop.f32.mrb[0].mxu0
      %v4071 = vadd.f32 0.0, %v4070
      %v4072 = vpop.f32.mrb[0].mxu0
      %4073 = vmatprep.mubr.bf16.mxu0 0
      %4074 = vmatmul.mubr.bf16.gmra.mrb[0].mxu0 %v3864
      %v4075 = vpop.f32.mrb[0].mxu0
      %v4076 = vadd.f32 0.0, %v4075
      %v4077 = vpop.f32.mrb[0].mxu0
      %v4078 = vpop.f32.mrb[0].mxu0
      %v4079 = vadd.f32 0.0, %v4078
      %v4080 = vpop.f32.mrb[0].mxu0
      %4081 = vdwg.mxu0
      %v4086 = vrot.slane %v4068, 1
      %v4087 = vrot.slane %v4071, 1
      %v4088 = vrot.slane %v4076, 1
      %v4089 = vrot.slane %v4079, 1
      %v4094 = vadd.f32 %v3964, %v4086
      %v4095 = vadd.f32 %v3965, %v4087
      %v4096 = vadd.f32 %v3966, %v4088
      %v4097 = vadd.f32 %v3967, %v4089
      %s4098 = scalar_lea.vmem %s5, 512
      %v4099 = vld [vmem:[%s4098] sm:$0xf]
      %v4100 = vld [vmem:[%s4098 + $0x4] sm:$0xf]
      %v4101 = vld [vmem:[%s4098 + $0x8] sm:$0xf]
      %v4102 = vld [vmem:[%s4098 + $0xc] sm:$0xf]
      %v4103 = vld [vmem:[%s4098 + $0x10] sm:$0xf]
      %v4104 = vld [vmem:[%s4098 + $0x14] sm:$0xf]
      %v4105 = vld [vmem:[%s4098 + $0x18] sm:$0xf]
      %v4106 = vld [vmem:[%s4098 + $0x1c] sm:$0xf]
      %v4107 = vld [vmem:[%s4098 + $0x20] sm:$0xf]
      %v4108 = vld [vmem:[%s4098 + $0x24] sm:$0xf]
      %v4109 = vld [vmem:[%s4098 + $0x28] sm:$0xf]
      %v4110 = vld [vmem:[%s4098 + $0x2c] sm:$0xf]
      %v4111 = vld [vmem:[%s4098 + $0x30] sm:$0xf]
      %v4112 = vld [vmem:[%s4098 + $0x34] sm:$0xf]
      %v4113 = vld [vmem:[%s4098 + $0x38] sm:$0xf]
      %v4114 = vld [vmem:[%s4098 + $0x3c] sm:$0xf]
      %v4131 = vunpack.c.l.b16 %v4099
      %v4132 = vunpack.c.l.b16 %v4100
      %v4133 = vunpack.c.l.b16 %v4101
      %v4134 = vunpack.c.l.b16 %v4102
      %v4135 = vunpack.c.l.b16 %v4103
      %v4136 = vunpack.c.l.b16 %v4104
      %v4137 = vunpack.c.l.b16 %v4105
      %v4138 = vunpack.c.l.b16 %v4106
      %v4139 = vunpack.c.l.b16 %v4107
      %v4140 = vunpack.c.l.b16 %v4108
      %v4141 = vunpack.c.l.b16 %v4109
      %v4142 = vunpack.c.l.b16 %v4110
      %v4143 = vunpack.c.l.b16 %v4111
      %v4144 = vunpack.c.l.b16 %v4112
      %v4145 = vunpack.c.l.b16 %v4113
      %v4146 = vunpack.c.l.b16 %v4114
      %v4147 = vpack.c.b16 %v4132, %v4131
      %v4148 = vpack.c.b16 %v4134, %v4133
      %v4149 = vpack.c.b16 %v4136, %v4135
      %v4150 = vpack.c.b16 %v4138, %v4137
      %v4151 = vpack.c.b16 %v4140, %v4139
      %v4152 = vpack.c.b16 %v4142, %v4141
      %v4153 = vpack.c.b16 %v4144, %v4143
      %v4154 = vpack.c.b16 %v4146, %v4145
      %4163 = vmatprep.subr.bf16.mxu0 0
      %4164 = vmatpush1.bf16.msra.mxu0 %v4147
      %4165 = vmatprep.subr.bf16.mxu0 0
      %4166 = vmatpush1.bf16.msra.mxu0 %v4148
      %4167 = vmatprep.subr.bf16.mxu0 0
      %4168 = vmatpush1.bf16.msra.mxu0 %v4149
      %4169 = vmatprep.subr.bf16.mxu0 0
      %4170 = vmatpush1.bf16.msra.mxu0 %v4150
      %4171 = vmatprep.subr.bf16.mxu0 0
      %4172 = vmatpush1.bf16.msra.mxu0 %v4151
      %4173 = vmatprep.subr.bf16.mxu0 0
      %4174 = vmatpush1.bf16.msra.mxu0 %v4152
      %4175 = vmatprep.subr.bf16.mxu0 0
      %4176 = vmatpush1.bf16.msra.mxu0 %v4153
      %4177 = vmatprep.subr.bf16.mxu0 0
      %4178 = vmatpush1.bf16.msra.mxu0 %v4154
      %4179 = vmatprep.subr.bf16.mxu0 0
      %4180 = vmatpush1.bf16.msra.mxu0 0
      %4181 = vmatprep.subr.bf16.mxu0 0
      %4182 = vmatpush1.bf16.msra.mxu0 0
      %4183 = vmatprep.subr.bf16.mxu0 0
      %4184 = vmatpush1.bf16.msra.mxu0 0
      %4185 = vmatprep.subr.bf16.mxu0 0
      %4186 = vmatpush1.bf16.msra.mxu0 0
      %4187 = vmatprep.subr.bf16.mxu0 0
      %4188 = vmatpush1.bf16.msra.mxu0 0
      %4189 = vmatprep.subr.bf16.mxu0 0
      %4190 = vmatpush1.bf16.msra.mxu0 0
      %4191 = vmatprep.subr.bf16.mxu0 0
      %4192 = vmatpush1.bf16.msra.mxu0 0
      %4193 = vmatprep.subr.bf16.mxu0 0
      %4194 = vmatpush1.bf16.msra.mxu0 0
      %4195 = vmatprep.mubr.bf16.mxu0 0
      %4196 = vmatmul.mubr.bf16.gmra.mrb[0].mxu0 %v3863
      %v4197 = vpop.f32.mrb[0].mxu0
      %v4198 = vadd.f32 0.0, %v4197
      %v4199 = vpop.f32.mrb[0].mxu0
      %v4200 = vpop.f32.mrb[0].mxu0
      %v4201 = vadd.f32 0.0, %v4200
      %v4202 = vpop.f32.mrb[0].mxu0
      %4203 = vmatprep.mubr.bf16.mxu0 0
      %4204 = vmatmul.mubr.bf16.gmra.mrb[0].mxu0 %v3864
      %v4205 = vpop.f32.mrb[0].mxu0
      %v4206 = vadd.f32 0.0, %v4205
      %v4207 = vpop.f32.mrb[0].mxu0
      %v4208 = vpop.f32.mrb[0].mxu0
      %v4209 = vadd.f32 0.0, %v4208
      %v4210 = vpop.f32.mrb[0].mxu0
      %4211 = vdwg.mxu0
      %v4216 = vrot.slane %v4198, 2
      %v4217 = vrot.slane %v4201, 2
      %v4218 = vrot.slane %v4206, 2
      %v4219 = vrot.slane %v4209, 2
      %v4224 = vadd.f32 %v4094, %v4216
      %v4225 = vadd.f32 %v4095, %v4217
      %v4226 = vadd.f32 %v4096, %v4218
      %v4227 = vadd.f32 %v4097, %v4219
      %v4228 = vld [vmem:[%s6] sm:$0x1]
      %v4230 = vlaneseq
      %v4231 = vshrl.u32 %v4230, 7
      %v4232 = vsub.s32 0, %v4231
      %v4233 = vrot.slane %v4228, %v4232
      %v4235 = vadd.f32 %v4224, %v4233
      %v4236 = vadd.f32 %v4225, %v4233
      %v4237 = vadd.f32 %v4226, %v4233
      %v4238 = vadd.f32 %v4227, %v4233
      %v4239 = vmax.f32 %v4235, 0.0
      %v4240 = vmax.f32 %v4236, 0.0
      %v4241 = vmax.f32 %v4237, 0.0
      %v4242 = vmax.f32 %v4238, 0.0
      %v4243 = vpack.c.bf16 %v4239, %v4239
      %v4244 = vpack.c.bf16 %v4240, %v4240
      %v4245 = vpack.c.bf16 %v4241, %v4241
      %v4246 = vpack.c.bf16 %v4242, %v4242
      %v4251 = vunpack.c.l.b16 %v4243
      %v4252 = vunpack.c.l.b16 %v4244
      %v4253 = vunpack.c.l.b16 %v4245
      %v4254 = vunpack.c.l.b16 %v4246
      %v4255 = vpack.c.b16 %v4251, %v4251
      %v4256 = vpack.c.b16 %v4252, %v4252
      %v4257 = vpack.c.b16 %v4253, %v4253
      %v4258 = vpack.c.b16 %v4254, %v4254
      %v4260 = vshrl.u32 %v4255, 16
      %v4262 = vrot.slane %v4260, 7
      %v4263 = vshll.u32 %v4255, 16
      %v4265 = vor.u32 %v4262, %v4263
      %v4267 = vshrl.u32 %v4256, 16
      %v4269 = vrot.slane %v4267, 7
      %v4270 = vshll.u32 %v4256, 16
      %v4272 = vor.u32 %v4269, %v4270
      %v4274 = vshrl.u32 %v4257, 16
      %v4276 = vrot.slane %v4274, 7
      %v4277 = vshll.u32 %v4257, 16
      %v4279 = vor.u32 %v4276, %v4277
      %v4281 = vshrl.u32 %v4258, 16
      %v4283 = vrot.slane %v4281, 7
      %v4284 = vshll.u32 %v4258, 16
      %v4286 = vor.u32 %v4283, %v4284
      %s4291 = scalar_lea.vmem [#allocation4], 4
      %4292 = vst [vmem:[%s4291] sm:$0x6] %v4265
      %4293 = vst [vmem:[%s4291 + $0x4] sm:$0x6] %v4272
      %4294 = vst [vmem:[%s4291 + $0x8] sm:$0x6] %v4279
      %4295 = vst [vmem:[%s4291 + $0xc] sm:$0x6] %v4286
      %v4296 = vld [vmem:[#allocation4] sm:$0xf]
      %v4297 = vld [vmem:[#allocation4 + $0x4] sm:$0xf]
      %v4298 = vld [vmem:[#allocation4 + $0x8] sm:$0xf]
      %v4299 = vld [vmem:[#allocation4 + $0xc] sm:$0xf]
      %v4300 = vld [vmem:[%s7] sm:$0xf]
      %v4301 = vld [vmem:[%s7 + $0x4] sm:$0xf]
      %v4302 = vld [vmem:[%s7 + $0x8] sm:$0xf]
      %v4303 = vld [vmem:[%s7 + $0xc] sm:$0xf]
      %v4304 = vld [vmem:[%s7 + $0x10] sm:$0xf]
      %v4305 = vld [vmem:[%s7 + $0x14] sm:$0xf]
      %v4306 = vld [vmem:[%s7 + $0x18] sm:$0xf]
      %v4307 = vld [vmem:[%s7 + $0x1c] sm:$0xf]
      %v4308 = vld [vmem:[%s7 + $0x20] sm:$0xf]
      %v4309 = vld [vmem:[%s7 + $0x24] sm:$0xf]
      %v4310 = vld [vmem:[%s7 + $0x28] sm:$0xf]
      %v4311 = vld [vmem:[%s7 + $0x2c] sm:$0xf]
      %v4312 = vld [vmem:[%s7 + $0x30] sm:$0xf]
      %v4313 = vld [vmem:[%s7 + $0x34] sm:$0xf]
      %v4314 = vld [vmem:[%s7 + $0x38] sm:$0xf]
      %v4315 = vld [vmem:[%s7 + $0x3c] sm:$0xf]
      %v4320 = vunpack.c.l.b16 %v4296
      %v4321 = vunpack.c.l.b16 %v4297
      %v4322 = vunpack.c.l.b16 %v4298
      %v4323 = vunpack.c.l.b16 %v4299
      %v4324 = vpack.c.b16 %v4321, %v4320
      %v4325 = vpack.c.b16 %v4323, %v4322
      %v4344 = vunpack.c.l.b16 %v4300
      %v4345 = vunpack.c.l.b16 %v4301
      %v4346 = vunpack.c.l.b16 %v4302
      %v4347 = vunpack.c.l.b16 %v4303
      %v4348 = vunpack.c.l.b16 %v4304
      %v4349 = vunpack.c.l.b16 %v4305
      %v4350 = vunpack.c.l.b16 %v4306
      %v4351 = vunpack.c.l.b16 %v4307
      %v4352 = vunpack.c.l.b16 %v4308
      %v4353 = vunpack.c.l.b16 %v4309
      %v4354 = vunpack.c.l.b16 %v4310
      %v4355 = vunpack.c.l.b16 %v4311
      %v4356 = vunpack.c.l.b16 %v4312
      %v4357 = vunpack.c.l.b16 %v4313
      %v4358 = vunpack.c.l.b16 %v4314
      %v4359 = vunpack.c.l.b16 %v4315
      %v4360 = vpack.c.b16 %v4345, %v4344
      %v4361 = vpack.c.b16 %v4347, %v4346
      %v4362 = vpack.c.b16 %v4349, %v4348
      %v4363 = vpack.c.b16 %v4351, %v4350
      %v4364 = vpack.c.b16 %v4353, %v4352
      %v4365 = vpack.c.b16 %v4355, %v4354
      %v4366 = vpack.c.b16 %v4357, %v4356
      %v4367 = vpack.c.b16 %v4359, %v4358
      %4376 = vmatprep.subr.bf16.mxu0 0
      %4377 = vmatpush1.bf16.msra.mxu0 %v4360
      %4378 = vmatprep.subr.bf16.mxu0 0
      %4379 = vmatpush1.bf16.msra.mxu0 %v4361
      %4380 = vmatprep.subr.bf16.mxu0 0
      %4381 = vmatpush1.bf16.msra.mxu0 %v4362
      %4382 = vmatprep.subr.bf16.mxu0 0
      %4383 = vmatpush1.bf16.msra.mxu0 %v4363
      %4384 = vmatprep.subr.bf16.mxu0 0
      %4385 = vmatpush1.bf16.msra.mxu0 %v4364
      %4386 = vmatprep.subr.bf16.mxu0 0
      %4387 = vmatpush1.bf16.msra.mxu0 %v4365
      %4388 = vmatprep.subr.bf16.mxu0 0
      %4389 = vmatpush1.bf16.msra.mxu0 %v4366
      %4390 = vmatprep.subr.bf16.mxu0 0
      %4391 = vmatpush1.bf16.msra.mxu0 %v4367
      %4392 = vmatprep.subr.bf16.mxu0 0
      %4393 = vmatpush1.bf16.msra.mxu0 0
      %4394 = vmatprep.subr.bf16.mxu0 0
      %4395 = vmatpush1.bf16.msra.mxu0 0
      %4396 = vmatprep.subr.bf16.mxu0 0
      %4397 = vmatpush1.bf16.msra.mxu0 0
      %4398 = vmatprep.subr.bf16.mxu0 0
      %4399 = vmatpush1.bf16.msra.mxu0 0
      %4400 = vmatprep.subr.bf16.mxu0 0
      %4401 = vmatpush1.bf16.msra.mxu0 0
      %4402 = vmatprep.subr.bf16.mxu0 0
      %4403 = vmatpush1.bf16.msra.mxu0 0
      %4404 = vmatprep.subr.bf16.mxu0 0
      %4405 = vmatpush1.bf16.msra.mxu0 0
      %4406 = vmatprep.subr.bf16.mxu0 0
      %4407 = vmatpush1.bf16.msra.mxu0 0
      %4408 = vmatprep.mubr.bf16.mxu0 0
      %4409 = vmatmul.mubr.bf16.gmra.mrb[0].mxu0 %v4324
      %v4410 = vpop.f32.mrb[0].mxu0
      %v4411 = vadd.f32 0.0, %v4410
      %v4412 = vpop.f32.mrb[0].mxu0
      %v4413 = vpop.f32.mrb[0].mxu0
      %v4414 = vadd.f32 0.0, %v4413
      %v4415 = vpop.f32.mrb[0].mxu0
      %4416 = vmatprep.mubr.bf16.mxu0 0
      %4417 = vmatmul.mubr.bf16.gmra.mrb[0].mxu0 %v4325
      %v4418 = vpop.f32.mrb[0].mxu0
      %v4419 = vadd.f32 0.0, %v4418
      %v4420 = vpop.f32.mrb[0].mxu0
      %v4421 = vpop.f32.mrb[0].mxu0
      %v4422 = vadd.f32 0.0, %v4421
      %v4423 = vpop.f32.mrb[0].mxu0
      %4424 = vdwg.mxu0
      %s4425 = scalar_lea.vmem %s7, 64
      %v4426 = vld [vmem:[%s4425] sm:$0xf]
      %v4427 = vld [vmem:[%s4425 + $0x4] sm:$0xf]
      %v4428 = vld [vmem:[%s4425 + $0x8] sm:$0xf]
      %v4429 = vld [vmem:[%s4425 + $0xc] sm:$0xf]
      %v4430 = vld [vmem:[%s4425 + $0x10] sm:$0xf]
      %v4431 = vld [vmem:[%s4425 + $0x14] sm:$0xf]
      %v4432 = vld [vmem:[%s4425 + $0x18] sm:$0xf]
      %v4433 = vld [vmem:[%s4425 + $0x1c] sm:$0xf]
      %v4434 = vld [vmem:[%s4425 + $0x20] sm:$0xf]
      %v4435 = vld [vmem:[%s4425 + $0x24] sm:$0xf]
      %v4436 = vld [vmem:[%s4425 + $0x28] sm:$0xf]
      %v4437 = vld [vmem:[%s4425 + $0x2c] sm:$0xf]
      %v4438 = vld [vmem:[%s4425 + $0x30] sm:$0xf]
      %v4439 = vld [vmem:[%s4425 + $0x34] sm:$0xf]
      %v4440 = vld [vmem:[%s4425 + $0x38] sm:$0xf]
      %v4441 = vld [vmem:[%s4425 + $0x3c] sm:$0xf]
      %v4458 = vunpack.c.l.b16 %v4426
      %v4459 = vunpack.c.l.b16 %v4427
      %v4460 = vunpack.c.l.b16 %v4428
      %v4461 = vunpack.c.l.b16 %v4429
      %v4462 = vunpack.c.l.b16 %v4430
      %v4463 = vunpack.c.l.b16 %v4431
      %v4464 = vunpack.c.l.b16 %v4432
      %v4465 = vunpack.c.l.b16 %v4433
      %v4466 = vunpack.c.l.b16 %v4434
      %v4467 = vunpack.c.l.b16 %v4435
      %v4468 = vunpack.c.l.b16 %v4436
      %v4469 = vunpack.c.l.b16 %v4437
      %v4470 = vunpack.c.l.b16 %v4438
      %v4471 = vunpack.c.l.b16 %v4439
      %v4472 = vunpack.c.l.b16 %v4440
      %v4473 = vunpack.c.l.b16 %v4441
      %v4474 = vpack.c.b16 %v4459, %v4458
      %v4475 = vpack.c.b16 %v4461, %v4460
      %v4476 = vpack.c.b16 %v4463, %v4462
      %v4477 = vpack.c.b16 %v4465, %v4464
      %v4478 = vpack.c.b16 %v4467, %v4466
      %v4479 = vpack.c.b16 %v4469, %v4468
      %v4480 = vpack.c.b16 %v4471, %v4470
      %v4481 = vpack.c.b16 %v4473, %v4472
      %4490 = vmatprep.subr.bf16.mxu0 0
      %4491 = vmatpush1.bf16.msra.mxu0 %v4474
      %4492 = vmatprep.subr.bf16.mxu0 0
      %4493 = vmatpush1.bf16.msra.mxu0 %v4475
      %4494 = vmatprep.subr.bf16.mxu0 0
      %4495 = vmatpush1.bf16.msra.mxu0 %v4476
      %4496 = vmatprep.subr.bf16.mxu0 0
      %4497 = vmatpush1.bf16.msra.mxu0 %v4477
      %4498 = vmatprep.subr.bf16.mxu0 0
      %4499 = vmatpush1.bf16.msra.mxu0 %v4478
      %4500 = vmatprep.subr.bf16.mxu0 0
      %4501 = vmatpush1.bf16.msra.mxu0 %v4479
      %4502 = vmatprep.subr.bf16.mxu0 0
      %4503 = vmatpush1.bf16.msra.mxu0 %v4480
      %4504 = vmatprep.subr.bf16.mxu0 0
      %4505 = vmatpush1.bf16.msra.mxu0 %v4481
      %4506 = vmatprep.subr.bf16.mxu0 0
      %4507 = vmatpush1.bf16.msra.mxu0 0
      %4508 = vmatprep.subr.bf16.mxu0 0
      %4509 = vmatpush1.bf16.msra.mxu0 0
      %4510 = vmatprep.subr.bf16.mxu0 0
      %4511 = vmatpush1.bf16.msra.mxu0 0
      %4512 = vmatprep.subr.bf16.mxu0 0
      %4513 = vmatpush1.bf16.msra.mxu0 0
      %4514 = vmatprep.subr.bf16.mxu0 0
      %4515 = vmatpush1.bf16.msra.mxu0 0
      %4516 = vmatprep.subr.bf16.mxu0 0
      %4517 = vmatpush1.bf16.msra.mxu0 0
      %4518 = vmatprep.subr.bf16.mxu0 0
      %4519 = vmatpush1.bf16.msra.mxu0 0
      %4520 = vmatprep.subr.bf16.mxu0 0
      %4521 = vmatpush1.bf16.msra.mxu0 0
      %4522 = vmatprep.mubr.bf16.mxu0 0
      %4523 = vmatmul.mubr.bf16.gmra.mrb[0].mxu0 %v4324
      %v4524 = vpop.f32.mrb[0].mxu0
      %v4525 = vadd.f32 0.0, %v4524
      %v4526 = vpop.f32.mrb[0].mxu0
      %v4527 = vpop.f32.mrb[0].mxu0
      %v4528 = vadd.f32 0.0, %v4527
      %v4529 = vpop.f32.mrb[0].mxu0
      %4530 = vmatprep.mubr.bf16.mxu0 0
      %4531 = vmatmul.mubr.bf16.gmra.mrb[0].mxu0 %v4325
      %v4532 = vpop.f32.mrb[0].mxu0
      %v4533 = vadd.f32 0.0, %v4532
      %v4534 = vpop.f32.mrb[0].mxu0
      %v4535 = vpop.f32.mrb[0].mxu0
      %v4536 = vadd.f32 0.0, %v4535
      %v4537 = vpop.f32.mrb[0].mxu0
      %4538 = vdwg.mxu0
      %v4543 = vrot.slane %v4525, 1
      %v4544 = vrot.slane %v4528, 1
      %v4545 = vrot.slane %v4533, 1
      %v4546 = vrot.slane %v4536, 1
      %v4551 = vadd.f32 %v4411, %v4543
      %v4552 = vadd.f32 %v4414, %v4544
      %v4553 = vadd.f32 %v4419, %v4545
      %v4554 = vadd.f32 %v4422, %v4546
      %s4555 = scalar_lea.vmem %s7, 128
      %v4556 = vld [vmem:[%s4555] sm:$0xf]
      %v4557 = vld [vmem:[%s4555 + $0x4] sm:$0xf]
      %v4558 = vld [vmem:[%s4555 + $0x8] sm:$0xf]
      %v4559 = vld [vmem:[%s4555 + $0xc] sm:$0xf]
      %v4560 = vld [vmem:[%s4555 + $0x10] sm:$0xf]
      %v4561 = vld [vmem:[%s4555 + $0x14] sm:$0xf]
      %v4562 = vld [vmem:[%s4555 + $0x18] sm:$0xf]
      %v4563 = vld [vmem:[%s4555 + $0x1c] sm:$0xf]
      %v4564 = vld [vmem:[%s4555 + $0x20] sm:$0xf]
      %v4565 = vld [vmem:[%s4555 + $0x24] sm:$0xf]
      %v4566 = vld [vmem:[%s4555 + $0x28] sm:$0xf]
      %v4567 = vld [vmem:[%s4555 + $0x2c] sm:$0xf]
      %v4568 = vld [vmem:[%s4555 + $0x30] sm:$0xf]
      %v4569 = vld [vmem:[%s4555 + $0x34] sm:$0xf]
      %v4570 = vld [vmem:[%s4555 + $0x38] sm:$0xf]
      %v4571 = vld [vmem:[%s4555 + $0x3c] sm:$0xf]
      %v4588 = vunpack.c.l.b16 %v4556
      %v4589 = vunpack.c.l.b16 %v4557
      %v4590 = vunpack.c.l.b16 %v4558
      %v4591 = vunpack.c.l.b16 %v4559
      %v4592 = vunpack.c.l.b16 %v4560
      %v4593 = vunpack.c.l.b16 %v4561
      %v4594 = vunpack.c.l.b16 %v4562
      %v4595 = vunpack.c.l.b16 %v4563
      %v4596 = vunpack.c.l.b16 %v4564
      %v4597 = vunpack.c.l.b16 %v4565
      %v4598 = vunpack.c.l.b16 %v4566
      %v4599 = vunpack.c.l.b16 %v4567
      %v4600 = vunpack.c.l.b16 %v4568
      %v4601 = vunpack.c.l.b16 %v4569
      %v4602 = vunpack.c.l.b16 %v4570
      %v4603 = vunpack.c.l.b16 %v4571
      %v4604 = vpack.c.b16 %v4589, %v4588
      %v4605 = vpack.c.b16 %v4591, %v4590
      %v4606 = vpack.c.b16 %v4593, %v4592
      %v4607 = vpack.c.b16 %v4595, %v4594
      %v4608 = vpack.c.b16 %v4597, %v4596
      %v4609 = vpack.c.b16 %v4599, %v4598
      %v4610 = vpack.c.b16 %v4601, %v4600
      %v4611 = vpack.c.b16 %v4603, %v4602
      %4620 = vmatprep.subr.bf16.mxu0 0
      %4621 = vmatpush1.bf16.msra.mxu0 %v4604
      %4622 = vmatprep.subr.bf16.mxu0 0
      %4623 = vmatpush1.bf16.msra.mxu0 %v4605
      %4624 = vmatprep.subr.bf16.mxu0 0
      %4625 = vmatpush1.bf16.msra.mxu0 %v4606
      %4626 = vmatprep.subr.bf16.mxu0 0
      %4627 = vmatpush1.bf16.msra.mxu0 %v4607
      %4628 = vmatprep.subr.bf16.mxu0 0
      %4629 = vmatpush1.bf16.msra.mxu0 %v4608
      %4630 = vmatprep.subr.bf16.mxu0 0
      %4631 = vmatpush1.bf16.msra.mxu0 %v4609
      %4632 = vmatprep.subr.bf16.mxu0 0
      %4633 = vmatpush1.bf16.msra.mxu0 %v4610
      %4634 = vmatprep.subr.bf16.mxu0 0
      %4635 = vmatpush1.bf16.msra.mxu0 %v4611
      %4636 = vmatprep.subr.bf16.mxu0 0
      %4637 = vmatpush1.bf16.msra.mxu0 0
      %4638 = vmatprep.subr.bf16.mxu0 0
      %4639 = vmatpush1.bf16.msra.mxu0 0
      %4640 = vmatprep.subr.bf16.mxu0 0
      %4641 = vmatpush1.bf16.msra.mxu0 0
      %4642 = vmatprep.subr.bf16.mxu0 0
      %4643 = vmatpush1.bf16.msra.mxu0 0
      %4644 = vmatprep.subr.bf16.mxu0 0
      %4645 = vmatpush1.bf16.msra.mxu0 0
      %4646 = vmatprep.subr.bf16.mxu0 0
      %4647 = vmatpush1.bf16.msra.mxu0 0
      %4648 = vmatprep.subr.bf16.mxu0 0
      %4649 = vmatpush1.bf16.msra.mxu0 0
      %4650 = vmatprep.subr.bf16.mxu0 0
      %4651 = vmatpush1.bf16.msra.mxu0 0
      %4652 = vmatprep.mubr.bf16.mxu0 0
      %4653 = vmatmul.mubr.bf16.gmra.mrb[0].mxu0 %v4324
      %v4654 = vpop.f32.mrb[0].mxu0
      %v4655 = vadd.f32 0.0, %v4654
      %v4656 = vpop.f32.mrb[0].mxu0
      %v4657 = vpop.f32.mrb[0].mxu0
      %v4658 = vadd.f32 0.0, %v4657
      %v4659 = vpop.f32.mrb[0].mxu0
      %4660 = vmatprep.mubr.bf16.mxu0 0
      %4661 = vmatmul.mubr.bf16.gmra.mrb[0].mxu0 %v4325
      %v4662 = vpop.f32.mrb[0].mxu0
      %v4663 = vadd.f32 0.0, %v4662
      %v4664 = vpop.f32.mrb[0].mxu0
      %v4665 = vpop.f32.mrb[0].mxu0
      %v4666 = vadd.f32 0.0, %v4665
      %v4667 = vpop.f32.mrb[0].mxu0
      %4668 = vdwg.mxu0
      %v4673 = vrot.slane %v4655, 2
      %v4674 = vrot.slane %v4658, 2
      %v4675 = vrot.slane %v4663, 2
      %v4676 = vrot.slane %v4666, 2
      %v4681 = vadd.f32 %v4551, %v4673
      %v4682 = vadd.f32 %v4552, %v4674
      %v4683 = vadd.f32 %v4553, %v4675
      %v4684 = vadd.f32 %v4554, %v4676
      %v4685 = vld [vmem:[%s4291] sm:$0xf]
      %v4686 = vld [vmem:[%s4291 + $0x4] sm:$0xf]
      %v4687 = vld [vmem:[%s4291 + $0x8] sm:$0xf]
      %v4688 = vld [vmem:[%s4291 + $0xc] sm:$0xf]
      %s4689 = scalar_lea.vmem %s7, 192
      %v4690 = vld [vmem:[%s4689] sm:$0xf]
      %v4691 = vld [vmem:[%s4689 + $0x4] sm:$0xf]
      %v4692 = vld [vmem:[%s4689 + $0x8] sm:$0xf]
      %v4693 = vld [vmem:[%s4689 + $0xc] sm:$0xf]
      %v4694 = vld [vmem:[%s4689 + $0x10] sm:$0xf]
      %v4695 = vld [vmem:[%s4689 + $0x14] sm:$0xf]
      %v4696 = vld [vmem:[%s4689 + $0x18] sm:$0xf]
      %v4697 = vld [vmem:[%s4689 + $0x1c] sm:$0xf]
      %v4698 = vld [vmem:[%s4689 + $0x20] sm:$0xf]
      %v4699 = vld [vmem:[%s4689 + $0x24] sm:$0xf]
      %v4700 = vld [vmem:[%s4689 + $0x28] sm:$0xf]
      %v4701 = vld [vmem:[%s4689 + $0x2c] sm:$0xf]
      %v4702 = vld [vmem:[%s4689 + $0x30] sm:$0xf]
      %v4703 = vld [vmem:[%s4689 + $0x34] sm:$0xf]
      %v4704 = vld [vmem:[%s4689 + $0x38] sm:$0xf]
      %v4705 = vld [vmem:[%s4689 + $0x3c] sm:$0xf]
      %v4710 = vunpack.c.l.b16 %v4685
      %v4711 = vunpack.c.l.b16 %v4686
      %v4712 = vunpack.c.l.b16 %v4687
      %v4713 = vunpack.c.l.b16 %v4688
      %v4714 = vpack.c.b16 %v4711, %v4710
      %v4715 = vpack.c.b16 %v4713, %v4712
      %v4734 = vunpack.c.l.b16 %v4690
      %v4735 = vunpack.c.l.b16 %v4691
      %v4736 = vunpack.c.l.b16 %v4692
      %v4737 = vunpack.c.l.b16 %v4693
      %v4738 = vunpack.c.l.b16 %v4694
      %v4739 = vunpack.c.l.b16 %v4695
      %v4740 = vunpack.c.l.b16 %v4696
      %v4741 = vunpack.c.l.b16 %v4697
      %v4742 = vunpack.c.l.b16 %v4698
      %v4743 = vunpack.c.l.b16 %v4699
      %v4744 = vunpack.c.l.b16 %v4700
      %v4745 = vunpack.c.l.b16 %v4701
      %v4746 = vunpack.c.l.b16 %v4702
      %v4747 = vunpack.c.l.b16 %v4703
      %v4748 = vunpack.c.l.b16 %v4704
      %v4749 = vunpack.c.l.b16 %v4705
      %v4750 = vpack.c.b16 %v4735, %v4734
      %v4751 = vpack.c.b16 %v4737, %v4736
      %v4752 = vpack.c.b16 %v4739, %v4738
      %v4753 = vpack.c.b16 %v4741, %v4740
      %v4754 = vpack.c.b16 %v4743, %v4742
      %v4755 = vpack.c.b16 %v4745, %v4744
      %v4756 = vpack.c.b16 %v4747, %v4746
      %v4757 = vpack.c.b16 %v4749, %v4748
      %4766 = vmatprep.subr.bf16.mxu0 0
      %4767 = vmatpush1.bf16.msra.mxu0 %v4750
      %4768 = vmatprep.subr.bf16.mxu0 0
      %4769 = vmatpush1.bf16.msra.mxu0 %v4751
      %4770 = vmatprep.subr.bf16.mxu0 0
      %4771 = vmatpush1.bf16.msra.mxu0 %v4752
      %4772 = vmatprep.subr.bf16.mxu0 0
      %4773 = vmatpush1.bf16.msra.mxu0 %v4753
      %4774 = vmatprep.subr.bf16.mxu0 0
      %4775 = vmatpush1.bf16.msra.mxu0 %v4754
      %4776 = vmatprep.subr.bf16.mxu0 0
      %4777 = vmatpush1.bf16.msra.mxu0 %v4755
      %4778 = vmatprep.subr.bf16.mxu0 0
      %4779 = vmatpush1.bf16.msra.mxu0 %v4756
      %4780 = vmatprep.subr.bf16.mxu0 0
      %4781 = vmatpush1.bf16.msra.mxu0 %v4757
      %4782 = vmatprep.subr.bf16.mxu0 0
      %4783 = vmatpush1.bf16.msra.mxu0 0
      %4784 = vmatprep.subr.bf16.mxu0 0
      %4785 = vmatpush1.bf16.msra.mxu0 0
      %4786 = vmatprep.subr.bf16.mxu0 0
      %4787 = vmatpush1.bf16.msra.mxu0 0
      %4788 = vmatprep.subr.bf16.mxu0 0
      %4789 = vmatpush1.bf16.msra.mxu0 0
      %4790 = vmatprep.subr.bf16.mxu0 0
      %4791 = vmatpush1.bf16.msra.mxu0 0
      %4792 = vmatprep.subr.bf16.mxu0 0
      %4793 = vmatpush1.bf16.msra.mxu0 0
      %4794 = vmatprep.subr.bf16.mxu0 0
      %4795 = vmatpush1.bf16.msra.mxu0 0
      %4796 = vmatprep.subr.bf16.mxu0 0
      %4797 = vmatpush1.bf16.msra.mxu0 0
      %4798 = vmatprep.mubr.bf16.mxu0 0
      %4799 = vmatmul.mubr.bf16.gmra.mrb[0].mxu0 %v4714
      %v4800 = vpop.f32.mrb[0].mxu0
      %v4801 = vadd.f32 0.0, %v4800
      %v4802 = vpop.f32.mrb[0].mxu0
      %v4803 = vpop.f32.mrb[0].mxu0
      %v4804 = vadd.f32 0.0, %v4803
      %v4805 = vpop.f32.mrb[0].mxu0
      %4806 = vmatprep.mubr.bf16.mxu0 0
      %4807 = vmatmul.mubr.bf16.gmra.mrb[0].mxu0 %v4715
      %v4808 = vpop.f32.mrb[0].mxu0
      %v4809 = vadd.f32 0.0, %v4808
      %v4810 = vpop.f32.mrb[0].mxu0
      %v4811 = vpop.f32.mrb[0].mxu0
      %v4812 = vadd.f32 0.0, %v4811
      %v4813 = vpop.f32.mrb[0].mxu0
      %4814 = vdwg.mxu0
      %v4815 = vadd.f32 %v4681, %v4801
      %v4816 = vadd.f32 %v4682, %v4804
      %v4817 = vadd.f32 %v4683, %v4809
      %v4818 = vadd.f32 %v4684, %v4812
      %s4819 = scalar_lea.vmem %s7, 256
      %v4820 = vld [vmem:[%s4819] sm:$0xf]
      %v4821 = vld [vmem:[%s4819 + $0x4] sm:$0xf]
      %v4822 = vld [vmem:[%s4819 + $0x8] sm:$0xf]
      %v4823 = vld [vmem:[%s4819 + $0xc] sm:$0xf]
      %v4824 = vld [vmem:[%s4819 + $0x10] sm:$0xf]
      %v4825 = vld [vmem:[%s4819 + $0x14] sm:$0xf]
      %v4826 = vld [vmem:[%s4819 + $0x18] sm:$0xf]
      %v4827 = vld [vmem:[%s4819 + $0x1c] sm:$0xf]
      %v4828 = vld [vmem:[%s4819 + $0x20] sm:$0xf]
      %v4829 = vld [vmem:[%s4819 + $0x24] sm:$0xf]
      %v4830 = vld [vmem:[%s4819 + $0x28] sm:$0xf]
      %v4831 = vld [vmem:[%s4819 + $0x2c] sm:$0xf]
      %v4832 = vld [vmem:[%s4819 + $0x30] sm:$0xf]
      %v4833 = vld [vmem:[%s4819 + $0x34] sm:$0xf]
      %v4834 = vld [vmem:[%s4819 + $0x38] sm:$0xf]
      %v4835 = vld [vmem:[%s4819 + $0x3c] sm:$0xf]
      %v4852 = vunpack.c.l.b16 %v4820
      %v4853 = vunpack.c.l.b16 %v4821
      %v4854 = vunpack.c.l.b16 %v4822
      %v4855 = vunpack.c.l.b16 %v4823
      %v4856 = vunpack.c.l.b16 %v4824
      %v4857 = vunpack.c.l.b16 %v4825
      %v4858 = vunpack.c.l.b16 %v4826
      %v4859 = vunpack.c.l.b16 %v4827
      %v4860 = vunpack.c.l.b16 %v4828
      %v4861 = vunpack.c.l.b16 %v4829
      %v4862 = vunpack.c.l.b16 %v4830
      %v4863 = vunpack.c.l.b16 %v4831
      %v4864 = vunpack.c.l.b16 %v4832
      %v4865 = vunpack.c.l.b16 %v4833
      %v4866 = vunpack.c.l.b16 %v4834
      %v4867 = vunpack.c.l.b16 %v4835
      %v4868 = vpack.c.b16 %v4853, %v4852
      %v4869 = vpack.c.b16 %v4855, %v4854
      %v4870 = vpack.c.b16 %v4857, %v4856
      %v4871 = vpack.c.b16 %v4859, %v4858
      %v4872 = vpack.c.b16 %v4861, %v4860
      %v4873 = vpack.c.b16 %v4863, %v4862
      %v4874 = vpack.c.b16 %v4865, %v4864
      %v4875 = vpack.c.b16 %v4867, %v4866
      %4884 = vmatprep.subr.bf16.mxu0 0
      %4885 = vmatpush1.bf16.msra.mxu0 %v4868
      %4886 = vmatprep.subr.bf16.mxu0 0
      %4887 = vmatpush1.bf16.msra.mxu0 %v4869
      %4888 = vmatprep.subr.bf16.mxu0 0
      %4889 = vmatpush1.bf16.msra.mxu0 %v4870
      %4890 = vmatprep.subr.bf16.mxu0 0
      %4891 = vmatpush1.bf16.msra.mxu0 %v4871
      %4892 = vmatprep.subr.bf16.mxu0 0
      %4893 = vmatpush1.bf16.msra.mxu0 %v4872
      %4894 = vmatprep.subr.bf16.mxu0 0
      %4895 = vmatpush1.bf16.msra.mxu0 %v4873
      %4896 = vmatprep.subr.bf16.mxu0 0
      %4897 = vmatpush1.bf16.msra.mxu0 %v4874
      %4898 = vmatprep.subr.bf16.mxu0 0
      %4899 = vmatpush1.bf16.msra.mxu0 %v4875
      %4900 = vmatprep.subr.bf16.mxu0 0
      %4901 = vmatpush1.bf16.msra.mxu0 0
      %4902 = vmatprep.subr.bf16.mxu0 0
      %4903 = vmatpush1.bf16.msra.mxu0 0
      %4904 = vmatprep.subr.bf16.mxu0 0
      %4905 = vmatpush1.bf16.msra.mxu0 0
      %4906 = vmatprep.subr.bf16.mxu0 0
      %4907 = vmatpush1.bf16.msra.mxu0 0
      %4908 = vmatprep.subr.bf16.mxu0 0
      %4909 = vmatpush1.bf16.msra.mxu0 0
      %4910 = vmatprep.subr.bf16.mxu0 0
      %4911 = vmatpush1.bf16.msra.mxu0 0
      %4912 = vmatprep.subr.bf16.mxu0 0
      %4913 = vmatpush1.bf16.msra.mxu0 0
      %4914 = vmatprep.subr.bf16.mxu0 0
      %4915 = vmatpush1.bf16.msra.mxu0 0
      %4916 = vmatprep.mubr.bf16.mxu0 0
      %4917 = vmatmul.mubr.bf16.gmra.mrb[0].mxu0 %v4714
      %v4918 = vpop.f32.mrb[0].mxu0
      %v4919 = vadd.f32 0.0, %v4918
      %v4920 = vpop.f32.mrb[0].mxu0
      %v4921 = vpop.f32.mrb[0].mxu0
      %v4922 = vadd.f32 0.0, %v4921
      %v4923 = vpop.f32.mrb[0].mxu0
      %4924 = vmatprep.mubr.bf16.mxu0 0
      %4925 = vmatmul.mubr.bf16.gmra.mrb[0].mxu0 %v4715
      %v4926 = vpop.f32.mrb[0].mxu0
      %v4927 = vadd.f32 0.0, %v4926
      %v4928 = vpop.f32.mrb[0].mxu0
      %v4929 = vpop.f32.mrb[0].mxu0
      %v4930 = vadd.f32 0.0, %v4929
      %v4931 = vpop.f32.mrb[0].mxu0
      %4932 = vdwg.mxu0
      %v4937 = vrot.slane %v4919, 1
      %v4938 = vrot.slane %v4922, 1
      %v4939 = vrot.slane %v4927, 1
      %v4940 = vrot.slane %v4930, 1
      %v4945 = vadd.f32 %v4815, %v4937
      %v4946 = vadd.f32 %v4816, %v4938
      %v4947 = vadd.f32 %v4817, %v4939
      %v4948 = vadd.f32 %v4818, %v4940
      %s4949 = scalar_lea.vmem %s7, 320
      %v4950 = vld [vmem:[%s4949] sm:$0xf]
      %v4951 = vld [vmem:[%s4949 + $0x4] sm:$0xf]
      %v4952 = vld [vmem:[%s4949 + $0x8] sm:$0xf]
      %v4953 = vld [vmem:[%s4949 + $0xc] sm:$0xf]
      %v4954 = vld [vmem:[%s4949 + $0x10] sm:$0xf]
      %v4955 = vld [vmem:[%s4949 + $0x14] sm:$0xf]
      %v4956 = vld [vmem:[%s4949 + $0x18] sm:$0xf]
      %v4957 = vld [vmem:[%s4949 + $0x1c] sm:$0xf]
      %v4958 = vld [vmem:[%s4949 + $0x20] sm:$0xf]
      %v4959 = vld [vmem:[%s4949 + $0x24] sm:$0xf]
      %v4960 = vld [vmem:[%s4949 + $0x28] sm:$0xf]
      %v4961 = vld [vmem:[%s4949 + $0x2c] sm:$0xf]
      %v4962 = vld [vmem:[%s4949 + $0x30] sm:$0xf]
      %v4963 = vld [vmem:[%s4949 + $0x34] sm:$0xf]
      %v4964 = vld [vmem:[%s4949 + $0x38] sm:$0xf]
      %v4965 = vld [vmem:[%s4949 + $0x3c] sm:$0xf]
      %v4982 = vunpack.c.l.b16 %v4950
      %v4983 = vunpack.c.l.b16 %v4951
      %v4984 = vunpack.c.l.b16 %v4952
      %v4985 = vunpack.c.l.b16 %v4953
      %v4986 = vunpack.c.l.b16 %v4954
      %v4987 = vunpack.c.l.b16 %v4955
      %v4988 = vunpack.c.l.b16 %v4956
      %v4989 = vunpack.c.l.b16 %v4957
      %v4990 = vunpack.c.l.b16 %v4958
      %v4991 = vunpack.c.l.b16 %v4959
      %v4992 = vunpack.c.l.b16 %v4960
      %v4993 = vunpack.c.l.b16 %v4961
      %v4994 = vunpack.c.l.b16 %v4962
      %v4995 = vunpack.c.l.b16 %v4963
      %v4996 = vunpack.c.l.b16 %v4964
      %v4997 = vunpack.c.l.b16 %v4965
      %v4998 = vpack.c.b16 %v4983, %v4982
      %v4999 = vpack.c.b16 %v4985, %v4984
      %v5000 = vpack.c.b16 %v4987, %v4986
      %v5001 = vpack.c.b16 %v4989, %v4988
      %v5002 = vpack.c.b16 %v4991, %v4990
      %v5003 = vpack.c.b16 %v4993, %v4992
      %v5004 = vpack.c.b16 %v4995, %v4994
      %v5005 = vpack.c.b16 %v4997, %v4996
      %5014 = vmatprep.subr.bf16.mxu0 0
      %5015 = vmatpush1.bf16.msra.mxu0 %v4998
      %5016 = vmatprep.subr.bf16.mxu0 0
      %5017 = vmatpush1.bf16.msra.mxu0 %v4999
      %5018 = vmatprep.subr.bf16.mxu0 0
      %5019 = vmatpush1.bf16.msra.mxu0 %v5000
      %5020 = vmatprep.subr.bf16.mxu0 0
      %5021 = vmatpush1.bf16.msra.mxu0 %v5001
      %5022 = vmatprep.subr.bf16.mxu0 0
      %5023 = vmatpush1.bf16.msra.mxu0 %v5002
      %5024 = vmatprep.subr.bf16.mxu0 0
      %5025 = vmatpush1.bf16.msra.mxu0 %v5003
      %5026 = vmatprep.subr.bf16.mxu0 0
      %5027 = vmatpush1.bf16.msra.mxu0 %v5004
      %5028 = vmatprep.subr.bf16.mxu0 0
      %5029 = vmatpush1.bf16.msra.mxu0 %v5005
      %5030 = vmatprep.subr.bf16.mxu0 0
      %5031 = vmatpush1.bf16.msra.mxu0 0
      %5032 = vmatprep.subr.bf16.mxu0 0
      %5033 = vmatpush1.bf16.msra.mxu0 0
      %5034 = vmatprep.subr.bf16.mxu0 0
      %5035 = vmatpush1.bf16.msra.mxu0 0
      %5036 = vmatprep.subr.bf16.mxu0 0
      %5037 = vmatpush1.bf16.msra.mxu0 0
      %5038 = vmatprep.subr.bf16.mxu0 0
      %5039 = vmatpush1.bf16.msra.mxu0 0
      %5040 = vmatprep.subr.bf16.mxu0 0
      %5041 = vmatpush1.bf16.msra.mxu0 0
      %5042 = vmatprep.subr.bf16.mxu0 0
      %5043 = vmatpush1.bf16.msra.mxu0 0
      %5044 = vmatprep.subr.bf16.mxu0 0
      %5045 = vmatpush1.bf16.msra.mxu0 0
      %5046 = vmatprep.mubr.bf16.mxu0 0
      %5047 = vmatmul.mubr.bf16.gmra.mrb[0].mxu0 %v4714
      %v5048 = vpop.f32.mrb[0].mxu0
      %v5049 = vadd.f32 0.0, %v5048
      %v5050 = vpop.f32.mrb[0].mxu0
      %v5051 = vpop.f32.mrb[0].mxu0
      %v5052 = vadd.f32 0.0, %v5051
      %v5053 = vpop.f32.mrb[0].mxu0
      %5054 = vmatprep.mubr.bf16.mxu0 0
      %5055 = vmatmul.mubr.bf16.gmra.mrb[0].mxu0 %v4715
      %v5056 = vpop.f32.mrb[0].mxu0
      %v5057 = vadd.f32 0.0, %v5056
      %v5058 = vpop.f32.mrb[0].mxu0
      %v5059 = vpop.f32.mrb[0].mxu0
      %v5060 = vadd.f32 0.0, %v5059
      %v5061 = vpop.f32.mrb[0].mxu0
      %5062 = vdwg.mxu0
      %v5067 = vrot.slane %v5049, 2
      %v5068 = vrot.slane %v5052, 2
      %v5069 = vrot.slane %v5057, 2
      %v5070 = vrot.slane %v5060, 2
      %v5075 = vadd.f32 %v4945, %v5067
      %v5076 = vadd.f32 %v4946, %v5068
      %v5077 = vadd.f32 %v4947, %v5069
      %v5078 = vadd.f32 %v4948, %v5070
      %s5079 = scalar_lea.vmem [#allocation4], 8
      %v5080 = vld [vmem:[%s5079] sm:$0xf]
      %v5081 = vld [vmem:[%s5079 + $0x4] sm:$0xf]
      %v5082 = vld [vmem:[%s5079 + $0x8] sm:$0xf]
      %v5083 = vld [vmem:[%s5079 + $0xc] sm:$0xf]
      %s5084 = scalar_lea.vmem %s7, 384
      %v5085 = vld [vmem:[%s5084] sm:$0xf]
      %v5086 = vld [vmem:[%s5084 + $0x4] sm:$0xf]
      %v5087 = vld [vmem:[%s5084 + $0x8] sm:$0xf]
      %v5088 = vld [vmem:[%s5084 + $0xc] sm:$0xf]
      %v5089 = vld [vmem:[%s5084 + $0x10] sm:$0xf]
      %v5090 = vld [vmem:[%s5084 + $0x14] sm:$0xf]
      %v5091 = vld [vmem:[%s5084 + $0x18] sm:$0xf]
      %v5092 = vld [vmem:[%s5084 + $0x1c] sm:$0xf]
      %v5093 = vld [vmem:[%s5084 + $0x20] sm:$0xf]
      %v5094 = vld [vmem:[%s5084 + $0x24] sm:$0xf]
      %v5095 = vld [vmem:[%s5084 + $0x28] sm:$0xf]
      %v5096 = vld [vmem:[%s5084 + $0x2c] sm:$0xf]
      %v5097 = vld [vmem:[%s5084 + $0x30] sm:$0xf]
      %v5098 = vld [vmem:[%s5084 + $0x34] sm:$0xf]
      %v5099 = vld [vmem:[%s5084 + $0x38] sm:$0xf]
      %v5100 = vld [vmem:[%s5084 + $0x3c] sm:$0xf]
      %v5105 = vunpack.c.l.b16 %v5080
      %v5106 = vunpack.c.l.b16 %v5081
      %v5107 = vunpack.c.l.b16 %v5082
      %v5108 = vunpack.c.l.b16 %v5083
      %v5109 = vpack.c.b16 %v5106, %v5105
      %v5110 = vpack.c.b16 %v5108, %v5107
      %v5129 = vunpack.c.l.b16 %v5085
      %v5130 = vunpack.c.l.b16 %v5086
      %v5131 = vunpack.c.l.b16 %v5087
      %v5132 = vunpack.c.l.b16 %v5088
      %v5133 = vunpack.c.l.b16 %v5089
      %v5134 = vunpack.c.l.b16 %v5090
      %v5135 = vunpack.c.l.b16 %v5091
      %v5136 = vunpack.c.l.b16 %v5092
      %v5137 = vunpack.c.l.b16 %v5093
      %v5138 = vunpack.c.l.b16 %v5094
      %v5139 = vunpack.c.l.b16 %v5095
      %v5140 = vunpack.c.l.b16 %v5096
      %v5141 = vunpack.c.l.b16 %v5097
      %v5142 = vunpack.c.l.b16 %v5098
      %v5143 = vunpack.c.l.b16 %v5099
      %v5144 = vunpack.c.l.b16 %v5100
      %v5145 = vpack.c.b16 %v5130, %v5129
      %v5146 = vpack.c.b16 %v5132, %v5131
      %v5147 = vpack.c.b16 %v5134, %v5133
      %v5148 = vpack.c.b16 %v5136, %v5135
      %v5149 = vpack.c.b16 %v5138, %v5137
      %v5150 = vpack.c.b16 %v5140, %v5139
      %v5151 = vpack.c.b16 %v5142, %v5141
      %v5152 = vpack.c.b16 %v5144, %v5143
      %5161 = vmatprep.subr.bf16.mxu0 0
      %5162 = vmatpush1.bf16.msra.mxu0 %v5145
      %5163 = vmatprep.subr.bf16.mxu0 0
      %5164 = vmatpush1.bf16.msra.mxu0 %v5146
      %5165 = vmatprep.subr.bf16.mxu0 0
      %5166 = vmatpush1.bf16.msra.mxu0 %v5147
      %5167 = vmatprep.subr.bf16.mxu0 0
      %5168 = vmatpush1.bf16.msra.mxu0 %v5148
      %5169 = vmatprep.subr.bf16.mxu0 0
      %5170 = vmatpush1.bf16.msra.mxu0 %v5149
      %5171 = vmatprep.subr.bf16.mxu0 0
      %5172 = vmatpush1.bf16.msra.mxu0 %v5150
      %5173 = vmatprep.subr.bf16.mxu0 0
      %5174 = vmatpush1.bf16.msra.mxu0 %v5151
      %5175 = vmatprep.subr.bf16.mxu0 0
      %5176 = vmatpush1.bf16.msra.mxu0 %v5152
      %5177 = vmatprep.subr.bf16.mxu0 0
      %5178 = vmatpush1.bf16.msra.mxu0 0
      %5179 = vmatprep.subr.bf16.mxu0 0
      %5180 = vmatpush1.bf16.msra.mxu0 0
      %5181 = vmatprep.subr.bf16.mxu0 0
      %5182 = vmatpush1.bf16.msra.mxu0 0
      %5183 = vmatprep.subr.bf16.mxu0 0
      %5184 = vmatpush1.bf16.msra.mxu0 0
      %5185 = vmatprep.subr.bf16.mxu0 0
      %5186 = vmatpush1.bf16.msra.mxu0 0
      %5187 = vmatprep.subr.bf16.mxu0 0
      %5188 = vmatpush1.bf16.msra.mxu0 0
      %5189 = vmatprep.subr.bf16.mxu0 0
      %5190 = vmatpush1.bf16.msra.mxu0 0
      %5191 = vmatprep.subr.bf16.mxu0 0
      %5192 = vmatpush1.bf16.msra.mxu0 0
      %5193 = vmatprep.mubr.bf16.mxu0 0
      %5194 = vmatmul.mubr.bf16.gmra.mrb[0].mxu0 %v5109
      %v5195 = vpop.f32.mrb[0].mxu0
      %v5196 = vadd.f32 0.0, %v5195
      %v5197 = vpop.f32.mrb[0].mxu0
      %v5198 = vpop.f32.mrb[0].mxu0
      %v5199 = vadd.f32 0.0, %v5198
      %v5200 = vpop.f32.mrb[0].mxu0
      %5201 = vmatprep.mubr.bf16.mxu0 0
      %5202 = vmatmul.mubr.bf16.gmra.mrb[0].mxu0 %v5110
      %v5203 = vpop.f32.mrb[0].mxu0
      %v5204 = vadd.f32 0.0, %v5203
      %v5205 = vpop.f32.mrb[0].mxu0
      %v5206 = vpop.f32.mrb[0].mxu0
      %v5207 = vadd.f32 0.0, %v5206
      %v5208 = vpop.f32.mrb[0].mxu0
      %5209 = vdwg.mxu0
      %v5210 = vadd.f32 %v5075, %v5196
      %v5211 = vadd.f32 %v5076, %v5199
      %v5212 = vadd.f32 %v5077, %v5204
      %v5213 = vadd.f32 %v5078, %v5207
      %s5214 = scalar_lea.vmem %s7, 448
      %v5215 = vld [vmem:[%s5214] sm:$0xf]
      %v5216 = vld [vmem:[%s5214 + $0x4] sm:$0xf]
      %v5217 = vld [vmem:[%s5214 + $0x8] sm:$0xf]
      %v5218 = vld [vmem:[%s5214 + $0xc] sm:$0xf]
      %v5219 = vld [vmem:[%s5214 + $0x10] sm:$0xf]
      %v5220 = vld [vmem:[%s5214 + $0x14] sm:$0xf]
      %v5221 = vld [vmem:[%s5214 + $0x18] sm:$0xf]
      %v5222 = vld [vmem:[%s5214 + $0x1c] sm:$0xf]
      %v5223 = vld [vmem:[%s5214 + $0x20] sm:$0xf]
      %v5224 = vld [vmem:[%s5214 + $0x24] sm:$0xf]
      %v5225 = vld [vmem:[%s5214 + $0x28] sm:$0xf]
      %v5226 = vld [vmem:[%s5214 + $0x2c] sm:$0xf]
      %v5227 = vld [vmem:[%s5214 + $0x30] sm:$0xf]
      %v5228 = vld [vmem:[%s5214 + $0x34] sm:$0xf]
      %v5229 = vld [vmem:[%s5214 + $0x38] sm:$0xf]
      %v5230 = vld [vmem:[%s5214 + $0x3c] sm:$0xf]
      %v5247 = vunpack.c.l.b16 %v5215
      %v5248 = vunpack.c.l.b16 %v5216
      %v5249 = vunpack.c.l.b16 %v5217
      %v5250 = vunpack.c.l.b16 %v5218
      %v5251 = vunpack.c.l.b16 %v5219
      %v5252 = vunpack.c.l.b16 %v5220
      %v5253 = vunpack.c.l.b16 %v5221
      %v5254 = vunpack.c.l.b16 %v5222
      %v5255 = vunpack.c.l.b16 %v5223
      %v5256 = vunpack.c.l.b16 %v5224
      %v5257 = vunpack.c.l.b16 %v5225
      %v5258 = vunpack.c.l.b16 %v5226
      %v5259 = vunpack.c.l.b16 %v5227
      %v5260 = vunpack.c.l.b16 %v5228
      %v5261 = vunpack.c.l.b16 %v5229
      %v5262 = vunpack.c.l.b16 %v5230
      %v5263 = vpack.c.b16 %v5248, %v5247
      %v5264 = vpack.c.b16 %v5250, %v5249
      %v5265 = vpack.c.b16 %v5252, %v5251
      %v5266 = vpack.c.b16 %v5254, %v5253
      %v5267 = vpack.c.b16 %v5256, %v5255
      %v5268 = vpack.c.b16 %v5258, %v5257
      %v5269 = vpack.c.b16 %v5260, %v5259
      %v5270 = vpack.c.b16 %v5262, %v5261
      %5279 = vmatprep.subr.bf16.mxu0 0
      %5280 = vmatpush1.bf16.msra.mxu0 %v5263
      %5281 = vmatprep.subr.bf16.mxu0 0
      %5282 = vmatpush1.bf16.msra.mxu0 %v5264
      %5283 = vmatprep.subr.bf16.mxu0 0
      %5284 = vmatpush1.bf16.msra.mxu0 %v5265
      %5285 = vmatprep.subr.bf16.mxu0 0
      %5286 = vmatpush1.bf16.msra.mxu0 %v5266
      %5287 = vmatprep.subr.bf16.mxu0 0
      %5288 = vmatpush1.bf16.msra.mxu0 %v5267
      %5289 = vmatprep.subr.bf16.mxu0 0
      %5290 = vmatpush1.bf16.msra.mxu0 %v5268
      %5291 = vmatprep.subr.bf16.mxu0 0
      %5292 = vmatpush1.bf16.msra.mxu0 %v5269
      %5293 = vmatprep.subr.bf16.mxu0 0
      %5294 = vmatpush1.bf16.msra.mxu0 %v5270
      %5295 = vmatprep.subr.bf16.mxu0 0
      %5296 = vmatpush1.bf16.msra.mxu0 0
      %5297 = vmatprep.subr.bf16.mxu0 0
      %5298 = vmatpush1.bf16.msra.mxu0 0
      %5299 = vmatprep.subr.bf16.mxu0 0
      %5300 = vmatpush1.bf16.msra.mxu0 0
      %5301 = vmatprep.subr.bf16.mxu0 0
      %5302 = vmatpush1.bf16.msra.mxu0 0
      %5303 = vmatprep.subr.bf16.mxu0 0
      %5304 = vmatpush1.bf16.msra.mxu0 0
      %5305 = vmatprep.subr.bf16.mxu0 0
      %5306 = vmatpush1.bf16.msra.mxu0 0
      %5307 = vmatprep.subr.bf16.mxu0 0
      %5308 = vmatpush1.bf16.msra.mxu0 0
      %5309 = vmatprep.subr.bf16.mxu0 0
      %5310 = vmatpush1.bf16.msra.mxu0 0
      %5311 = vmatprep.mubr.bf16.mxu0 0
      %5312 = vmatmul.mubr.bf16.gmra.mrb[0].mxu0 %v5109
      %v5313 = vpop.f32.mrb[0].mxu0
      %v5314 = vadd.f32 0.0, %v5313
      %v5315 = vpop.f32.mrb[0].mxu0
      %v5316 = vpop.f32.mrb[0].mxu0
      %v5317 = vadd.f32 0.0, %v5316
      %v5318 = vpop.f32.mrb[0].mxu0
      %5319 = vmatprep.mubr.bf16.mxu0 0
      %5320 = vmatmul.mubr.bf16.gmra.mrb[0].mxu0 %v5110
      %v5321 = vpop.f32.mrb[0].mxu0
      %v5322 = vadd.f32 0.0, %v5321
      %v5323 = vpop.f32.mrb[0].mxu0
      %v5324 = vpop.f32.mrb[0].mxu0
      %v5325 = vadd.f32 0.0, %v5324
      %v5326 = vpop.f32.mrb[0].mxu0
      %5327 = vdwg.mxu0
      %v5332 = vrot.slane %v5314, 1
      %v5333 = vrot.slane %v5317, 1
      %v5334 = vrot.slane %v5322, 1
      %v5335 = vrot.slane %v5325, 1
      %v5340 = vadd.f32 %v5210, %v5332
      %v5341 = vadd.f32 %v5211, %v5333
      %v5342 = vadd.f32 %v5212, %v5334
      %v5343 = vadd.f32 %v5213, %v5335
      %s5344 = scalar_lea.vmem %s7, 512
      %v5345 = vld [vmem:[%s5344] sm:$0xf]
      %v5346 = vld [vmem:[%s5344 + $0x4] sm:$0xf]
      %v5347 = vld [vmem:[%s5344 + $0x8] sm:$0xf]
      %v5348 = vld [vmem:[%s5344 + $0xc] sm:$0xf]
      %v5349 = vld [vmem:[%s5344 + $0x10] sm:$0xf]
      %v5350 = vld [vmem:[%s5344 + $0x14] sm:$0xf]
      %v5351 = vld [vmem:[%s5344 + $0x18] sm:$0xf]
      %v5352 = vld [vmem:[%s5344 + $0x1c] sm:$0xf]
      %v5353 = vld [vmem:[%s5344 + $0x20] sm:$0xf]
      %v5354 = vld [vmem:[%s5344 + $0x24] sm:$0xf]
      %v5355 = vld [vmem:[%s5344 + $0x28] sm:$0xf]
      %v5356 = vld [vmem:[%s5344 + $0x2c] sm:$0xf]
      %v5357 = vld [vmem:[%s5344 + $0x30] sm:$0xf]
      %v5358 = vld [vmem:[%s5344 + $0x34] sm:$0xf]
      %v5359 = vld [vmem:[%s5344 + $0x38] sm:$0xf]
      %v5360 = vld [vmem:[%s5344 + $0x3c] sm:$0xf]
      %v5377 = vunpack.c.l.b16 %v5345
      %v5378 = vunpack.c.l.b16 %v5346
      %v5379 = vunpack.c.l.b16 %v5347
      %v5380 = vunpack.c.l.b16 %v5348
      %v5381 = vunpack.c.l.b16 %v5349
      %v5382 = vunpack.c.l.b16 %v5350
      %v5383 = vunpack.c.l.b16 %v5351
      %v5384 = vunpack.c.l.b16 %v5352
      %v5385 = vunpack.c.l.b16 %v5353
      %v5386 = vunpack.c.l.b16 %v5354
      %v5387 = vunpack.c.l.b16 %v5355
      %v5388 = vunpack.c.l.b16 %v5356
      %v5389 = vunpack.c.l.b16 %v5357
      %v5390 = vunpack.c.l.b16 %v5358
      %v5391 = vunpack.c.l.b16 %v5359
      %v5392 = vunpack.c.l.b16 %v5360
      %v5393 = vpack.c.b16 %v5378, %v5377
      %v5394 = vpack.c.b16 %v5380, %v5379
      %v5395 = vpack.c.b16 %v5382, %v5381
      %v5396 = vpack.c.b16 %v5384, %v5383
      %v5397 = vpack.c.b16 %v5386, %v5385
      %v5398 = vpack.c.b16 %v5388, %v5387
      %v5399 = vpack.c.b16 %v5390, %v5389
      %v5400 = vpack.c.b16 %v5392, %v5391
      %5409 = vmatprep.subr.bf16.mxu0 0
      %5410 = vmatpush1.bf16.msra.mxu0 %v5393
      %5411 = vmatprep.subr.bf16.mxu0 0
      %5412 = vmatpush1.bf16.msra.mxu0 %v5394
      %5413 = vmatprep.subr.bf16.mxu0 0
      %5414 = vmatpush1.bf16.msra.mxu0 %v5395
      %5415 = vmatprep.subr.bf16.mxu0 0
      %5416 = vmatpush1.bf16.msra.mxu0 %v5396
      %5417 = vmatprep.subr.bf16.mxu0 0
      %5418 = vmatpush1.bf16.msra.mxu0 %v5397
      %5419 = vmatprep.subr.bf16.mxu0 0
      %5420 = vmatpush1.bf16.msra.mxu0 %v5398
      %5421 = vmatprep.subr.bf16.mxu0 0
      %5422 = vmatpush1.bf16.msra.mxu0 %v5399
      %5423 = vmatprep.subr.bf16.mxu0 0
      %5424 = vmatpush1.bf16.msra.mxu0 %v5400
      %5425 = vmatprep.subr.bf16.mxu0 0
      %5426 = vmatpush1.bf16.msra.mxu0 0
      %5427 = vmatprep.subr.bf16.mxu0 0
      %5428 = vmatpush1.bf16.msra.mxu0 0
      %5429 = vmatprep.subr.bf16.mxu0 0
      %5430 = vmatpush1.bf16.msra.mxu0 0
      %5431 = vmatprep.subr.bf16.mxu0 0
      %5432 = vmatpush1.bf16.msra.mxu0 0
      %5433 = vmatprep.subr.bf16.mxu0 0
      %5434 = vmatpush1.bf16.msra.mxu0 0
      %5435 = vmatprep.subr.bf16.mxu0 0
      %5436 = vmatpush1.bf16.msra.mxu0 0
      %5437 = vmatprep.subr.bf16.mxu0 0
      %5438 = vmatpush1.bf16.msra.mxu0 0
      %5439 = vmatprep.subr.bf16.mxu0 0
      %5440 = vmatpush1.bf16.msra.mxu0 0
      %5441 = vmatprep.mubr.bf16.mxu0 0
      %5442 = vmatmul.mubr.bf16.gmra.mrb[0].mxu0 %v5109
      %v5443 = vpop.f32.mrb[0].mxu0
      %v5444 = vadd.f32 0.0, %v5443
      %v5445 = vpop.f32.mrb[0].mxu0
      %v5446 = vpop.f32.mrb[0].mxu0
      %v5447 = vadd.f32 0.0, %v5446
      %v5448 = vpop.f32.mrb[0].mxu0
      %5449 = vmatprep.mubr.bf16.mxu0 0
      %5450 = vmatmul.mubr.bf16.gmra.mrb[0].mxu0 %v5110
      %v5451 = vpop.f32.mrb[0].mxu0
      %v5452 = vadd.f32 0.0, %v5451
      %v5453 = vpop.f32.mrb[0].mxu0
      %v5454 = vpop.f32.mrb[0].mxu0
      %v5455 = vadd.f32 0.0, %v5454
      %v5456 = vpop.f32.mrb[0].mxu0
      %5457 = vdwg.mxu0
      %v5462 = vrot.slane %v5444, 2
      %v5463 = vrot.slane %v5447, 2
      %v5464 = vrot.slane %v5452, 2
      %v5465 = vrot.slane %v5455, 2
      %v5470 = vadd.f32 %v5340, %v5462
      %v5471 = vadd.f32 %v5341, %v5463
      %v5472 = vadd.f32 %v5342, %v5464
      %v5473 = vadd.f32 %v5343, %v5465
      %v5474 = vld [vmem:[%s8] sm:$0x1]
      %v5476 = vlaneseq
      %v5477 = vshrl.u32 %v5476, 7
      %v5478 = vsub.s32 0, %v5477
      %v5479 = vrot.slane %v5474, %v5478
      %v5481 = vadd.f32 %v5470, %v5479
      %v5482 = vadd.f32 %v5471, %v5479
      %v5483 = vadd.f32 %v5472, %v5479
      %v5484 = vadd.f32 %v5473, %v5479
      %v5485 = vmax.f32 %v5481, 0.0
      %v5486 = vmax.f32 %v5482, 0.0
      %v5487 = vmax.f32 %v5483, 0.0
      %v5488 = vmax.f32 %v5484, 0.0
      %v5489 = vpack.c.bf16 %v5485, %v5485
      %v5490 = vpack.c.bf16 %v5486, %v5486
      %v5491 = vpack.c.bf16 %v5487, %v5487
      %v5492 = vpack.c.bf16 %v5488, %v5488
      %v5497 = vunpack.c.l.b16 %v5489
      %v5498 = vunpack.c.l.b16 %v5490
      %v5499 = vunpack.c.l.b16 %v5491
      %v5500 = vunpack.c.l.b16 %v5492
      %v5501 = vpack.c.b16 %v5497, %v5497
      %v5502 = vpack.c.b16 %v5498, %v5498
      %v5503 = vpack.c.b16 %v5499, %v5499
      %v5504 = vpack.c.b16 %v5500, %v5500
      %v5506 = vshrl.u32 %v5501, 16
      %v5508 = vrot.slane %v5506, 7
      %v5509 = vshll.u32 %v5501, 16
      %v5511 = vor.u32 %v5508, %v5509
      %v5513 = vshrl.u32 %v5502, 16
      %v5515 = vrot.slane %v5513, 7
      %v5516 = vshll.u32 %v5502, 16
      %v5518 = vor.u32 %v5515, %v5516
      %v5520 = vshrl.u32 %v5503, 16
      %v5522 = vrot.slane %v5520, 7
      %v5523 = vshll.u32 %v5503, 16
      %v5525 = vor.u32 %v5522, %v5523
      %v5527 = vshrl.u32 %v5504, 16
      %v5529 = vrot.slane %v5527, 7
      %v5530 = vshll.u32 %v5504, 16
      %v5532 = vor.u32 %v5529, %v5530
      %5537 = vst [vmem:[%s3045] sm:$0x6] %v5511
      %5538 = vst [vmem:[%s3045 + $0x4] sm:$0x6] %v5518
      %5539 = vst [vmem:[%s3045 + $0x8] sm:$0x6] %v5525
      %5540 = vst [vmem:[%s3045 + $0xc] sm:$0x6] %v5532
      %v5541 = vld [vmem:[#allocation3] sm:$0xf]
      %v5542 = vld [vmem:[#allocation3 + $0x4] sm:$0xf]
      %v5543 = vld [vmem:[#allocation3 + $0x8] sm:$0xf]
      %v5544 = vld [vmem:[#allocation3 + $0xc] sm:$0xf]
      %v5545 = vld [vmem:[%s9] sm:$0xf]
      %v5546 = vld [vmem:[%s9 + $0x4] sm:$0xf]
      %v5547 = vld [vmem:[%s9 + $0x8] sm:$0xf]
      %v5548 = vld [vmem:[%s9 + $0xc] sm:$0xf]
      %v5549 = vld [vmem:[%s9 + $0x10] sm:$0xf]
      %v5550 = vld [vmem:[%s9 + $0x14] sm:$0xf]
      %v5551 = vld [vmem:[%s9 + $0x18] sm:$0xf]
      %v5552 = vld [vmem:[%s9 + $0x1c] sm:$0xf]
      %v5553 = vld [vmem:[%s9 + $0x20] sm:$0xf]
      %v5554 = vld [vmem:[%s9 + $0x24] sm:$0xf]
      %v5555 = vld [vmem:[%s9 + $0x28] sm:$0xf]
      %v5556 = vld [vmem:[%s9 + $0x2c] sm:$0xf]
      %v5557 = vld [vmem:[%s9 + $0x30] sm:$0xf]
      %v5558 = vld [vmem:[%s9 + $0x34] sm:$0xf]
      %v5559 = vld [vmem:[%s9 + $0x38] sm:$0xf]
      %v5560 = vld [vmem:[%s9 + $0x3c] sm:$0xf]
      %v5565 = vunpack.c.l.b16 %v5541
      %v5566 = vunpack.c.l.b16 %v5542
      %v5567 = vunpack.c.l.b16 %v5543
      %v5568 = vunpack.c.l.b16 %v5544
      %v5569 = vpack.c.b16 %v5566, %v5565
      %v5570 = vpack.c.b16 %v5568, %v5567
      %v5589 = vunpack.c.l.b16 %v5545
      %v5590 = vunpack.c.l.b16 %v5546
      %v5591 = vunpack.c.l.b16 %v5547
      %v5592 = vunpack.c.l.b16 %v5548
      %v5593 = vunpack.c.l.b16 %v5549
      %v5594 = vunpack.c.l.b16 %v5550
      %v5595 = vunpack.c.l.b16 %v5551
      %v5596 = vunpack.c.l.b16 %v5552
      %v5597 = vunpack.c.l.b16 %v5553
      %v5598 = vunpack.c.l.b16 %v5554
      %v5599 = vunpack.c.l.b16 %v5555
      %v5600 = vunpack.c.l.b16 %v5556
      %v5601 = vunpack.c.l.b16 %v5557
      %v5602 = vunpack.c.l.b16 %v5558
      %v5603 = vunpack.c.l.b16 %v5559
      %v5604 = vunpack.c.l.b16 %v5560
      %v5605 = vpack.c.b16 %v5590, %v5589
      %v5606 = vpack.c.b16 %v5592, %v5591
      %v5607 = vpack.c.b16 %v5594, %v5593
      %v5608 = vpack.c.b16 %v5596, %v5595
      %v5609 = vpack.c.b16 %v5598, %v5597
      %v5610 = vpack.c.b16 %v5600, %v5599
      %v5611 = vpack.c.b16 %v5602, %v5601
      %v5612 = vpack.c.b16 %v5604, %v5603
      %5621 = vmatprep.subr.bf16.mxu0 0
      %5622 = vmatpush1.bf16.msra.mxu0 %v5605
      %5623 = vmatprep.subr.bf16.mxu0 0
      %5624 = vmatpush1.bf16.msra.mxu0 %v5606
      %5625 = vmatprep.subr.bf16.mxu0 0
      %5626 = vmatpush1.bf16.msra.mxu0 %v5607
      %5627 = vmatprep.subr.bf16.mxu0 0
      %5628 = vmatpush1.bf16.msra.mxu0 %v5608
      %5629 = vmatprep.subr.bf16.mxu0 0
      %5630 = vmatpush1.bf16.msra.mxu0 %v5609
      %5631 = vmatprep.subr.bf16.mxu0 0
      %5632 = vmatpush1.bf16.msra.mxu0 %v5610
      %5633 = vmatprep.subr.bf16.mxu0 0
      %5634 = vmatpush1.bf16.msra.mxu0 %v5611
      %5635 = vmatprep.subr.bf16.mxu0 0
      %5636 = vmatpush1.bf16.msra.mxu0 %v5612
      %5637 = vmatprep.subr.bf16.mxu0 0
      %5638 = vmatpush1.bf16.msra.mxu0 0
      %5639 = vmatprep.subr.bf16.mxu0 0
      %5640 = vmatpush1.bf16.msra.mxu0 0
      %5641 = vmatprep.subr.bf16.mxu0 0
      %5642 = vmatpush1.bf16.msra.mxu0 0
      %5643 = vmatprep.subr.bf16.mxu0 0
      %5644 = vmatpush1.bf16.msra.mxu0 0
      %5645 = vmatprep.subr.bf16.mxu0 0
      %5646 = vmatpush1.bf16.msra.mxu0 0
      %5647 = vmatprep.subr.bf16.mxu0 0
      %5648 = vmatpush1.bf16.msra.mxu0 0
      %5649 = vmatprep.subr.bf16.mxu0 0
      %5650 = vmatpush1.bf16.msra.mxu0 0
      %5651 = vmatprep.subr.bf16.mxu0 0
      %5652 = vmatpush1.bf16.msra.mxu0 0
      %5653 = vmatprep.mubr.bf16.mxu0 0
      %5654 = vmatmul.mubr.bf16.gmra.mrb[0].mxu0 %v5569
      %v5655 = vpop.f32.mrb[0].mxu0
      %v5656 = vadd.f32 0.0, %v5655
      %v5657 = vpop.f32.mrb[0].mxu0
      %v5658 = vpop.f32.mrb[0].mxu0
      %v5659 = vadd.f32 0.0, %v5658
      %v5660 = vpop.f32.mrb[0].mxu0
      %5661 = vmatprep.mubr.bf16.mxu0 0
      %5662 = vmatmul.mubr.bf16.gmra.mrb[0].mxu0 %v5570
      %v5663 = vpop.f32.mrb[0].mxu0
      %v5664 = vadd.f32 0.0, %v5663
      %v5665 = vpop.f32.mrb[0].mxu0
      %v5666 = vpop.f32.mrb[0].mxu0
      %v5667 = vadd.f32 0.0, %v5666
      %v5668 = vpop.f32.mrb[0].mxu0
      %5669 = vdwg.mxu0
      %s5670 = scalar_lea.vmem %s9, 64
      %v5671 = vld [vmem:[%s5670] sm:$0xf]
      %v5672 = vld [vmem:[%s5670 + $0x4] sm:$0xf]
      %v5673 = vld [vmem:[%s5670 + $0x8] sm:$0xf]
      %v5674 = vld [vmem:[%s5670 + $0xc] sm:$0xf]
      %v5675 = vld [vmem:[%s5670 + $0x10] sm:$0xf]
      %v5676 = vld [vmem:[%s5670 + $0x14] sm:$0xf]
      %v5677 = vld [vmem:[%s5670 + $0x18] sm:$0xf]
      %v5678 = vld [vmem:[%s5670 + $0x1c] sm:$0xf]
      %v5679 = vld [vmem:[%s5670 + $0x20] sm:$0xf]
      %v5680 = vld [vmem:[%s5670 + $0x24] sm:$0xf]
      %v5681 = vld [vmem:[%s5670 + $0x28] sm:$0xf]
      %v5682 = vld [vmem:[%s5670 + $0x2c] sm:$0xf]
      %v5683 = vld [vmem:[%s5670 + $0x30] sm:$0xf]
      %v5684 = vld [vmem:[%s5670 + $0x34] sm:$0xf]
      %v5685 = vld [vmem:[%s5670 + $0x38] sm:$0xf]
      %v5686 = vld [vmem:[%s5670 + $0x3c] sm:$0xf]
      %v5703 = vunpack.c.l.b16 %v5671
      %v5704 = vunpack.c.l.b16 %v5672
      %v5705 = vunpack.c.l.b16 %v5673
      %v5706 = vunpack.c.l.b16 %v5674
      %v5707 = vunpack.c.l.b16 %v5675
      %v5708 = vunpack.c.l.b16 %v5676
      %v5709 = vunpack.c.l.b16 %v5677
      %v5710 = vunpack.c.l.b16 %v5678
      %v5711 = vunpack.c.l.b16 %v5679
      %v5712 = vunpack.c.l.b16 %v5680
      %v5713 = vunpack.c.l.b16 %v5681
      %v5714 = vunpack.c.l.b16 %v5682
      %v5715 = vunpack.c.l.b16 %v5683
      %v5716 = vunpack.c.l.b16 %v5684
      %v5717 = vunpack.c.l.b16 %v5685
      %v5718 = vunpack.c.l.b16 %v5686
      %v5719 = vpack.c.b16 %v5704, %v5703
      %v5720 = vpack.c.b16 %v5706, %v5705
      %v5721 = vpack.c.b16 %v5708, %v5707
      %v5722 = vpack.c.b16 %v5710, %v5709
      %v5723 = vpack.c.b16 %v5712, %v5711
      %v5724 = vpack.c.b16 %v5714, %v5713
      %v5725 = vpack.c.b16 %v5716, %v5715
      %v5726 = vpack.c.b16 %v5718, %v5717
      %5735 = vmatprep.subr.bf16.mxu0 0
      %5736 = vmatpush1.bf16.msra.mxu0 %v5719
      %5737 = vmatprep.subr.bf16.mxu0 0
      %5738 = vmatpush1.bf16.msra.mxu0 %v5720
      %5739 = vmatprep.subr.bf16.mxu0 0
      %5740 = vmatpush1.bf16.msra.mxu0 %v5721
      %5741 = vmatprep.subr.bf16.mxu0 0
      %5742 = vmatpush1.bf16.msra.mxu0 %v5722
      %5743 = vmatprep.subr.bf16.mxu0 0
      %5744 = vmatpush1.bf16.msra.mxu0 %v5723
      %5745 = vmatprep.subr.bf16.mxu0 0
      %5746 = vmatpush1.bf16.msra.mxu0 %v5724
      %5747 = vmatprep.subr.bf16.mxu0 0
      %5748 = vmatpush1.bf16.msra.mxu0 %v5725
      %5749 = vmatprep.subr.bf16.mxu0 0
      %5750 = vmatpush1.bf16.msra.mxu0 %v5726
      %5751 = vmatprep.subr.bf16.mxu0 0
      %5752 = vmatpush1.bf16.msra.mxu0 0
      %5753 = vmatprep.subr.bf16.mxu0 0
      %5754 = vmatpush1.bf16.msra.mxu0 0
      %5755 = vmatprep.subr.bf16.mxu0 0
      %5756 = vmatpush1.bf16.msra.mxu0 0
      %5757 = vmatprep.subr.bf16.mxu0 0
      %5758 = vmatpush1.bf16.msra.mxu0 0
      %5759 = vmatprep.subr.bf16.mxu0 0
      %5760 = vmatpush1.bf16.msra.mxu0 0
      %5761 = vmatprep.subr.bf16.mxu0 0
      %5762 = vmatpush1.bf16.msra.mxu0 0
      %5763 = vmatprep.subr.bf16.mxu0 0
      %5764 = vmatpush1.bf16.msra.mxu0 0
      %5765 = vmatprep.subr.bf16.mxu0 0
      %5766 = vmatpush1.bf16.msra.mxu0 0
      %5767 = vmatprep.mubr.bf16.mxu0 0
      %5768 = vmatmul.mubr.bf16.gmra.mrb[0].mxu0 %v5569
      %v5769 = vpop.f32.mrb[0].mxu0
      %v5770 = vadd.f32 0.0, %v5769
      %v5771 = vpop.f32.mrb[0].mxu0
      %v5772 = vpop.f32.mrb[0].mxu0
      %v5773 = vadd.f32 0.0, %v5772
      %v5774 = vpop.f32.mrb[0].mxu0
      %5775 = vmatprep.mubr.bf16.mxu0 0
      %5776 = vmatmul.mubr.bf16.gmra.mrb[0].mxu0 %v5570
      %v5777 = vpop.f32.mrb[0].mxu0
      %v5778 = vadd.f32 0.0, %v5777
      %v5779 = vpop.f32.mrb[0].mxu0
      %v5780 = vpop.f32.mrb[0].mxu0
      %v5781 = vadd.f32 0.0, %v5780
      %v5782 = vpop.f32.mrb[0].mxu0
      %5783 = vdwg.mxu0
      %v5788 = vrot.slane %v5770, 1
      %v5789 = vrot.slane %v5773, 1
      %v5790 = vrot.slane %v5778, 1
      %v5791 = vrot.slane %v5781, 1
      %v5796 = vadd.f32 %v5656, %v5788
      %v5797 = vadd.f32 %v5659, %v5789
      %v5798 = vadd.f32 %v5664, %v5790
      %v5799 = vadd.f32 %v5667, %v5791
      %s5800 = scalar_lea.vmem %s9, 128
      %v5801 = vld [vmem:[%s5800] sm:$0xf]
      %v5802 = vld [vmem:[%s5800 + $0x4] sm:$0xf]
      %v5803 = vld [vmem:[%s5800 + $0x8] sm:$0xf]
      %v5804 = vld [vmem:[%s5800 + $0xc] sm:$0xf]
      %v5805 = vld [vmem:[%s5800 + $0x10] sm:$0xf]
      %v5806 = vld [vmem:[%s5800 + $0x14] sm:$0xf]
      %v5807 = vld [vmem:[%s5800 + $0x18] sm:$0xf]
      %v5808 = vld [vmem:[%s5800 + $0x1c] sm:$0xf]
      %v5809 = vld [vmem:[%s5800 + $0x20] sm:$0xf]
      %v5810 = vld [vmem:[%s5800 + $0x24] sm:$0xf]
      %v5811 = vld [vmem:[%s5800 + $0x28] sm:$0xf]
      %v5812 = vld [vmem:[%s5800 + $0x2c] sm:$0xf]
      %v5813 = vld [vmem:[%s5800 + $0x30] sm:$0xf]
      %v5814 = vld [vmem:[%s5800 + $0x34] sm:$0xf]
      %v5815 = vld [vmem:[%s5800 + $0x38] sm:$0xf]
      %v5816 = vld [vmem:[%s5800 + $0x3c] sm:$0xf]
      %v5833 = vunpack.c.l.b16 %v5801
      %v5834 = vunpack.c.l.b16 %v5802
      %v5835 = vunpack.c.l.b16 %v5803
      %v5836 = vunpack.c.l.b16 %v5804
      %v5837 = vunpack.c.l.b16 %v5805
      %v5838 = vunpack.c.l.b16 %v5806
      %v5839 = vunpack.c.l.b16 %v5807
      %v5840 = vunpack.c.l.b16 %v5808
      %v5841 = vunpack.c.l.b16 %v5809
      %v5842 = vunpack.c.l.b16 %v5810
      %v5843 = vunpack.c.l.b16 %v5811
      %v5844 = vunpack.c.l.b16 %v5812
      %v5845 = vunpack.c.l.b16 %v5813
      %v5846 = vunpack.c.l.b16 %v5814
      %v5847 = vunpack.c.l.b16 %v5815
      %v5848 = vunpack.c.l.b16 %v5816
      %v5849 = vpack.c.b16 %v5834, %v5833
      %v5850 = vpack.c.b16 %v5836, %v5835
      %v5851 = vpack.c.b16 %v5838, %v5837
      %v5852 = vpack.c.b16 %v5840, %v5839
      %v5853 = vpack.c.b16 %v5842, %v5841
      %v5854 = vpack.c.b16 %v5844, %v5843
      %v5855 = vpack.c.b16 %v5846, %v5845
      %v5856 = vpack.c.b16 %v5848, %v5847
      %5865 = vmatprep.subr.bf16.mxu0 0
      %5866 = vmatpush1.bf16.msra.mxu0 %v5849
      %5867 = vmatprep.subr.bf16.mxu0 0
      %5868 = vmatpush1.bf16.msra.mxu0 %v5850
      %5869 = vmatprep.subr.bf16.mxu0 0
      %5870 = vmatpush1.bf16.msra.mxu0 %v5851
      %5871 = vmatprep.subr.bf16.mxu0 0
      %5872 = vmatpush1.bf16.msra.mxu0 %v5852
      %5873 = vmatprep.subr.bf16.mxu0 0
      %5874 = vmatpush1.bf16.msra.mxu0 %v5853
      %5875 = vmatprep.subr.bf16.mxu0 0
      %5876 = vmatpush1.bf16.msra.mxu0 %v5854
      %5877 = vmatprep.subr.bf16.mxu0 0
      %5878 = vmatpush1.bf16.msra.mxu0 %v5855
      %5879 = vmatprep.subr.bf16.mxu0 0
      %5880 = vmatpush1.bf16.msra.mxu0 %v5856
      %5881 = vmatprep.subr.bf16.mxu0 0
      %5882 = vmatpush1.bf16.msra.mxu0 0
      %5883 = vmatprep.subr.bf16.mxu0 0
      %5884 = vmatpush1.bf16.msra.mxu0 0
      %5885 = vmatprep.subr.bf16.mxu0 0
      %5886 = vmatpush1.bf16.msra.mxu0 0
      %5887 = vmatprep.subr.bf16.mxu0 0
      %5888 = vmatpush1.bf16.msra.mxu0 0
      %5889 = vmatprep.subr.bf16.mxu0 0
      %5890 = vmatpush1.bf16.msra.mxu0 0
      %5891 = vmatprep.subr.bf16.mxu0 0
      %5892 = vmatpush1.bf16.msra.mxu0 0
      %5893 = vmatprep.subr.bf16.mxu0 0
      %5894 = vmatpush1.bf16.msra.mxu0 0
      %5895 = vmatprep.subr.bf16.mxu0 0
      %5896 = vmatpush1.bf16.msra.mxu0 0
      %5897 = vmatprep.mubr.bf16.mxu0 0
      %5898 = vmatmul.mubr.bf16.gmra.mrb[0].mxu0 %v5569
      %v5899 = vpop.f32.mrb[0].mxu0
      %v5900 = vadd.f32 0.0, %v5899
      %v5901 = vpop.f32.mrb[0].mxu0
      %v5902 = vpop.f32.mrb[0].mxu0
      %v5903 = vadd.f32 0.0, %v5902
      %v5904 = vpop.f32.mrb[0].mxu0
      %5905 = vmatprep.mubr.bf16.mxu0 0
      %5906 = vmatmul.mubr.bf16.gmra.mrb[0].mxu0 %v5570
      %v5907 = vpop.f32.mrb[0].mxu0
      %v5908 = vadd.f32 0.0, %v5907
      %v5909 = vpop.f32.mrb[0].mxu0
      %v5910 = vpop.f32.mrb[0].mxu0
      %v5911 = vadd.f32 0.0, %v5910
      %v5912 = vpop.f32.mrb[0].mxu0
      %5913 = vdwg.mxu0
      %v5918 = vrot.slane %v5900, 2
      %v5919 = vrot.slane %v5903, 2
      %v5920 = vrot.slane %v5908, 2
      %v5921 = vrot.slane %v5911, 2
      %v5926 = vadd.f32 %v5796, %v5918
      %v5927 = vadd.f32 %v5797, %v5919
      %v5928 = vadd.f32 %v5798, %v5920
      %v5929 = vadd.f32 %v5799, %v5921
      %v5930 = vld [vmem:[%s3045] sm:$0xf]
      %v5931 = vld [vmem:[%s3045 + $0x4] sm:$0xf]
      %v5932 = vld [vmem:[%s3045 + $0x8] sm:$0xf]
      %v5933 = vld [vmem:[%s3045 + $0xc] sm:$0xf]
      %s5934 = scalar_lea.vmem %s9, 192
      %v5935 = vld [vmem:[%s5934] sm:$0xf]
      %v5936 = vld [vmem:[%s5934 + $0x4] sm:$0xf]
      %v5937 = vld [vmem:[%s5934 + $0x8] sm:$0xf]
      %v5938 = vld [vmem:[%s5934 + $0xc] sm:$0xf]
      %v5939 = vld [vmem:[%s5934 + $0x10] sm:$0xf]
      %v5940 = vld [vmem:[%s5934 + $0x14] sm:$0xf]
      %v5941 = vld [vmem:[%s5934 + $0x18] sm:$0xf]
      %v5942 = vld [vmem:[%s5934 + $0x1c] sm:$0xf]
      %v5943 = vld [vmem:[%s5934 + $0x20] sm:$0xf]
      %v5944 = vld [vmem:[%s5934 + $0x24] sm:$0xf]
      %v5945 = vld [vmem:[%s5934 + $0x28] sm:$0xf]
      %v5946 = vld [vmem:[%s5934 + $0x2c] sm:$0xf]
      %v5947 = vld [vmem:[%s5934 + $0x30] sm:$0xf]
      %v5948 = vld [vmem:[%s5934 + $0x34] sm:$0xf]
      %v5949 = vld [vmem:[%s5934 + $0x38] sm:$0xf]
      %v5950 = vld [vmem:[%s5934 + $0x3c] sm:$0xf]
      %v5955 = vunpack.c.l.b16 %v5930
      %v5956 = vunpack.c.l.b16 %v5931
      %v5957 = vunpack.c.l.b16 %v5932
      %v5958 = vunpack.c.l.b16 %v5933
      %v5959 = vpack.c.b16 %v5956, %v5955
      %v5960 = vpack.c.b16 %v5958, %v5957
      %v5979 = vunpack.c.l.b16 %v5935
      %v5980 = vunpack.c.l.b16 %v5936
      %v5981 = vunpack.c.l.b16 %v5937
      %v5982 = vunpack.c.l.b16 %v5938
      %v5983 = vunpack.c.l.b16 %v5939
      %v5984 = vunpack.c.l.b16 %v5940
      %v5985 = vunpack.c.l.b16 %v5941
      %v5986 = vunpack.c.l.b16 %v5942
      %v5987 = vunpack.c.l.b16 %v5943
      %v5988 = vunpack.c.l.b16 %v5944
      %v5989 = vunpack.c.l.b16 %v5945
      %v5990 = vunpack.c.l.b16 %v5946
      %v5991 = vunpack.c.l.b16 %v5947
      %v5992 = vunpack.c.l.b16 %v5948
      %v5993 = vunpack.c.l.b16 %v5949
      %v5994 = vunpack.c.l.b16 %v5950
      %v5995 = vpack.c.b16 %v5980, %v5979
      %v5996 = vpack.c.b16 %v5982, %v5981
      %v5997 = vpack.c.b16 %v5984, %v5983
      %v5998 = vpack.c.b16 %v5986, %v5985
      %v5999 = vpack.c.b16 %v5988, %v5987
      %v6000 = vpack.c.b16 %v5990, %v5989
      %v6001 = vpack.c.b16 %v5992, %v5991
      %v6002 = vpack.c.b16 %v5994, %v5993
      %6011 = vmatprep.subr.bf16.mxu0 0
      %6012 = vmatpush1.bf16.msra.mxu0 %v5995
      %6013 = vmatprep.subr.bf16.mxu0 0
      %6014 = vmatpush1.bf16.msra.mxu0 %v5996
      %6015 = vmatprep.subr.bf16.mxu0 0
      %6016 = vmatpush1.bf16.msra.mxu0 %v5997
      %6017 = vmatprep.subr.bf16.mxu0 0
      %6018 = vmatpush1.bf16.msra.mxu0 %v5998
      %6019 = vmatprep.subr.bf16.mxu0 0
      %6020 = vmatpush1.bf16.msra.mxu0 %v5999
      %6021 = vmatprep.subr.bf16.mxu0 0
      %6022 = vmatpush1.bf16.msra.mxu0 %v6000
      %6023 = vmatprep.subr.bf16.mxu0 0
      %6024 = vmatpush1.bf16.msra.mxu0 %v6001
      %6025 = vmatprep.subr.bf16.mxu0 0
      %6026 = vmatpush1.bf16.msra.mxu0 %v6002
      %6027 = vmatprep.subr.bf16.mxu0 0
      %6028 = vmatpush1.bf16.msra.mxu0 0
      %6029 = vmatprep.subr.bf16.mxu0 0
      %6030 = vmatpush1.bf16.msra.mxu0 0
      %6031 = vmatprep.subr.bf16.mxu0 0
      %6032 = vmatpush1.bf16.msra.mxu0 0
      %6033 = vmatprep.subr.bf16.mxu0 0
      %6034 = vmatpush1.bf16.msra.mxu0 0
      %6035 = vmatprep.subr.bf16.mxu0 0
      %6036 = vmatpush1.bf16.msra.mxu0 0
      %6037 = vmatprep.subr.bf16.mxu0 0
      %6038 = vmatpush1.bf16.msra.mxu0 0
      %6039 = vmatprep.subr.bf16.mxu0 0
      %6040 = vmatpush1.bf16.msra.mxu0 0
      %6041 = vmatprep.subr.bf16.mxu0 0
      %6042 = vmatpush1.bf16.msra.mxu0 0
      %6043 = vmatprep.mubr.bf16.mxu0 0
      %6044 = vmatmul.mubr.bf16.gmra.mrb[0].mxu0 %v5959
      %v6045 = vpop.f32.mrb[0].mxu0
      %v6046 = vadd.f32 0.0, %v6045
      %v6047 = vpop.f32.mrb[0].mxu0
      %v6048 = vpop.f32.mrb[0].mxu0
      %v6049 = vadd.f32 0.0, %v6048
      %v6050 = vpop.f32.mrb[0].mxu0
      %6051 = vmatprep.mubr.bf16.mxu0 0
      %6052 = vmatmul.mubr.bf16.gmra.mrb[0].mxu0 %v5960
      %v6053 = vpop.f32.mrb[0].mxu0
      %v6054 = vadd.f32 0.0, %v6053
      %v6055 = vpop.f32.mrb[0].mxu0
      %v6056 = vpop.f32.mrb[0].mxu0
      %v6057 = vadd.f32 0.0, %v6056
      %v6058 = vpop.f32.mrb[0].mxu0
      %6059 = vdwg.mxu0
      %v6060 = vadd.f32 %v5926, %v6046
      %v6061 = vadd.f32 %v5927, %v6049
      %v6062 = vadd.f32 %v5928, %v6054
      %v6063 = vadd.f32 %v5929, %v6057
      %s6064 = scalar_lea.vmem %s9, 256
      %v6065 = vld [vmem:[%s6064] sm:$0xf]
      %v6066 = vld [vmem:[%s6064 + $0x4] sm:$0xf]
      %v6067 = vld [vmem:[%s6064 + $0x8] sm:$0xf]
      %v6068 = vld [vmem:[%s6064 + $0xc] sm:$0xf]
      %v6069 = vld [vmem:[%s6064 + $0x10] sm:$0xf]
      %v6070 = vld [vmem:[%s6064 + $0x14] sm:$0xf]
      %v6071 = vld [vmem:[%s6064 + $0x18] sm:$0xf]
      %v6072 = vld [vmem:[%s6064 + $0x1c] sm:$0xf]
      %v6073 = vld [vmem:[%s6064 + $0x20] sm:$0xf]
      %v6074 = vld [vmem:[%s6064 + $0x24] sm:$0xf]
      %v6075 = vld [vmem:[%s6064 + $0x28] sm:$0xf]
      %v6076 = vld [vmem:[%s6064 + $0x2c] sm:$0xf]
      %v6077 = vld [vmem:[%s6064 + $0x30] sm:$0xf]
      %v6078 = vld [vmem:[%s6064 + $0x34] sm:$0xf]
      %v6079 = vld [vmem:[%s6064 + $0x38] sm:$0xf]
      %v6080 = vld [vmem:[%s6064 + $0x3c] sm:$0xf]
      %v6097 = vunpack.c.l.b16 %v6065
      %v6098 = vunpack.c.l.b16 %v6066
      %v6099 = vunpack.c.l.b16 %v6067
      %v6100 = vunpack.c.l.b16 %v6068
      %v6101 = vunpack.c.l.b16 %v6069
      %v6102 = vunpack.c.l.b16 %v6070
      %v6103 = vunpack.c.l.b16 %v6071
      %v6104 = vunpack.c.l.b16 %v6072
      %v6105 = vunpack.c.l.b16 %v6073
      %v6106 = vunpack.c.l.b16 %v6074
      %v6107 = vunpack.c.l.b16 %v6075
      %v6108 = vunpack.c.l.b16 %v6076
      %v6109 = vunpack.c.l.b16 %v6077
      %v6110 = vunpack.c.l.b16 %v6078
      %v6111 = vunpack.c.l.b16 %v6079
      %v6112 = vunpack.c.l.b16 %v6080
      %v6113 = vpack.c.b16 %v6098, %v6097
      %v6114 = vpack.c.b16 %v6100, %v6099
      %v6115 = vpack.c.b16 %v6102, %v6101
      %v6116 = vpack.c.b16 %v6104, %v6103
      %v6117 = vpack.c.b16 %v6106, %v6105
      %v6118 = vpack.c.b16 %v6108, %v6107
      %v6119 = vpack.c.b16 %v6110, %v6109
      %v6120 = vpack.c.b16 %v6112, %v6111
      %6129 = vmatprep.subr.bf16.mxu0 0
      %6130 = vmatpush1.bf16.msra.mxu0 %v6113
      %6131 = vmatprep.subr.bf16.mxu0 0
      %6132 = vmatpush1.bf16.msra.mxu0 %v6114
      %6133 = vmatprep.subr.bf16.mxu0 0
      %6134 = vmatpush1.bf16.msra.mxu0 %v6115
      %6135 = vmatprep.subr.bf16.mxu0 0
      %6136 = vmatpush1.bf16.msra.mxu0 %v6116
      %6137 = vmatprep.subr.bf16.mxu0 0
      %6138 = vmatpush1.bf16.msra.mxu0 %v6117
      %6139 = vmatprep.subr.bf16.mxu0 0
      %6140 = vmatpush1.bf16.msra.mxu0 %v6118
      %6141 = vmatprep.subr.bf16.mxu0 0
      %6142 = vmatpush1.bf16.msra.mxu0 %v6119
      %6143 = vmatprep.subr.bf16.mxu0 0
      %6144 = vmatpush1.bf16.msra.mxu0 %v6120
      %6145 = vmatprep.subr.bf16.mxu0 0
      %6146 = vmatpush1.bf16.msra.mxu0 0
      %6147 = vmatprep.subr.bf16.mxu0 0
      %6148 = vmatpush1.bf16.msra.mxu0 0
      %6149 = vmatprep.subr.bf16.mxu0 0
      %6150 = vmatpush1.bf16.msra.mxu0 0
      %6151 = vmatprep.subr.bf16.mxu0 0
      %6152 = vmatpush1.bf16.msra.mxu0 0
      %6153 = vmatprep.subr.bf16.mxu0 0
      %6154 = vmatpush1.bf16.msra.mxu0 0
      %6155 = vmatprep.subr.bf16.mxu0 0
      %6156 = vmatpush1.bf16.msra.mxu0 0
      %6157 = vmatprep.subr.bf16.mxu0 0
      %6158 = vmatpush1.bf16.msra.mxu0 0
      %6159 = vmatprep.subr.bf16.mxu0 0
      %6160 = vmatpush1.bf16.msra.mxu0 0
      %6161 = vmatprep.mubr.bf16.mxu0 0
      %6162 = vmatmul.mubr.bf16.gmra.mrb[0].mxu0 %v5959
      %v6163 = vpop.f32.mrb[0].mxu0
      %v6164 = vadd.f32 0.0, %v6163
      %v6165 = vpop.f32.mrb[0].mxu0
      %v6166 = vpop.f32.mrb[0].mxu0
      %v6167 = vadd.f32 0.0, %v6166
      %v6168 = vpop.f32.mrb[0].mxu0
      %6169 = vmatprep.mubr.bf16.mxu0 0
      %6170 = vmatmul.mubr.bf16.gmra.mrb[0].mxu0 %v5960
      %v6171 = vpop.f32.mrb[0].mxu0
      %v6172 = vadd.f32 0.0, %v6171
      %v6173 = vpop.f32.mrb[0].mxu0
      %v6174 = vpop.f32.mrb[0].mxu0
      %v6175 = vadd.f32 0.0, %v6174
      %v6176 = vpop.f32.mrb[0].mxu0
      %6177 = vdwg.mxu0
      %v6182 = vrot.slane %v6164, 1
      %v6183 = vrot.slane %v6167, 1
      %v6184 = vrot.slane %v6172, 1
      %v6185 = vrot.slane %v6175, 1
      %v6190 = vadd.f32 %v6060, %v6182
      %v6191 = vadd.f32 %v6061, %v6183
      %v6192 = vadd.f32 %v6062, %v6184
      %v6193 = vadd.f32 %v6063, %v6185
      %s6194 = scalar_lea.vmem %s9, 320
      %v6195 = vld [vmem:[%s6194] sm:$0xf]
      %v6196 = vld [vmem:[%s6194 + $0x4] sm:$0xf]
      %v6197 = vld [vmem:[%s6194 + $0x8] sm:$0xf]
      %v6198 = vld [vmem:[%s6194 + $0xc] sm:$0xf]
      %v6199 = vld [vmem:[%s6194 + $0x10] sm:$0xf]
      %v6200 = vld [vmem:[%s6194 + $0x14] sm:$0xf]
      %v6201 = vld [vmem:[%s6194 + $0x18] sm:$0xf]
      %v6202 = vld [vmem:[%s6194 + $0x1c] sm:$0xf]
      %v6203 = vld [vmem:[%s6194 + $0x20] sm:$0xf]
      %v6204 = vld [vmem:[%s6194 + $0x24] sm:$0xf]
      %v6205 = vld [vmem:[%s6194 + $0x28] sm:$0xf]
      %v6206 = vld [vmem:[%s6194 + $0x2c] sm:$0xf]
      %v6207 = vld [vmem:[%s6194 + $0x30] sm:$0xf]
      %v6208 = vld [vmem:[%s6194 + $0x34] sm:$0xf]
      %v6209 = vld [vmem:[%s6194 + $0x38] sm:$0xf]
      %v6210 = vld [vmem:[%s6194 + $0x3c] sm:$0xf]
      %v6227 = vunpack.c.l.b16 %v6195
      %v6228 = vunpack.c.l.b16 %v6196
      %v6229 = vunpack.c.l.b16 %v6197
      %v6230 = vunpack.c.l.b16 %v6198
      %v6231 = vunpack.c.l.b16 %v6199
      %v6232 = vunpack.c.l.b16 %v6200
      %v6233 = vunpack.c.l.b16 %v6201
      %v6234 = vunpack.c.l.b16 %v6202
      %v6235 = vunpack.c.l.b16 %v6203
      %v6236 = vunpack.c.l.b16 %v6204
      %v6237 = vunpack.c.l.b16 %v6205
      %v6238 = vunpack.c.l.b16 %v6206
      %v6239 = vunpack.c.l.b16 %v6207
      %v6240 = vunpack.c.l.b16 %v6208
      %v6241 = vunpack.c.l.b16 %v6209
      %v6242 = vunpack.c.l.b16 %v6210
      %v6243 = vpack.c.b16 %v6228, %v6227
      %v6244 = vpack.c.b16 %v6230, %v6229
      %v6245 = vpack.c.b16 %v6232, %v6231
      %v6246 = vpack.c.b16 %v6234, %v6233
      %v6247 = vpack.c.b16 %v6236, %v6235
      %v6248 = vpack.c.b16 %v6238, %v6237
      %v6249 = vpack.c.b16 %v6240, %v6239
      %v6250 = vpack.c.b16 %v6242, %v6241
      %6259 = vmatprep.subr.bf16.mxu0 0
      %6260 = vmatpush1.bf16.msra.mxu0 %v6243
      %6261 = vmatprep.subr.bf16.mxu0 0
      %6262 = vmatpush1.bf16.msra.mxu0 %v6244
      %6263 = vmatprep.subr.bf16.mxu0 0
      %6264 = vmatpush1.bf16.msra.mxu0 %v6245
      %6265 = vmatprep.subr.bf16.mxu0 0
      %6266 = vmatpush1.bf16.msra.mxu0 %v6246
      %6267 = vmatprep.subr.bf16.mxu0 0
      %6268 = vmatpush1.bf16.msra.mxu0 %v6247
      %6269 = vmatprep.subr.bf16.mxu0 0
      %6270 = vmatpush1.bf16.msra.mxu0 %v6248
      %6271 = vmatprep.subr.bf16.mxu0 0
      %6272 = vmatpush1.bf16.msra.mxu0 %v6249
      %6273 = vmatprep.subr.bf16.mxu0 0
      %6274 = vmatpush1.bf16.msra.mxu0 %v6250
      %6275 = vmatprep.subr.bf16.mxu0 0
      %6276 = vmatpush1.bf16.msra.mxu0 0
      %6277 = vmatprep.subr.bf16.mxu0 0
      %6278 = vmatpush1.bf16.msra.mxu0 0
      %6279 = vmatprep.subr.bf16.mxu0 0
      %6280 = vmatpush1.bf16.msra.mxu0 0
      %6281 = vmatprep.subr.bf16.mxu0 0
      %6282 = vmatpush1.bf16.msra.mxu0 0
      %6283 = vmatprep.subr.bf16.mxu0 0
      %6284 = vmatpush1.bf16.msra.mxu0 0
      %6285 = vmatprep.subr.bf16.mxu0 0
      %6286 = vmatpush1.bf16.msra.mxu0 0
      %6287 = vmatprep.subr.bf16.mxu0 0
      %6288 = vmatpush1.bf16.msra.mxu0 0
      %6289 = vmatprep.subr.bf16.mxu0 0
      %6290 = vmatpush1.bf16.msra.mxu0 0
      %6291 = vmatprep.mubr.bf16.mxu0 0
      %6292 = vmatmul.mubr.bf16.gmra.mrb[0].mxu0 %v5959
      %v6293 = vpop.f32.mrb[0].mxu0
      %v6294 = vadd.f32 0.0, %v6293
      %v6295 = vpop.f32.mrb[0].mxu0
      %v6296 = vpop.f32.mrb[0].mxu0
      %v6297 = vadd.f32 0.0, %v6296
      %v6298 = vpop.f32.mrb[0].mxu0
      %6299 = vmatprep.mubr.bf16.mxu0 0
      %6300 = vmatmul.mubr.bf16.gmra.mrb[0].mxu0 %v5960
      %v6301 = vpop.f32.mrb[0].mxu0
      %v6302 = vadd.f32 0.0, %v6301
      %v6303 = vpop.f32.mrb[0].mxu0
      %v6304 = vpop.f32.mrb[0].mxu0
      %v6305 = vadd.f32 0.0, %v6304
      %v6306 = vpop.f32.mrb[0].mxu0
      %6307 = vdwg.mxu0
      %v6312 = vrot.slane %v6294, 2
      %v6313 = vrot.slane %v6297, 2
      %v6314 = vrot.slane %v6302, 2
      %v6315 = vrot.slane %v6305, 2
      %v6320 = vadd.f32 %v6190, %v6312
      %v6321 = vadd.f32 %v6191, %v6313
      %v6322 = vadd.f32 %v6192, %v6314
      %v6323 = vadd.f32 %v6193, %v6315
      %v6324 = vld [vmem:[%s3833] sm:$0xf]
      %v6325 = vld [vmem:[%s3833 + $0x4] sm:$0xf]
      %v6326 = vld [vmem:[%s3833 + $0x8] sm:$0xf]
      %v6327 = vld [vmem:[%s3833 + $0xc] sm:$0xf]
      %s6328 = scalar_lea.vmem %s9, 384
      %v6329 = vld [vmem:[%s6328] sm:$0xf]
      %v6330 = vld [vmem:[%s6328 + $0x4] sm:$0xf]
      %v6331 = vld [vmem:[%s6328 + $0x8] sm:$0xf]
      %v6332 = vld [vmem:[%s6328 + $0xc] sm:$0xf]
      %v6333 = vld [vmem:[%s6328 + $0x10] sm:$0xf]
      %v6334 = vld [vmem:[%s6328 + $0x14] sm:$0xf]
      %v6335 = vld [vmem:[%s6328 + $0x18] sm:$0xf]
      %v6336 = vld [vmem:[%s6328 + $0x1c] sm:$0xf]
      %v6337 = vld [vmem:[%s6328 + $0x20] sm:$0xf]
      %v6338 = vld [vmem:[%s6328 + $0x24] sm:$0xf]
      %v6339 = vld [vmem:[%s6328 + $0x28] sm:$0xf]
      %v6340 = vld [vmem:[%s6328 + $0x2c] sm:$0xf]
      %v6341 = vld [vmem:[%s6328 + $0x30] sm:$0xf]
      %v6342 = vld [vmem:[%s6328 + $0x34] sm:$0xf]
      %v6343 = vld [vmem:[%s6328 + $0x38] sm:$0xf]
      %v6344 = vld [vmem:[%s6328 + $0x3c] sm:$0xf]
      %v6349 = vunpack.c.l.b16 %v6324
      %v6350 = vunpack.c.l.b16 %v6325
      %v6351 = vunpack.c.l.b16 %v6326
      %v6352 = vunpack.c.l.b16 %v6327
      %v6353 = vpack.c.b16 %v6350, %v6349
      %v6354 = vpack.c.b16 %v6352, %v6351
      %v6373 = vunpack.c.l.b16 %v6329
      %v6374 = vunpack.c.l.b16 %v6330
      %v6375 = vunpack.c.l.b16 %v6331
      %v6376 = vunpack.c.l.b16 %v6332
      %v6377 = vunpack.c.l.b16 %v6333
      %v6378 = vunpack.c.l.b16 %v6334
      %v6379 = vunpack.c.l.b16 %v6335
      %v6380 = vunpack.c.l.b16 %v6336
      %v6381 = vunpack.c.l.b16 %v6337
      %v6382 = vunpack.c.l.b16 %v6338
      %v6383 = vunpack.c.l.b16 %v6339
      %v6384 = vunpack.c.l.b16 %v6340
      %v6385 = vunpack.c.l.b16 %v6341
      %v6386 = vunpack.c.l.b16 %v6342
      %v6387 = vunpack.c.l.b16 %v6343
      %v6388 = vunpack.c.l.b16 %v6344
      %v6389 = vpack.c.b16 %v6374, %v6373
      %v6390 = vpack.c.b16 %v6376, %v6375
      %v6391 = vpack.c.b16 %v6378, %v6377
      %v6392 = vpack.c.b16 %v6380, %v6379
      %v6393 = vpack.c.b16 %v6382, %v6381
      %v6394 = vpack.c.b16 %v6384, %v6383
      %v6395 = vpack.c.b16 %v6386, %v6385
      %v6396 = vpack.c.b16 %v6388, %v6387
      %6405 = vmatprep.subr.bf16.mxu0 0
      %6406 = vmatpush1.bf16.msra.mxu0 %v6389
      %6407 = vmatprep.subr.bf16.mxu0 0
      %6408 = vmatpush1.bf16.msra.mxu0 %v6390
      %6409 = vmatprep.subr.bf16.mxu0 0
      %6410 = vmatpush1.bf16.msra.mxu0 %v6391
      %6411 = vmatprep.subr.bf16.mxu0 0
      %6412 = vmatpush1.bf16.msra.mxu0 %v6392
      %6413 = vmatprep.subr.bf16.mxu0 0
      %6414 = vmatpush1.bf16.msra.mxu0 %v6393
      %6415 = vmatprep.subr.bf16.mxu0 0
      %6416 = vmatpush1.bf16.msra.mxu0 %v6394
      %6417 = vmatprep.subr.bf16.mxu0 0
      %6418 = vmatpush1.bf16.msra.mxu0 %v6395
      %6419 = vmatprep.subr.bf16.mxu0 0
      %6420 = vmatpush1.bf16.msra.mxu0 %v6396
      %6421 = vmatprep.subr.bf16.mxu0 0
      %6422 = vmatpush1.bf16.msra.mxu0 0
      %6423 = vmatprep.subr.bf16.mxu0 0
      %6424 = vmatpush1.bf16.msra.mxu0 0
      %6425 = vmatprep.subr.bf16.mxu0 0
      %6426 = vmatpush1.bf16.msra.mxu0 0
      %6427 = vmatprep.subr.bf16.mxu0 0
      %6428 = vmatpush1.bf16.msra.mxu0 0
      %6429 = vmatprep.subr.bf16.mxu0 0
      %6430 = vmatpush1.bf16.msra.mxu0 0
      %6431 = vmatprep.subr.bf16.mxu0 0
      %6432 = vmatpush1.bf16.msra.mxu0 0
      %6433 = vmatprep.subr.bf16.mxu0 0
      %6434 = vmatpush1.bf16.msra.mxu0 0
      %6435 = vmatprep.subr.bf16.mxu0 0
      %6436 = vmatpush1.bf16.msra.mxu0 0
      %6437 = vmatprep.mubr.bf16.mxu0 0
      %6438 = vmatmul.mubr.bf16.gmra.mrb[0].mxu0 %v6353
      %v6439 = vpop.f32.mrb[0].mxu0
      %v6440 = vadd.f32 0.0, %v6439
      %v6441 = vpop.f32.mrb[0].mxu0
      %v6442 = vpop.f32.mrb[0].mxu0
      %v6443 = vadd.f32 0.0, %v6442
      %v6444 = vpop.f32.mrb[0].mxu0
      %6445 = vmatprep.mubr.bf16.mxu0 0
      %6446 = vmatmul.mubr.bf16.gmra.mrb[0].mxu0 %v6354
      %v6447 = vpop.f32.mrb[0].mxu0
      %v6448 = vadd.f32 0.0, %v6447
      %v6449 = vpop.f32.mrb[0].mxu0
      %v6450 = vpop.f32.mrb[0].mxu0
      %v6451 = vadd.f32 0.0, %v6450
      %v6452 = vpop.f32.mrb[0].mxu0
      %6453 = vdwg.mxu0
      %v6454 = vadd.f32 %v6320, %v6440
      %v6455 = vadd.f32 %v6321, %v6443
      %v6456 = vadd.f32 %v6322, %v6448
      %v6457 = vadd.f32 %v6323, %v6451
      %s6458 = scalar_lea.vmem %s9, 448
      %v6459 = vld [vmem:[%s6458] sm:$0xf]
      %v6460 = vld [vmem:[%s6458 + $0x4] sm:$0xf]
      %v6461 = vld [vmem:[%s6458 + $0x8] sm:$0xf]
      %v6462 = vld [vmem:[%s6458 + $0xc] sm:$0xf]
      %v6463 = vld [vmem:[%s6458 + $0x10] sm:$0xf]
      %v6464 = vld [vmem:[%s6458 + $0x14] sm:$0xf]
      %v6465 = vld [vmem:[%s6458 + $0x18] sm:$0xf]
      %v6466 = vld [vmem:[%s6458 + $0x1c] sm:$0xf]
      %v6467 = vld [vmem:[%s6458 + $0x20] sm:$0xf]
      %v6468 = vld [vmem:[%s6458 + $0x24] sm:$0xf]
      %v6469 = vld [vmem:[%s6458 + $0x28] sm:$0xf]
      %v6470 = vld [vmem:[%s6458 + $0x2c] sm:$0xf]
      %v6471 = vld [vmem:[%s6458 + $0x30] sm:$0xf]
      %v6472 = vld [vmem:[%s6458 + $0x34] sm:$0xf]
      %v6473 = vld [vmem:[%s6458 + $0x38] sm:$0xf]
      %v6474 = vld [vmem:[%s6458 + $0x3c] sm:$0xf]
      %v6491 = vunpack.c.l.b16 %v6459
      %v6492 = vunpack.c.l.b16 %v6460
      %v6493 = vunpack.c.l.b16 %v6461
      %v6494 = vunpack.c.l.b16 %v6462
      %v6495 = vunpack.c.l.b16 %v6463
      %v6496 = vunpack.c.l.b16 %v6464
      %v6497 = vunpack.c.l.b16 %v6465
      %v6498 = vunpack.c.l.b16 %v6466
      %v6499 = vunpack.c.l.b16 %v6467
      %v6500 = vunpack.c.l.b16 %v6468
      %v6501 = vunpack.c.l.b16 %v6469
      %v6502 = vunpack.c.l.b16 %v6470
      %v6503 = vunpack.c.l.b16 %v6471
      %v6504 = vunpack.c.l.b16 %v6472
      %v6505 = vunpack.c.l.b16 %v6473
      %v6506 = vunpack.c.l.b16 %v6474
      %v6507 = vpack.c.b16 %v6492, %v6491
      %v6508 = vpack.c.b16 %v6494, %v6493
      %v6509 = vpack.c.b16 %v6496, %v6495
      %v6510 = vpack.c.b16 %v6498, %v6497
      %v6511 = vpack.c.b16 %v6500, %v6499
      %v6512 = vpack.c.b16 %v6502, %v6501
      %v6513 = vpack.c.b16 %v6504, %v6503
      %v6514 = vpack.c.b16 %v6506, %v6505
      %6523 = vmatprep.subr.bf16.mxu0 0
      %6524 = vmatpush1.bf16.msra.mxu0 %v6507
      %6525 = vmatprep.subr.bf16.mxu0 0
      %6526 = vmatpush1.bf16.msra.mxu0 %v6508
      %6527 = vmatprep.subr.bf16.mxu0 0
      %6528 = vmatpush1.bf16.msra.mxu0 %v6509
      %6529 = vmatprep.subr.bf16.mxu0 0
      %6530 = vmatpush1.bf16.msra.mxu0 %v6510
      %6531 = vmatprep.subr.bf16.mxu0 0
      %6532 = vmatpush1.bf16.msra.mxu0 %v6511
      %6533 = vmatprep.subr.bf16.mxu0 0
      %6534 = vmatpush1.bf16.msra.mxu0 %v6512
      %6535 = vmatprep.subr.bf16.mxu0 0
      %6536 = vmatpush1.bf16.msra.mxu0 %v6513
      %6537 = vmatprep.subr.bf16.mxu0 0
      %6538 = vmatpush1.bf16.msra.mxu0 %v6514
      %6539 = vmatprep.subr.bf16.mxu0 0
      %6540 = vmatpush1.bf16.msra.mxu0 0
      %6541 = vmatprep.subr.bf16.mxu0 0
      %6542 = vmatpush1.bf16.msra.mxu0 0
      %6543 = vmatprep.subr.bf16.mxu0 0
      %6544 = vmatpush1.bf16.msra.mxu0 0
      %6545 = vmatprep.subr.bf16.mxu0 0
      %6546 = vmatpush1.bf16.msra.mxu0 0
      %6547 = vmatprep.subr.bf16.mxu0 0
      %6548 = vmatpush1.bf16.msra.mxu0 0
      %6549 = vmatprep.subr.bf16.mxu0 0
      %6550 = vmatpush1.bf16.msra.mxu0 0
      %6551 = vmatprep.subr.bf16.mxu0 0
      %6552 = vmatpush1.bf16.msra.mxu0 0
      %6553 = vmatprep.subr.bf16.mxu0 0
      %6554 = vmatpush1.bf16.msra.mxu0 0
      %6555 = vmatprep.mubr.bf16.mxu0 0
      %6556 = vmatmul.mubr.bf16.gmra.mrb[0].mxu0 %v6353
      %v6557 = vpop.f32.mrb[0].mxu0
      %v6558 = vadd.f32 0.0, %v6557
      %v6559 = vpop.f32.mrb[0].mxu0
      %v6560 = vpop.f32.mrb[0].mxu0
      %v6561 = vadd.f32 0.0, %v6560
      %v6562 = vpop.f32.mrb[0].mxu0
      %6563 = vmatprep.mubr.bf16.mxu0 0
      %6564 = vmatmul.mubr.bf16.gmra.mrb[0].mxu0 %v6354
      %v6565 = vpop.f32.mrb[0].mxu0
      %v6566 = vadd.f32 0.0, %v6565
      %v6567 = vpop.f32.mrb[0].mxu0
      %v6568 = vpop.f32.mrb[0].mxu0
      %v6569 = vadd.f32 0.0, %v6568
      %v6570 = vpop.f32.mrb[0].mxu0
      %6571 = vdwg.mxu0
      %v6576 = vrot.slane %v6558, 1
      %v6577 = vrot.slane %v6561, 1
      %v6578 = vrot.slane %v6566, 1
      %v6579 = vrot.slane %v6569, 1
      %v6584 = vadd.f32 %v6454, %v6576
      %v6585 = vadd.f32 %v6455, %v6577
      %v6586 = vadd.f32 %v6456, %v6578
      %v6587 = vadd.f32 %v6457, %v6579
      %s6588 = scalar_lea.vmem %s9, 512
      %v6589 = vld [vmem:[%s6588] sm:$0xf]
      %v6590 = vld [vmem:[%s6588 + $0x4] sm:$0xf]
      %v6591 = vld [vmem:[%s6588 + $0x8] sm:$0xf]
      %v6592 = vld [vmem:[%s6588 + $0xc] sm:$0xf]
      %v6593 = vld [vmem:[%s6588 + $0x10] sm:$0xf]
      %v6594 = vld [vmem:[%s6588 + $0x14] sm:$0xf]
      %v6595 = vld [vmem:[%s6588 + $0x18] sm:$0xf]
      %v6596 = vld [vmem:[%s6588 + $0x1c] sm:$0xf]
      %v6597 = vld [vmem:[%s6588 + $0x20] sm:$0xf]
      %v6598 = vld [vmem:[%s6588 + $0x24] sm:$0xf]
      %v6599 = vld [vmem:[%s6588 + $0x28] sm:$0xf]
      %v6600 = vld [vmem:[%s6588 + $0x2c] sm:$0xf]
      %v6601 = vld [vmem:[%s6588 + $0x30] sm:$0xf]
      %v6602 = vld [vmem:[%s6588 + $0x34] sm:$0xf]
      %v6603 = vld [vmem:[%s6588 + $0x38] sm:$0xf]
      %v6604 = vld [vmem:[%s6588 + $0x3c] sm:$0xf]
      %v6621 = vunpack.c.l.b16 %v6589
      %v6622 = vunpack.c.l.b16 %v6590
      %v6623 = vunpack.c.l.b16 %v6591
      %v6624 = vunpack.c.l.b16 %v6592
      %v6625 = vunpack.c.l.b16 %v6593
      %v6626 = vunpack.c.l.b16 %v6594
      %v6627 = vunpack.c.l.b16 %v6595
      %v6628 = vunpack.c.l.b16 %v6596
      %v6629 = vunpack.c.l.b16 %v6597
      %v6630 = vunpack.c.l.b16 %v6598
      %v6631 = vunpack.c.l.b16 %v6599
      %v6632 = vunpack.c.l.b16 %v6600
      %v6633 = vunpack.c.l.b16 %v6601
      %v6634 = vunpack.c.l.b16 %v6602
      %v6635 = vunpack.c.l.b16 %v6603
      %v6636 = vunpack.c.l.b16 %v6604
      %v6637 = vpack.c.b16 %v6622, %v6621
      %v6638 = vpack.c.b16 %v6624, %v6623
      %v6639 = vpack.c.b16 %v6626, %v6625
      %v6640 = vpack.c.b16 %v6628, %v6627
      %v6641 = vpack.c.b16 %v6630, %v6629
      %v6642 = vpack.c.b16 %v6632, %v6631
      %v6643 = vpack.c.b16 %v6634, %v6633
      %v6644 = vpack.c.b16 %v6636, %v6635
      %6653 = vmatprep.subr.bf16.mxu0 0
      %6654 = vmatpush1.bf16.msra.mxu0 %v6637
      %6655 = vmatprep.subr.bf16.mxu0 0
      %6656 = vmatpush1.bf16.msra.mxu0 %v6638
      %6657 = vmatprep.subr.bf16.mxu0 0
      %6658 = vmatpush1.bf16.msra.mxu0 %v6639
      %6659 = vmatprep.subr.bf16.mxu0 0
      %6660 = vmatpush1.bf16.msra.mxu0 %v6640
      %6661 = vmatprep.subr.bf16.mxu0 0
      %6662 = vmatpush1.bf16.msra.mxu0 %v6641
      %6663 = vmatprep.subr.bf16.mxu0 0
      %6664 = vmatpush1.bf16.msra.mxu0 %v6642
      %6665 = vmatprep.subr.bf16.mxu0 0
      %6666 = vmatpush1.bf16.msra.mxu0 %v6643
      %6667 = vmatprep.subr.bf16.mxu0 0
      %6668 = vmatpush1.bf16.msra.mxu0 %v6644
      %6669 = vmatprep.subr.bf16.mxu0 0
      %6670 = vmatpush1.bf16.msra.mxu0 0
      %6671 = vmatprep.subr.bf16.mxu0 0
      %6672 = vmatpush1.bf16.msra.mxu0 0
      %6673 = vmatprep.subr.bf16.mxu0 0
      %6674 = vmatpush1.bf16.msra.mxu0 0
      %6675 = vmatprep.subr.bf16.mxu0 0
      %6676 = vmatpush1.bf16.msra.mxu0 0
      %6677 = vmatprep.subr.bf16.mxu0 0
      %6678 = vmatpush1.bf16.msra.mxu0 0
      %6679 = vmatprep.subr.bf16.mxu0 0
      %6680 = vmatpush1.bf16.msra.mxu0 0
      %6681 = vmatprep.subr.bf16.mxu0 0
      %6682 = vmatpush1.bf16.msra.mxu0 0
      %6683 = vmatprep.subr.bf16.mxu0 0
      %6684 = vmatpush1.bf16.msra.mxu0 0
      %6685 = vmatprep.mubr.bf16.mxu0 0
      %6686 = vmatmul.mubr.bf16.gmra.mrb[0].mxu0 %v6353
      %v6687 = vpop.f32.mrb[0].mxu0
      %v6688 = vadd.f32 0.0, %v6687
      %v6689 = vpop.f32.mrb[0].mxu0
      %v6690 = vpop.f32.mrb[0].mxu0
      %v6691 = vadd.f32 0.0, %v6690
      %v6692 = vpop.f32.mrb[0].mxu0
      %6693 = vmatprep.mubr.bf16.mxu0 0
      %6694 = vmatmul.mubr.bf16.gmra.mrb[0].mxu0 %v6354
      %v6695 = vpop.f32.mrb[0].mxu0
      %v6696 = vadd.f32 0.0, %v6695
      %v6697 = vpop.f32.mrb[0].mxu0
      %v6698 = vpop.f32.mrb[0].mxu0
      %v6699 = vadd.f32 0.0, %v6698
      %v6700 = vpop.f32.mrb[0].mxu0
      %6701 = vdwg.mxu0
      %v6706 = vrot.slane %v6688, 2
      %v6707 = vrot.slane %v6691, 2
      %v6708 = vrot.slane %v6696, 2
      %v6709 = vrot.slane %v6699, 2
      %v6714 = vadd.f32 %v6584, %v6706
      %v6715 = vadd.f32 %v6585, %v6707
      %v6716 = vadd.f32 %v6586, %v6708
      %v6717 = vadd.f32 %v6587, %v6709
      %v6718 = vld [vmem:[%s10] sm:$0x1]
      %v6720 = vlaneseq
      %v6721 = vshrl.u32 %v6720, 7
      %v6722 = vsub.s32 0, %v6721
      %v6723 = vrot.slane %v6718, %v6722
      %v6725 = vadd.f32 %v6714, %v6723
      %v6726 = vadd.f32 %v6715, %v6723
      %v6727 = vadd.f32 %v6716, %v6723
      %v6728 = vadd.f32 %v6717, %v6723
      %v6729 = vmax.f32 %v6725, 0.0
      %v6730 = vmax.f32 %v6726, 0.0
      %v6731 = vmax.f32 %v6727, 0.0
      %v6732 = vmax.f32 %v6728, 0.0
      %v6733 = vpack.c.bf16 %v6729, %v6729
      %v6734 = vpack.c.bf16 %v6730, %v6730
      %v6735 = vpack.c.bf16 %v6731, %v6731
      %v6736 = vpack.c.bf16 %v6732, %v6732
      %v6741 = vunpack.c.l.b16 %v6733
      %v6742 = vunpack.c.l.b16 %v6734
      %v6743 = vunpack.c.l.b16 %v6735
      %v6744 = vunpack.c.l.b16 %v6736
      %v6745 = vpack.c.b16 %v6741, %v6741
      %v6746 = vpack.c.b16 %v6742, %v6742
      %v6747 = vpack.c.b16 %v6743, %v6743
      %v6748 = vpack.c.b16 %v6744, %v6744
      %v6750 = vshrl.u32 %v6745, 16
      %v6752 = vrot.slane %v6750, 7
      %v6753 = vshll.u32 %v6745, 16
      %v6755 = vor.u32 %v6752, %v6753
      %v6757 = vshrl.u32 %v6746, 16
      %v6759 = vrot.slane %v6757, 7
      %v6760 = vshll.u32 %v6746, 16
      %v6762 = vor.u32 %v6759, %v6760
      %v6764 = vshrl.u32 %v6747, 16
      %v6766 = vrot.slane %v6764, 7
      %v6767 = vshll.u32 %v6747, 16
      %v6769 = vor.u32 %v6766, %v6767
      %v6771 = vshrl.u32 %v6748, 16
      %v6773 = vrot.slane %v6771, 7
      %v6774 = vshll.u32 %v6748, 16
      %v6776 = vor.u32 %v6773, %v6774
      %6781 = vst [vmem:[%s4291] sm:$0x6] %v6755
      %6782 = vst [vmem:[%s4291 + $0x4] sm:$0x6] %v6762
      %6783 = vst [vmem:[%s4291 + $0x8] sm:$0x6] %v6769
      %6784 = vst [vmem:[%s4291 + $0xc] sm:$0x6] %v6776
      %v6785 = vld [vmem:[%s4291] sm:$0xf]
      %v6786 = vld [vmem:[%s4291 + $0x4] sm:$0xf]
      %v6787 = vld [vmem:[%s4291 + $0x8] sm:$0xf]
      %v6788 = vld [vmem:[%s4291 + $0xc] sm:$0xf]
      %v6789 = vld [vmem:[%s11] sm:$0xf]
      %v6790 = vld [vmem:[%s11 + $0x4] sm:$0xf]
      %v6791 = vld [vmem:[%s11 + $0x8] sm:$0xf]
      %v6792 = vld [vmem:[%s11 + $0xc] sm:$0xf]
      %v6793 = vld [vmem:[%s11 + $0x10] sm:$0xf]
      %v6794 = vld [vmem:[%s11 + $0x14] sm:$0xf]
      %v6795 = vld [vmem:[%s11 + $0x18] sm:$0xf]
      %v6796 = vld [vmem:[%s11 + $0x1c] sm:$0xf]
      %v6797 = vld [vmem:[%s11 + $0x20] sm:$0xf]
      %v6798 = vld [vmem:[%s11 + $0x24] sm:$0xf]
      %v6799 = vld [vmem:[%s11 + $0x28] sm:$0xf]
      %v6800 = vld [vmem:[%s11 + $0x2c] sm:$0xf]
      %v6801 = vld [vmem:[%s11 + $0x30] sm:$0xf]
      %v6802 = vld [vmem:[%s11 + $0x34] sm:$0xf]
      %v6803 = vld [vmem:[%s11 + $0x38] sm:$0xf]
      %v6804 = vld [vmem:[%s11 + $0x3c] sm:$0xf]
      %v6805 = vld [vmem:[%s12] sm:$0x1]
      %v6807 = vlaneseq
      %v6808 = vshrl.u32 %v6807, 7
      %v6809 = vsub.s32 0, %v6808
      %v6810 = vrot.slane %v6805, %v6809
      %v6816 = vunpack.c.l.b16 %v6785
      %v6817 = vunpack.c.l.b16 %v6786
      %v6818 = vunpack.c.l.b16 %v6787
      %v6819 = vunpack.c.l.b16 %v6788
      %v6820 = vpack.c.b16 %v6817, %v6816
      %v6821 = vpack.c.b16 %v6819, %v6818
      %v6840 = vunpack.c.l.b16 %v6789
      %v6841 = vunpack.c.l.b16 %v6790
      %v6842 = vunpack.c.l.b16 %v6791
      %v6843 = vunpack.c.l.b16 %v6792
      %v6844 = vunpack.c.l.b16 %v6793
      %v6845 = vunpack.c.l.b16 %v6794
      %v6846 = vunpack.c.l.b16 %v6795
      %v6847 = vunpack.c.l.b16 %v6796
      %v6848 = vunpack.c.l.b16 %v6797
      %v6849 = vunpack.c.l.b16 %v6798
      %v6850 = vunpack.c.l.b16 %v6799
      %v6851 = vunpack.c.l.b16 %v6800
      %v6852 = vunpack.c.l.b16 %v6801
      %v6853 = vunpack.c.l.b16 %v6802
      %v6854 = vunpack.c.l.b16 %v6803
      %v6855 = vunpack.c.l.b16 %v6804
      %v6856 = vpack.c.b16 %v6841, %v6840
      %v6857 = vpack.c.b16 %v6843, %v6842
      %v6858 = vpack.c.b16 %v6845, %v6844
      %v6859 = vpack.c.b16 %v6847, %v6846
      %v6860 = vpack.c.b16 %v6849, %v6848
      %v6861 = vpack.c.b16 %v6851, %v6850
      %v6862 = vpack.c.b16 %v6853, %v6852
      %v6863 = vpack.c.b16 %v6855, %v6854
      %6872 = vmatprep.subr.bf16.mxu0 0
      %6873 = vmatpush1.bf16.msra.mxu0 %v6856
      %6874 = vmatprep.subr.bf16.mxu0 0
      %6875 = vmatpush1.bf16.msra.mxu0 %v6857
      %6876 = vmatprep.subr.bf16.mxu0 0
      %6877 = vmatpush1.bf16.msra.mxu0 %v6858
      %6878 = vmatprep.subr.bf16.mxu0 0
      %6879 = vmatpush1.bf16.msra.mxu0 %v6859
      %6880 = vmatprep.subr.bf16.mxu0 0
      %6881 = vmatpush1.bf16.msra.mxu0 %v6860
      %6882 = vmatprep.subr.bf16.mxu0 0
      %6883 = vmatpush1.bf16.msra.mxu0 %v6861
      %6884 = vmatprep.subr.bf16.mxu0 0
      %6885 = vmatpush1.bf16.msra.mxu0 %v6862
      %6886 = vmatprep.subr.bf16.mxu0 0
      %6887 = vmatpush1.bf16.msra.mxu0 %v6863
      %6888 = vmatprep.subr.bf16.mxu0 0
      %6889 = vmatpush1.bf16.msra.mxu0 0
      %6890 = vmatprep.subr.bf16.mxu0 0
      %6891 = vmatpush1.bf16.msra.mxu0 0
      %6892 = vmatprep.subr.bf16.mxu0 0
      %6893 = vmatpush1.bf16.msra.mxu0 0
      %6894 = vmatprep.subr.bf16.mxu0 0
      %6895 = vmatpush1.bf16.msra.mxu0 0
      %6896 = vmatprep.subr.bf16.mxu0 0
      %6897 = vmatpush1.bf16.msra.mxu0 0
      %6898 = vmatprep.subr.bf16.mxu0 0
      %6899 = vmatpush1.bf16.msra.mxu0 0
      %6900 = vmatprep.subr.bf16.mxu0 0
      %6901 = vmatpush1.bf16.msra.mxu0 0
      %6902 = vmatprep.subr.bf16.mxu0 0
      %6903 = vmatpush1.bf16.msra.mxu0 0
      %6904 = vmatprep.mubr.bf16.mxu0 0
      %6905 = vmatmul.mubr.bf16.gmra.mrb[0].mxu0 %v6820
      %v6906 = vpop.f32.mrb[0].mxu0
      %v6907 = vadd.f32 %v6810, %v6906
      %v6908 = vpop.f32.mrb[0].mxu0
      %v6909 = vpop.f32.mrb[0].mxu0
      %v6910 = vadd.f32 %v6810, %v6909
      %v6911 = vpop.f32.mrb[0].mxu0
      %6912 = vmatprep.mubr.bf16.mxu0 0
      %6913 = vmatmul.mubr.bf16.gmra.mrb[0].mxu0 %v6821
      %v6914 = vpop.f32.mrb[0].mxu0
      %v6915 = vadd.f32 %v6810, %v6914
      %v6916 = vpop.f32.mrb[0].mxu0
      %v6917 = vpop.f32.mrb[0].mxu0
      %v6918 = vadd.f32 %v6810, %v6917
      %v6919 = vpop.f32.mrb[0].mxu0
      %6920 = vdwg.mxu0
      %v6921 = vxor.u32 %v6907, 2147483648
      %v6922 = vxor.u32 %v6910, 2147483648
      %v6923 = vxor.u32 %v6915, 2147483648
      %v6924 = vxor.u32 %v6918, 2147483648
      %v6925 = vmul.f32 %v6921, 1.442695
      %v6926 = vpow.pop %v6925
      %v6927 = vmul.f32 %v6922, 1.442695
      %v6928 = vpow.pop %v6927
      %v6929 = vmul.f32 %v6923, 1.442695
      %v6930 = vpow.pop %v6929
      %v6931 = vmul.f32 %v6924, 1.442695
      %v6932 = vpow.pop %v6931
      %v6933 = vadd.f32 %v6926, 1.0
      %v6934 = vadd.f32 %v6928, 1.0
      %v6935 = vadd.f32 %v6930, 1.0
      %v6936 = vadd.f32 %v6932, 1.0
      %v6937 = vrcp.pop %v6933
      %v6938 = vmul.f32 1.0, %v6937
      %v6939 = vrcp.pop %v6934
      %v6940 = vmul.f32 1.0, %v6939
      %v6941 = vrcp.pop %v6935
      %v6942 = vmul.f32 1.0, %v6941
      %v6943 = vrcp.pop %v6936
      %v6944 = vmul.f32 1.0, %v6943
      %6945 = vst [vmem:[%s440 - $0x2] sm:$0x3c] %v6938
      %6946 = vst [vmem:[%s440 + $0x2] sm:$0x3c] %v6940
      %6947 = vst [vmem:[%s440 + $0x6] sm:$0x3c] %v6942
      %6948 = vst [vmem:[%s440 + $0xa] sm:$0x3c] %v6944
      %p6949 = scmp.lt.s32.totalorder %s24, 1
      %s6950 = scalar_select %p6949, %s24, 1
      %s6951 = smul.addr %s6950, 4
      %s6952 = smul.addr %s6951, 4
      %s6953 = scalar_lea.vmem %s13, %s6952
      // Predicated region
      $region73: #{basic_fcn_forward.1} parent=71 // pred_check
        %p6954 = pneg %p320
      $region74: #{basic_fcn_forward.1} parent=71 // pred_check_branch
        %6956 = sbr.rel (%p6954) target = $region76
      $region75: #{basic_fcn_forward.1} parent=71 // pred_region
        _
      $region76: #{basic_fcn_forward.1} parent=71 // pred_fallthru
        _
    $region72: #{basic_fcn_forward.1} parent=5 // pred_fallthru
      _
    %p6957 = scmp.le.s32.totalorder 2, %s19
    // Predicated region
    $region77: #{basic_fcn_forward.1} parent=5 // pred_check
      %p6958 = pneg %p6957
    $region78: #{basic_fcn_forward.1} parent=5 // pred_check_branch
      %6960 = sbr.rel (%p6958) target = $region80
    $region79: #{basic_fcn_forward.1} parent=5 // pred_region
      %s6961 = ssub.s32 %s19, 2
      // Predicated region
      $region81: #{basic_fcn_forward.1} parent=79 // pred_check
        %p6962 = pneg %p326
      $region82: #{basic_fcn_forward.1} parent=79 // pred_check_branch
        %6964 = sbr.rel (%p6962) target = $region84
      $region83: #{basic_fcn_forward.1} parent=79 // pred_region
        %p6965 = scmp.lt.s32.totalorder %s25, 1
        %s6966 = scalar_select %p6965, %s25, 1
        %s6967 = smul.addr %s6966, 4
        %s6968 = smul.addr %s6967, 4
        %s6969 = scalar_lea.vmem %s13, %s6968
      $region84: #{basic_fcn_forward.1} parent=79 // pred_fallthru
        _
    $region80: #{basic_fcn_forward.1} parent=5 // pred_fallthru
      _
  $region6: #{basic_fcn_forward.1} parent=0 // loop_footer
    %s23 = sadd.s32 1, %s19
  $region7: #{basic_fcn_forward.1} parent=0 // loop_footer_branch
    %18 = sbr.rel target = $region3
  $region8: #{basic_fcn_forward.1} parent=0 // loop_exit
    _

</llo_original>
